<compile_context>
chip_gen: v7x
topology: tpu7x:2x2x1
jax: 0.10.0
libtpu: 0.0.40
codegen_flags: <defaults>
</compile_context>

<pallas_src>
import math

import jax
import jax.numpy as jnp
from jax.experimental import pallas as pl
from jax.experimental.pallas import tpu as pltpu

# ----------------------- small, module-consistent sizes -----------------------
NB, NLOC, NALL, NNEI = 2, 8, 12, 8
NG1, NG2, AX = 32, 16, 4            # g1_dim, g2_dim, axis_neuron
ND1, NH1 = 16, 2                    # attn1_hidden, attn1_nhead  (LocalAtten)
ND2, NH2 = 8, 2                     # attn2_hidden, attn2_nhead  (Atten2Map)
SHIFT = 20.0                        # attnw_shift
LN_EPS = 1e-5
G1_IN = NG1 + NG2 + NG2 * AX + NG1 * AX   # concat order: [g1, conv, grrg, drrd] = 240
INV_SQRT3 = 1.0 / math.sqrt(3.0)
BF16 = jnp.bfloat16


def _softmax(x):
    """Exact softmax (used both in-kernel and in the reference)."""
    m = jnp.max(x, axis=-1, keepdims=True)
    e = jnp.exp(x - m)
    return e / jnp.sum(e, axis=-1, keepdims=True)


# ================================ Pallas kernel ================================
def repformer_kernel(
    g1_ref, gg1_ref, g2_ref, h2t_ref, m_ref, sw_ref,
    w_ng2_ref, w_qkv2_ref, w_kv1_ref, w_ng1_ref, bias_ref,
    g1_out_ref, g2_out_ref,
):
    B = g1_ref.shape[0]            # atoms in this block (nb*nloc tile)
    BN = g2_ref.shape[0]           # B * nnei
    nnei = m_ref.shape[1]
    inv_nnei = 1.0 / nnei

    # ---------------- loads ----------------
    g1 = g1_ref[...]                          # (B, NG1) f32
    g1_bf = g1.astype(BF16)
    gg1_bf = gg1_ref[...]                     # (BN, NG1) bf16 (MXU operand)
    g2_bf = g2_ref[...]                       # (BN, NG2) bf16 (MXU operand)
    gg1f = gg1_bf.astype(jnp.float32)         # f32 for elementwise / reshapes
    g2f = g2_bf.astype(jnp.float32)
    h2t = h2t_ref[...]                        # (B, 3, nnei) f32
    m = m_ref[...]                            # (B, nnei)  1.0 real / 0.0 pad
    sw = sw_ref[...]                          # (B, nnei)

    # packed weight slabs, static tile-aligned row slices (all bf16)
    w_lin2 = w_ng2_ref[0:NG2, :]                                   # (16, 16)
    w_pg1g1g2 = w_ng2_ref[NG2:NG2 + NG1, :]                        # (32, 16)
    w_pg1g2 = w_ng2_ref[NG2 + NG1:NG2 + 2 * NG1, :]                # (32, 16)
    w_mh = w_ng2_ref[NG2 + 2 * NG1:NG2 + 2 * NG1 + NH2 * NG2, :]   # (32, 16) head-major
    w_qkv2 = w_qkv2_ref[...]                                       # (16, 2*NH2*ND2 + NH2*NG2)
    w_kv1 = w_kv1_ref[...]                                         # (32, NH1*(ND1+NG1))
    w_lin1 = w_ng1_ref[0:G1_IN, :]                                 # (240, 32)
    w_q1 = w_ng1_ref[G1_IN:G1_IN + NH1 * ND1, :]                   # (32, 32)
    w_la = w_ng1_ref[G1_IN + NH1 * ND1:G1_IN + NH1 * ND1 + NH1 * NG1, :]   # (64, 32)

    bias = bias_ref[...]                                           # (1, 128) f32
    b_lin2 = bias[:, 0:NG2]
    b_mh = bias[:, NG2:2 * NG2]
    lm_g = bias[:, 2 * NG2:3 * NG2]
    lm_b = bias[:, 3 * NG2:4 * NG2]
    b_lin1 = bias[:, 4 * NG2:4 * NG2 + NG1]
    b_la = bias[:, 4 * NG2 + NG1:4 * NG2 + 2 * NG1]

    # ---------------- hoisted masked/switched tensors ----------------
    msw = m * sw                              # (B, nnei)
    msw3 = msw[:, :, None]
    gg1_3d = gg1f.reshape(B, nnei, NG1)
    g2_3d = g2f.reshape(B, nnei, NG2)
    gg1m = gg1_3d * msw3                      # reused: g1g1-proj, drrd
    g2m = g2_3d * msw3                        # reused: grrg

    # ---------------- g2 update 1: linear2 + tanh ----------------
    g2_1 = jnp.tanh(jnp.dot(g2_bf, w_lin2, preferred_element_type=jnp.float32) + b_lin2)

    # ---------------- g2 update 2: (g1 * gg1) projection ----------------
    t = g1[:, None, :] * gg1m                                       # (B, nnei, NG1)
    g2_g1g1 = jnp.dot(t.reshape(BN, NG1).astype(BF16), w_pg1g1g2,
                      preferred_element_type=jnp.float32)           # (BN, NG2)

    # ---------------- g2 update 3: pair-pair attention ----------------
    h2c = [h2t[:, c, :] for c in range(3)]                          # 3 x (B, nnei)
    h2h2t = (h2c[0][:, :, None] * h2c[0][:, None, :]
             + h2c[1][:, :, None] * h2c[1][:, None, :]
             + h2c[2][:, :, None] * h2c[2][:, None, :]) * INV_SQRT3
    sww = sw[:, :, None] * sw[:, None, :]                           # pre-softmax smooth shift
    gate = (msw[:, :, None] * msw[:, None, :]) * h2h2t              # post-softmax gate (m*m==m)

    # fused Q/K/V projection for all attn2 heads: one MXU matmul, static lane slices
    qkv2 = jnp.dot(g2_bf, w_qkv2, preferred_element_type=jnp.float32)   # (BN, 64) f32
    off_k2 = NH2 * ND2
    off_v2 = 2 * NH2 * ND2

    ho_heads = []
    for h in range(NH2):                                            # unrolled over heads
        qh = qkv2[:, h * ND2:(h + 1) * ND2].reshape(B, nnei, ND2)
        kh = qkv2[:, off_k2 + h * ND2:off_k2 + (h + 1) * ND2].reshape(B, nnei, ND2)
        vh = qkv2[:, off_v2 + h * NG2:off_v2 + (h + 1) * NG2].reshape(B, nnei, NG2)
        s = jnp.einsum("bid,bjd->bij", qh.astype(BF16), kh.astype(BF16),
                       preferred_element_type=jnp.float32) * (1.0 / (ND2 ** 0.5))
        aw = (s + SHIFT) * sww - SHIFT                              # smooth shift
        aw = _softmax(aw) * gate
        ho = jnp.einsum("bij,bjd->bid", aw.astype(BF16), vh.astype(BF16),
                        preferred_element_type=jnp.float32)         # (B, nnei, NG2)
        ho_heads.append(ho.reshape(BN, NG2))
    # fused head_map: one K = NH2*NG2 dot on the lane-concatenated head outputs
    ho_cat = jnp.concatenate(ho_heads, axis=-1)                     # (BN, NH2*NG2)
    g2_2 = jnp.dot(ho_cat.astype(BF16), w_mh, preferred_element_type=jnp.float32) + b_mh
    mu = jnp.mean(g2_2, axis=-1, keepdims=True)
    var = jnp.mean((g2_2 - mu) ** 2, axis=-1, keepdims=True)
    g2_2 = (g2_2 - mu) * jax.lax.rsqrt(var + LN_EPS) * lm_g + lm_b

    # res_avg over [g2, linear2, g1g1-proj, attn]  ->  / sqrt(4)
    g2_new = (g2f + g2_1 + g2_g1g1 + g2_2) * 0.5                    # (BN, NG2)
    # lane-dense packed store (B, nnei*NG2); same flat order as (BN, NG2)
    g2_new3 = g2_new.reshape(B, nnei, NG2)
    g2_out_ref[...] = jnp.concatenate([g2_new3[:, n, :] for n in range(nnei)], axis=-1)

    # ---------------- g1 update: conv ----------------
    gg1p = jnp.dot(gg1_bf, w_pg1g2,
                   preferred_element_type=jnp.float32).reshape(B, nnei, NG2) * msw3
    g1_conv = jnp.sum(g2_3d * gg1p, axis=1) * inv_nnei              # (B, NG2)

    # ---------------- g1 update: grrg / drrd ----------------
    # nnei contraction on the MXU (batched 'bij,bjd->bid'-class einsum)
    h2t_bf = h2t.astype(BF16)
    h2g2 = jnp.einsum("bcn,bng->bcg", h2t_bf, g2m.astype(BF16),
                      preferred_element_type=jnp.float32) * inv_nnei      # (B, 3, NG2)
    h2g1 = jnp.einsum("bcn,bng->bcg", h2t_bf, gg1m.astype(BF16),
                      preferred_element_type=jnp.float32) * inv_nnei      # (B, 3, NG1)
    hg2 = [h2g2[:, c, :] for c in range(3)]
    hg1 = [h2g1[:, c, :] for c in range(3)]
    third = 1.0 / 3.0
    grrg = [(hg2[0][:, a:a + 1] * hg2[0] + hg2[1][:, a:a + 1] * hg2[1]
             + hg2[2][:, a:a + 1] * hg2[2]) * third for a in range(AX)]   # AX x (B, NG2)
    drrd = [(hg1[0][:, a:a + 1] * hg1[0] + hg1[1][:, a:a + 1] * hg1[1]
             + hg1[2][:, a:a + 1] * hg1[2]) * third for a in range(AX)]   # AX x (B, NG1)

    # single K=240 dot for linear1 (lane concat of resident pieces is cheap)
    mlp_in = jnp.concatenate([g1, g1_conv] + grrg + drrd, axis=-1)        # (B, G1_IN)
    g1_1 = jnp.tanh(jnp.dot(mlp_in.astype(BF16), w_lin1,
                            preferred_element_type=jnp.float32) + b_lin1)

    # ---------------- g1 update: local attention ----------------
    q_all = jnp.dot(g1_bf, w_q1, preferred_element_type=jnp.float32)      # (B, NH1*ND1)
    kv_all = jnp.dot(gg1_bf, w_kv1, preferred_element_type=jnp.float32)   # (BN, NH1*(ND1+NG1))
    off_v1 = NH1 * ND1

    ga_heads = []
    for h in range(NH1):                                                  # unrolled over heads
        qh = q_all[:, h * ND1:(h + 1) * ND1]                              # (B, ND1)
        kh = kv_all[:, h * ND1:(h + 1) * ND1].reshape(B, nnei, ND1)
        vh = kv_all[:, off_v1 + h * NG1:off_v1 + (h + 1) * NG1].reshape(B, nnei, NG1)
        aw = jnp.sum(qh[:, None, :] * kh, axis=-1) * (1.0 / (ND1 ** 0.5)) # (B, nnei)
        aw = (aw + SHIFT) * sw - SHIFT
        aw = _softmax(aw) * msw
        ga_heads.append(jnp.sum(aw[:, :, None] * vh, axis=1))             # (B, NG1)
    ga_cat = jnp.concatenate(ga_heads, axis=-1)                           # (B, NH1*NG1)
    g1_att = jnp.dot(ga_cat.astype(BF16), w_la, preferred_element_type=jnp.float32) + b_la

    # res_avg over [g1, linear1, attn]  ->  / sqrt(3)
    g1_out_ref[...] = (g1 + g1_1 + g1_att) * INV_SQRT3


# ================================ wrapper ================================
def repformer_pallas(g1, gg1, g2, h2, maskf, sw, kweights, b_tile=8):
    nb, nloc, nnei = maskf.shape
    B, BN = nb * nloc, nb * nloc * nnei
    bt = min(b_tile, B)
    assert B % bt == 0 and bt % 8 == 0, "fused-batch tile must divide B and be sublane-aligned"

    # big BN-row tensors are cast to bf16 wrapper-side (halved HBM traffic);
    # g1 / h2 / masks stay f32 (VPU math). All reshapes here are metadata-only.
    data = [
        g1.reshape(B, NG1).astype(jnp.float32),
        gg1.reshape(BN, NG1).astype(BF16),
        g2.reshape(BN, NG2).astype(BF16),
        jnp.transpose(h2.reshape(B, nnei, 3), (0, 2, 1)),   # (B, 3, nnei) for MXU einsums
        maskf.reshape(B, nnei).astype(jnp.float32),
        sw.reshape(B, nnei).astype(jnp.float32),
    ]
    data_specs = [
        pl.BlockSpec((bt, NG1), lambda i: (i, 0)),
        pl.BlockSpec((bt * nnei, NG1), lambda i: (i, 0)),
        pl.BlockSpec((bt * nnei, NG2), lambda i: (i, 0)),
        pl.BlockSpec((bt, 3, nnei), lambda i: (i, 0, 0)),
        pl.BlockSpec((bt, nnei), lambda i: (i, 0)),
        pl.BlockSpec((bt, nnei), lambda i: (i, 0)),
    ]
    w_specs = [pl.BlockSpec(w.shape, (lambda i, _n=w.ndim: (0,) * _n)) for w in kweights]

    out_shape = (
        jax.ShapeDtypeStruct((B, NG1), jnp.float32),
        jax.ShapeDtypeStruct((B, nnei * NG2), jnp.float32),   # lane-dense packed g2
    )
    out_specs = (
        pl.BlockSpec((bt, NG1), lambda i: (i, 0)),
        pl.BlockSpec((bt, nnei * NG2), lambda i: (i, 0)),
    )
    fn = pl.pallas_call(
        repformer_kernel,
        out_shape=out_shape,
        grid=(B // bt,),
        in_specs=data_specs + w_specs,
        out_specs=out_specs,
        compiler_params=pltpu.CompilerParams(
            dimension_semantics=("parallel",),
            vmem_limit_bytes=64 * 1024 * 1024,
        ),
    )
    g1_new, g2_new = fn(*data, *kweights)
    # h2 passes through unchanged (update list of length 1) — never touches the kernel.
    return (g1_new.reshape(nb, nloc, NG1),
            g2_new.reshape(nb, nloc, nnei, NG2),
            h2)


# ======================= parameters (deterministic, synthetic) =======================
def init_params(key):
    ks = jax.random.split(key, 14)
    s = 0.1

    def rnd(k, shape):
        return jax.random.normal(k, shape, jnp.float32) * s

    p = {}
    p["w_lin2"] = rnd(ks[0], (NG2, NG2)); p["b_lin2"] = rnd(ks[1], (NG2,))
    p["w_pg1g1g2"] = rnd(ks[2], (NG1, NG2))
    p["w_qk"] = rnd(ks[3], (NG2, ND2 * 2 * NH2))                 # Atten2Map.mapqk
    p["w_v"] = rnd(ks[4], (NG2, NG2 * NH2))                      # Atten2MultiHeadApply.mapv
    p["w_mh"] = rnd(ks[5], (NG2 * NH2, NG2)); p["b_mh"] = rnd(ks[6], (NG2,))
    p["lm_g"] = jnp.ones((NG2,), jnp.float32)                    # LayerNorm affine
    p["lm_b"] = jnp.zeros((NG2,), jnp.float32)
    p["w_pg1g2"] = rnd(ks[7], (NG1, NG2))
    p["w_lin1"] = rnd(ks[8], (G1_IN, NG1)); p["b_lin1"] = rnd(ks[9], (NG1,))
    p["w_q"] = rnd(ks[10], (NG1, ND1 * NH1))                     # LocalAtten.mapq
    p["w_kv"] = rnd(ks[11], (NG1, (ND1 + NG1) * NH1))            # LocalAtten.mapkv
    p["w_la"] = rnd(ks[12], (NG1 * NH1, NG1)); p["b_la"] = rnd(ks[13], (NG1,))
    return p


def make_kernel_weights(p):
    """Repack PyTorch-layout weights into a few bf16 slabs + one f32 bias slab."""
    # attn2: fused [Q heads | K heads | V heads] columns (head-major)
    wqk3 = p["w_qk"].reshape(NG2, ND2, 2 * NH2)
    wv3 = p["w_v"].reshape(NG2, NG2, NH2)
    w_qkv2 = jnp.concatenate(
        [wqk3[:, :, h] for h in range(NH2)]
        + [wqk3[:, :, NH2 + h] for h in range(NH2)]
        + [wv3[:, :, h] for h in range(NH2)], axis=1)            # (NG2, 2*NH2*ND2 + NH2*NG2)
    # attn2 head_map rows reordered head-major for the fused dot
    w_mh_hm = jnp.transpose(p["w_mh"].reshape(NG2, NH2, NG2), (1, 0, 2)).reshape(NH2 * NG2, NG2)

    # local attention: fused Q and fused [K heads | V heads]
    wq3 = p["w_q"].reshape(NG1, ND1, NH1)
    w_q1 = jnp.concatenate([wq3[:, :, h] for h in range(NH1)], axis=1)     # (NG1, NH1*ND1)
    wkv3 = p["w_kv"].reshape(NG1, ND1 + NG1, NH1)
    w_kv1 = jnp.concatenate([wkv3[:, :ND1, h] for h in range(NH1)]
                            + [wkv3[:, ND1:, h] for h in range(NH1)], axis=1)  # (NG1, NH1*(ND1+NG1))
    w_la_flat = p["w_la"]                                                  # already head-major rows

    # slab with NG2-wide columns: [linear2 | proj_g1g1g2 | proj_g1g2 | attn2 head_map]
    w_ng2 = jnp.concatenate([p["w_lin2"], p["w_pg1g1g2"], p["w_pg1g2"], w_mh_hm], axis=0)
    # slab with NG1-wide columns: [linear1 (240 rows, order [g1|conv|grrg|drrd]) | mapq | loc head_map]
    w_ng1 = jnp.concatenate([p["w_lin1"], w_q1, w_la_flat], axis=0)
    # single lane-dense bias slab (f32)
    bias = jnp.concatenate([p["b_lin2"], p["b_mh"], p["lm_g"], p["lm_b"],
                            p["b_lin1"], p["b_la"]]).reshape(1, 4 * NG2 + 2 * NG1)

    return [w_ng2.astype(BF16), w_qkv2.astype(BF16), w_kv1.astype(BF16),
            w_ng1.astype(BF16), bias.astype(jnp.float32)]


# ======================= plain-JAX reference (mirrors PyTorch) =======================
def make_nei_g1(g1_ext, nlist):
    nb, nloc, nnei = nlist.shape
    ng1 = g1_ext.shape[-1]
    idx = jnp.broadcast_to(nlist.reshape(nb, nloc * nnei)[:, :, None],
                           (nb, nloc * nnei, ng1))
    return jnp.take_along_axis(g1_ext, idx, axis=1).reshape(nb, nloc, nnei, ng1)


def repformer_ref(p, g1_ext, g2, h2, nlist, nlist_mask, sw):
    nb, nloc, nnei, _ = g2.shape
    g1 = g1_ext[:, :nloc, :]
    mask = nlist_mask.astype(jnp.float32)
    gg1 = make_nei_g1(g1_ext, nlist)

    g2_1 = jnp.tanh(g2 @ p["w_lin2"] + p["b_lin2"])

    t = g1[:, :, None, :] * gg1
    t = t * mask[..., None] * sw[..., None]
    g2_g1g1 = t @ p["w_pg1g1g2"]

    g2qk = (g2 @ p["w_qk"]).reshape(nb, nloc, nnei, ND2, NH2 * 2)
    g2qk = jnp.transpose(g2qk, (0, 1, 4, 2, 3))
    g2q, g2k = g2qk[:, :, :NH2], g2qk[:, :, NH2:]
    attnw = jnp.matmul(g2q, jnp.swapaxes(g2k, -1, -2)) / (ND2 ** 0.5)
    attnw = (attnw + SHIFT) * sw[:, :, None, :, None] * sw[:, :, None, None, :] - SHIFT
    attnw = _softmax(attnw)
    attnw = attnw * mask[:, :, None, None, :]
    attnw = attnw * mask[:, :, None, :, None]
    attnw = attnw * sw[:, :, None, :, None] * sw[:, :, None, None, :]
    h2h2t = jnp.matmul(h2, jnp.swapaxes(h2, -1, -2)) / jnp.sqrt(3.0)
    AA = attnw * h2h2t[:, :, None, :, :]

    g2v = (g2 @ p["w_v"]).reshape(nb, nloc, nnei, NG2, NH2)
    g2v = jnp.transpose(g2v, (0, 1, 4, 2, 3))
    ret = jnp.matmul(AA, g2v)
    ret = jnp.transpose(ret, (0, 1, 3, 4, 2)).reshape(nb, nloc, nnei, NG2 * NH2)
    g2_2 = ret @ p["w_mh"] + p["b_mh"]
    mu = jnp.mean(g2_2, axis=-1, keepdims=True)
    var = jnp.mean((g2_2 - mu) ** 2, axis=-1, keepdims=True)
    g2_2 = (g2_2 - mu) / jnp.sqrt(var + LN_EPS) * p["lm_g"] + p["lm_b"]

    g2_new = (g2 + g2_1 + g2_g1g1 + g2_2) / math.sqrt(4.0)

    gg1p = gg1 @ p["w_pg1g2"]
    gg1p = gg1p * mask[..., None] * sw[..., None]
    g1_conv = jnp.sum(g2 * gg1p, axis=2) / nnei

    def cal_grrg(gx):
        gxm = gx * mask[..., None] * sw[..., None]
        h2g2 = jnp.matmul(jnp.swapaxes(h2, -1, -2), gxm) / nnei
        h2g2m = h2g2[..., :AX]
        out = jnp.matmul(jnp.swapaxes(h2g2m, -1, -2), h2g2) / 3.0
        return out.reshape(nb, nloc, AX * gx.shape[-1])

    g1_grrg = cal_grrg(g2)
    g1_drrd = cal_grrg(gg1)

    cat = jnp.concatenate([g1, g1_conv, g1_grrg, g1_drrd], axis=-1)
    g1_1 = jnp.tanh(cat @ p["w_lin1"] + p["b_lin1"])

    g1q = (g1 @ p["w_q"]).reshape(nb, nloc, ND1, NH1)
    g1q = jnp.transpose(g1q, (0, 1, 3, 2))
    gg1kv = (gg1 @ p["w_kv"]).reshape(nb, nloc, nnei, ND1 + NG1, NH1)
    gg1kv = jnp.transpose(gg1kv, (0, 1, 4, 2, 3))
    gg1k, gg1v = gg1kv[..., :ND1], gg1kv[..., ND1:]
    aw = jnp.matmul(g1q[:, :, :, None, :], jnp.swapaxes(gg1k, -1, -2)) / (ND1 ** 0.5)
    aw = aw[..., 0, :]
    aw = (aw + SHIFT) * sw[:, :, None, :] - SHIFT
    aw = _softmax(aw)
    aw = aw * mask[:, :, None, :]
    aw = aw * sw[:, :, None, :]
    ret1 = jnp.matmul(aw[:, :, :, None, :], gg1v)[..., 0, :]
    ret1 = ret1.reshape(nb, nloc, NH1 * NG1)
    g1_att = ret1 @ p["w_la"] + p["b_la"]

    g1_new = (g1 + g1_1 + g1_att) / math.sqrt(3.0)
    return g1_new, g2_new, h2


# ==================================== main ====================================
if __name__ == "__main__":
    key = jax.random.PRNGKey(0)
    kp, kd = jax.random.split(key)
    p = init_params(kp)
    kws = make_kernel_weights(p)

    ks = jax.random.split(kd, 6)
    g1_ext = jax.random.normal(ks[0], (NB, NALL, NG1), jnp.float32) * 0.5
    g2 = jax.random.normal(ks[1], (NB, NLOC, NNEI, NG2), jnp.float32) * 0.5
    h2 = jax.random.normal(ks[2], (NB, NLOC, NNEI, 3), jnp.float32)
    nlist = jax.random.randint(ks[3], (NB, NLOC, NNEI), 0, NALL)
    nlist_mask = jax.random.uniform(ks[4], (NB, NLOC, NNEI)) > 0.25
    nlist = jnp.where(nlist_mask, nlist, 0)
    sw = jax.random.uniform(ks[5], (NB, NLOC, NNEI)) * nlist_mask.astype(jnp.float32)

    # glue outside the kernel: local-atom slice + neighbor gather (torch.gather)
    g1 = g1_ext[:, :NLOC, :]
    gg1 = make_nei_g1(g1_ext, nlist)
    maskf = nlist_mask.astype(jnp.float32)

    g1_new, g2_new, h2_new = repformer_pallas(g1, gg1, g2, h2, maskf, sw, kws)
    jax.block_until_ready((g1_new, g2_new, h2_new))

    # verify against the plain-JAX reference at highest matmul precision (golden is
    # f32-accurate; the kernel runs single-pass bf16 MXU, hence the looser tolerance).
    with jax.default_matmul_precision("highest"):
        r1, r2, r3 = repformer_ref(p, g1_ext, g2, h2, nlist, nlist_mask, sw)
        jax.block_until_ready((r1, r2, r3))

    for name, got, want in (("g1", g1_new, r1), ("g2", g2_new, r2), ("h2", h2_new, r3)):
        err = float(jnp.max(jnp.abs(got - want)))
        if not (err < 5e-2):
            raise AssertionError(f"{name} mismatch vs reference: max abs err = {err}")

    print("KERNEL_OK")
</pallas_src>

<mosaic_0001>
module attributes {stable_mosaic.version = 11 : i64} {
  func.func @repformer_kernel(%arg0: i32, %arg1: memref<8x32xf32, #tpu.memory_space<vmem>>, %arg2: memref<64x32xbf16, #tpu.memory_space<vmem>>, %arg3: memref<64x16xbf16, #tpu.memory_space<vmem>>, %arg4: memref<8x3x8xf32, #tpu.memory_space<vmem>>, %arg5: memref<8x8xf32, #tpu.memory_space<vmem>>, %arg6: memref<8x8xf32, #tpu.memory_space<vmem>>, %arg7: memref<112x16xbf16, #tpu.memory_space<vmem>>, %arg8: memref<16x64xbf16, #tpu.memory_space<vmem>>, %arg9: memref<32x96xbf16, #tpu.memory_space<vmem>>, %arg10: memref<336x32xbf16, #tpu.memory_space<vmem>>, %arg11: memref<1x128xf32, #tpu.memory_space<vmem>>, %arg12: memref<8x32xf32, #tpu.memory_space<vmem>>, %arg13: memref<8x128xf32, #tpu.memory_space<vmem>>) attributes {dimension_semantics = [#tpu.dimension_semantics<parallel>], iteration_bounds = array<i64: 2>, scalar_prefetch = 0 : i64, scratch_operands = 0 : i64, tpu.core_type = #tpu.core_type<tc>, window_params = [{transform_indices = @transform_0, window_bounds = array<i64: 8, 32>}, {transform_indices = @transform_1, window_bounds = array<i64: 64, 32>}, {transform_indices = @transform_2, window_bounds = array<i64: 64, 16>}, {transform_indices = @transform_3, window_bounds = array<i64: 8, 3, 8>}, {transform_indices = @transform_4, window_bounds = array<i64: 8, 8>}, {transform_indices = @transform_5, window_bounds = array<i64: 8, 8>}, {pipeline_mode = #tpu.pipeline_mode<synchronous>, transform_indices = @transform_6, window_bounds = array<i64: 112, 16>}, {pipeline_mode = #tpu.pipeline_mode<synchronous>, transform_indices = @transform_7, window_bounds = array<i64: 16, 64>}, {pipeline_mode = #tpu.pipeline_mode<synchronous>, transform_indices = @transform_8, window_bounds = array<i64: 32, 96>}, {pipeline_mode = #tpu.pipeline_mode<synchronous>, transform_indices = @transform_9, window_bounds = array<i64: 336, 32>}, {pipeline_mode = #tpu.pipeline_mode<synchronous>, transform_indices = @transform_10, window_bounds = array<i64: 1, 128>}, {transform_indices = @transform_11, window_bounds = array<i64: 8, 32>}, {transform_indices = @transform_12, window_bounds = array<i64: 8, 128>}]} {
    %c0 = arith.constant 0 : index
    %c0_0 = arith.constant 0 : index
    %0 = vector.load %arg1[%c0, %c0_0] : memref<8x32xf32, #tpu.memory_space<vmem>>, vector<8x32xf32>
    %1 = arith.truncf %0 : vector<8x32xf32> to vector<8x32xbf16>
    %c0_1 = arith.constant 0 : index
    %c0_2 = arith.constant 0 : index
    %2 = vector.load %arg2[%c0_1, %c0_2] : memref<64x32xbf16, #tpu.memory_space<vmem>>, vector<64x32xbf16>
    %c0_3 = arith.constant 0 : index
    %c0_4 = arith.constant 0 : index
    %3 = vector.load %arg3[%c0_3, %c0_4] : memref<64x16xbf16, #tpu.memory_space<vmem>>, vector<64x16xbf16>
    %4 = arith.extf %2 : vector<64x32xbf16> to vector<64x32xf32>
    %5 = arith.extf %3 : vector<64x16xbf16> to vector<64x16xf32>
    %c0_5 = arith.constant 0 : index
    %c0_6 = arith.constant 0 : index
    %c0_7 = arith.constant 0 : index
    %6 = vector.load %arg4[%c0_5, %c0_6, %c0_7] : memref<8x3x8xf32, #tpu.memory_space<vmem>>, vector<8x3x8xf32>
    %c0_8 = arith.constant 0 : index
    %c0_9 = arith.constant 0 : index
    %7 = vector.load %arg5[%c0_8, %c0_9] : memref<8x8xf32, #tpu.memory_space<vmem>>, vector<8x8xf32>
    %c0_10 = arith.constant 0 : index
    %c0_11 = arith.constant 0 : index
    %8 = vector.load %arg6[%c0_10, %c0_11] : memref<8x8xf32, #tpu.memory_space<vmem>>, vector<8x8xf32>
    %c0_12 = arith.constant 0 : index
    %c0_13 = arith.constant 0 : index
    %9 = vector.load %arg7[%c0_12, %c0_13] : memref<112x16xbf16, #tpu.memory_space<vmem>>, vector<16x16xbf16>
    %c16 = arith.constant 16 : index
    %c0_14 = arith.constant 0 : index
    %10 = vector.load %arg7[%c16, %c0_14] : memref<112x16xbf16, #tpu.memory_space<vmem>>, vector<32x16xbf16>
    %c48 = arith.constant 48 : index
    %c0_15 = arith.constant 0 : index
    %11 = vector.load %arg7[%c48, %c0_15] : memref<112x16xbf16, #tpu.memory_space<vmem>>, vector<32x16xbf16>
    %c80 = arith.constant 80 : index
    %c0_16 = arith.constant 0 : index
    %12 = vector.load %arg7[%c80, %c0_16] : memref<112x16xbf16, #tpu.memory_space<vmem>>, vector<32x16xbf16>
    %c0_17 = arith.constant 0 : index
    %c0_18 = arith.constant 0 : index
    %13 = vector.load %arg8[%c0_17, %c0_18] : memref<16x64xbf16, #tpu.memory_space<vmem>>, vector<16x64xbf16>
    %c0_19 = arith.constant 0 : index
    %c0_20 = arith.constant 0 : index
    %14 = vector.load %arg9[%c0_19, %c0_20] : memref<32x96xbf16, #tpu.memory_space<vmem>>, vector<32x96xbf16>
    %c0_21 = arith.constant 0 : index
    %c0_22 = arith.constant 0 : index
    %15 = vector.load %arg10[%c0_21, %c0_22] : memref<336x32xbf16, #tpu.memory_space<vmem>>, vector<240x32xbf16>
    %c240 = arith.constant 240 : index
    %c0_23 = arith.constant 0 : index
    %16 = vector.load %arg10[%c240, %c0_23] : memref<336x32xbf16, #tpu.memory_space<vmem>>, vector<32x32xbf16>
    %c272 = arith.constant 272 : index
    %c0_24 = arith.constant 0 : index
    %17 = vector.load %arg10[%c272, %c0_24] : memref<336x32xbf16, #tpu.memory_space<vmem>>, vector<64x32xbf16>
    %c0_25 = arith.constant 0 : index
    %c0_26 = arith.constant 0 : index
    %18 = vector.load %arg11[%c0_25, %c0_26] : memref<1x128xf32, #tpu.memory_space<vmem>>, vector<1x128xf32>
    %19 = vector.extract_strided_slice %18 {offsets = [0, 0], sizes = [1, 16], strides = [1, 1]} : vector<1x128xf32> to vector<1x16xf32>
    %20 = vector.extract_strided_slice %18 {offsets = [0, 16], sizes = [1, 16], strides = [1, 1]} : vector<1x128xf32> to vector<1x16xf32>
    %21 = vector.extract_strided_slice %18 {offsets = [0, 32], sizes = [1, 16], strides = [1, 1]} : vector<1x128xf32> to vector<1x16xf32>
    %22 = vector.extract_strided_slice %18 {offsets = [0, 48], sizes = [1, 16], strides = [1, 1]} : vector<1x128xf32> to vector<1x16xf32>
    %23 = vector.extract_strided_slice %18 {offsets = [0, 64], sizes = [1, 32], strides = [1, 1]} : vector<1x128xf32> to vector<1x32xf32>
    %24 = vector.extract_strided_slice %18 {offsets = [0, 96], sizes = [1, 32], strides = [1, 1]} : vector<1x128xf32> to vector<1x32xf32>
    %25 = arith.mulf %7, %8 : vector<8x8xf32>
    %26 = vector.shape_cast %25 : vector<8x8xf32> to vector<8x8x1xf32>
    %27 = vector.shape_cast %4 : vector<64x32xf32> to vector<8x8x32xf32>
    %28 = vector.shape_cast %5 : vector<64x16xf32> to vector<8x8x16xf32>
    %29 = vector.broadcast %26 : vector<8x8x1xf32> to vector<8x8x32xf32>
    %30 = arith.mulf %27, %29 : vector<8x8x32xf32>
    %31 = vector.broadcast %26 : vector<8x8x1xf32> to vector<8x8x16xf32>
    %32 = arith.mulf %28, %31 : vector<8x8x16xf32>
    %cst = arith.constant dense<0.000000e+00> : vector<64x16xf32>
    %33 = tpu.matmul %3, %9, %cst {dimension_numbers = #tpu.dot_dimension_numbers<[1], [0], [0], [1], [0, 0, 1, 1], [], []>} : vector<64x16xbf16>, vector<16x16xbf16>, vector<64x16xf32> -> vector<64x16xf32>
    %34 = vector.broadcast %19 : vector<1x16xf32> to vector<64x16xf32>
    %35 = arith.addf %33, %34 : vector<64x16xf32>
    %36 = math.tanh %35 : vector<64x16xf32>
    %37 = vector.shape_cast %0 : vector<8x32xf32> to vector<8x1x32xf32>
    %38 = vector.broadcast %37 : vector<8x1x32xf32> to vector<8x8x32xf32>
    %39 = arith.mulf %38, %30 : vector<8x8x32xf32>
    %40 = vector.shape_cast %39 : vector<8x8x32xf32> to vector<64x32xf32>
    %41 = arith.truncf %40 : vector<64x32xf32> to vector<64x32xbf16>
    %cst_27 = arith.constant dense<0.000000e+00> : vector<64x16xf32>
    %42 = tpu.matmul %41, %10, %cst_27 {dimension_numbers = #tpu.dot_dimension_numbers<[1], [0], [0], [1], [0, 0, 1, 1], [], []>} : vector<64x32xbf16>, vector<32x16xbf16>, vector<64x16xf32> -> vector<64x16xf32>
    %43 = vector.extract_strided_slice %6 {offsets = [0, 0, 0], sizes = [8, 1, 8], strides = [1, 1, 1]} : vector<8x3x8xf32> to vector<8x1x8xf32>
    %44 = vector.shape_cast %43 : vector<8x1x8xf32> to vector<8x8xf32>
    %45 = vector.extract_strided_slice %6 {offsets = [0, 1, 0], sizes = [8, 1, 8], strides = [1, 1, 1]} : vector<8x3x8xf32> to vector<8x1x8xf32>
    %46 = vector.shape_cast %45 : vector<8x1x8xf32> to vector<8x8xf32>
    %47 = vector.extract_strided_slice %6 {offsets = [0, 2, 0], sizes = [8, 1, 8], strides = [1, 1, 1]} : vector<8x3x8xf32> to vector<8x1x8xf32>
    %48 = vector.shape_cast %47 : vector<8x1x8xf32> to vector<8x8xf32>
    %49 = vector.shape_cast %44 : vector<8x8xf32> to vector<8x8x1xf32>
    %50 = vector.shape_cast %44 : vector<8x8xf32> to vector<8x1x8xf32>
    %51 = vector.broadcast %49 : vector<8x8x1xf32> to vector<8x8x8xf32>
    %52 = vector.broadcast %50 : vector<8x1x8xf32> to vector<8x8x8xf32>
    %53 = arith.mulf %51, %52 : vector<8x8x8xf32>
    %54 = vector.shape_cast %46 : vector<8x8xf32> to vector<8x8x1xf32>
    %55 = vector.shape_cast %46 : vector<8x8xf32> to vector<8x1x8xf32>
    %56 = vector.broadcast %54 : vector<8x8x1xf32> to vector<8x8x8xf32>
    %57 = vector.broadcast %55 : vector<8x1x8xf32> to vector<8x8x8xf32>
    %58 = arith.mulf %56, %57 : vector<8x8x8xf32>
    %59 = arith.addf %53, %58 : vector<8x8x8xf32>
    %60 = vector.shape_cast %48 : vector<8x8xf32> to vector<8x8x1xf32>
    %61 = vector.shape_cast %48 : vector<8x8xf32> to vector<8x1x8xf32>
    %62 = vector.broadcast %60 : vector<8x8x1xf32> to vector<8x8x8xf32>
    %63 = vector.broadcast %61 : vector<8x1x8xf32> to vector<8x8x8xf32>
    %64 = arith.mulf %62, %63 : vector<8x8x8xf32>
    %65 = arith.addf %59, %64 : vector<8x8x8xf32>
    %cst_28 = arith.constant 0.577350259 : f32
    %66 = vector.broadcast %cst_28 : f32 to vector<8x8x8xf32>
    %67 = arith.mulf %65, %66 : vector<8x8x8xf32>
    %68 = vector.shape_cast %8 : vector<8x8xf32> to vector<8x8x1xf32>
    %69 = vector.shape_cast %8 : vector<8x8xf32> to vector<8x1x8xf32>
    %70 = vector.broadcast %68 : vector<8x8x1xf32> to vector<8x8x8xf32>
    %71 = vector.broadcast %69 : vector<8x1x8xf32> to vector<8x8x8xf32>
    %72 = arith.mulf %70, %71 : vector<8x8x8xf32>
    %73 = vector.shape_cast %25 : vector<8x8xf32> to vector<8x8x1xf32>
    %74 = vector.shape_cast %25 : vector<8x8xf32> to vector<8x1x8xf32>
    %75 = vector.broadcast %73 : vector<8x8x1xf32> to vector<8x8x8xf32>
    %76 = vector.broadcast %74 : vector<8x1x8xf32> to vector<8x8x8xf32>
    %77 = arith.mulf %75, %76 : vector<8x8x8xf32>
    %78 = arith.mulf %77, %67 : vector<8x8x8xf32>
    %cst_29 = arith.constant dense<0.000000e+00> : vector<64x64xf32>
    %79 = tpu.matmul %3, %13, %cst_29 {dimension_numbers = #tpu.dot_dimension_numbers<[1], [0], [0], [1], [0, 0, 1, 1], [], []>} : vector<64x16xbf16>, vector<16x64xbf16>, vector<64x64xf32> -> vector<64x64xf32>
    %80 = vector.extract_strided_slice %79 {offsets = [0, 0], sizes = [64, 8], strides = [1, 1]} : vector<64x64xf32> to vector<64x8xf32>
    %81 = vector.shape_cast %80 : vector<64x8xf32> to vector<8x8x8xf32>
    %82 = vector.extract_strided_slice %79 {offsets = [0, 16], sizes = [64, 8], strides = [1, 1]} : vector<64x64xf32> to vector<64x8xf32>
    %83 = vector.shape_cast %82 : vector<64x8xf32> to vector<8x8x8xf32>
    %84 = vector.extract_strided_slice %79 {offsets = [0, 32], sizes = [64, 16], strides = [1, 1]} : vector<64x64xf32> to vector<64x16xf32>
    %85 = vector.shape_cast %84 : vector<64x16xf32> to vector<8x8x16xf32>
    %86 = arith.truncf %81 : vector<8x8x8xf32> to vector<8x8x8xbf16>
    %87 = arith.truncf %83 : vector<8x8x8xf32> to vector<8x8x8xbf16>
    "tpu.trace_start"() <{level = 10 : i32, message = "bid,bjd->bij"}> : () -> ()
    %cst_30 = arith.constant dense<0.000000e+00> : vector<8x8x8xf32>
    %88 = tpu.matmul %86, %87, %cst_30 {dimension_numbers = #tpu.dot_dimension_numbers<[2], [2], [1], [1], [0, 0, 0, 1, 1, 1], [0], [0]>} : vector<8x8x8xbf16>, vector<8x8x8xbf16>, vector<8x8x8xf32> -> vector<8x8x8xf32>
    "tpu.trace_stop"() : () -> ()
    %cst_31 = arith.constant 0.353553385 : f32
    %89 = vector.broadcast %cst_31 : f32 to vector<8x8x8xf32>
    %90 = arith.mulf %88, %89 : vector<8x8x8xf32>
    %cst_32 = arith.constant 2.000000e+01 : f32
    %91 = vector.broadcast %cst_32 : f32 to vector<8x8x8xf32>
    %92 = arith.addf %90, %91 : vector<8x8x8xf32>
    %93 = arith.mulf %92, %72 : vector<8x8x8xf32>
    %cst_33 = arith.constant 2.000000e+01 : f32
    %94 = vector.broadcast %cst_33 : f32 to vector<8x8x8xf32>
    %95 = arith.subf %93, %94 : vector<8x8x8xf32>
    %cst_34 = arith.constant dense<0xFF800000> : vector<8x8xf32>
    %96 = vector.multi_reduction <maximumf>, %95, %cst_34 [2] : vector<8x8x8xf32> to vector<8x8xf32>
    %97 = vector.shape_cast %96 : vector<8x8xf32> to vector<8x8x1xf32>
    %98 = vector.broadcast %97 : vector<8x8x1xf32> to vector<8x8x8xf32>
    %99 = arith.subf %95, %98 : vector<8x8x8xf32>
    %100 = math.exp %99 : vector<8x8x8xf32>
    %cst_35 = arith.constant dense<0.000000e+00> : vector<8x8xf32>
    %101 = vector.multi_reduction <add>, %100, %cst_35 [2] : vector<8x8x8xf32> to vector<8x8xf32>
    %102 = vector.shape_cast %101 : vector<8x8xf32> to vector<8x8x1xf32>
    %103 = vector.broadcast %102 : vector<8x8x1xf32> to vector<8x8x8xf32>
    %104 = arith.divf %100, %103 : vector<8x8x8xf32>
    %105 = arith.mulf %104, %78 : vector<8x8x8xf32>
    %106 = arith.truncf %105 : vector<8x8x8xf32> to vector<8x8x8xbf16>
    %107 = arith.truncf %85 : vector<8x8x16xf32> to vector<8x8x16xbf16>
    "tpu.trace_start"() <{level = 10 : i32, message = "bij,bjd->bid"}> : () -> ()
    %cst_36 = arith.constant dense<0.000000e+00> : vector<8x8x16xf32>
    %108 = tpu.matmul %106, %107, %cst_36 {dimension_numbers = #tpu.dot_dimension_numbers<[2], [1], [1], [2], [0, 0, 0, 1, 1, 2], [0], [0]>} : vector<8x8x8xbf16>, vector<8x8x16xbf16>, vector<8x8x16xf32> -> vector<8x8x16xf32>
    "tpu.trace_stop"() : () -> ()
    %109 = vector.shape_cast %108 : vector<8x8x16xf32> to vector<64x16xf32>
    %110 = vector.extract_strided_slice %79 {offsets = [0, 8], sizes = [64, 8], strides = [1, 1]} : vector<64x64xf32> to vector<64x8xf32>
    %111 = vector.shape_cast %110 : vector<64x8xf32> to vector<8x8x8xf32>
    %112 = vector.extract_strided_slice %79 {offsets = [0, 24], sizes = [64, 8], strides = [1, 1]} : vector<64x64xf32> to vector<64x8xf32>
    %113 = vector.shape_cast %112 : vector<64x8xf32> to vector<8x8x8xf32>
    %114 = vector.extract_strided_slice %79 {offsets = [0, 48], sizes = [64, 16], strides = [1, 1]} : vector<64x64xf32> to vector<64x16xf32>
    %115 = vector.shape_cast %114 : vector<64x16xf32> to vector<8x8x16xf32>
    %116 = arith.truncf %111 : vector<8x8x8xf32> to vector<8x8x8xbf16>
    %117 = arith.truncf %113 : vector<8x8x8xf32> to vector<8x8x8xbf16>
    "tpu.trace_start"() <{level = 10 : i32, message = "bid,bjd->bij"}> : () -> ()
    %cst_37 = arith.constant dense<0.000000e+00> : vector<8x8x8xf32>
    %118 = tpu.matmul %116, %117, %cst_37 {dimension_numbers = #tpu.dot_dimension_numbers<[2], [2], [1], [1], [0, 0, 0, 1, 1, 1], [0], [0]>} : vector<8x8x8xbf16>, vector<8x8x8xbf16>, vector<8x8x8xf32> -> vector<8x8x8xf32>
    "tpu.trace_stop"() : () -> ()
    %cst_38 = arith.constant 0.353553385 : f32
    %119 = vector.broadcast %cst_38 : f32 to vector<8x8x8xf32>
    %120 = arith.mulf %118, %119 : vector<8x8x8xf32>
    %cst_39 = arith.constant 2.000000e+01 : f32
    %121 = vector.broadcast %cst_39 : f32 to vector<8x8x8xf32>
    %122 = arith.addf %120, %121 : vector<8x8x8xf32>
    %123 = arith.mulf %122, %72 : vector<8x8x8xf32>
    %cst_40 = arith.constant 2.000000e+01 : f32
    %124 = vector.broadcast %cst_40 : f32 to vector<8x8x8xf32>
    %125 = arith.subf %123, %124 : vector<8x8x8xf32>
    %cst_41 = arith.constant dense<0xFF800000> : vector<8x8xf32>
    %126 = vector.multi_reduction <maximumf>, %125, %cst_41 [2] : vector<8x8x8xf32> to vector<8x8xf32>
    %127 = vector.shape_cast %126 : vector<8x8xf32> to vector<8x8x1xf32>
    %128 = vector.broadcast %127 : vector<8x8x1xf32> to vector<8x8x8xf32>
    %129 = arith.subf %125, %128 : vector<8x8x8xf32>
    %130 = math.exp %129 : vector<8x8x8xf32>
    %cst_42 = arith.constant dense<0.000000e+00> : vector<8x8xf32>
    %131 = vector.multi_reduction <add>, %130, %cst_42 [2] : vector<8x8x8xf32> to vector<8x8xf32>
    %132 = vector.shape_cast %131 : vector<8x8xf32> to vector<8x8x1xf32>
    %133 = vector.broadcast %132 : vector<8x8x1xf32> to vector<8x8x8xf32>
    %134 = arith.divf %130, %133 : vector<8x8x8xf32>
    %135 = arith.mulf %134, %78 : vector<8x8x8xf32>
    %136 = arith.truncf %135 : vector<8x8x8xf32> to vector<8x8x8xbf16>
    %137 = arith.truncf %115 : vector<8x8x16xf32> to vector<8x8x16xbf16>
    "tpu.trace_start"() <{level = 10 : i32, message = "bij,bjd->bid"}> : () -> ()
    %cst_43 = arith.constant dense<0.000000e+00> : vector<8x8x16xf32>
    %138 = tpu.matmul %136, %137, %cst_43 {dimension_numbers = #tpu.dot_dimension_numbers<[2], [1], [1], [2], [0, 0, 0, 1, 1, 2], [0], [0]>} : vector<8x8x8xbf16>, vector<8x8x16xbf16>, vector<8x8x16xf32> -> vector<8x8x16xf32>
    "tpu.trace_stop"() : () -> ()
    %139 = vector.shape_cast %138 : vector<8x8x16xf32> to vector<64x16xf32>
    %140 = tpu.concatenate %109, %139 in 1 : vector<64x16xf32>, vector<64x16xf32> -> vector<64x32xf32>
    %141 = arith.truncf %140 : vector<64x32xf32> to vector<64x32xbf16>
    %cst_44 = arith.constant dense<0.000000e+00> : vector<64x16xf32>
    %142 = tpu.matmul %141, %12, %cst_44 {dimension_numbers = #tpu.dot_dimension_numbers<[1], [0], [0], [1], [0, 0, 1, 1], [], []>} : vector<64x32xbf16>, vector<32x16xbf16>, vector<64x16xf32> -> vector<64x16xf32>
    %143 = vector.broadcast %20 : vector<1x16xf32> to vector<64x16xf32>
    %144 = arith.addf %142, %143 : vector<64x16xf32>
    %cst_45 = arith.constant dense<0.000000e+00> : vector<64xf32>
    %145 = vector.multi_reduction <add>, %144, %cst_45 [1] : vector<64x16xf32> to vector<64xf32>
    %146 = vector.shape_cast %145 : vector<64xf32> to vector<64x1xf32>
    %cst_46 = arith.constant 1.600000e+01 : f32
    %147 = vector.broadcast %cst_46 : f32 to vector<64x1xf32>
    %148 = arith.divf %146, %147 : vector<64x1xf32>
    %149 = vector.broadcast %148 : vector<64x1xf32> to vector<64x16xf32>
    %150 = arith.subf %144, %149 : vector<64x16xf32>
    %151 = arith.mulf %150, %150 : vector<64x16xf32>
    %cst_47 = arith.constant dense<0.000000e+00> : vector<64xf32>
    %152 = vector.multi_reduction <add>, %151, %cst_47 [1] : vector<64x16xf32> to vector<64xf32>
    %153 = vector.shape_cast %152 : vector<64xf32> to vector<64x1xf32>
    %cst_48 = arith.constant 1.600000e+01 : f32
    %154 = vector.broadcast %cst_48 : f32 to vector<64x1xf32>
    %155 = arith.divf %153, %154 : vector<64x1xf32>
    %156 = vector.broadcast %148 : vector<64x1xf32> to vector<64x16xf32>
    %157 = arith.subf %144, %156 : vector<64x16xf32>
    %cst_49 = arith.constant 9.99999974E-6 : f32
    %158 = vector.broadcast %cst_49 : f32 to vector<64x1xf32>
    %159 = arith.addf %155, %158 : vector<64x1xf32>
    %160 = math.rsqrt %159 : vector<64x1xf32>
    %161 = vector.broadcast %160 : vector<64x1xf32> to vector<64x16xf32>
    %162 = arith.mulf %157, %161 : vector<64x16xf32>
    %163 = vector.broadcast %21 : vector<1x16xf32> to vector<64x16xf32>
    %164 = arith.mulf %162, %163 : vector<64x16xf32>
    %165 = vector.broadcast %22 : vector<1x16xf32> to vector<64x16xf32>
    %166 = arith.addf %164, %165 : vector<64x16xf32>
    %167 = arith.addf %5, %36 : vector<64x16xf32>
    %168 = arith.addf %167, %42 : vector<64x16xf32>
    %169 = arith.addf %168, %166 : vector<64x16xf32>
    %cst_50 = arith.constant 5.000000e-01 : f32
    %170 = vector.broadcast %cst_50 : f32 to vector<64x16xf32>
    %171 = arith.mulf %169, %170 : vector<64x16xf32>
    %172 = vector.shape_cast %171 : vector<64x16xf32> to vector<8x8x16xf32>
    %173 = vector.extract_strided_slice %172 {offsets = [0, 0, 0], sizes = [8, 1, 16], strides = [1, 1, 1]} : vector<8x8x16xf32> to vector<8x1x16xf32>
    %174 = vector.shape_cast %173 : vector<8x1x16xf32> to vector<8x16xf32>
    %175 = vector.extract_strided_slice %172 {offsets = [0, 1, 0], sizes = [8, 1, 16], strides = [1, 1, 1]} : vector<8x8x16xf32> to vector<8x1x16xf32>
    %176 = vector.shape_cast %175 : vector<8x1x16xf32> to vector<8x16xf32>
    %177 = vector.extract_strided_slice %172 {offsets = [0, 2, 0], sizes = [8, 1, 16], strides = [1, 1, 1]} : vector<8x8x16xf32> to vector<8x1x16xf32>
    %178 = vector.shape_cast %177 : vector<8x1x16xf32> to vector<8x16xf32>
    %179 = vector.extract_strided_slice %172 {offsets = [0, 3, 0], sizes = [8, 1, 16], strides = [1, 1, 1]} : vector<8x8x16xf32> to vector<8x1x16xf32>
    %180 = vector.shape_cast %179 : vector<8x1x16xf32> to vector<8x16xf32>
    %181 = vector.extract_strided_slice %172 {offsets = [0, 4, 0], sizes = [8, 1, 16], strides = [1, 1, 1]} : vector<8x8x16xf32> to vector<8x1x16xf32>
    %182 = vector.shape_cast %181 : vector<8x1x16xf32> to vector<8x16xf32>
    %183 = vector.extract_strided_slice %172 {offsets = [0, 5, 0], sizes = [8, 1, 16], strides = [1, 1, 1]} : vector<8x8x16xf32> to vector<8x1x16xf32>
    %184 = vector.shape_cast %183 : vector<8x1x16xf32> to vector<8x16xf32>
    %185 = vector.extract_strided_slice %172 {offsets = [0, 6, 0], sizes = [8, 1, 16], strides = [1, 1, 1]} : vector<8x8x16xf32> to vector<8x1x16xf32>
    %186 = vector.shape_cast %185 : vector<8x1x16xf32> to vector<8x16xf32>
    %187 = vector.extract_strided_slice %172 {offsets = [0, 7, 0], sizes = [8, 1, 16], strides = [1, 1, 1]} : vector<8x8x16xf32> to vector<8x1x16xf32>
    %188 = vector.shape_cast %187 : vector<8x1x16xf32> to vector<8x16xf32>
    %189 = tpu.concatenate %174, %176, %178, %180, %182, %184, %186, %188 in 1 : vector<8x16xf32>, vector<8x16xf32>, vector<8x16xf32>, vector<8x16xf32>, vector<8x16xf32>, vector<8x16xf32>, vector<8x16xf32>, vector<8x16xf32> -> vector<8x128xf32>
    %c0_51 = arith.constant 0 : index
    %c0_52 = arith.constant 0 : index
    %190 = vector.load %arg13[%c0_51, %c0_52] : memref<8x128xf32, #tpu.memory_space<vmem>>, vector<8x128xf32>
    tpu.vector_store %arg13[%c0_51, %c0_52], %189 {strides = array<i32>} : memref<8x128xf32, #tpu.memory_space<vmem>>, vector<8x128xf32>,
    %cst_53 = arith.constant dense<0.000000e+00> : vector<64x16xf32>
    %191 = tpu.matmul %2, %11, %cst_53 {dimension_numbers = #tpu.dot_dimension_numbers<[1], [0], [0], [1], [0, 0, 1, 1], [], []>} : vector<64x32xbf16>, vector<32x16xbf16>, vector<64x16xf32> -> vector<64x16xf32>
    %192 = vector.shape_cast %191 : vector<64x16xf32> to vector<8x8x16xf32>
    %193 = vector.broadcast %26 : vector<8x8x1xf32> to vector<8x8x16xf32>
    %194 = arith.mulf %192, %193 : vector<8x8x16xf32>
    %195 = arith.mulf %28, %194 : vector<8x8x16xf32>
    %cst_54 = arith.constant dense<0.000000e+00> : vector<8x16xf32>
    %196 = vector.multi_reduction <add>, %195, %cst_54 [1] : vector<8x8x16xf32> to vector<8x16xf32>
    %cst_55 = arith.constant 1.250000e-01 : f32
    %197 = vector.broadcast %cst_55 : f32 to vector<8x16xf32>
    %198 = arith.mulf %196, %197 : vector<8x16xf32>
    %199 = arith.truncf %6 : vector<8x3x8xf32> to vector<8x3x8xbf16>
    %200 = arith.truncf %32 : vector<8x8x16xf32> to vector<8x8x16xbf16>
    "tpu.trace_start"() <{level = 10 : i32, message = "bcn,bng->bcg"}> : () -> ()
    %cst_56 = arith.constant dense<0.000000e+00> : vector<8x3x16xf32>
    %201 = tpu.matmul %199, %200, %cst_56 {dimension_numbers = #tpu.dot_dimension_numbers<[2], [1], [1], [2], [0, 0, 0, 1, 1, 2], [0], [0]>} : vector<8x3x8xbf16>, vector<8x8x16xbf16>, vector<8x3x16xf32> -> vector<8x3x16xf32>
    "tpu.trace_stop"() : () -> ()
    %cst_57 = arith.constant 1.250000e-01 : f32
    %202 = vector.broadcast %cst_57 : f32 to vector<8x3x16xf32>
    %203 = arith.mulf %201, %202 : vector<8x3x16xf32>
    %204 = arith.truncf %30 : vector<8x8x32xf32> to vector<8x8x32xbf16>
    "tpu.trace_start"() <{level = 10 : i32, message = "bcn,bng->bcg"}> : () -> ()
    %cst_58 = arith.constant dense<0.000000e+00> : vector<8x3x32xf32>
    %205 = tpu.matmul %199, %204, %cst_58 {dimension_numbers = #tpu.dot_dimension_numbers<[2], [1], [1], [2], [0, 0, 0, 1, 1, 2], [0], [0]>} : vector<8x3x8xbf16>, vector<8x8x32xbf16>, vector<8x3x32xf32> -> vector<8x3x32xf32>
    "tpu.trace_stop"() : () -> ()
    %cst_59 = arith.constant 1.250000e-01 : f32
    %206 = vector.broadcast %cst_59 : f32 to vector<8x3x32xf32>
    %207 = arith.mulf %205, %206 : vector<8x3x32xf32>
    %208 = vector.extract_strided_slice %203 {offsets = [0, 0, 0], sizes = [8, 1, 16], strides = [1, 1, 1]} : vector<8x3x16xf32> to vector<8x1x16xf32>
    %209 = vector.shape_cast %208 : vector<8x1x16xf32> to vector<8x16xf32>
    %210 = vector.extract_strided_slice %203 {offsets = [0, 1, 0], sizes = [8, 1, 16], strides = [1, 1, 1]} : vector<8x3x16xf32> to vector<8x1x16xf32>
    %211 = vector.shape_cast %210 : vector<8x1x16xf32> to vector<8x16xf32>
    %212 = vector.extract_strided_slice %203 {offsets = [0, 2, 0], sizes = [8, 1, 16], strides = [1, 1, 1]} : vector<8x3x16xf32> to vector<8x1x16xf32>
    %213 = vector.shape_cast %212 : vector<8x1x16xf32> to vector<8x16xf32>
    %214 = vector.extract_strided_slice %207 {offsets = [0, 0, 0], sizes = [8, 1, 32], strides = [1, 1, 1]} : vector<8x3x32xf32> to vector<8x1x32xf32>
    %215 = vector.shape_cast %214 : vector<8x1x32xf32> to vector<8x32xf32>
    %216 = vector.extract_strided_slice %207 {offsets = [0, 1, 0], sizes = [8, 1, 32], strides = [1, 1, 1]} : vector<8x3x32xf32> to vector<8x1x32xf32>
    %217 = vector.shape_cast %216 : vector<8x1x32xf32> to vector<8x32xf32>
    %218 = vector.extract_strided_slice %207 {offsets = [0, 2, 0], sizes = [8, 1, 32], strides = [1, 1, 1]} : vector<8x3x32xf32> to vector<8x1x32xf32>
    %219 = vector.shape_cast %218 : vector<8x1x32xf32> to vector<8x32xf32>
    %220 = vector.extract_strided_slice %209 {offsets = [0, 0], sizes = [8, 1], strides = [1, 1]} : vector<8x16xf32> to vector<8x1xf32>
    %221 = vector.broadcast %220 : vector<8x1xf32> to vector<8x16xf32>
    %222 = arith.mulf %221, %209 : vector<8x16xf32>
    %223 = vector.extract_strided_slice %211 {offsets = [0, 0], sizes = [8, 1], strides = [1, 1]} : vector<8x16xf32> to vector<8x1xf32>
    %224 = vector.broadcast %223 : vector<8x1xf32> to vector<8x16xf32>
    %225 = arith.mulf %224, %211 : vector<8x16xf32>
    %226 = arith.addf %222, %225 : vector<8x16xf32>
    %227 = vector.extract_strided_slice %213 {offsets = [0, 0], sizes = [8, 1], strides = [1, 1]} : vector<8x16xf32> to vector<8x1xf32>
    %228 = vector.broadcast %227 : vector<8x1xf32> to vector<8x16xf32>
    %229 = arith.mulf %228, %213 : vector<8x16xf32>
    %230 = arith.addf %226, %229 : vector<8x16xf32>
    %cst_60 = arith.constant 0.333333343 : f32
    %231 = vector.broadcast %cst_60 : f32 to vector<8x16xf32>
    %232 = arith.mulf %230, %231 : vector<8x16xf32>
    %233 = vector.extract_strided_slice %209 {offsets = [0, 1], sizes = [8, 1], strides = [1, 1]} : vector<8x16xf32> to vector<8x1xf32>
    %234 = vector.broadcast %233 : vector<8x1xf32> to vector<8x16xf32>
    %235 = arith.mulf %234, %209 : vector<8x16xf32>
    %236 = vector.extract_strided_slice %211 {offsets = [0, 1], sizes = [8, 1], strides = [1, 1]} : vector<8x16xf32> to vector<8x1xf32>
    %237 = vector.broadcast %236 : vector<8x1xf32> to vector<8x16xf32>
    %238 = arith.mulf %237, %211 : vector<8x16xf32>
    %239 = arith.addf %235, %238 : vector<8x16xf32>
    %240 = vector.extract_strided_slice %213 {offsets = [0, 1], sizes = [8, 1], strides = [1, 1]} : vector<8x16xf32> to vector<8x1xf32>
    %241 = vector.broadcast %240 : vector<8x1xf32> to vector<8x16xf32>
    %242 = arith.mulf %241, %213 : vector<8x16xf32>
    %243 = arith.addf %239, %242 : vector<8x16xf32>
    %cst_61 = arith.constant 0.333333343 : f32
    %244 = vector.broadcast %cst_61 : f32 to vector<8x16xf32>
    %245 = arith.mulf %243, %244 : vector<8x16xf32>
    %246 = vector.extract_strided_slice %209 {offsets = [0, 2], sizes = [8, 1], strides = [1, 1]} : vector<8x16xf32> to vector<8x1xf32>
    %247 = vector.broadcast %246 : vector<8x1xf32> to vector<8x16xf32>
    %248 = arith.mulf %247, %209 : vector<8x16xf32>
    %249 = vector.extract_strided_slice %211 {offsets = [0, 2], sizes = [8, 1], strides = [1, 1]} : vector<8x16xf32> to vector<8x1xf32>
    %250 = vector.broadcast %249 : vector<8x1xf32> to vector<8x16xf32>
    %251 = arith.mulf %250, %211 : vector<8x16xf32>
    %252 = arith.addf %248, %251 : vector<8x16xf32>
    %253 = vector.extract_strided_slice %213 {offsets = [0, 2], sizes = [8, 1], strides = [1, 1]} : vector<8x16xf32> to vector<8x1xf32>
    %254 = vector.broadcast %253 : vector<8x1xf32> to vector<8x16xf32>
    %255 = arith.mulf %254, %213 : vector<8x16xf32>
    %256 = arith.addf %252, %255 : vector<8x16xf32>
    %cst_62 = arith.constant 0.333333343 : f32
    %257 = vector.broadcast %cst_62 : f32 to vector<8x16xf32>
    %258 = arith.mulf %256, %257 : vector<8x16xf32>
    %259 = vector.extract_strided_slice %209 {offsets = [0, 3], sizes = [8, 1], strides = [1, 1]} : vector<8x16xf32> to vector<8x1xf32>
    %260 = vector.broadcast %259 : vector<8x1xf32> to vector<8x16xf32>
    %261 = arith.mulf %260, %209 : vector<8x16xf32>
    %262 = vector.extract_strided_slice %211 {offsets = [0, 3], sizes = [8, 1], strides = [1, 1]} : vector<8x16xf32> to vector<8x1xf32>
    %263 = vector.broadcast %262 : vector<8x1xf32> to vector<8x16xf32>
    %264 = arith.mulf %263, %211 : vector<8x16xf32>
    %265 = arith.addf %261, %264 : vector<8x16xf32>
    %266 = vector.extract_strided_slice %213 {offsets = [0, 3], sizes = [8, 1], strides = [1, 1]} : vector<8x16xf32> to vector<8x1xf32>
    %267 = vector.broadcast %266 : vector<8x1xf32> to vector<8x16xf32>
    %268 = arith.mulf %267, %213 : vector<8x16xf32>
    %269 = arith.addf %265, %268 : vector<8x16xf32>
    %cst_63 = arith.constant 0.333333343 : f32
    %270 = vector.broadcast %cst_63 : f32 to vector<8x16xf32>
    %271 = arith.mulf %269, %270 : vector<8x16xf32>
    %272 = vector.extract_strided_slice %215 {offsets = [0, 0], sizes = [8, 1], strides = [1, 1]} : vector<8x32xf32> to vector<8x1xf32>
    %273 = vector.broadcast %272 : vector<8x1xf32> to vector<8x32xf32>
    %274 = arith.mulf %273, %215 : vector<8x32xf32>
    %275 = vector.extract_strided_slice %217 {offsets = [0, 0], sizes = [8, 1], strides = [1, 1]} : vector<8x32xf32> to vector<8x1xf32>
    %276 = vector.broadcast %275 : vector<8x1xf32> to vector<8x32xf32>
    %277 = arith.mulf %276, %217 : vector<8x32xf32>
    %278 = arith.addf %274, %277 : vector<8x32xf32>
    %279 = vector.extract_strided_slice %219 {offsets = [0, 0], sizes = [8, 1], strides = [1, 1]} : vector<8x32xf32> to vector<8x1xf32>
    %280 = vector.broadcast %279 : vector<8x1xf32> to vector<8x32xf32>
    %281 = arith.mulf %280, %219 : vector<8x32xf32>
    %282 = arith.addf %278, %281 : vector<8x32xf32>
    %cst_64 = arith.constant 0.333333343 : f32
    %283 = vector.broadcast %cst_64 : f32 to vector<8x32xf32>
    %284 = arith.mulf %282, %283 : vector<8x32xf32>
    %285 = vector.extract_strided_slice %215 {offsets = [0, 1], sizes = [8, 1], strides = [1, 1]} : vector<8x32xf32> to vector<8x1xf32>
    %286 = vector.broadcast %285 : vector<8x1xf32> to vector<8x32xf32>
    %287 = arith.mulf %286, %215 : vector<8x32xf32>
    %288 = vector.extract_strided_slice %217 {offsets = [0, 1], sizes = [8, 1], strides = [1, 1]} : vector<8x32xf32> to vector<8x1xf32>
    %289 = vector.broadcast %288 : vector<8x1xf32> to vector<8x32xf32>
    %290 = arith.mulf %289, %217 : vector<8x32xf32>
    %291 = arith.addf %287, %290 : vector<8x32xf32>
    %292 = vector.extract_strided_slice %219 {offsets = [0, 1], sizes = [8, 1], strides = [1, 1]} : vector<8x32xf32> to vector<8x1xf32>
    %293 = vector.broadcast %292 : vector<8x1xf32> to vector<8x32xf32>
    %294 = arith.mulf %293, %219 : vector<8x32xf32>
    %295 = arith.addf %291, %294 : vector<8x32xf32>
    %cst_65 = arith.constant 0.333333343 : f32
    %296 = vector.broadcast %cst_65 : f32 to vector<8x32xf32>
    %297 = arith.mulf %295, %296 : vector<8x32xf32>
    %298 = vector.extract_strided_slice %215 {offsets = [0, 2], sizes = [8, 1], strides = [1, 1]} : vector<8x32xf32> to vector<8x1xf32>
    %299 = vector.broadcast %298 : vector<8x1xf32> to vector<8x32xf32>
    %300 = arith.mulf %299, %215 : vector<8x32xf32>
    %301 = vector.extract_strided_slice %217 {offsets = [0, 2], sizes = [8, 1], strides = [1, 1]} : vector<8x32xf32> to vector<8x1xf32>
    %302 = vector.broadcast %301 : vector<8x1xf32> to vector<8x32xf32>
    %303 = arith.mulf %302, %217 : vector<8x32xf32>
    %304 = arith.addf %300, %303 : vector<8x32xf32>
    %305 = vector.extract_strided_slice %219 {offsets = [0, 2], sizes = [8, 1], strides = [1, 1]} : vector<8x32xf32> to vector<8x1xf32>
    %306 = vector.broadcast %305 : vector<8x1xf32> to vector<8x32xf32>
    %307 = arith.mulf %306, %219 : vector<8x32xf32>
    %308 = arith.addf %304, %307 : vector<8x32xf32>
    %cst_66 = arith.constant 0.333333343 : f32
    %309 = vector.broadcast %cst_66 : f32 to vector<8x32xf32>
    %310 = arith.mulf %308, %309 : vector<8x32xf32>
    %311 = vector.extract_strided_slice %215 {offsets = [0, 3], sizes = [8, 1], strides = [1, 1]} : vector<8x32xf32> to vector<8x1xf32>
    %312 = vector.broadcast %311 : vector<8x1xf32> to vector<8x32xf32>
    %313 = arith.mulf %312, %215 : vector<8x32xf32>
    %314 = vector.extract_strided_slice %217 {offsets = [0, 3], sizes = [8, 1], strides = [1, 1]} : vector<8x32xf32> to vector<8x1xf32>
    %315 = vector.broadcast %314 : vector<8x1xf32> to vector<8x32xf32>
    %316 = arith.mulf %315, %217 : vector<8x32xf32>
    %317 = arith.addf %313, %316 : vector<8x32xf32>
    %318 = vector.extract_strided_slice %219 {offsets = [0, 3], sizes = [8, 1], strides = [1, 1]} : vector<8x32xf32> to vector<8x1xf32>
    %319 = vector.broadcast %318 : vector<8x1xf32> to vector<8x32xf32>
    %320 = arith.mulf %319, %219 : vector<8x32xf32>
    %321 = arith.addf %317, %320 : vector<8x32xf32>
    %cst_67 = arith.constant 0.333333343 : f32
    %322 = vector.broadcast %cst_67 : f32 to vector<8x32xf32>
    %323 = arith.mulf %321, %322 : vector<8x32xf32>
    %324 = tpu.concatenate %0, %198, %232, %245, %258, %271, %284, %297, %310, %323 in 1 : vector<8x32xf32>, vector<8x16xf32>, vector<8x16xf32>, vector<8x16xf32>, vector<8x16xf32>, vector<8x16xf32>, vector<8x32xf32>, vector<8x32xf32>, vector<8x32xf32>, vector<8x32xf32> -> vector<8x240xf32>
    %325 = arith.truncf %324 : vector<8x240xf32> to vector<8x240xbf16>
    %cst_68 = arith.constant dense<0.000000e+00> : vector<8x32xf32>
    %326 = tpu.matmul %325, %15, %cst_68 {dimension_numbers = #tpu.dot_dimension_numbers<[1], [0], [0], [1], [0, 0, 1, 1], [], []>} : vector<8x240xbf16>, vector<240x32xbf16>, vector<8x32xf32> -> vector<8x32xf32>
    %327 = vector.broadcast %23 : vector<1x32xf32> to vector<8x32xf32>
    %328 = arith.addf %326, %327 : vector<8x32xf32>
    %329 = math.tanh %328 : vector<8x32xf32>
    %cst_69 = arith.constant dense<0.000000e+00> : vector<8x32xf32>
    %330 = tpu.matmul %1, %16, %cst_69 {dimension_numbers = #tpu.dot_dimension_numbers<[1], [0], [0], [1], [0, 0, 1, 1], [], []>} : vector<8x32xbf16>, vector<32x32xbf16>, vector<8x32xf32> -> vector<8x32xf32>
    %cst_70 = arith.constant dense<0.000000e+00> : vector<64x96xf32>
    %331 = tpu.matmul %2, %14, %cst_70 {dimension_numbers = #tpu.dot_dimension_numbers<[1], [0], [0], [1], [0, 0, 1, 1], [], []>} : vector<64x32xbf16>, vector<32x96xbf16>, vector<64x96xf32> -> vector<64x96xf32>
    %332 = vector.extract_strided_slice %330 {offsets = [0, 0], sizes = [8, 16], strides = [1, 1]} : vector<8x32xf32> to vector<8x16xf32>
    %333 = vector.extract_strided_slice %331 {offsets = [0, 0], sizes = [64, 16], strides = [1, 1]} : vector<64x96xf32> to vector<64x16xf32>
    %334 = vector.shape_cast %333 : vector<64x16xf32> to vector<8x8x16xf32>
    %335 = vector.extract_strided_slice %331 {offsets = [0, 32], sizes = [64, 32], strides = [1, 1]} : vector<64x96xf32> to vector<64x32xf32>
    %336 = vector.shape_cast %335 : vector<64x32xf32> to vector<8x8x32xf32>
    %337 = vector.shape_cast %332 : vector<8x16xf32> to vector<8x1x16xf32>
    %338 = vector.broadcast %337 : vector<8x1x16xf32> to vector<8x8x16xf32>
    %339 = arith.mulf %338, %334 : vector<8x8x16xf32>
    %cst_71 = arith.constant dense<0.000000e+00> : vector<8x8xf32>
    %340 = vector.multi_reduction <add>, %339, %cst_71 [2] : vector<8x8x16xf32> to vector<8x8xf32>
    %cst_72 = arith.constant 2.500000e-01 : f32
    %341 = vector.broadcast %cst_72 : f32 to vector<8x8xf32>
    %342 = arith.mulf %340, %341 : vector<8x8xf32>
    %cst_73 = arith.constant 2.000000e+01 : f32
    %343 = vector.broadcast %cst_73 : f32 to vector<8x8xf32>
    %344 = arith.addf %342, %343 : vector<8x8xf32>
    %345 = arith.mulf %344, %8 : vector<8x8xf32>
    %cst_74 = arith.constant 2.000000e+01 : f32
    %346 = vector.broadcast %cst_74 : f32 to vector<8x8xf32>
    %347 = arith.subf %345, %346 : vector<8x8xf32>
    %cst_75 = arith.constant dense<0xFF800000> : vector<8xf32>
    %348 = vector.multi_reduction <maximumf>, %347, %cst_75 [1] : vector<8x8xf32> to vector<8xf32>
    %349 = vector.shape_cast %348 : vector<8xf32> to vector<8x1xf32>
    %350 = vector.broadcast %349 : vector<8x1xf32> to vector<8x8xf32>
    %351 = arith.subf %347, %350 : vector<8x8xf32>
    %352 = math.exp %351 : vector<8x8xf32>
    %cst_76 = arith.constant dense<0.000000e+00> : vector<8xf32>
    %353 = vector.multi_reduction <add>, %352, %cst_76 [1] : vector<8x8xf32> to vector<8xf32>
    %354 = vector.shape_cast %353 : vector<8xf32> to vector<8x1xf32>
    %355 = vector.broadcast %354 : vector<8x1xf32> to vector<8x8xf32>
    %356 = arith.divf %352, %355 : vector<8x8xf32>
    %357 = arith.mulf %356, %25 : vector<8x8xf32>
    %358 = vector.shape_cast %357 : vector<8x8xf32> to vector<8x8x1xf32>
    %359 = vector.broadcast %358 : vector<8x8x1xf32> to vector<8x8x32xf32>
    %360 = arith.mulf %359, %336 : vector<8x8x32xf32>
    %cst_77 = arith.constant dense<0.000000e+00> : vector<8x32xf32>
    %361 = vector.multi_reduction <add>, %360, %cst_77 [1] : vector<8x8x32xf32> to vector<8x32xf32>
    %362 = vector.extract_strided_slice %330 {offsets = [0, 16], sizes = [8, 16], strides = [1, 1]} : vector<8x32xf32> to vector<8x16xf32>
    %363 = vector.extract_strided_slice %331 {offsets = [0, 16], sizes = [64, 16], strides = [1, 1]} : vector<64x96xf32> to vector<64x16xf32>
    %364 = vector.shape_cast %363 : vector<64x16xf32> to vector<8x8x16xf32>
    %365 = vector.extract_strided_slice %331 {offsets = [0, 64], sizes = [64, 32], strides = [1, 1]} : vector<64x96xf32> to vector<64x32xf32>
    %366 = vector.shape_cast %365 : vector<64x32xf32> to vector<8x8x32xf32>
    %367 = vector.shape_cast %362 : vector<8x16xf32> to vector<8x1x16xf32>
    %368 = vector.broadcast %367 : vector<8x1x16xf32> to vector<8x8x16xf32>
    %369 = arith.mulf %368, %364 : vector<8x8x16xf32>
    %cst_78 = arith.constant dense<0.000000e+00> : vector<8x8xf32>
    %370 = vector.multi_reduction <add>, %369, %cst_78 [2] : vector<8x8x16xf32> to vector<8x8xf32>
    %cst_79 = arith.constant 2.500000e-01 : f32
    %371 = vector.broadcast %cst_79 : f32 to vector<8x8xf32>
    %372 = arith.mulf %370, %371 : vector<8x8xf32>
    %cst_80 = arith.constant 2.000000e+01 : f32
    %373 = vector.broadcast %cst_80 : f32 to vector<8x8xf32>
    %374 = arith.addf %372, %373 : vector<8x8xf32>
    %375 = arith.mulf %374, %8 : vector<8x8xf32>
    %cst_81 = arith.constant 2.000000e+01 : f32
    %376 = vector.broadcast %cst_81 : f32 to vector<8x8xf32>
    %377 = arith.subf %375, %376 : vector<8x8xf32>
    %cst_82 = arith.constant dense<0xFF800000> : vector<8xf32>
    %378 = vector.multi_reduction <maximumf>, %377, %cst_82 [1] : vector<8x8xf32> to vector<8xf32>
    %379 = vector.shape_cast %378 : vector<8xf32> to vector<8x1xf32>
    %380 = vector.broadcast %379 : vector<8x1xf32> to vector<8x8xf32>
    %381 = arith.subf %377, %380 : vector<8x8xf32>
    %382 = math.exp %381 : vector<8x8xf32>
    %cst_83 = arith.constant dense<0.000000e+00> : vector<8xf32>
    %383 = vector.multi_reduction <add>, %382, %cst_83 [1] : vector<8x8xf32> to vector<8xf32>
    %384 = vector.shape_cast %383 : vector<8xf32> to vector<8x1xf32>
    %385 = vector.broadcast %384 : vector<8x1xf32> to vector<8x8xf32>
    %386 = arith.divf %382, %385 : vector<8x8xf32>
    %387 = arith.mulf %386, %25 : vector<8x8xf32>
    %388 = vector.shape_cast %387 : vector<8x8xf32> to vector<8x8x1xf32>
    %389 = vector.broadcast %388 : vector<8x8x1xf32> to vector<8x8x32xf32>
    %390 = arith.mulf %389, %366 : vector<8x8x32xf32>
    %cst_84 = arith.constant dense<0.000000e+00> : vector<8x32xf32>
    %391 = vector.multi_reduction <add>, %390, %cst_84 [1] : vector<8x8x32xf32> to vector<8x32xf32>
    %392 = tpu.concatenate %361, %391 in 1 : vector<8x32xf32>, vector<8x32xf32> -> vector<8x64xf32>
    %393 = arith.truncf %392 : vector<8x64xf32> to vector<8x64xbf16>
    %cst_85 = arith.constant dense<0.000000e+00> : vector<8x32xf32>
    %394 = tpu.matmul %393, %17, %cst_85 {dimension_numbers = #tpu.dot_dimension_numbers<[1], [0], [0], [1], [0, 0, 1, 1], [], []>} : vector<8x64xbf16>, vector<64x32xbf16>, vector<8x32xf32> -> vector<8x32xf32>
    %395 = vector.broadcast %24 : vector<1x32xf32> to vector<8x32xf32>
    %396 = arith.addf %394, %395 : vector<8x32xf32>
    %397 = arith.addf %0, %329 : vector<8x32xf32>
    %398 = arith.addf %397, %396 : vector<8x32xf32>
    %cst_86 = arith.constant 0.577350259 : f32
    %399 = vector.broadcast %cst_86 : f32 to vector<8x32xf32>
    %400 = arith.mulf %398, %399 : vector<8x32xf32>
    %c0_87 = arith.constant 0 : index
    %c0_88 = arith.constant 0 : index
    %401 = vector.load %arg12[%c0_87, %c0_88] : memref<8x32xf32, #tpu.memory_space<vmem>>, vector<8x32xf32>
    tpu.vector_store %arg12[%c0_87, %c0_88], %400 {strides = array<i32>} : memref<8x32xf32, #tpu.memory_space<vmem>>, vector<8x32xf32>,
    return
  }
  func.func @transform_0(%arg0: i32) -> (i32, i32) {
    %c0_i32 = arith.constant 0 : i32
    %c0_i32_0 = arith.constant 0 : i32
    return %arg0, %c0_i32 : i32, i32
  }
  func.func @transform_1(%arg0: i32) -> (i32, i32) {
    %c0_i32 = arith.constant 0 : i32
    %c0_i32_0 = arith.constant 0 : i32
    return %arg0, %c0_i32 : i32, i32
  }
  func.func @transform_2(%arg0: i32) -> (i32, i32) {
    %c0_i32 = arith.constant 0 : i32
    %c0_i32_0 = arith.constant 0 : i32
    return %arg0, %c0_i32 : i32, i32
  }
  func.func @transform_3(%arg0: i32) -> (i32, i32, i32) {
    %c0_i32 = arith.constant 0 : i32
    %c0_i32_0 = arith.constant 0 : i32
    %c0_i32_1 = arith.constant 0 : i32
    return %arg0, %c0_i32, %c0_i32_0 : i32, i32, i32
  }
  func.func @transform_4(%arg0: i32) -> (i32, i32) {
    %c0_i32 = arith.constant 0 : i32
    %c0_i32_0 = arith.constant 0 : i32
    return %arg0, %c0_i32 : i32, i32
  }
  func.func @transform_5(%arg0: i32) -> (i32, i32) {
    %c0_i32 = arith.constant 0 : i32
    %c0_i32_0 = arith.constant 0 : i32
    return %arg0, %c0_i32 : i32, i32
  }
  func.func @transform_6(%arg0: i32) -> (i32, i32) {
    %c0_i32 = arith.constant 0 : i32
    %c0_i32_0 = arith.constant 0 : i32
    %c0_i32_1 = arith.constant 0 : i32
    return %c0_i32, %c0_i32_0 : i32, i32
  }
  func.func @transform_7(%arg0: i32) -> (i32, i32) {
    %c0_i32 = arith.constant 0 : i32
    %c0_i32_0 = arith.constant 0 : i32
    %c0_i32_1 = arith.constant 0 : i32
    return %c0_i32, %c0_i32_0 : i32, i32
  }
  func.func @transform_8(%arg0: i32) -> (i32, i32) {
    %c0_i32 = arith.constant 0 : i32
    %c0_i32_0 = arith.constant 0 : i32
    %c0_i32_1 = arith.constant 0 : i32
    return %c0_i32, %c0_i32_0 : i32, i32
  }
  func.func @transform_9(%arg0: i32) -> (i32, i32) {
    %c0_i32 = arith.constant 0 : i32
    %c0_i32_0 = arith.constant 0 : i32
    %c0_i32_1 = arith.constant 0 : i32
    return %c0_i32, %c0_i32_0 : i32, i32
  }
  func.func @transform_10(%arg0: i32) -> (i32, i32) {
    %c0_i32 = arith.constant 0 : i32
    %c0_i32_0 = arith.constant 0 : i32
    %c0_i32_1 = arith.constant 0 : i32
    return %c0_i32, %c0_i32_0 : i32, i32
  }
  func.func @transform_11(%arg0: i32) -> (i32, i32) {
    %c0_i32 = arith.constant 0 : i32
    %c0_i32_0 = arith.constant 0 : i32
    return %arg0, %c0_i32 : i32, i32
  }
  func.func @transform_12(%arg0: i32) -> (i32, i32) {
    %c0_i32 = arith.constant 0 : i32
    %c0_i32_0 = arith.constant 0 : i32
    return %arg0, %c0_i32 : i32, i32
  }
}

</mosaic_0001>

<llo_original>
// kernel: tpu_custom_call.1
$region0: #{tpu_custom_call.1}
  #allocation0 [shape = 'u32[]', space=smem, size = 0x4, offset = 0x4, fixed_abs, tag = 'smem constant byte address 0x4 - core index']
  #allocation1 [shape = 'u32[144,128]{1,0:T(1,128)}', space=vmem, size = 0x12000, scoped, tag = 'internal scratch']
  %s0 = inlined_call_operand.hbm [shape: f32[16,32], index: 0, kind: input, shape index: {}]
  %s1 = inlined_call_operand.hbm [shape: bf16[128,32], index: 1, kind: input, shape index: {}]
  %s2 = inlined_call_operand.hbm [shape: bf16[128,16], index: 2, kind: input, shape index: {}]
  %s3 = inlined_call_operand.hbm [shape: f32[16,3,8], index: 3, kind: input, shape index: {}]
  %s4 = inlined_call_operand.hbm [shape: f32[16,8], index: 4, kind: input, shape index: {}]
  %s5 = inlined_call_operand.hbm [shape: f32[16,8], index: 5, kind: input, shape index: {}]
  %s6 = inlined_call_operand.hbm [shape: bf16[112,16], index: 6, kind: input, shape index: {}]
  %s7 = inlined_call_operand.hbm [shape: bf16[16,64], index: 7, kind: input, shape index: {}]
  %s8 = inlined_call_operand.hbm [shape: bf16[32,96], index: 8, kind: input, shape index: {}]
  %s9 = inlined_call_operand.hbm [shape: bf16[336,32], index: 9, kind: input, shape index: {}]
  %s10 = inlined_call_operand.hbm [shape: f32[1,128], index: 10, kind: input, shape index: {}]
  %s11 = inlined_call_operand.hbm [shape: f32[16,32], index: 11, kind: output, shape index: {0}]
  %s12 = inlined_call_operand.hbm [shape: f32[16,128], index: 12, kind: output, shape index: {1}]
  %13 = xla_tuple %s11, %s12
  %s14 = sld [smem:[#allocation0]]
  $region129: #{tpu_custom_call.1} parent=0
    _
  %s16 = ssub.s32 1, %s14
  %s17 = scalar_select 0, %s16, %s14
  $region1: #{tpu_custom_call.1} parent=0
    #allocation2 [shape = 'u8[8192]{0}', space=vmem, size = 0x2000, scoped, tag = 'input window, operand 0']
    #allocation3 [shape = 's32[2]{0}', space=sflag, size = 0x8, scoped, tag = 'scoped memory for tpu_custom_call.1']
    #allocation4 [shape = 's32[2]{0}', space=sflag, size = 0x8, scoped, tag = 'scoped memory for tpu_custom_call.1']
    #allocation5 [shape = 'u8[32768]{0}', space=vmem, size = 0x8000, scoped, tag = 'input window, operand 1']
    #allocation6 [shape = 's32[2]{0}', space=sflag, size = 0x8, scoped, tag = 'scoped memory for tpu_custom_call.1']
    #allocation7 [shape = 'u8[32768]{0}', space=vmem, size = 0x8000, scoped, tag = 'input window, operand 2']
    #allocation8 [shape = 'u8[32768]{0}', space=vmem, size = 0x8000, scoped, tag = 'input window, operand 3']
    #allocation9 [shape = 's32[2]{0}', space=sflag, size = 0x8, scoped, tag = 'scoped memory for tpu_custom_call.1']
    #allocation10 [shape = 'u8[8192]{0}', space=vmem, size = 0x2000, scoped, tag = 'input window, operand 4']
    #allocation11 [shape = 'u8[8192]{0}', space=vmem, size = 0x2000, scoped, tag = 'input window, operand 5']
    #allocation12 [shape = 's32[2]{0}', space=sflag, size = 0x8, scoped, tag = 'scoped memory for tpu_custom_call.1']
    #allocation13 [shape = 'u8[28672]{0}', space=vmem, size = 0x7000, scoped, tag = 'input window, operand 6, single buffered']
    #allocation14 [shape = 'u8[4096]{0}', space=vmem, size = 0x1000, scoped, tag = 'input window, operand 7, single buffered']
    #allocation15 [shape = 's32[1]{0}', space=sflag, size = 0x4, scoped, tag = 'scoped memory for tpu_custom_call.1']
    #allocation16 [shape = 'u8[8192]{0}', space=vmem, size = 0x2000, scoped, tag = 'input window, operand 8, single buffered']
    #allocation17 [shape = 'u8[86016]{0}', space=vmem, size = 0x15000, scoped, tag = 'input window, operand 9, single buffered']
    #allocation18 [shape = 's32[1]{0}', space=sflag, size = 0x4, scoped, tag = 'scoped memory for tpu_custom_call.1']
    #allocation19 [shape = 'u8[512]{0}', space=vmem, size = 0x400, scoped, tag = 'input window, operand 10, single buffered']
    #allocation20 [shape = 'u8[8192]{0}', space=vmem, size = 0x2000, scoped, tag = 'output window, operand 0']
    #allocation21 [shape = 'u8[8192]{0}', space=vmem, size = 0x2000, scoped, tag = 'output window, operand 1']
    #allocation22 [shape = 's32[2]{0}', space=sflag, size = 0x8, scoped, tag = 'scoped memory for tpu_custom_call.1']
    %18 = vsyncpa [#allocation3], 0
    %s19 = scalar_lea.sflag [#allocation3], 1
    %20 = vsyncpa %s19, 0
    %21 = vsyncpa [#allocation6], 0
    %s22 = scalar_lea.sflag [#allocation6], 1
    %23 = vsyncpa %s22, 0
    %24 = vsyncpa [#allocation9], 0
    %s25 = scalar_lea.sflag [#allocation9], 1
    %26 = vsyncpa %s25, 0
    %27 = vsyncpa [#allocation12], 0
    %s28 = scalar_lea.sflag [#allocation12], 1
    %29 = vsyncpa %s28, 0
    %30 = vsyncpa [#allocation15], 0
    %31 = vsyncpa [#allocation18], 0
    %32 = vsyncpa [#allocation4], 0
    %s33 = scalar_lea.sflag [#allocation4], 1
    %34 = vsyncpa %s33, 0
    %35 = vsyncpa [#allocation22], 0
    %s36 = scalar_lea.sflag [#allocation22], 1
    %37 = vsyncpa %s36, 0
    loop: start=0, step=1, limit=4
    $region2: #{tpu_custom_call.1} parent=1 // loop_pre_header
      _
    $region3: #{tpu_custom_call.1} parent=1 // loop_header
      %s39 = sphi 0, %s43
      %p40 = scmp.ge.s32.totalorder %s39, 4
      %s49 = sphi 0, %s51
      %s52 = sphi 0, %s49
      %s53 = sphi 0, %s52
      %s69 = sphi 0, %s53
      %s75 = sphi 0, %s77
      %s78 = sphi 0, %s75
      %s79 = sphi 0, %s78
      %s95 = sphi 0, %s79
      %s101 = sphi 0, %s103
      %s104 = sphi 0, %s101
      %s105 = sphi 0, %s104
      %s121 = sphi 0, %s105
      %s127 = sphi 0, %s129
      %s130 = sphi 0, %s127
      %s131 = sphi 0, %s130
      %s147 = sphi 0, %s131
      %s153 = sphi 0, %s155
      %s156 = sphi 0, %s153
      %s157 = sphi 0, %s156
      %s173 = sphi 0, %s157
      %s179 = sphi 0, %s181
      %s182 = sphi 0, %s179
      %s183 = sphi 0, %s182
      %s199 = sphi 0, %s183
      %s203 = sphi 0, %s203
      %s205 = sphi 0, %s203
      %s206 = sphi 0, %s205
      %s220 = sphi 0, %s206
      %s224 = sphi 0, %s224
      %s226 = sphi 0, %s224
      %s227 = sphi 0, %s226
      %s241 = sphi 0, %s227
      %s245 = sphi 0, %s245
      %s247 = sphi 0, %s245
      %s248 = sphi 0, %s247
      %s262 = sphi 0, %s248
      %s266 = sphi 0, %s266
      %s268 = sphi 0, %s266
      %s269 = sphi 0, %s268
      %s283 = sphi 0, %s269
      %s287 = sphi 0, %s287
      %s289 = sphi 0, %s287
      %s290 = sphi 0, %s289
      %s304 = sphi 0, %s290
      %s310 = sphi 0, %s312
      %s313 = sphi 0, %s310
      %s314 = sphi 0, %s313
      %s330 = sphi 0, %s314
      %s336 = sphi 0, %s338
      %s339 = sphi 0, %s336
      %s340 = sphi 0, %s339
      %s356 = sphi 0, %s340
    $region4: #{tpu_custom_call.1} parent=1 // loop_header_branch
      %42 = sbr.rel (%p40) target = $region8
    $region5: #{tpu_custom_call.1} parent=1 // loop_body
      %s44 = ssub.s32 %s39, 1
      %s45 = ssub.s32 %s39, 2
      %s46 = sadd.s32 %s39, 1
      %s47 = ssub.s32 %s39, %s46
      %p48 = scmp.eq.s32.totalorder %s47, 0
      %s50 = sadd.s32 %s49, 1
      %s51 = scalar_select %p48, %s49, %s50
      %p54 = pneg %p48
      %p55 = scmp.eq.s32.totalorder %s39, 1
      %p56 = por %p54, %p55
      %p57 = scmp.ne.s32.totalorder %s49, %s52
      %p58 = scmp.eq.s32.totalorder %s39, 0
      %p59 = por %p57, %p58
      %p60 = scmp.ne.s32.totalorder %s49, %s52
      %p61 = scmp.eq.s32.totalorder %s44, 1
      %p62 = por %p60, %p61
      %p63 = scmp.ne.s32.totalorder %s52, %s53
      %p64 = scmp.eq.s32.totalorder %s44, 0
      %p65 = por %p63, %p64
      %p66 = scmp.ne.s32.totalorder %s52, %s53
      %p67 = scmp.eq.s32.totalorder %s45, 1
      %p68 = por %p66, %p67
      %p70 = scmp.ne.s32.totalorder %s53, %s69
      %p71 = scmp.eq.s32.totalorder %s45, 0
      %p72 = por %p70, %p71
      %s73 = ssub.s32 %s39, %s46
      %p74 = scmp.eq.s32.totalorder %s73, 0
      %s76 = sadd.s32 %s75, 1
      %s77 = scalar_select %p74, %s75, %s76
      %p80 = pneg %p74
      %p81 = scmp.eq.s32.totalorder %s39, 1
      %p82 = por %p80, %p81
      %p83 = scmp.ne.s32.totalorder %s75, %s78
      %p84 = scmp.eq.s32.totalorder %s39, 0
      %p85 = por %p83, %p84
      %p86 = scmp.ne.s32.totalorder %s75, %s78
      %p87 = scmp.eq.s32.totalorder %s44, 1
      %p88 = por %p86, %p87
      %p89 = scmp.ne.s32.totalorder %s78, %s79
      %p90 = scmp.eq.s32.totalorder %s44, 0
      %p91 = por %p89, %p90
      %p92 = scmp.ne.s32.totalorder %s78, %s79
      %p93 = scmp.eq.s32.totalorder %s45, 1
      %p94 = por %p92, %p93
      %p96 = scmp.ne.s32.totalorder %s79, %s95
      %p97 = scmp.eq.s32.totalorder %s45, 0
      %p98 = por %p96, %p97
      %s99 = ssub.s32 %s39, %s46
      %p100 = scmp.eq.s32.totalorder %s99, 0
      %s102 = sadd.s32 %s101, 1
      %s103 = scalar_select %p100, %s101, %s102
      %p106 = pneg %p100
      %p107 = scmp.eq.s32.totalorder %s39, 1
      %p108 = por %p106, %p107
      %p109 = scmp.ne.s32.totalorder %s101, %s104
      %p110 = scmp.eq.s32.totalorder %s39, 0
      %p111 = por %p109, %p110
      %p112 = scmp.ne.s32.totalorder %s101, %s104
      %p113 = scmp.eq.s32.totalorder %s44, 1
      %p114 = por %p112, %p113
      %p115 = scmp.ne.s32.totalorder %s104, %s105
      %p116 = scmp.eq.s32.totalorder %s44, 0
      %p117 = por %p115, %p116
      %p118 = scmp.ne.s32.totalorder %s104, %s105
      %p119 = scmp.eq.s32.totalorder %s45, 1
      %p120 = por %p118, %p119
      %p122 = scmp.ne.s32.totalorder %s105, %s121
      %p123 = scmp.eq.s32.totalorder %s45, 0
      %p124 = por %p122, %p123
      %s125 = ssub.s32 %s39, %s46
      %p126 = scmp.eq.s32.totalorder %s125, 0
      %s128 = sadd.s32 %s127, 1
      %s129 = scalar_select %p126, %s127, %s128
      %p132 = pneg %p126
      %p133 = scmp.eq.s32.totalorder %s39, 1
      %p134 = por %p132, %p133
      %p135 = scmp.ne.s32.totalorder %s127, %s130
      %p136 = scmp.eq.s32.totalorder %s39, 0
      %p137 = por %p135, %p136
      %p138 = scmp.ne.s32.totalorder %s127, %s130
      %p139 = scmp.eq.s32.totalorder %s44, 1
      %p140 = por %p138, %p139
      %p141 = scmp.ne.s32.totalorder %s130, %s131
      %p142 = scmp.eq.s32.totalorder %s44, 0
      %p143 = por %p141, %p142
      %p144 = scmp.ne.s32.totalorder %s130, %s131
      %p145 = scmp.eq.s32.totalorder %s45, 1
      %p146 = por %p144, %p145
      %p148 = scmp.ne.s32.totalorder %s131, %s147
      %p149 = scmp.eq.s32.totalorder %s45, 0
      %p150 = por %p148, %p149
      %s151 = ssub.s32 %s39, %s46
      %p152 = scmp.eq.s32.totalorder %s151, 0
      %s154 = sadd.s32 %s153, 1
      %s155 = scalar_select %p152, %s153, %s154
      %p158 = pneg %p152
      %p159 = scmp.eq.s32.totalorder %s39, 1
      %p160 = por %p158, %p159
      %p161 = scmp.ne.s32.totalorder %s153, %s156
      %p162 = scmp.eq.s32.totalorder %s39, 0
      %p163 = por %p161, %p162
      %p164 = scmp.ne.s32.totalorder %s153, %s156
      %p165 = scmp.eq.s32.totalorder %s44, 1
      %p166 = por %p164, %p165
      %p167 = scmp.ne.s32.totalorder %s156, %s157
      %p168 = scmp.eq.s32.totalorder %s44, 0
      %p169 = por %p167, %p168
      %p170 = scmp.ne.s32.totalorder %s156, %s157
      %p171 = scmp.eq.s32.totalorder %s45, 1
      %p172 = por %p170, %p171
      %p174 = scmp.ne.s32.totalorder %s157, %s173
      %p175 = scmp.eq.s32.totalorder %s45, 0
      %p176 = por %p174, %p175
      %s177 = ssub.s32 %s39, %s46
      %p178 = scmp.eq.s32.totalorder %s177, 0
      %s180 = sadd.s32 %s179, 1
      %s181 = scalar_select %p178, %s179, %s180
      %p184 = pneg %p178
      %p185 = scmp.eq.s32.totalorder %s39, 1
      %p186 = por %p184, %p185
      %p187 = scmp.ne.s32.totalorder %s179, %s182
      %p188 = scmp.eq.s32.totalorder %s39, 0
      %p189 = por %p187, %p188
      %p190 = scmp.ne.s32.totalorder %s179, %s182
      %p191 = scmp.eq.s32.totalorder %s44, 1
      %p192 = por %p190, %p191
      %p193 = scmp.ne.s32.totalorder %s182, %s183
      %p194 = scmp.eq.s32.totalorder %s44, 0
      %p195 = por %p193, %p194
      %p196 = scmp.ne.s32.totalorder %s182, %s183
      %p197 = scmp.eq.s32.totalorder %s45, 1
      %p198 = por %p196, %p197
      %p200 = scmp.ne.s32.totalorder %s183, %s199
      %p201 = scmp.eq.s32.totalorder %s45, 0
      %p202 = por %p200, %p201
      %s204 = sadd.s32 %s203, 1
      %p207 = scmp.eq.s32.totalorder %s39, 1
      %p208 = scmp.ne.s32.totalorder %s203, %s205
      %p209 = scmp.eq.s32.totalorder %s39, 0
      %p210 = por %p208, %p209
      %p211 = scmp.ne.s32.totalorder %s203, %s205
      %p212 = scmp.eq.s32.totalorder %s44, 1
      %p213 = por %p211, %p212
      %p214 = scmp.ne.s32.totalorder %s205, %s206
      %p215 = scmp.eq.s32.totalorder %s44, 0
      %p216 = por %p214, %p215
      %p217 = scmp.ne.s32.totalorder %s205, %s206
      %p218 = scmp.eq.s32.totalorder %s45, 1
      %p219 = por %p217, %p218
      %p221 = scmp.ne.s32.totalorder %s206, %s220
      %p222 = scmp.eq.s32.totalorder %s45, 0
      %p223 = por %p221, %p222
      %s225 = sadd.s32 %s224, 1
      %p228 = scmp.eq.s32.totalorder %s39, 1
      %p229 = scmp.ne.s32.totalorder %s224, %s226
      %p230 = scmp.eq.s32.totalorder %s39, 0
      %p231 = por %p229, %p230
      %p232 = scmp.ne.s32.totalorder %s224, %s226
      %p233 = scmp.eq.s32.totalorder %s44, 1
      %p234 = por %p232, %p233
      %p235 = scmp.ne.s32.totalorder %s226, %s227
      %p236 = scmp.eq.s32.totalorder %s44, 0
      %p237 = por %p235, %p236
      %p238 = scmp.ne.s32.totalorder %s226, %s227
      %p239 = scmp.eq.s32.totalorder %s45, 1
      %p240 = por %p238, %p239
      %p242 = scmp.ne.s32.totalorder %s227, %s241
      %p243 = scmp.eq.s32.totalorder %s45, 0
      %p244 = por %p242, %p243
      %s246 = sadd.s32 %s245, 1
      %p249 = scmp.eq.s32.totalorder %s39, 1
      %p250 = scmp.ne.s32.totalorder %s245, %s247
      %p251 = scmp.eq.s32.totalorder %s39, 0
      %p252 = por %p250, %p251
      %p253 = scmp.ne.s32.totalorder %s245, %s247
      %p254 = scmp.eq.s32.totalorder %s44, 1
      %p255 = por %p253, %p254
      %p256 = scmp.ne.s32.totalorder %s247, %s248
      %p257 = scmp.eq.s32.totalorder %s44, 0
      %p258 = por %p256, %p257
      %p259 = scmp.ne.s32.totalorder %s247, %s248
      %p260 = scmp.eq.s32.totalorder %s45, 1
      %p261 = por %p259, %p260
      %p263 = scmp.ne.s32.totalorder %s248, %s262
      %p264 = scmp.eq.s32.totalorder %s45, 0
      %p265 = por %p263, %p264
      %s267 = sadd.s32 %s266, 1
      %p270 = scmp.eq.s32.totalorder %s39, 1
      %p271 = scmp.ne.s32.totalorder %s266, %s268
      %p272 = scmp.eq.s32.totalorder %s39, 0
      %p273 = por %p271, %p272
      %p274 = scmp.ne.s32.totalorder %s266, %s268
      %p275 = scmp.eq.s32.totalorder %s44, 1
      %p276 = por %p274, %p275
      %p277 = scmp.ne.s32.totalorder %s268, %s269
      %p278 = scmp.eq.s32.totalorder %s44, 0
      %p279 = por %p277, %p278
      %p280 = scmp.ne.s32.totalorder %s268, %s269
      %p281 = scmp.eq.s32.totalorder %s45, 1
      %p282 = por %p280, %p281
      %p284 = scmp.ne.s32.totalorder %s269, %s283
      %p285 = scmp.eq.s32.totalorder %s45, 0
      %p286 = por %p284, %p285
      %s288 = sadd.s32 %s287, 1
      %p291 = scmp.eq.s32.totalorder %s39, 1
      %p292 = scmp.ne.s32.totalorder %s287, %s289
      %p293 = scmp.eq.s32.totalorder %s39, 0
      %p294 = por %p292, %p293
      %p295 = scmp.ne.s32.totalorder %s287, %s289
      %p296 = scmp.eq.s32.totalorder %s44, 1
      %p297 = por %p295, %p296
      %p298 = scmp.ne.s32.totalorder %s289, %s290
      %p299 = scmp.eq.s32.totalorder %s44, 0
      %p300 = por %p298, %p299
      %p301 = scmp.ne.s32.totalorder %s289, %s290
      %p302 = scmp.eq.s32.totalorder %s45, 1
      %p303 = por %p301, %p302
      %p305 = scmp.ne.s32.totalorder %s290, %s304
      %p306 = scmp.eq.s32.totalorder %s45, 0
      %p307 = por %p305, %p306
      %s308 = ssub.s32 %s39, %s46
      %p309 = scmp.eq.s32.totalorder %s308, 0
      %s311 = sadd.s32 %s310, 1
      %s312 = scalar_select %p309, %s310, %s311
      %p315 = pneg %p309
      %p316 = scmp.eq.s32.totalorder %s39, 1
      %p317 = por %p315, %p316
      %p318 = scmp.ne.s32.totalorder %s310, %s313
      %p319 = scmp.eq.s32.totalorder %s39, 0
      %p320 = por %p318, %p319
      %p321 = scmp.ne.s32.totalorder %s310, %s313
      %p322 = scmp.eq.s32.totalorder %s44, 1
      %p323 = por %p321, %p322
      %p324 = scmp.ne.s32.totalorder %s313, %s314
      %p325 = scmp.eq.s32.totalorder %s44, 0
      %p326 = por %p324, %p325
      %p327 = scmp.ne.s32.totalorder %s313, %s314
      %p328 = scmp.eq.s32.totalorder %s45, 1
      %p329 = por %p327, %p328
      %p331 = scmp.ne.s32.totalorder %s314, %s330
      %p332 = scmp.eq.s32.totalorder %s45, 0
      %p333 = por %p331, %p332
      %s334 = ssub.s32 %s39, %s46
      %p335 = scmp.eq.s32.totalorder %s334, 0
      %s337 = sadd.s32 %s336, 1
      %s338 = scalar_select %p335, %s336, %s337
      %p341 = pneg %p335
      %p342 = scmp.eq.s32.totalorder %s39, 1
      %p343 = por %p341, %p342
      %p344 = scmp.ne.s32.totalorder %s336, %s339
      %p345 = scmp.eq.s32.totalorder %s39, 0
      %p346 = por %p344, %p345
      %p347 = scmp.ne.s32.totalorder %s336, %s339
      %p348 = scmp.eq.s32.totalorder %s44, 1
      %p349 = por %p347, %p348
      %p350 = scmp.ne.s32.totalorder %s339, %s340
      %p351 = scmp.eq.s32.totalorder %s44, 0
      %p352 = por %p350, %p351
      %p353 = scmp.ne.s32.totalorder %s339, %s340
      %p354 = scmp.eq.s32.totalorder %s45, 1
      %p355 = por %p353, %p354
      %p357 = scmp.ne.s32.totalorder %s340, %s356
      %p358 = scmp.eq.s32.totalorder %s45, 0
      %p359 = por %p357, %p358
      %p360 = scmp.le.s32.totalorder 1, %s39
      %p361 = scmp.lt.s32.totalorder %s39, 3
      %p362 = pnand %p360, %p361
      %p363 = pneg %p362
      // Predicated region
      $region9: #{tpu_custom_call.1} parent=5 // pred_check
        _
      $region10: #{tpu_custom_call.1} parent=5 // pred_check_branch
        %365 = sbr.rel (%p362) target = $region12
      $region11: #{tpu_custom_call.1} parent=5 // pred_region
        %s366 = ssub.s32 %s39, 1
        // Predicated region
        $region13: #{tpu_custom_call.1} parent=11 // pred_check
          %p367 = pneg %p216
        $region14: #{tpu_custom_call.1} parent=11 // pred_check_branch
          %369 = sbr.rel (%p367) target = $region16
        $region15: #{tpu_custom_call.1} parent=11 // pred_region
          %s371 = ssub.s32 896, 896
          %372 = vsyncadd [#allocation12], %s371
          %s373 = sshll.u32 [#allocation13], 4
          %s374 = int_to_ptr.vmem [resolvable:$true] %s373
          %379 = dma.hbm_to_vmem [thread:$0]  %s6, 896, %s374, [#allocation12], 64, 64, 4
        $region16: #{tpu_custom_call.1} parent=11 // pred_fallthru
          _
        // Predicated region
        $region17: #{tpu_custom_call.1} parent=11 // pred_check
          %p380 = pneg %p237
        $region18: #{tpu_custom_call.1} parent=11 // pred_check_branch
          %382 = sbr.rel (%p380) target = $region20
        $region19: #{tpu_custom_call.1} parent=11 // pred_region
          %s384 = ssub.s32 128, 128
          %385 = vsyncadd [#allocation15], %s384
          %s386 = sshll.u32 [#allocation14], 4
          %s387 = int_to_ptr.vmem [resolvable:$true] %s386
          %392 = dma.hbm_to_vmem [thread:$0]  %s7, 128, %s387, [#allocation15], 64, 64, 4
        $region20: #{tpu_custom_call.1} parent=11 // pred_fallthru
          _
        // Predicated region
        $region21: #{tpu_custom_call.1} parent=11 // pred_check
          %p393 = pneg %p258
        $region22: #{tpu_custom_call.1} parent=11 // pred_check_branch
          %395 = sbr.rel (%p393) target = $region24
        $region23: #{tpu_custom_call.1} parent=11 // pred_region
          %s397 = ssub.s32 256, 256
          %398 = vsyncadd [#allocation15], %s397
          %s399 = sshll.u32 [#allocation16], 4
          %s400 = int_to_ptr.vmem [resolvable:$true] %s399
          %405 = dma.hbm_to_vmem [thread:$0]  %s8, 256, %s400, [#allocation15], 64, 64, 4
        $region24: #{tpu_custom_call.1} parent=11 // pred_fallthru
          _
        // Predicated region
        $region25: #{tpu_custom_call.1} parent=11 // pred_check
          %p406 = pneg %p279
        $region26: #{tpu_custom_call.1} parent=11 // pred_check_branch
          %408 = sbr.rel (%p406) target = $region28
        $region27: #{tpu_custom_call.1} parent=11 // pred_region
          %s410 = ssub.s32 2688, 2688
          %411 = vsyncadd [#allocation18], %s410
          %s412 = sshll.u32 [#allocation17], 4
          %s413 = int_to_ptr.vmem [resolvable:$true] %s412
          %418 = dma.hbm_to_vmem [thread:$0]  %s9, 2688, %s413, [#allocation18], 64, 64, 4
        $region28: #{tpu_custom_call.1} parent=11 // pred_fallthru
          _
        // Predicated region
        $region29: #{tpu_custom_call.1} parent=11 // pred_check
          %p419 = pneg %p300
        $region30: #{tpu_custom_call.1} parent=11 // pred_check_branch
          %421 = sbr.rel (%p419) target = $region32
        $region31: #{tpu_custom_call.1} parent=11 // pred_region
          %s423 = ssub.s32 16, 16
          %424 = vsyncadd [#allocation18], %s423
          %s426 = sshll.u32 [#allocation19], 4
          %s427 = int_to_ptr.vmem [resolvable:$true] %s426
          %429 = dma.hbm_to_vmem [thread:$0]  %s10, 16, %s427, [#allocation18]
        $region32: #{tpu_custom_call.1} parent=11 // pred_fallthru
          _
      $region12: #{tpu_custom_call.1} parent=5 // pred_fallthru
        _
      %p430 = scmp.lt.s32.totalorder %s39, 2
      // Predicated region
      $region33: #{tpu_custom_call.1} parent=5 // pred_check
        %p431 = pneg %p430
      $region34: #{tpu_custom_call.1} parent=5 // pred_check_branch
        %433 = sbr.rel (%p431) target = $region36
      $region35: #{tpu_custom_call.1} parent=5 // pred_region
        // Predicated region
        $region37: #{tpu_custom_call.1} parent=35 // pred_check
          %p434 = pneg %p59
        $region38: #{tpu_custom_call.1} parent=35 // pred_check_branch
          %436 = sbr.rel (%p434) target = $region40
        $region39: #{tpu_custom_call.1} parent=35 // pred_region
          %s437 = sand.u32 %s49, 1
          %s438 = scalar_lea.sflag [#allocation3], %s437
          %s439 = sand.u32 %s49, 1
          %s440 = smul.addr %s439, 8
          %s441 = scalar_lea.vmem [#allocation2], %s440
          %s443 = ssub.s32 128, 128
          %444 = vsyncadd %s438, %s443
          %s445 = smul.addr %s39, 128
          %s446 = scalar_lea.hbm %s0, %s445
          %s448 = sshll.u32 %s441, 4
          %s449 = int_to_ptr.vmem [resolvable:$true] %s448
          %451 = dma.hbm_to_vmem [thread:$0]  %s446, 128, %s449, %s438
        $region40: #{tpu_custom_call.1} parent=35 // pred_fallthru
          _
        // Predicated region
        $region41: #{tpu_custom_call.1} parent=35 // pred_check
          %p452 = pneg %p85
        $region42: #{tpu_custom_call.1} parent=35 // pred_check_branch
          %454 = sbr.rel (%p452) target = $region44
        $region43: #{tpu_custom_call.1} parent=35 // pred_region
          %s455 = sand.u32 %s39, 1
          %s456 = scalar_lea.sflag [#allocation6], %s455
          %s457 = sand.u32 %s75, 1
          %s458 = smul.addr %s457, 32
          %s459 = scalar_lea.vmem [#allocation5], %s458
          %s460 = smul.u32 8, %s39
          %s462 = ssub.s32 512, 512
          %463 = vsyncadd %s456, %s462
          %s464 = smul.addr %s460, 64
          %s465 = scalar_lea.hbm %s1, %s464
          %s466 = sshll.u32 %s459, 4
          %s467 = int_to_ptr.vmem [resolvable:$true] %s466
          %472 = dma.hbm_to_vmem [thread:$0]  %s465, 512, %s467, %s456, 64, 64, 4
        $region44: #{tpu_custom_call.1} parent=35 // pred_fallthru
          _
        // Predicated region
        $region45: #{tpu_custom_call.1} parent=35 // pred_check
          %p473 = pneg %p111
        $region46: #{tpu_custom_call.1} parent=35 // pred_check_branch
          %475 = sbr.rel (%p473) target = $region48
        $region47: #{tpu_custom_call.1} parent=35 // pred_region
          %s476 = sand.u32 %s39, 1
          %s477 = scalar_lea.sflag [#allocation6], %s476
          %s478 = sand.u32 %s101, 1
          %s479 = smul.addr %s478, 32
          %s480 = scalar_lea.vmem [#allocation7], %s479
          %s481 = smul.u32 8, %s39
          %s483 = ssub.s32 512, 512
          %484 = vsyncadd %s477, %s483
          %s485 = smul.addr %s481, 64
          %s486 = scalar_lea.hbm %s2, %s485
          %s487 = sshll.u32 %s480, 4
          %s488 = int_to_ptr.vmem [resolvable:$true] %s487
          %493 = dma.hbm_to_vmem [thread:$0]  %s486, 512, %s488, %s477, 64, 64, 4
        $region48: #{tpu_custom_call.1} parent=35 // pred_fallthru
          _
        // Predicated region
        $region49: #{tpu_custom_call.1} parent=35 // pred_check
          %p494 = pneg %p137
        $region50: #{tpu_custom_call.1} parent=35 // pred_check_branch
          %496 = sbr.rel (%p494) target = $region52
        $region51: #{tpu_custom_call.1} parent=35 // pred_region
          %s497 = sand.u32 %s39, 1
          %s498 = scalar_lea.sflag [#allocation9], %s497
          %s499 = sand.u32 %s127, 1
          %s500 = smul.addr %s499, 32
          %s501 = scalar_lea.vmem [#allocation8], %s500
          %s502 = smul.u32 8, %s39
          %s504 = ssub.s32 512, 512
          %505 = vsyncadd %s498, %s504
          %s506 = smul.addr %s502, 64
          %s507 = scalar_lea.hbm %s3, %s506
          %s508 = sshll.u32 %s501, 4
          %s509 = int_to_ptr.vmem [resolvable:$true] %s508
          %514 = dma.hbm_to_vmem [thread:$0]  %s507, 512, %s509, %s498, 64, 64, 4
        $region52: #{tpu_custom_call.1} parent=35 // pred_fallthru
          _
        // Predicated region
        $region53: #{tpu_custom_call.1} parent=35 // pred_check
          %p515 = pneg %p163
        $region54: #{tpu_custom_call.1} parent=35 // pred_check_branch
          %517 = sbr.rel (%p515) target = $region56
        $region55: #{tpu_custom_call.1} parent=35 // pred_region
          %s518 = sand.u32 %s39, 1
          %s519 = scalar_lea.sflag [#allocation9], %s518
          %s520 = sand.u32 %s153, 1
          %s521 = smul.addr %s520, 8
          %s522 = scalar_lea.vmem [#allocation10], %s521
          %s524 = ssub.s32 128, 128
          %525 = vsyncadd %s519, %s524
          %s526 = smul.addr %s39, 128
          %s527 = scalar_lea.hbm %s4, %s526
          %s529 = sshll.u32 %s522, 4
          %s530 = int_to_ptr.vmem [resolvable:$true] %s529
          %532 = dma.hbm_to_vmem [thread:$0]  %s527, 128, %s530, %s519
        $region56: #{tpu_custom_call.1} parent=35 // pred_fallthru
          _
        // Predicated region
        $region57: #{tpu_custom_call.1} parent=35 // pred_check
          %p533 = pneg %p189
        $region58: #{tpu_custom_call.1} parent=35 // pred_check_branch
          %535 = sbr.rel (%p533) target = $region60
        $region59: #{tpu_custom_call.1} parent=35 // pred_region
          %s536 = sand.u32 %s39, 1
          %s537 = scalar_lea.sflag [#allocation12], %s536
          %s538 = sand.u32 %s179, 1
          %s539 = smul.addr %s538, 8
          %s540 = scalar_lea.vmem [#allocation11], %s539
          %s542 = ssub.s32 128, 128
          %543 = vsyncadd %s537, %s542
          %s544 = smul.addr %s39, 128
          %s545 = scalar_lea.hbm %s5, %s544
          %s547 = sshll.u32 %s540, 4
          %s548 = int_to_ptr.vmem [resolvable:$true] %s547
          %550 = dma.hbm_to_vmem [thread:$0]  %s545, 128, %s548, %s537
        $region60: #{tpu_custom_call.1} parent=35 // pred_fallthru
          _
      $region36: #{tpu_custom_call.1} parent=5 // pred_fallthru
        _
      %p551 = scmp.le.s32.totalorder 1, %s39
      %p552 = scmp.lt.s32.totalorder %s39, 3
      %p553 = pnand %p551, %p552
      %p554 = pneg %p553
      // Predicated region
      $region61: #{tpu_custom_call.1} parent=5 // pred_check
        _
      $region62: #{tpu_custom_call.1} parent=5 // pred_check_branch
        %556 = sbr.rel (%p553) target = $region64
      $region63: #{tpu_custom_call.1} parent=5 // pred_region
        %s557 = ssub.s32 %s39, 1
        %s558 = sand.u32 %s52, 1
        %s559 = scalar_lea.sflag [#allocation3], %s558
        %s560 = sand.u32 %s52, 1
        %s561 = smul.addr %s560, 8
        %s562 = scalar_lea.vmem [#allocation2], %s561
        // Predicated region
        $region65: #{tpu_custom_call.1} parent=63 // pred_check
          %p563 = pneg %p65
        $region66: #{tpu_custom_call.1} parent=63 // pred_check_branch
          %565 = sbr.rel (%p563) target = $region68
        $region67: #{tpu_custom_call.1} parent=63 // pred_region
          %566 = dma.done %s559, 128
        $region68: #{tpu_custom_call.1} parent=63 // pred_fallthru
          _
        %s567 = sand.u32 %s44, 1
        %s568 = scalar_lea.sflag [#allocation6], %s567
        %s569 = sand.u32 %s78, 1
        %s570 = smul.addr %s569, 32
        %s571 = scalar_lea.vmem [#allocation5], %s570
        // Predicated region
        $region69: #{tpu_custom_call.1} parent=63 // pred_check
          %p572 = pneg %p91
        $region70: #{tpu_custom_call.1} parent=63 // pred_check_branch
          %574 = sbr.rel (%p572) target = $region72
        $region71: #{tpu_custom_call.1} parent=63 // pred_region
          %575 = dma.done %s568, 512
        $region72: #{tpu_custom_call.1} parent=63 // pred_fallthru
          _
        %s576 = sand.u32 %s44, 1
        %s577 = scalar_lea.sflag [#allocation6], %s576
        %s578 = sand.u32 %s104, 1
        %s579 = smul.addr %s578, 32
        %s580 = scalar_lea.vmem [#allocation7], %s579
        // Predicated region
        $region73: #{tpu_custom_call.1} parent=63 // pred_check
          %p581 = pneg %p117
        $region74: #{tpu_custom_call.1} parent=63 // pred_check_branch
          %583 = sbr.rel (%p581) target = $region76
        $region75: #{tpu_custom_call.1} parent=63 // pred_region
          %584 = dma.done %s577, 512
        $region76: #{tpu_custom_call.1} parent=63 // pred_fallthru
          _
        %s585 = sand.u32 %s44, 1
        %s586 = scalar_lea.sflag [#allocation9], %s585
        %s587 = sand.u32 %s130, 1
        %s588 = smul.addr %s587, 32
        %s589 = scalar_lea.vmem [#allocation8], %s588
        // Predicated region
        $region77: #{tpu_custom_call.1} parent=63 // pred_check
          %p590 = pneg %p143
        $region78: #{tpu_custom_call.1} parent=63 // pred_check_branch
          %592 = sbr.rel (%p590) target = $region80
        $region79: #{tpu_custom_call.1} parent=63 // pred_region
          %593 = dma.done %s586, 512
        $region80: #{tpu_custom_call.1} parent=63 // pred_fallthru
          _
        %s594 = sand.u32 %s44, 1
        %s595 = scalar_lea.sflag [#allocation9], %s594
        %s596 = sand.u32 %s156, 1
        %s597 = smul.addr %s596, 8
        %s598 = scalar_lea.vmem [#allocation10], %s597
        // Predicated region
        $region81: #{tpu_custom_call.1} parent=63 // pred_check
          %p599 = pneg %p169
        $region82: #{tpu_custom_call.1} parent=63 // pred_check_branch
          %601 = sbr.rel (%p599) target = $region84
        $region83: #{tpu_custom_call.1} parent=63 // pred_region
          %602 = dma.done %s595, 128
        $region84: #{tpu_custom_call.1} parent=63 // pred_fallthru
          _
        %s603 = sand.u32 %s44, 1
        %s604 = scalar_lea.sflag [#allocation12], %s603
        %s605 = sand.u32 %s182, 1
        %s606 = smul.addr %s605, 8
        %s607 = scalar_lea.vmem [#allocation11], %s606
        // Predicated region
        $region85: #{tpu_custom_call.1} parent=63 // pred_check
          %p608 = pneg %p195
        $region86: #{tpu_custom_call.1} parent=63 // pred_check_branch
          %610 = sbr.rel (%p608) target = $region88
        $region87: #{tpu_custom_call.1} parent=63 // pred_region
          %611 = dma.done %s604, 128
        $region88: #{tpu_custom_call.1} parent=63 // pred_fallthru
          _
        // Predicated region
        $region89: #{tpu_custom_call.1} parent=63 // pred_check
          %p612 = pneg %p216
        $region90: #{tpu_custom_call.1} parent=63 // pred_check_branch
          %614 = sbr.rel (%p612) target = $region92
        $region91: #{tpu_custom_call.1} parent=63 // pred_region
          %615 = dma.done [#allocation12], 896
        $region92: #{tpu_custom_call.1} parent=63 // pred_fallthru
          _
        // Predicated region
        $region93: #{tpu_custom_call.1} parent=63 // pred_check
          %p616 = pneg %p237
        $region94: #{tpu_custom_call.1} parent=63 // pred_check_branch
          %618 = sbr.rel (%p616) target = $region96
        $region95: #{tpu_custom_call.1} parent=63 // pred_region
          %619 = dma.done [#allocation15], 128
        $region96: #{tpu_custom_call.1} parent=63 // pred_fallthru
          _
        // Predicated region
        $region97: #{tpu_custom_call.1} parent=63 // pred_check
          %p620 = pneg %p258
        $region98: #{tpu_custom_call.1} parent=63 // pred_check_branch
          %622 = sbr.rel (%p620) target = $region100
        $region99: #{tpu_custom_call.1} parent=63 // pred_region
          %623 = dma.done [#allocation15], 256
        $region100: #{tpu_custom_call.1} parent=63 // pred_fallthru
          _
        // Predicated region
        $region101: #{tpu_custom_call.1} parent=63 // pred_check
          %p624 = pneg %p279
        $region102: #{tpu_custom_call.1} parent=63 // pred_check_branch
          %626 = sbr.rel (%p624) target = $region104
        $region103: #{tpu_custom_call.1} parent=63 // pred_region
          %627 = dma.done [#allocation18], 2688
        $region104: #{tpu_custom_call.1} parent=63 // pred_fallthru
          _
        // Predicated region
        $region105: #{tpu_custom_call.1} parent=63 // pred_check
          %p628 = pneg %p300
        $region106: #{tpu_custom_call.1} parent=63 // pred_check_branch
          %630 = sbr.rel (%p628) target = $region108
        $region107: #{tpu_custom_call.1} parent=63 // pred_region
          %631 = dma.done [#allocation18], 16
        $region108: #{tpu_custom_call.1} parent=63 // pred_fallthru
          _
        %s632 = sand.u32 %s52, 1
        %s633 = scalar_lea.sflag [#allocation3], %s632
        %s634 = sand.u32 %s52, 1
        %s635 = smul.addr %s634, 8
        %s636 = scalar_lea.vmem [#allocation2], %s635
        %p637 = pneg %p65
        %p638 = pneg %p62
        %s639 = sand.u32 %s44, 1
        %s640 = scalar_lea.sflag [#allocation6], %s639
        %s641 = sand.u32 %s78, 1
        %s642 = smul.addr %s641, 32
        %s643 = scalar_lea.vmem [#allocation5], %s642
        %p644 = pneg %p91
        %p645 = pneg %p88
        %s646 = sand.u32 %s44, 1
        %s647 = scalar_lea.sflag [#allocation6], %s646
        %s648 = sand.u32 %s104, 1
        %s649 = smul.addr %s648, 32
        %s650 = scalar_lea.vmem [#allocation7], %s649
        %p651 = pneg %p117
        %p652 = pneg %p114
        %s653 = sand.u32 %s44, 1
        %s654 = scalar_lea.sflag [#allocation9], %s653
        %s655 = sand.u32 %s130, 1
        %s656 = smul.addr %s655, 32
        %s657 = scalar_lea.vmem [#allocation8], %s656
        %p658 = pneg %p143
        %p659 = pneg %p140
        %s660 = sand.u32 %s44, 1
        %s661 = scalar_lea.sflag [#allocation9], %s660
        %s662 = sand.u32 %s156, 1
        %s663 = smul.addr %s662, 8
        %s664 = scalar_lea.vmem [#allocation10], %s663
        %p665 = pneg %p169
        %p666 = pneg %p166
        %s667 = sand.u32 %s44, 1
        %s668 = scalar_lea.sflag [#allocation12], %s667
        %s669 = sand.u32 %s182, 1
        %s670 = smul.addr %s669, 8
        %s671 = scalar_lea.vmem [#allocation11], %s670
        %p672 = pneg %p195
        %p673 = pneg %p192
        %p674 = pneg %p216
        %p675 = pneg %p213
        %p676 = pneg %p237
        %p677 = pneg %p234
        %p678 = pneg %p258
        %p679 = pneg %p255
        %p680 = pneg %p279
        %p681 = pneg %p276
        %p682 = pneg %p300
        %p683 = pneg %p297
        %p684 = pneg %p326
        %p685 = pneg %p323
        %s686 = sand.u32 %s313, 1
        %s687 = scalar_lea.sflag [#allocation4], %s686
        %s688 = sand.u32 %s313, 1
        %s689 = smul.addr %s688, 8
        %s690 = scalar_lea.vmem [#allocation20], %s689
        %p691 = pneg %p352
        %p692 = pneg %p349
        %s693 = sand.u32 %s339, 1
        %s694 = scalar_lea.sflag [#allocation22], %s693
        %s695 = sand.u32 %s339, 1
        %s696 = smul.addr %s695, 8
        %s697 = scalar_lea.vmem [#allocation21], %s696
        %s698 = smul.u32 8, %s44
        %s699 = smul.u32 8, %s44
        %s700 = smul.u32 8, %s44
        %v702 = vld [vmem:[%s562] sm:$0xff]
        %v703 = vpack.c.bf16 %v702, %v702
        %v704 = vld [vmem:[%s571] sm:$0xf]
        %v705 = vld [vmem:[%s571 + $0x4] sm:$0xf]
        %v706 = vld [vmem:[%s571 + $0x8] sm:$0xf]
        %v707 = vld [vmem:[%s571 + $0xc] sm:$0xf]
        %v708 = vld [vmem:[%s571 + $0x10] sm:$0xf]
        %v709 = vld [vmem:[%s571 + $0x14] sm:$0xf]
        %v710 = vld [vmem:[%s571 + $0x18] sm:$0xf]
        %v711 = vld [vmem:[%s571 + $0x1c] sm:$0xf]
        %v712 = vld [vmem:[%s580] sm:$0xf]
        %v713 = vld [vmem:[%s580 + $0x4] sm:$0xf]
        %v714 = vld [vmem:[%s580 + $0x8] sm:$0xf]
        %v715 = vld [vmem:[%s580 + $0xc] sm:$0xf]
        %v716 = vld [vmem:[%s580 + $0x10] sm:$0xf]
        %v717 = vld [vmem:[%s580 + $0x14] sm:$0xf]
        %v718 = vld [vmem:[%s580 + $0x18] sm:$0xf]
        %v719 = vld [vmem:[%s580 + $0x1c] sm:$0xf]
        %v720 = vunpack.c.l.bf16 %v704
        %v721 = vunpack.c.l.bf16 %v705
        %v722 = vunpack.c.l.bf16 %v706
        %v723 = vunpack.c.l.bf16 %v707
        %v724 = vunpack.c.l.bf16 %v708
        %v725 = vunpack.c.l.bf16 %v709
        %v726 = vunpack.c.l.bf16 %v710
        %v727 = vunpack.c.l.bf16 %v711
        %v728 = vunpack.c.l.bf16 %v712
        %v729 = vunpack.c.l.bf16 %v713
        %v730 = vunpack.c.l.bf16 %v714
        %v731 = vunpack.c.l.bf16 %v715
        %v732 = vunpack.c.l.bf16 %v716
        %v733 = vunpack.c.l.bf16 %v717
        %v734 = vunpack.c.l.bf16 %v718
        %v735 = vunpack.c.l.bf16 %v719
        %v736 = vld [vmem:[%s589] sm:$0x7]
        %v737 = vld [vmem:[%s589 + $0x4] sm:$0x7]
        %v738 = vld [vmem:[%s589 + $0x8] sm:$0x7]
        %v739 = vld [vmem:[%s589 + $0xc] sm:$0x7]
        %v740 = vld [vmem:[%s589 + $0x10] sm:$0x7]
        %v741 = vld [vmem:[%s589 + $0x14] sm:$0x7]
        %v742 = vld [vmem:[%s589 + $0x18] sm:$0x7]
        %v743 = vld [vmem:[%s589 + $0x1c] sm:$0x7]
        %v744 = vld [vmem:[%s598] sm:$0xff]
        %v745 = vld [vmem:[%s607] sm:$0xff]
        %v746 = vld [vmem:[#allocation13] sm:$0xf]
        %v747 = vld [vmem:[#allocation13 + $0x4] sm:$0xf]
        %v748 = vld [vmem:[#allocation13 + $0x8] sm:$0xf]
        %v749 = vld [vmem:[#allocation13 + $0xc] sm:$0xf]
        %v750 = vld [vmem:[#allocation13 + $0x10] sm:$0xf]
        %v751 = vld [vmem:[#allocation13 + $0x14] sm:$0xf]
        %v752 = vld [vmem:[#allocation13 + $0x18] sm:$0xf]
        %v753 = vld [vmem:[#allocation13 + $0x1c] sm:$0xf]
        %v754 = vld [vmem:[#allocation13 + $0x20] sm:$0xf]
        %v755 = vld [vmem:[#allocation13 + $0x24] sm:$0xf]
        %v756 = vld [vmem:[#allocation13 + $0x28] sm:$0xf]
        %v757 = vld [vmem:[#allocation13 + $0x2c] sm:$0xf]
        %v758 = vld [vmem:[#allocation13 + $0x30] sm:$0xf]
        %v759 = vld [vmem:[#allocation13 + $0x34] sm:$0xf]
        %v760 = vld [vmem:[#allocation14] sm:$0xf]
        %v761 = vld [vmem:[#allocation14 + $0x4] sm:$0xf]
        %v762 = vld [vmem:[#allocation16] sm:$0xf]
        %v763 = vld [vmem:[#allocation16 + $0x4] sm:$0xf]
        %v764 = vld [vmem:[#allocation16 + $0x8] sm:$0xf]
        %v765 = vld [vmem:[#allocation16 + $0xc] sm:$0xf]
        %v766 = vld [vmem:[#allocation17] sm:$0xf]
        %v767 = vld [vmem:[#allocation17 + $0x4] sm:$0xf]
        %v768 = vld [vmem:[#allocation17 + $0x8] sm:$0xf]
        %v769 = vld [vmem:[#allocation17 + $0xc] sm:$0xf]
        %v770 = vld [vmem:[#allocation17 + $0x10] sm:$0xf]
        %v771 = vld [vmem:[#allocation17 + $0x14] sm:$0xf]
        %v772 = vld [vmem:[#allocation17 + $0x18] sm:$0xf]
        %v773 = vld [vmem:[#allocation17 + $0x1c] sm:$0xf]
        %v774 = vld [vmem:[#allocation17 + $0x20] sm:$0xf]
        %v775 = vld [vmem:[#allocation17 + $0x24] sm:$0xf]
        %v776 = vld [vmem:[#allocation17 + $0x28] sm:$0xf]
        %v777 = vld [vmem:[#allocation17 + $0x2c] sm:$0xf]
        %v778 = vld [vmem:[#allocation17 + $0x30] sm:$0xf]
        %v779 = vld [vmem:[#allocation17 + $0x34] sm:$0xf]
        %v780 = vld [vmem:[#allocation17 + $0x38] sm:$0xf]
        %v781 = vld [vmem:[#allocation17 + $0x3c] sm:$0xf]
        %v782 = vld [vmem:[#allocation17 + $0x40] sm:$0xf]
        %v783 = vld [vmem:[#allocation17 + $0x44] sm:$0xf]
        %v784 = vld [vmem:[#allocation17 + $0x48] sm:$0xf]
        %v785 = vld [vmem:[#allocation17 + $0x4c] sm:$0xf]
        %v786 = vld [vmem:[#allocation17 + $0x50] sm:$0xf]
        %v787 = vld [vmem:[#allocation17 + $0x54] sm:$0xf]
        %v788 = vld [vmem:[#allocation17 + $0x58] sm:$0xf]
        %v789 = vld [vmem:[#allocation17 + $0x5c] sm:$0xf]
        %v790 = vld [vmem:[#allocation17 + $0x60] sm:$0xf]
        %v791 = vld [vmem:[#allocation17 + $0x64] sm:$0xf]
        %v792 = vld [vmem:[#allocation17 + $0x68] sm:$0xf]
        %v793 = vld [vmem:[#allocation17 + $0x6c] sm:$0xf]
        %v794 = vld [vmem:[#allocation17 + $0x70] sm:$0xf]
        %v795 = vld [vmem:[#allocation17 + $0x74] sm:$0xf]
        %v796 = vld [vmem:[#allocation17 + $0x78] sm:$0xf]
        %v797 = vld [vmem:[#allocation17 + $0x7c] sm:$0xf]
        %v798 = vld [vmem:[#allocation17 + $0x80] sm:$0xf]
        %v799 = vld [vmem:[#allocation17 + $0x84] sm:$0xf]
        %v800 = vld [vmem:[#allocation17 + $0x88] sm:$0xf]
        %v801 = vld [vmem:[#allocation17 + $0x8c] sm:$0xf]
        %v802 = vld [vmem:[#allocation17 + $0x90] sm:$0xf]
        %v803 = vld [vmem:[#allocation17 + $0x94] sm:$0xf]
        %v804 = vld [vmem:[#allocation17 + $0x98] sm:$0xf]
        %v805 = vld [vmem:[#allocation17 + $0x9c] sm:$0xf]
        %v806 = vld [vmem:[#allocation17 + $0xa0] sm:$0xf]
        %v807 = vld [vmem:[#allocation17 + $0xa4] sm:$0xf]
        %v808 = vld [vmem:[#allocation19] sm:$0x1]
        %v809 = vmul.f32 %v744, %v745
        %v810 = vlaneseq
        %v811 = vshrl.u32 %v810, 7
        %v812 = vsub.s32 0, %v811
        %v813 = vrot.slane %v809, %v812
        %815 = vbcast.lane.b32.xlu0 %v813, 256
        %v816 = vpop.permute.xlu0 %815
        %v817 = vlaneseq
        %v818 = vshrl.u32 %v817, 7
        %v819 = vsub.s32 1, %v818
        %v820 = vrot.slane %v809, %v819
        %822 = vbcast.lane.b32.xlu0 %v820, 256
        %v823 = vpop.permute.xlu0 %822
        %v824 = vlaneseq
        %v825 = vshrl.u32 %v824, 7
        %v826 = vsub.s32 2, %v825
        %v827 = vrot.slane %v809, %v826
        %829 = vbcast.lane.b32.xlu0 %v827, 256
        %v830 = vpop.permute.xlu0 %829
        %v831 = vlaneseq
        %v832 = vshrl.u32 %v831, 7
        %v833 = vsub.s32 3, %v832
        %v834 = vrot.slane %v809, %v833
        %836 = vbcast.lane.b32.xlu0 %v834, 256
        %v837 = vpop.permute.xlu0 %836
        %v838 = vlaneseq
        %v839 = vshrl.u32 %v838, 7
        %v840 = vsub.s32 4, %v839
        %v841 = vrot.slane %v809, %v840
        %843 = vbcast.lane.b32.xlu0 %v841, 256
        %v844 = vpop.permute.xlu0 %843
        %v845 = vlaneseq
        %v846 = vshrl.u32 %v845, 7
        %v847 = vsub.s32 5, %v846
        %v848 = vrot.slane %v809, %v847
        %850 = vbcast.lane.b32.xlu0 %v848, 256
        %v851 = vpop.permute.xlu0 %850
        %v852 = vlaneseq
        %v853 = vshrl.u32 %v852, 7
        %v854 = vsub.s32 6, %v853
        %v855 = vrot.slane %v809, %v854
        %857 = vbcast.lane.b32.xlu0 %v855, 256
        %v858 = vpop.permute.xlu0 %857
        %v859 = vlaneseq
        %v860 = vshrl.u32 %v859, 7
        %v861 = vsub.s32 7, %v860
        %v862 = vrot.slane %v809, %v861
        %864 = vbcast.lane.b32.xlu0 %v862, 256
        %v865 = vpop.permute.xlu0 %864
        %v866 = vmul.f32 %v720, %v816
        %v867 = vmul.f32 %v721, %v823
        %v868 = vmul.f32 %v722, %v830
        %v869 = vmul.f32 %v723, %v837
        %v870 = vmul.f32 %v724, %v844
        %v871 = vmul.f32 %v725, %v851
        %v872 = vmul.f32 %v726, %v858
        %v873 = vmul.f32 %v727, %v865
        %v874 = vmul.f32 %v728, %v816
        %v875 = vmul.f32 %v729, %v823
        %v876 = vmul.f32 %v730, %v830
        %v877 = vmul.f32 %v731, %v837
        %v878 = vmul.f32 %v732, %v844
        %v879 = vmul.f32 %v733, %v851
        %v880 = vmul.f32 %v734, %v858
        %v881 = vmul.f32 %v735, %v865
        %v883 = vlaneseq
        %v884 = vshrl.u32 %v883, 7
        %v885 = vsub.s32 0, %v884
        %v886 = vrot.slane %v808, %v885
        %v896 = vunpack.c.l.b16 %v712
        %v897 = vunpack.c.l.b16 %v713
        %v898 = vunpack.c.l.b16 %v714
        %v899 = vunpack.c.l.b16 %v715
        %v900 = vunpack.c.l.b16 %v716
        %v901 = vunpack.c.l.b16 %v717
        %v902 = vunpack.c.l.b16 %v718
        %v903 = vunpack.c.l.b16 %v719
        %v904 = vpack.c.b16 %v897, %v896
        %v905 = vpack.c.b16 %v899, %v898
        %v906 = vpack.c.b16 %v901, %v900
        %v907 = vpack.c.b16 %v903, %v902
        %v910 = vunpack.c.l.b16 %v746
        %v911 = vunpack.c.l.b16 %v747
        %v912 = vpack.c.b16 %v911, %v910
        %vm914 = vcmask 130048
        %v916 = vsel %vm914, %v904, 0
        %v919 = vsel %vm914, %v905, 0
        %v922 = vsel %vm914, %v906, 0
        %v925 = vsel %vm914, %v907, 0
        %927 = vmatprep.subr.bf16.mxu0 0
        %928 = vmatpush1.bf16.msra.mxu0 %v912
        %929 = vmatprep.subr.bf16.mxu0 0
        %930 = vmatpush1.bf16.msra.mxu0 0
        %931 = vmatprep.subr.bf16.mxu0 0
        %932 = vmatpush1.bf16.msra.mxu0 0
        %933 = vmatprep.subr.bf16.mxu0 0
        %934 = vmatpush1.bf16.msra.mxu0 0
        %935 = vmatprep.subr.bf16.mxu0 0
        %936 = vmatpush1.bf16.msra.mxu0 0
        %937 = vmatprep.subr.bf16.mxu0 0
        %938 = vmatpush1.bf16.msra.mxu0 0
        %939 = vmatprep.subr.bf16.mxu0 0
        %940 = vmatpush1.bf16.msra.mxu0 0
        %941 = vmatprep.subr.bf16.mxu0 0
        %942 = vmatpush1.bf16.msra.mxu0 0
        %943 = vmatprep.subr.bf16.mxu0 0
        %944 = vmatpush1.bf16.msra.mxu0 0
        %945 = vmatprep.subr.bf16.mxu0 0
        %946 = vmatpush1.bf16.msra.mxu0 0
        %947 = vmatprep.subr.bf16.mxu0 0
        %948 = vmatpush1.bf16.msra.mxu0 0
        %949 = vmatprep.subr.bf16.mxu0 0
        %950 = vmatpush1.bf16.msra.mxu0 0
        %951 = vmatprep.subr.bf16.mxu0 0
        %952 = vmatpush1.bf16.msra.mxu0 0
        %953 = vmatprep.subr.bf16.mxu0 0
        %954 = vmatpush1.bf16.msra.mxu0 0
        %955 = vmatprep.subr.bf16.mxu0 0
        %956 = vmatpush1.bf16.msra.mxu0 0
        %957 = vmatprep.subr.bf16.mxu0 0
        %958 = vmatpush1.bf16.msra.mxu0 0
        %959 = vmatprep.mubr.bf16.mxu0 0
        %960 = vmatmul.mubr.bf16.gmra.mrb[0].mxu0 %v916
        %v961 = vpop.f32.mrb[0].mxu0
        %v962 = vadd.f32 %v886, %v961
        %v963 = vpop.f32.mrb[0].mxu0
        %v964 = vpop.f32.mrb[0].mxu0
        %v965 = vadd.f32 %v886, %v964
        %v966 = vpop.f32.mrb[0].mxu0
        %967 = vmatprep.mubr.bf16.mxu0 0
        %968 = vmatmul.mubr.bf16.gmra.mrb[0].mxu0 %v919
        %v969 = vpop.f32.mrb[0].mxu0
        %v970 = vadd.f32 %v886, %v969
        %v971 = vpop.f32.mrb[0].mxu0
        %v972 = vpop.f32.mrb[0].mxu0
        %v973 = vadd.f32 %v886, %v972
        %v974 = vpop.f32.mrb[0].mxu0
        %975 = vmatprep.mubr.bf16.mxu0 0
        %976 = vmatmul.mubr.bf16.gmra.mrb[0].mxu0 %v922
        %v977 = vpop.f32.mrb[0].mxu0
        %v978 = vadd.f32 %v886, %v977
        %v979 = vpop.f32.mrb[0].mxu0
        %v980 = vpop.f32.mrb[0].mxu0
        %v981 = vadd.f32 %v886, %v980
        %v982 = vpop.f32.mrb[0].mxu0
        %983 = vmatprep.mubr.bf16.mxu0 0
        %984 = vmatmul.mubr.bf16.gmra.mrb[0].mxu0 %v925
        %v985 = vpop.f32.mrb[0].mxu0
        %v986 = vadd.f32 %v886, %v985
        %v987 = vpop.f32.mrb[0].mxu0
        %v988 = vpop.f32.mrb[0].mxu0
        %v989 = vadd.f32 %v886, %v988
        %v990 = vpop.f32.mrb[0].mxu0
        %991 = vdwg.mxu0
        %v992 = vtanh.pop %v962
        %v993 = vtanh.pop %v965
        %v994 = vtanh.pop %v970
        %v995 = vtanh.pop %v973
        %v996 = vtanh.pop %v978
        %v997 = vtanh.pop %v981
        %v998 = vtanh.pop %v986
        %v999 = vtanh.pop %v989
        %v1001 = vcombine.high %v702, %v702
        %v1003 = vunpack.c.l.s4 1966171168
        %v1004 = vunpack.c.0.s8 %v1003
        %v1005 = vlaneseq
        %v1006 = vshrl.u32 %v1005, 7
        %v1007 = vsub.s32 %v1004, %v1006
        %v1008 = vrot.slane %v702, %v1007
        %v1010 = vunpack.c.l.s4 1966171168
        %v1011 = vunpack.c.0.s8 %v1010
        %v1012 = vlaneseq
        %v1013 = vshrl.u32 %v1012, 7
        %v1014 = vsub.s32 %v1011, %v1013
        %v1015 = vrot.slane %v1001, %v1014
        %v1016 = vcombine.high %v1008, %v1008
        %v1017 = vcombine.high %v1015, %v1015
        %v1019 = vunpack.c.l.s4 1966171168
        %v1020 = vunpack.c.0.s8 %v1019
        %v1021 = vlaneseq
        %v1022 = vshrl.u32 %v1021, 7
        %v1023 = vsub.s32 %v1020, %v1022
        %v1024 = vrot.slane %v1008, %v1023
        %v1026 = vunpack.c.l.s4 1966171168
        %v1027 = vunpack.c.0.s8 %v1026
        %v1028 = vlaneseq
        %v1029 = vshrl.u32 %v1028, 7
        %v1030 = vsub.s32 %v1027, %v1029
        %v1031 = vrot.slane %v1015, %v1030
        %v1033 = vunpack.c.l.s4 1966171168
        %v1034 = vunpack.c.0.s8 %v1033
        %v1035 = vlaneseq
        %v1036 = vshrl.u32 %v1035, 7
        %v1037 = vsub.s32 %v1034, %v1036
        %v1038 = vrot.slane %v1016, %v1037
        %v1040 = vunpack.c.l.s4 1966171168
        %v1041 = vunpack.c.0.s8 %v1040
        %v1042 = vlaneseq
        %v1043 = vshrl.u32 %v1042, 7
        %v1044 = vsub.s32 %v1041, %v1043
        %v1045 = vrot.slane %v1017, %v1044
        %v1046 = vcombine.high %v1024, %v1024
        %v1047 = vcombine.high %v1031, %v1031
        %v1048 = vcombine.high %v1038, %v1038
        %v1049 = vcombine.high %v1045, %v1045
        %v1050 = vlaneseq
        %v1051 = vshrl.u32 %v1050, 7
        %v1052 = vsub.s32 0, %v1051
        %v1053 = vrot.slane %v1024, %v1052
        %v1054 = vlaneseq
        %v1055 = vshrl.u32 %v1054, 7
        %v1056 = vsub.s32 0, %v1055
        %v1057 = vrot.slane %v1038, %v1056
        %v1058 = vlaneseq
        %v1059 = vshrl.u32 %v1058, 7
        %v1060 = vsub.s32 0, %v1059
        %v1061 = vrot.slane %v1046, %v1060
        %v1062 = vlaneseq
        %v1063 = vshrl.u32 %v1062, 7
        %v1064 = vsub.s32 0, %v1063
        %v1065 = vrot.slane %v1048, %v1064
        %v1066 = vlaneseq
        %v1067 = vshrl.u32 %v1066, 7
        %v1068 = vsub.s32 0, %v1067
        %v1069 = vrot.slane %v1031, %v1068
        %v1070 = vlaneseq
        %v1071 = vshrl.u32 %v1070, 7
        %v1072 = vsub.s32 0, %v1071
        %v1073 = vrot.slane %v1045, %v1072
        %v1074 = vlaneseq
        %v1075 = vshrl.u32 %v1074, 7
        %v1076 = vsub.s32 0, %v1075
        %v1077 = vrot.slane %v1047, %v1076
        %v1078 = vlaneseq
        %v1079 = vshrl.u32 %v1078, 7
        %v1080 = vsub.s32 0, %v1079
        %v1081 = vrot.slane %v1049, %v1080
        %v1090 = vmul.f32 %v1053, %v866
        %v1091 = vmul.f32 %v1057, %v867
        %v1092 = vmul.f32 %v1061, %v868
        %v1093 = vmul.f32 %v1065, %v869
        %v1094 = vmul.f32 %v1069, %v870
        %v1095 = vmul.f32 %v1073, %v871
        %v1096 = vmul.f32 %v1077, %v872
        %v1097 = vmul.f32 %v1081, %v873
        %v1098 = vpack.c.bf16 %v1091, %v1090
        %v1099 = vpack.c.bf16 %v1093, %v1092
        %v1100 = vpack.c.bf16 %v1095, %v1094
        %v1101 = vpack.c.bf16 %v1097, %v1096
        %v1106 = vunpack.c.l.b16 %v748
        %v1107 = vunpack.c.l.b16 %v749
        %v1108 = vunpack.c.l.b16 %v750
        %v1109 = vunpack.c.l.b16 %v751
        %v1110 = vpack.c.b16 %v1107, %v1106
        %v1111 = vpack.c.b16 %v1109, %v1108
        %vm1114 = vcmask 261120
        %v1116 = vsel %vm1114, %v1098, 0
        %v1119 = vsel %vm1114, %v1099, 0
        %v1122 = vsel %vm1114, %v1100, 0
        %v1125 = vsel %vm1114, %v1101, 0
        %1127 = vmatprep.subr.bf16.mxu0 0
        %1128 = vmatpush1.bf16.msra.mxu0 %v1110
        %1129 = vmatprep.subr.bf16.mxu0 0
        %1130 = vmatpush1.bf16.msra.mxu0 %v1111
        %1131 = vmatprep.subr.bf16.mxu0 0
        %1132 = vmatpush1.bf16.msra.mxu0 0
        %1133 = vmatprep.subr.bf16.mxu0 0
        %1134 = vmatpush1.bf16.msra.mxu0 0
        %1135 = vmatprep.subr.bf16.mxu0 0
        %1136 = vmatpush1.bf16.msra.mxu0 0
        %1137 = vmatprep.subr.bf16.mxu0 0
        %1138 = vmatpush1.bf16.msra.mxu0 0
        %1139 = vmatprep.subr.bf16.mxu0 0
        %1140 = vmatpush1.bf16.msra.mxu0 0
        %1141 = vmatprep.subr.bf16.mxu0 0
        %1142 = vmatpush1.bf16.msra.mxu0 0
        %1143 = vmatprep.subr.bf16.mxu0 0
        %1144 = vmatpush1.bf16.msra.mxu0 0
        %1145 = vmatprep.subr.bf16.mxu0 0
        %1146 = vmatpush1.bf16.msra.mxu0 0
        %1147 = vmatprep.subr.bf16.mxu0 0
        %1148 = vmatpush1.bf16.msra.mxu0 0
        %1149 = vmatprep.subr.bf16.mxu0 0
        %1150 = vmatpush1.bf16.msra.mxu0 0
        %1151 = vmatprep.subr.bf16.mxu0 0
        %1152 = vmatpush1.bf16.msra.mxu0 0
        %1153 = vmatprep.subr.bf16.mxu0 0
        %1154 = vmatpush1.bf16.msra.mxu0 0
        %1155 = vmatprep.subr.bf16.mxu0 0
        %1156 = vmatpush1.bf16.msra.mxu0 0
        %1157 = vmatprep.subr.bf16.mxu0 0
        %1158 = vmatpush1.bf16.msra.mxu0 0
        %1159 = vmatprep.mubr.bf16.mxu0 0
        %1160 = vmatmul.mubr.bf16.gmra.mrb[0].mxu0 %v1116
        %v1161 = vpop.f32.mrb[0].mxu0
        %v1162 = vadd.f32 0.0, %v1161
        %v1163 = vpop.f32.mrb[0].mxu0
        %v1164 = vpop.f32.mrb[0].mxu0
        %v1165 = vadd.f32 0.0, %v1164
        %v1166 = vpop.f32.mrb[0].mxu0
        %1167 = vmatprep.mubr.bf16.mxu0 0
        %1168 = vmatmul.mubr.bf16.gmra.mrb[0].mxu0 %v1119
        %v1169 = vpop.f32.mrb[0].mxu0
        %v1170 = vadd.f32 0.0, %v1169
        %v1171 = vpop.f32.mrb[0].mxu0
        %v1172 = vpop.f32.mrb[0].mxu0
        %v1173 = vadd.f32 0.0, %v1172
        %v1174 = vpop.f32.mrb[0].mxu0
        %1175 = vmatprep.mubr.bf16.mxu0 0
        %1176 = vmatmul.mubr.bf16.gmra.mrb[0].mxu0 %v1122
        %v1177 = vpop.f32.mrb[0].mxu0
        %v1178 = vadd.f32 0.0, %v1177
        %v1179 = vpop.f32.mrb[0].mxu0
        %v1180 = vpop.f32.mrb[0].mxu0
        %v1181 = vadd.f32 0.0, %v1180
        %v1182 = vpop.f32.mrb[0].mxu0
        %1183 = vmatprep.mubr.bf16.mxu0 0
        %1184 = vmatmul.mubr.bf16.gmra.mrb[0].mxu0 %v1125
        %v1185 = vpop.f32.mrb[0].mxu0
        %v1186 = vadd.f32 0.0, %v1185
        %v1187 = vpop.f32.mrb[0].mxu0
        %v1188 = vpop.f32.mrb[0].mxu0
        %v1189 = vadd.f32 0.0, %v1188
        %v1190 = vpop.f32.mrb[0].mxu0
        %1191 = vdwg.mxu0
        %v1192 = vlaneseq
        %v1193 = vshrl.u32 %v1192, 7
        %v1194 = vsub.s32 0, %v1193
        %v1195 = vrot.slane %v736, %v1194
        %1197 = vbcast.lane.b32.xlu0 %v1195, 256
        %v1198 = vpop.permute.xlu0 %1197
        %v1199 = vlaneseq
        %v1200 = vshrl.u32 %v1199, 7
        %v1201 = vsub.s32 0, %v1200
        %v1202 = vrot.slane %v737, %v1201
        %1204 = vbcast.lane.b32.xlu0 %v1202, 256
        %v1205 = vpop.permute.xlu0 %1204
        %v1206 = vlaneseq
        %v1207 = vshrl.u32 %v1206, 7
        %v1208 = vsub.s32 0, %v1207
        %v1209 = vrot.slane %v738, %v1208
        %1211 = vbcast.lane.b32.xlu0 %v1209, 256
        %v1212 = vpop.permute.xlu0 %1211
        %v1213 = vlaneseq
        %v1214 = vshrl.u32 %v1213, 7
        %v1215 = vsub.s32 0, %v1214
        %v1216 = vrot.slane %v739, %v1215
        %1218 = vbcast.lane.b32.xlu0 %v1216, 256
        %v1219 = vpop.permute.xlu0 %1218
        %v1220 = vlaneseq
        %v1221 = vshrl.u32 %v1220, 7
        %v1222 = vsub.s32 0, %v1221
        %v1223 = vrot.slane %v740, %v1222
        %1225 = vbcast.lane.b32.xlu0 %v1223, 256
        %v1226 = vpop.permute.xlu0 %1225
        %v1227 = vlaneseq
        %v1228 = vshrl.u32 %v1227, 7
        %v1229 = vsub.s32 0, %v1228
        %v1230 = vrot.slane %v741, %v1229
        %1232 = vbcast.lane.b32.xlu0 %v1230, 256
        %v1233 = vpop.permute.xlu0 %1232
        %v1234 = vlaneseq
        %v1235 = vshrl.u32 %v1234, 7
        %v1236 = vsub.s32 0, %v1235
        %v1237 = vrot.slane %v742, %v1236
        %1239 = vbcast.lane.b32.xlu0 %v1237, 256
        %v1240 = vpop.permute.xlu0 %1239
        %v1241 = vlaneseq
        %v1242 = vshrl.u32 %v1241, 7
        %v1243 = vsub.s32 0, %v1242
        %v1244 = vrot.slane %v743, %v1243
        %1246 = vbcast.lane.b32.xlu0 %v1244, 256
        %v1247 = vpop.permute.xlu0 %1246
        %v1248 = vmul.f32 %v1198, %v1195
        %v1249 = vmul.f32 %v1205, %v1202
        %v1250 = vmul.f32 %v1212, %v1209
        %v1251 = vmul.f32 %v1219, %v1216
        %v1252 = vmul.f32 %v1226, %v1223
        %v1253 = vmul.f32 %v1233, %v1230
        %v1254 = vmul.f32 %v1240, %v1237
        %v1255 = vmul.f32 %v1247, %v1244
        %v1256 = vlaneseq
        %v1257 = vshrl.u32 %v1256, 7
        %v1258 = vsub.s32 1, %v1257
        %v1259 = vrot.slane %v736, %v1258
        %1261 = vbcast.lane.b32.xlu0 %v1259, 256
        %v1262 = vpop.permute.xlu0 %1261
        %v1263 = vlaneseq
        %v1264 = vshrl.u32 %v1263, 7
        %v1265 = vsub.s32 1, %v1264
        %v1266 = vrot.slane %v737, %v1265
        %1268 = vbcast.lane.b32.xlu0 %v1266, 256
        %v1269 = vpop.permute.xlu0 %1268
        %v1270 = vlaneseq
        %v1271 = vshrl.u32 %v1270, 7
        %v1272 = vsub.s32 1, %v1271
        %v1273 = vrot.slane %v738, %v1272
        %1275 = vbcast.lane.b32.xlu0 %v1273, 256
        %v1276 = vpop.permute.xlu0 %1275
        %v1277 = vlaneseq
        %v1278 = vshrl.u32 %v1277, 7
        %v1279 = vsub.s32 1, %v1278
        %v1280 = vrot.slane %v739, %v1279
        %1282 = vbcast.lane.b32.xlu0 %v1280, 256
        %v1283 = vpop.permute.xlu0 %1282
        %v1284 = vlaneseq
        %v1285 = vshrl.u32 %v1284, 7
        %v1286 = vsub.s32 1, %v1285
        %v1287 = vrot.slane %v740, %v1286
        %1289 = vbcast.lane.b32.xlu0 %v1287, 256
        %v1290 = vpop.permute.xlu0 %1289
        %v1291 = vlaneseq
        %v1292 = vshrl.u32 %v1291, 7
        %v1293 = vsub.s32 1, %v1292
        %v1294 = vrot.slane %v741, %v1293
        %1296 = vbcast.lane.b32.xlu0 %v1294, 256
        %v1297 = vpop.permute.xlu0 %1296
        %v1298 = vlaneseq
        %v1299 = vshrl.u32 %v1298, 7
        %v1300 = vsub.s32 1, %v1299
        %v1301 = vrot.slane %v742, %v1300
        %1303 = vbcast.lane.b32.xlu0 %v1301, 256
        %v1304 = vpop.permute.xlu0 %1303
        %v1305 = vlaneseq
        %v1306 = vshrl.u32 %v1305, 7
        %v1307 = vsub.s32 1, %v1306
        %v1308 = vrot.slane %v743, %v1307
        %1310 = vbcast.lane.b32.xlu0 %v1308, 256
        %v1311 = vpop.permute.xlu0 %1310
        %v1312 = vmul.f32 %v1262, %v1259
        %v1313 = vmul.f32 %v1269, %v1266
        %v1314 = vmul.f32 %v1276, %v1273
        %v1315 = vmul.f32 %v1283, %v1280
        %v1316 = vmul.f32 %v1290, %v1287
        %v1317 = vmul.f32 %v1297, %v1294
        %v1318 = vmul.f32 %v1304, %v1301
        %v1319 = vmul.f32 %v1311, %v1308
        %v1320 = vadd.f32 %v1248, %v1312
        %v1321 = vadd.f32 %v1249, %v1313
        %v1322 = vadd.f32 %v1250, %v1314
        %v1323 = vadd.f32 %v1251, %v1315
        %v1324 = vadd.f32 %v1252, %v1316
        %v1325 = vadd.f32 %v1253, %v1317
        %v1326 = vadd.f32 %v1254, %v1318
        %v1327 = vadd.f32 %v1255, %v1319
        %v1328 = vlaneseq
        %v1329 = vshrl.u32 %v1328, 7
        %v1330 = vsub.s32 2, %v1329
        %v1331 = vrot.slane %v736, %v1330
        %1333 = vbcast.lane.b32.xlu0 %v1331, 256
        %v1334 = vpop.permute.xlu0 %1333
        %v1335 = vlaneseq
        %v1336 = vshrl.u32 %v1335, 7
        %v1337 = vsub.s32 2, %v1336
        %v1338 = vrot.slane %v737, %v1337
        %1340 = vbcast.lane.b32.xlu0 %v1338, 256
        %v1341 = vpop.permute.xlu0 %1340
        %v1342 = vlaneseq
        %v1343 = vshrl.u32 %v1342, 7
        %v1344 = vsub.s32 2, %v1343
        %v1345 = vrot.slane %v738, %v1344
        %1347 = vbcast.lane.b32.xlu0 %v1345, 256
        %v1348 = vpop.permute.xlu0 %1347
        %v1349 = vlaneseq
        %v1350 = vshrl.u32 %v1349, 7
        %v1351 = vsub.s32 2, %v1350
        %v1352 = vrot.slane %v739, %v1351
        %1354 = vbcast.lane.b32.xlu0 %v1352, 256
        %v1355 = vpop.permute.xlu0 %1354
        %v1356 = vlaneseq
        %v1357 = vshrl.u32 %v1356, 7
        %v1358 = vsub.s32 2, %v1357
        %v1359 = vrot.slane %v740, %v1358
        %1361 = vbcast.lane.b32.xlu0 %v1359, 256
        %v1362 = vpop.permute.xlu0 %1361
        %v1363 = vlaneseq
        %v1364 = vshrl.u32 %v1363, 7
        %v1365 = vsub.s32 2, %v1364
        %v1366 = vrot.slane %v741, %v1365
        %1368 = vbcast.lane.b32.xlu0 %v1366, 256
        %v1369 = vpop.permute.xlu0 %1368
        %v1370 = vlaneseq
        %v1371 = vshrl.u32 %v1370, 7
        %v1372 = vsub.s32 2, %v1371
        %v1373 = vrot.slane %v742, %v1372
        %1375 = vbcast.lane.b32.xlu0 %v1373, 256
        %v1376 = vpop.permute.xlu0 %1375
        %v1377 = vlaneseq
        %v1378 = vshrl.u32 %v1377, 7
        %v1379 = vsub.s32 2, %v1378
        %v1380 = vrot.slane %v743, %v1379
        %1382 = vbcast.lane.b32.xlu0 %v1380, 256
        %v1383 = vpop.permute.xlu0 %1382
        %v1384 = vmul.f32 %v1334, %v1331
        %v1385 = vmul.f32 %v1341, %v1338
        %v1386 = vmul.f32 %v1348, %v1345
        %v1387 = vmul.f32 %v1355, %v1352
        %v1388 = vmul.f32 %v1362, %v1359
        %v1389 = vmul.f32 %v1369, %v1366
        %v1390 = vmul.f32 %v1376, %v1373
        %v1391 = vmul.f32 %v1383, %v1380
        %v1392 = vadd.f32 %v1320, %v1384
        %v1393 = vadd.f32 %v1321, %v1385
        %v1394 = vadd.f32 %v1322, %v1386
        %v1395 = vadd.f32 %v1323, %v1387
        %v1396 = vadd.f32 %v1324, %v1388
        %v1397 = vadd.f32 %v1325, %v1389
        %v1398 = vadd.f32 %v1326, %v1390
        %v1399 = vadd.f32 %v1327, %v1391
        %v1400 = vmul.f32 %v1392, 0.57735026
        %v1401 = vmul.f32 %v1393, 0.57735026
        %v1402 = vmul.f32 %v1394, 0.57735026
        %v1403 = vmul.f32 %v1395, 0.57735026
        %v1404 = vmul.f32 %v1396, 0.57735026
        %v1405 = vmul.f32 %v1397, 0.57735026
        %v1406 = vmul.f32 %v1398, 0.57735026
        %v1407 = vmul.f32 %v1399, 0.57735026
        %v1408 = vlaneseq
        %v1409 = vshrl.u32 %v1408, 7
        %v1410 = vsub.s32 0, %v1409
        %v1411 = vrot.slane %v745, %v1410
        %1413 = vbcast.lane.b32.xlu0 %v1411, 256
        %v1414 = vpop.permute.xlu0 %1413
        %v1415 = vlaneseq
        %v1416 = vshrl.u32 %v1415, 7
        %v1417 = vsub.s32 1, %v1416
        %v1418 = vrot.slane %v745, %v1417
        %1420 = vbcast.lane.b32.xlu0 %v1418, 256
        %v1421 = vpop.permute.xlu0 %1420
        %v1422 = vlaneseq
        %v1423 = vshrl.u32 %v1422, 7
        %v1424 = vsub.s32 2, %v1423
        %v1425 = vrot.slane %v745, %v1424
        %1427 = vbcast.lane.b32.xlu0 %v1425, 256
        %v1428 = vpop.permute.xlu0 %1427
        %v1429 = vlaneseq
        %v1430 = vshrl.u32 %v1429, 7
        %v1431 = vsub.s32 3, %v1430
        %v1432 = vrot.slane %v745, %v1431
        %1434 = vbcast.lane.b32.xlu0 %v1432, 256
        %v1435 = vpop.permute.xlu0 %1434
        %v1436 = vlaneseq
        %v1437 = vshrl.u32 %v1436, 7
        %v1438 = vsub.s32 4, %v1437
        %v1439 = vrot.slane %v745, %v1438
        %1441 = vbcast.lane.b32.xlu0 %v1439, 256
        %v1442 = vpop.permute.xlu0 %1441
        %v1443 = vlaneseq
        %v1444 = vshrl.u32 %v1443, 7
        %v1445 = vsub.s32 5, %v1444
        %v1446 = vrot.slane %v745, %v1445
        %1448 = vbcast.lane.b32.xlu0 %v1446, 256
        %v1449 = vpop.permute.xlu0 %1448
        %v1450 = vlaneseq
        %v1451 = vshrl.u32 %v1450, 7
        %v1452 = vsub.s32 6, %v1451
        %v1453 = vrot.slane %v745, %v1452
        %1455 = vbcast.lane.b32.xlu0 %v1453, 256
        %v1456 = vpop.permute.xlu0 %1455
        %v1457 = vlaneseq
        %v1458 = vshrl.u32 %v1457, 7
        %v1459 = vsub.s32 7, %v1458
        %v1460 = vrot.slane %v745, %v1459
        %1462 = vbcast.lane.b32.xlu0 %v1460, 256
        %v1463 = vpop.permute.xlu0 %1462
        %v1465 = vcombine.high %v745, %v745
        %v1467 = vunpack.c.l.s4 1966171168
        %v1468 = vunpack.c.0.s8 %v1467
        %v1469 = vlaneseq
        %v1470 = vshrl.u32 %v1469, 7
        %v1471 = vsub.s32 %v1468, %v1470
        %v1472 = vrot.slane %v745, %v1471
        %v1474 = vunpack.c.l.s4 1966171168
        %v1475 = vunpack.c.0.s8 %v1474
        %v1476 = vlaneseq
        %v1477 = vshrl.u32 %v1476, 7
        %v1478 = vsub.s32 %v1475, %v1477
        %v1479 = vrot.slane %v1465, %v1478
        %v1480 = vcombine.high %v1472, %v1472
        %v1481 = vcombine.high %v1479, %v1479
        %v1483 = vunpack.c.l.s4 1966171168
        %v1484 = vunpack.c.0.s8 %v1483
        %v1485 = vlaneseq
        %v1486 = vshrl.u32 %v1485, 7
        %v1487 = vsub.s32 %v1484, %v1486
        %v1488 = vrot.slane %v1472, %v1487
        %v1490 = vunpack.c.l.s4 1966171168
        %v1491 = vunpack.c.0.s8 %v1490
        %v1492 = vlaneseq
        %v1493 = vshrl.u32 %v1492, 7
        %v1494 = vsub.s32 %v1491, %v1493
        %v1495 = vrot.slane %v1479, %v1494
        %v1497 = vunpack.c.l.s4 1966171168
        %v1498 = vunpack.c.0.s8 %v1497
        %v1499 = vlaneseq
        %v1500 = vshrl.u32 %v1499, 7
        %v1501 = vsub.s32 %v1498, %v1500
        %v1502 = vrot.slane %v1480, %v1501
        %v1504 = vunpack.c.l.s4 1966171168
        %v1505 = vunpack.c.0.s8 %v1504
        %v1506 = vlaneseq
        %v1507 = vshrl.u32 %v1506, 7
        %v1508 = vsub.s32 %v1505, %v1507
        %v1509 = vrot.slane %v1481, %v1508
        %v1510 = vcombine.high %v1488, %v1488
        %v1511 = vcombine.high %v1495, %v1495
        %v1512 = vcombine.high %v1502, %v1502
        %v1513 = vcombine.high %v1509, %v1509
        %v1514 = vlaneseq
        %v1515 = vshrl.u32 %v1514, 7
        %v1516 = vsub.s32 0, %v1515
        %v1517 = vrot.slane %v1488, %v1516
        %v1518 = vlaneseq
        %v1519 = vshrl.u32 %v1518, 7
        %v1520 = vsub.s32 0, %v1519
        %v1521 = vrot.slane %v1502, %v1520
        %v1522 = vlaneseq
        %v1523 = vshrl.u32 %v1522, 7
        %v1524 = vsub.s32 0, %v1523
        %v1525 = vrot.slane %v1510, %v1524
        %v1526 = vlaneseq
        %v1527 = vshrl.u32 %v1526, 7
        %v1528 = vsub.s32 0, %v1527
        %v1529 = vrot.slane %v1512, %v1528
        %v1530 = vlaneseq
        %v1531 = vshrl.u32 %v1530, 7
        %v1532 = vsub.s32 0, %v1531
        %v1533 = vrot.slane %v1495, %v1532
        %v1534 = vlaneseq
        %v1535 = vshrl.u32 %v1534, 7
        %v1536 = vsub.s32 0, %v1535
        %v1537 = vrot.slane %v1509, %v1536
        %v1538 = vlaneseq
        %v1539 = vshrl.u32 %v1538, 7
        %v1540 = vsub.s32 0, %v1539
        %v1541 = vrot.slane %v1511, %v1540
        %v1542 = vlaneseq
        %v1543 = vshrl.u32 %v1542, 7
        %v1544 = vsub.s32 0, %v1543
        %v1545 = vrot.slane %v1513, %v1544
        %v1554 = vmul.f32 %v1414, %v1517
        %v1555 = vmul.f32 %v1421, %v1521
        %v1556 = vmul.f32 %v1428, %v1525
        %v1557 = vmul.f32 %v1435, %v1529
        %v1558 = vmul.f32 %v1442, %v1533
        %v1559 = vmul.f32 %v1449, %v1537
        %v1560 = vmul.f32 %v1456, %v1541
        %v1561 = vmul.f32 %v1463, %v1545
        %v1563 = vcombine.high %v809, %v809
        %v1565 = vunpack.c.l.s4 1966171168
        %v1566 = vunpack.c.0.s8 %v1565
        %v1567 = vlaneseq
        %v1568 = vshrl.u32 %v1567, 7
        %v1569 = vsub.s32 %v1566, %v1568
        %v1570 = vrot.slane %v809, %v1569
        %v1572 = vunpack.c.l.s4 1966171168
        %v1573 = vunpack.c.0.s8 %v1572
        %v1574 = vlaneseq
        %v1575 = vshrl.u32 %v1574, 7
        %v1576 = vsub.s32 %v1573, %v1575
        %v1577 = vrot.slane %v1563, %v1576
        %v1578 = vcombine.high %v1570, %v1570
        %v1579 = vcombine.high %v1577, %v1577
        %v1581 = vunpack.c.l.s4 1966171168
        %v1582 = vunpack.c.0.s8 %v1581
        %v1583 = vlaneseq
        %v1584 = vshrl.u32 %v1583, 7
        %v1585 = vsub.s32 %v1582, %v1584
        %v1586 = vrot.slane %v1570, %v1585
        %v1588 = vunpack.c.l.s4 1966171168
        %v1589 = vunpack.c.0.s8 %v1588
        %v1590 = vlaneseq
        %v1591 = vshrl.u32 %v1590, 7
        %v1592 = vsub.s32 %v1589, %v1591
        %v1593 = vrot.slane %v1577, %v1592
        %v1595 = vunpack.c.l.s4 1966171168
        %v1596 = vunpack.c.0.s8 %v1595
        %v1597 = vlaneseq
        %v1598 = vshrl.u32 %v1597, 7
        %v1599 = vsub.s32 %v1596, %v1598
        %v1600 = vrot.slane %v1578, %v1599
        %v1602 = vunpack.c.l.s4 1966171168
        %v1603 = vunpack.c.0.s8 %v1602
        %v1604 = vlaneseq
        %v1605 = vshrl.u32 %v1604, 7
        %v1606 = vsub.s32 %v1603, %v1605
        %v1607 = vrot.slane %v1579, %v1606
        %v1608 = vcombine.high %v1586, %v1586
        %v1609 = vcombine.high %v1593, %v1593
        %v1610 = vcombine.high %v1600, %v1600
        %v1611 = vcombine.high %v1607, %v1607
        %v1612 = vlaneseq
        %v1613 = vshrl.u32 %v1612, 7
        %v1614 = vsub.s32 0, %v1613
        %v1615 = vrot.slane %v1586, %v1614
        %v1616 = vlaneseq
        %v1617 = vshrl.u32 %v1616, 7
        %v1618 = vsub.s32 0, %v1617
        %v1619 = vrot.slane %v1600, %v1618
        %v1620 = vlaneseq
        %v1621 = vshrl.u32 %v1620, 7
        %v1622 = vsub.s32 0, %v1621
        %v1623 = vrot.slane %v1608, %v1622
        %v1624 = vlaneseq
        %v1625 = vshrl.u32 %v1624, 7
        %v1626 = vsub.s32 0, %v1625
        %v1627 = vrot.slane %v1610, %v1626
        %v1628 = vlaneseq
        %v1629 = vshrl.u32 %v1628, 7
        %v1630 = vsub.s32 0, %v1629
        %v1631 = vrot.slane %v1593, %v1630
        %v1632 = vlaneseq
        %v1633 = vshrl.u32 %v1632, 7
        %v1634 = vsub.s32 0, %v1633
        %v1635 = vrot.slane %v1607, %v1634
        %v1636 = vlaneseq
        %v1637 = vshrl.u32 %v1636, 7
        %v1638 = vsub.s32 0, %v1637
        %v1639 = vrot.slane %v1609, %v1638
        %v1640 = vlaneseq
        %v1641 = vshrl.u32 %v1640, 7
        %v1642 = vsub.s32 0, %v1641
        %v1643 = vrot.slane %v1611, %v1642
        %v1652 = vmul.f32 %v816, %v1615
        %v1653 = vmul.f32 %v823, %v1619
        %v1654 = vmul.f32 %v830, %v1623
        %v1655 = vmul.f32 %v837, %v1627
        %v1656 = vmul.f32 %v844, %v1631
        %v1657 = vmul.f32 %v851, %v1635
        %v1658 = vmul.f32 %v858, %v1639
        %v1659 = vmul.f32 %v865, %v1643
        %v1660 = vmul.f32 %v1652, %v1400
        %v1661 = vmul.f32 %v1653, %v1401
        %v1662 = vmul.f32 %v1654, %v1402
        %v1663 = vmul.f32 %v1655, %v1403
        %v1664 = vmul.f32 %v1656, %v1404
        %v1665 = vmul.f32 %v1657, %v1405
        %v1666 = vmul.f32 %v1658, %v1406
        %v1667 = vmul.f32 %v1659, %v1407
        %v1670 = vunpack.c.l.b16 %v760
        %v1671 = vunpack.c.l.b16 %v761
        %v1672 = vpack.c.b16 %v1671, %v1670
        %1674 = vmatprep.subr.bf16.mxu0 0
        %1675 = vmatpush1.bf16.msra.mxu0 %v1672
        %1676 = vmatprep.subr.bf16.mxu0 0
        %1677 = vmatpush1.bf16.msra.mxu0 0
        %1678 = vmatprep.subr.bf16.mxu0 0
        %1679 = vmatpush1.bf16.msra.mxu0 0
        %1680 = vmatprep.subr.bf16.mxu0 0
        %1681 = vmatpush1.bf16.msra.mxu0 0
        %1682 = vmatprep.subr.bf16.mxu0 0
        %1683 = vmatpush1.bf16.msra.mxu0 0
        %1684 = vmatprep.subr.bf16.mxu0 0
        %1685 = vmatpush1.bf16.msra.mxu0 0
        %1686 = vmatprep.subr.bf16.mxu0 0
        %1687 = vmatpush1.bf16.msra.mxu0 0
        %1688 = vmatprep.subr.bf16.mxu0 0
        %1689 = vmatpush1.bf16.msra.mxu0 0
        %1690 = vmatprep.subr.bf16.mxu0 0
        %1691 = vmatpush1.bf16.msra.mxu0 0
        %1692 = vmatprep.subr.bf16.mxu0 0
        %1693 = vmatpush1.bf16.msra.mxu0 0
        %1694 = vmatprep.subr.bf16.mxu0 0
        %1695 = vmatpush1.bf16.msra.mxu0 0
        %1696 = vmatprep.subr.bf16.mxu0 0
        %1697 = vmatpush1.bf16.msra.mxu0 0
        %1698 = vmatprep.subr.bf16.mxu0 0
        %1699 = vmatpush1.bf16.msra.mxu0 0
        %1700 = vmatprep.subr.bf16.mxu0 0
        %1701 = vmatpush1.bf16.msra.mxu0 0
        %1702 = vmatprep.subr.bf16.mxu0 0
        %1703 = vmatpush1.bf16.msra.mxu0 0
        %1704 = vmatprep.subr.bf16.mxu0 0
        %1705 = vmatpush1.bf16.msra.mxu0 0
        %1706 = vmatprep.mubr.bf16.mxu0 0
        %1707 = vmatmul.mubr.bf16.gmra.mrb[0].mxu0 %v916
        %v1708 = vpop.f32.mrb[0].mxu0
        %v1709 = vadd.f32 0.0, %v1708
        %v1710 = vpop.f32.mrb[0].mxu0
        %v1711 = vpop.f32.mrb[0].mxu0
        %v1712 = vadd.f32 0.0, %v1711
        %v1713 = vpop.f32.mrb[0].mxu0
        %1714 = vmatprep.mubr.bf16.mxu0 0
        %1715 = vmatmul.mubr.bf16.gmra.mrb[0].mxu0 %v919
        %v1716 = vpop.f32.mrb[0].mxu0
        %v1717 = vadd.f32 0.0, %v1716
        %v1718 = vpop.f32.mrb[0].mxu0
        %v1719 = vpop.f32.mrb[0].mxu0
        %v1720 = vadd.f32 0.0, %v1719
        %v1721 = vpop.f32.mrb[0].mxu0
        %1722 = vmatprep.mubr.bf16.mxu0 0
        %1723 = vmatmul.mubr.bf16.gmra.mrb[0].mxu0 %v922
        %v1724 = vpop.f32.mrb[0].mxu0
        %v1725 = vadd.f32 0.0, %v1724
        %v1726 = vpop.f32.mrb[0].mxu0
        %v1727 = vpop.f32.mrb[0].mxu0
        %v1728 = vadd.f32 0.0, %v1727
        %v1729 = vpop.f32.mrb[0].mxu0
        %1730 = vmatprep.mubr.bf16.mxu0 0
        %1731 = vmatmul.mubr.bf16.gmra.mrb[0].mxu0 %v925
        %v1732 = vpop.f32.mrb[0].mxu0
        %v1733 = vadd.f32 0.0, %v1732
        %v1734 = vpop.f32.mrb[0].mxu0
        %v1735 = vpop.f32.mrb[0].mxu0
        %v1736 = vadd.f32 0.0, %v1735
        %v1737 = vpop.f32.mrb[0].mxu0
        %1738 = vdwg.mxu0
        %v1739 = vpack.c.bf16 %v1709, %v1709
        %v1740 = vpack.c.bf16 %v1712, %v1712
        %v1741 = vpack.c.bf16 %v1717, %v1717
        %v1742 = vpack.c.bf16 %v1720, %v1720
        %v1743 = vpack.c.bf16 %v1725, %v1725
        %v1744 = vpack.c.bf16 %v1728, %v1728
        %v1745 = vpack.c.bf16 %v1733, %v1733
        %v1746 = vpack.c.bf16 %v1736, %v1736
        %1748 = vrot.lane.b32.xlu0 %v1739, 112
        %v1749 = vpop.permute.xlu0 %1748
        %vm1750 = vcmask 64512
        %v1752 = vsel %vm1750, %v1739, 0
        %v1755 = vsel %vm1750, %v1749, 0
        %1757 = vmatprep.subr.bf16.mxu0 0
        %1758 = vmatpush1.bf16.xpose.msra.mxu0 %v1755
        %1759 = vmatprep.subr.bf16.mxu0 0
        %1760 = vmatpush1.bf16.xpose.msra.mxu0 0
        %1761 = vmatprep.subr.bf16.mxu0 0
        %1762 = vmatpush1.bf16.xpose.msra.mxu0 0
        %1763 = vmatprep.subr.bf16.mxu0 0
        %1764 = vmatpush1.bf16.xpose.msra.mxu0 0
        %1765 = vmatprep.subr.bf16.mxu0 0
        %1766 = vmatpush1.bf16.xpose.msra.mxu0 0
        %1767 = vmatprep.subr.bf16.mxu0 0
        %1768 = vmatpush1.bf16.xpose.msra.mxu0 0
        %1769 = vmatprep.subr.bf16.mxu0 0
        %1770 = vmatpush1.bf16.xpose.msra.mxu0 0
        %1771 = vmatprep.subr.bf16.mxu0 0
        %1772 = vmatpush1.bf16.xpose.msra.mxu0 0
        %1773 = vmatprep.subr.bf16.mxu0 0
        %1774 = vmatpush1.bf16.xpose.msra.mxu0 0
        %1775 = vmatprep.subr.bf16.mxu0 0
        %1776 = vmatpush1.bf16.xpose.msra.mxu0 0
        %1777 = vmatprep.subr.bf16.mxu0 0
        %1778 = vmatpush1.bf16.xpose.msra.mxu0 0
        %1779 = vmatprep.subr.bf16.mxu0 0
        %1780 = vmatpush1.bf16.xpose.msra.mxu0 0
        %1781 = vmatprep.subr.bf16.mxu0 0
        %1782 = vmatpush1.bf16.xpose.msra.mxu0 0
        %1783 = vmatprep.subr.bf16.mxu0 0
        %1784 = vmatpush1.bf16.xpose.msra.mxu0 0
        %1785 = vmatprep.subr.bf16.mxu0 0
        %1786 = vmatpush1.bf16.xpose.msra.mxu0 0
        %1787 = vmatprep.subr.bf16.mxu0 0
        %1788 = vmatpush1.bf16.xpose.msra.mxu0 0
        %1789 = vmatprep.mubr.bf16.mxu0 0
        %1790 = vmatmul.mubr.bf16.gmra.mrb[0].mxu0 %v1752
        %v1791 = vpop.f32.mrb[0].mxu0
        %v1792 = vadd.f32 0.0, %v1791
        %v1793 = vpop.f32.mrb[0].mxu0
        %v1794 = vpop.f32.mrb[0].mxu0
        %v1795 = vpop.f32.mrb[0].mxu0
        %1796 = vdwg.mxu0
        %1798 = vrot.lane.b32.xlu0 %v1740, 112
        %v1799 = vpop.permute.xlu0 %1798
        %v1801 = vsel %vm1750, %v1740, 0
        %v1804 = vsel %vm1750, %v1799, 0
        %1806 = vmatprep.subr.bf16.mxu0 0
        %1807 = vmatpush1.bf16.xpose.msra.mxu0 %v1804
        %1808 = vmatprep.subr.bf16.mxu0 0
        %1809 = vmatpush1.bf16.xpose.msra.mxu0 0
        %1810 = vmatprep.subr.bf16.mxu0 0
        %1811 = vmatpush1.bf16.xpose.msra.mxu0 0
        %1812 = vmatprep.subr.bf16.mxu0 0
        %1813 = vmatpush1.bf16.xpose.msra.mxu0 0
        %1814 = vmatprep.subr.bf16.mxu0 0
        %1815 = vmatpush1.bf16.xpose.msra.mxu0 0
        %1816 = vmatprep.subr.bf16.mxu0 0
        %1817 = vmatpush1.bf16.xpose.msra.mxu0 0
        %1818 = vmatprep.subr.bf16.mxu0 0
        %1819 = vmatpush1.bf16.xpose.msra.mxu0 0
        %1820 = vmatprep.subr.bf16.mxu0 0
        %1821 = vmatpush1.bf16.xpose.msra.mxu0 0
        %1822 = vmatprep.subr.bf16.mxu0 0
        %1823 = vmatpush1.bf16.xpose.msra.mxu0 0
        %1824 = vmatprep.subr.bf16.mxu0 0
        %1825 = vmatpush1.bf16.xpose.msra.mxu0 0
        %1826 = vmatprep.subr.bf16.mxu0 0
        %1827 = vmatpush1.bf16.xpose.msra.mxu0 0
        %1828 = vmatprep.subr.bf16.mxu0 0
        %1829 = vmatpush1.bf16.xpose.msra.mxu0 0
        %1830 = vmatprep.subr.bf16.mxu0 0
        %1831 = vmatpush1.bf16.xpose.msra.mxu0 0
        %1832 = vmatprep.subr.bf16.mxu0 0
        %1833 = vmatpush1.bf16.xpose.msra.mxu0 0
        %1834 = vmatprep.subr.bf16.mxu0 0
        %1835 = vmatpush1.bf16.xpose.msra.mxu0 0
        %1836 = vmatprep.subr.bf16.mxu0 0
        %1837 = vmatpush1.bf16.xpose.msra.mxu0 0
        %1838 = vmatprep.mubr.bf16.mxu0 0
        %1839 = vmatmul.mubr.bf16.gmra.mrb[0].mxu0 %v1801
        %v1840 = vpop.f32.mrb[0].mxu0
        %v1841 = vadd.f32 0.0, %v1840
        %v1842 = vpop.f32.mrb[0].mxu0
        %v1843 = vpop.f32.mrb[0].mxu0
        %v1844 = vpop.f32.mrb[0].mxu0
        %1845 = vdwg.mxu0
        %1847 = vrot.lane.b32.xlu0 %v1741, 112
        %v1848 = vpop.permute.xlu0 %1847
        %v1850 = vsel %vm1750, %v1741, 0
        %v1853 = vsel %vm1750, %v1848, 0
        %1855 = vmatprep.subr.bf16.mxu0 0
        %1856 = vmatpush1.bf16.xpose.msra.mxu0 %v1853
        %1857 = vmatprep.subr.bf16.mxu0 0
        %1858 = vmatpush1.bf16.xpose.msra.mxu0 0
        %1859 = vmatprep.subr.bf16.mxu0 0
        %1860 = vmatpush1.bf16.xpose.msra.mxu0 0
        %1861 = vmatprep.subr.bf16.mxu0 0
        %1862 = vmatpush1.bf16.xpose.msra.mxu0 0
        %1863 = vmatprep.subr.bf16.mxu0 0
        %1864 = vmatpush1.bf16.xpose.msra.mxu0 0
        %1865 = vmatprep.subr.bf16.mxu0 0
        %1866 = vmatpush1.bf16.xpose.msra.mxu0 0
        %1867 = vmatprep.subr.bf16.mxu0 0
        %1868 = vmatpush1.bf16.xpose.msra.mxu0 0
        %1869 = vmatprep.subr.bf16.mxu0 0
        %1870 = vmatpush1.bf16.xpose.msra.mxu0 0
        %1871 = vmatprep.subr.bf16.mxu0 0
        %1872 = vmatpush1.bf16.xpose.msra.mxu0 0
        %1873 = vmatprep.subr.bf16.mxu0 0
        %1874 = vmatpush1.bf16.xpose.msra.mxu0 0
        %1875 = vmatprep.subr.bf16.mxu0 0
        %1876 = vmatpush1.bf16.xpose.msra.mxu0 0
        %1877 = vmatprep.subr.bf16.mxu0 0
        %1878 = vmatpush1.bf16.xpose.msra.mxu0 0
        %1879 = vmatprep.subr.bf16.mxu0 0
        %1880 = vmatpush1.bf16.xpose.msra.mxu0 0
        %1881 = vmatprep.subr.bf16.mxu0 0
        %1882 = vmatpush1.bf16.xpose.msra.mxu0 0
        %1883 = vmatprep.subr.bf16.mxu0 0
        %1884 = vmatpush1.bf16.xpose.msra.mxu0 0
        %1885 = vmatprep.subr.bf16.mxu0 0
        %1886 = vmatpush1.bf16.xpose.msra.mxu0 0
        %1887 = vmatprep.mubr.bf16.mxu0 0
        %1888 = vmatmul.mubr.bf16.gmra.mrb[0].mxu0 %v1850
        %v1889 = vpop.f32.mrb[0].mxu0
        %v1890 = vadd.f32 0.0, %v1889
        %v1891 = vpop.f32.mrb[0].mxu0
        %v1892 = vpop.f32.mrb[0].mxu0
        %v1893 = vpop.f32.mrb[0].mxu0
        %1894 = vdwg.mxu0
        %1896 = vrot.lane.b32.xlu0 %v1742, 112
        %v1897 = vpop.permute.xlu0 %1896
        %v1899 = vsel %vm1750, %v1742, 0
        %v1902 = vsel %vm1750, %v1897, 0
        %1904 = vmatprep.subr.bf16.mxu0 0
        %1905 = vmatpush1.bf16.xpose.msra.mxu0 %v1902
        %1906 = vmatprep.subr.bf16.mxu0 0
        %1907 = vmatpush1.bf16.xpose.msra.mxu0 0
        %1908 = vmatprep.subr.bf16.mxu0 0
        %1909 = vmatpush1.bf16.xpose.msra.mxu0 0
        %1910 = vmatprep.subr.bf16.mxu0 0
        %1911 = vmatpush1.bf16.xpose.msra.mxu0 0
        %1912 = vmatprep.subr.bf16.mxu0 0
        %1913 = vmatpush1.bf16.xpose.msra.mxu0 0
        %1914 = vmatprep.subr.bf16.mxu0 0
        %1915 = vmatpush1.bf16.xpose.msra.mxu0 0
        %1916 = vmatprep.subr.bf16.mxu0 0
        %1917 = vmatpush1.bf16.xpose.msra.mxu0 0
        %1918 = vmatprep.subr.bf16.mxu0 0
        %1919 = vmatpush1.bf16.xpose.msra.mxu0 0
        %1920 = vmatprep.subr.bf16.mxu0 0
        %1921 = vmatpush1.bf16.xpose.msra.mxu0 0
        %1922 = vmatprep.subr.bf16.mxu0 0
        %1923 = vmatpush1.bf16.xpose.msra.mxu0 0
        %1924 = vmatprep.subr.bf16.mxu0 0
        %1925 = vmatpush1.bf16.xpose.msra.mxu0 0
        %1926 = vmatprep.subr.bf16.mxu0 0
        %1927 = vmatpush1.bf16.xpose.msra.mxu0 0
        %1928 = vmatprep.subr.bf16.mxu0 0
        %1929 = vmatpush1.bf16.xpose.msra.mxu0 0
        %1930 = vmatprep.subr.bf16.mxu0 0
        %1931 = vmatpush1.bf16.xpose.msra.mxu0 0
        %1932 = vmatprep.subr.bf16.mxu0 0
        %1933 = vmatpush1.bf16.xpose.msra.mxu0 0
        %1934 = vmatprep.subr.bf16.mxu0 0
        %1935 = vmatpush1.bf16.xpose.msra.mxu0 0
        %1936 = vmatprep.mubr.bf16.mxu0 0
        %1937 = vmatmul.mubr.bf16.gmra.mrb[0].mxu0 %v1899
        %v1938 = vpop.f32.mrb[0].mxu0
        %v1939 = vadd.f32 0.0, %v1938
        %v1940 = vpop.f32.mrb[0].mxu0
        %v1941 = vpop.f32.mrb[0].mxu0
        %v1942 = vpop.f32.mrb[0].mxu0
        %1943 = vdwg.mxu0
        %1945 = vrot.lane.b32.xlu0 %v1743, 112
        %v1946 = vpop.permute.xlu0 %1945
        %v1948 = vsel %vm1750, %v1743, 0
        %v1951 = vsel %vm1750, %v1946, 0
        %1953 = vmatprep.subr.bf16.mxu0 0
        %1954 = vmatpush1.bf16.xpose.msra.mxu0 %v1951
        %1955 = vmatprep.subr.bf16.mxu0 0
        %1956 = vmatpush1.bf16.xpose.msra.mxu0 0
        %1957 = vmatprep.subr.bf16.mxu0 0
        %1958 = vmatpush1.bf16.xpose.msra.mxu0 0
        %1959 = vmatprep.subr.bf16.mxu0 0
        %1960 = vmatpush1.bf16.xpose.msra.mxu0 0
        %1961 = vmatprep.subr.bf16.mxu0 0
        %1962 = vmatpush1.bf16.xpose.msra.mxu0 0
        %1963 = vmatprep.subr.bf16.mxu0 0
        %1964 = vmatpush1.bf16.xpose.msra.mxu0 0
        %1965 = vmatprep.subr.bf16.mxu0 0
        %1966 = vmatpush1.bf16.xpose.msra.mxu0 0
        %1967 = vmatprep.subr.bf16.mxu0 0
        %1968 = vmatpush1.bf16.xpose.msra.mxu0 0
        %1969 = vmatprep.subr.bf16.mxu0 0
        %1970 = vmatpush1.bf16.xpose.msra.mxu0 0
        %1971 = vmatprep.subr.bf16.mxu0 0
        %1972 = vmatpush1.bf16.xpose.msra.mxu0 0
        %1973 = vmatprep.subr.bf16.mxu0 0
        %1974 = vmatpush1.bf16.xpose.msra.mxu0 0
        %1975 = vmatprep.subr.bf16.mxu0 0
        %1976 = vmatpush1.bf16.xpose.msra.mxu0 0
        %1977 = vmatprep.subr.bf16.mxu0 0
        %1978 = vmatpush1.bf16.xpose.msra.mxu0 0
        %1979 = vmatprep.subr.bf16.mxu0 0
        %1980 = vmatpush1.bf16.xpose.msra.mxu0 0
        %1981 = vmatprep.subr.bf16.mxu0 0
        %1982 = vmatpush1.bf16.xpose.msra.mxu0 0
        %1983 = vmatprep.subr.bf16.mxu0 0
        %1984 = vmatpush1.bf16.xpose.msra.mxu0 0
        %1985 = vmatprep.mubr.bf16.mxu0 0
        %1986 = vmatmul.mubr.bf16.gmra.mrb[0].mxu0 %v1948
        %v1987 = vpop.f32.mrb[0].mxu0
        %v1988 = vadd.f32 0.0, %v1987
        %v1989 = vpop.f32.mrb[0].mxu0
        %v1990 = vpop.f32.mrb[0].mxu0
        %v1991 = vpop.f32.mrb[0].mxu0
        %1992 = vdwg.mxu0
        %1994 = vrot.lane.b32.xlu0 %v1744, 112
        %v1995 = vpop.permute.xlu0 %1994
        %v1997 = vsel %vm1750, %v1744, 0
        %v2000 = vsel %vm1750, %v1995, 0
        %2002 = vmatprep.subr.bf16.mxu0 0
        %2003 = vmatpush1.bf16.xpose.msra.mxu0 %v2000
        %2004 = vmatprep.subr.bf16.mxu0 0
        %2005 = vmatpush1.bf16.xpose.msra.mxu0 0
        %2006 = vmatprep.subr.bf16.mxu0 0
        %2007 = vmatpush1.bf16.xpose.msra.mxu0 0
        %2008 = vmatprep.subr.bf16.mxu0 0
        %2009 = vmatpush1.bf16.xpose.msra.mxu0 0
        %2010 = vmatprep.subr.bf16.mxu0 0
        %2011 = vmatpush1.bf16.xpose.msra.mxu0 0
        %2012 = vmatprep.subr.bf16.mxu0 0
        %2013 = vmatpush1.bf16.xpose.msra.mxu0 0
        %2014 = vmatprep.subr.bf16.mxu0 0
        %2015 = vmatpush1.bf16.xpose.msra.mxu0 0
        %2016 = vmatprep.subr.bf16.mxu0 0
        %2017 = vmatpush1.bf16.xpose.msra.mxu0 0
        %2018 = vmatprep.subr.bf16.mxu0 0
        %2019 = vmatpush1.bf16.xpose.msra.mxu0 0
        %2020 = vmatprep.subr.bf16.mxu0 0
        %2021 = vmatpush1.bf16.xpose.msra.mxu0 0
        %2022 = vmatprep.subr.bf16.mxu0 0
        %2023 = vmatpush1.bf16.xpose.msra.mxu0 0
        %2024 = vmatprep.subr.bf16.mxu0 0
        %2025 = vmatpush1.bf16.xpose.msra.mxu0 0
        %2026 = vmatprep.subr.bf16.mxu0 0
        %2027 = vmatpush1.bf16.xpose.msra.mxu0 0
        %2028 = vmatprep.subr.bf16.mxu0 0
        %2029 = vmatpush1.bf16.xpose.msra.mxu0 0
        %2030 = vmatprep.subr.bf16.mxu0 0
        %2031 = vmatpush1.bf16.xpose.msra.mxu0 0
        %2032 = vmatprep.subr.bf16.mxu0 0
        %2033 = vmatpush1.bf16.xpose.msra.mxu0 0
        %2034 = vmatprep.mubr.bf16.mxu0 0
        %2035 = vmatmul.mubr.bf16.gmra.mrb[0].mxu0 %v1997
        %v2036 = vpop.f32.mrb[0].mxu0
        %v2037 = vadd.f32 0.0, %v2036
        %v2038 = vpop.f32.mrb[0].mxu0
        %v2039 = vpop.f32.mrb[0].mxu0
        %v2040 = vpop.f32.mrb[0].mxu0
        %2041 = vdwg.mxu0
        %2043 = vrot.lane.b32.xlu0 %v1745, 112
        %v2044 = vpop.permute.xlu0 %2043
        %v2046 = vsel %vm1750, %v1745, 0
        %v2049 = vsel %vm1750, %v2044, 0
        %2051 = vmatprep.subr.bf16.mxu0 0
        %2052 = vmatpush1.bf16.xpose.msra.mxu0 %v2049
        %2053 = vmatprep.subr.bf16.mxu0 0
        %2054 = vmatpush1.bf16.xpose.msra.mxu0 0
        %2055 = vmatprep.subr.bf16.mxu0 0
        %2056 = vmatpush1.bf16.xpose.msra.mxu0 0
        %2057 = vmatprep.subr.bf16.mxu0 0
        %2058 = vmatpush1.bf16.xpose.msra.mxu0 0
        %2059 = vmatprep.subr.bf16.mxu0 0
        %2060 = vmatpush1.bf16.xpose.msra.mxu0 0
        %2061 = vmatprep.subr.bf16.mxu0 0
        %2062 = vmatpush1.bf16.xpose.msra.mxu0 0
        %2063 = vmatprep.subr.bf16.mxu0 0
        %2064 = vmatpush1.bf16.xpose.msra.mxu0 0
        %2065 = vmatprep.subr.bf16.mxu0 0
        %2066 = vmatpush1.bf16.xpose.msra.mxu0 0
        %2067 = vmatprep.subr.bf16.mxu0 0
        %2068 = vmatpush1.bf16.xpose.msra.mxu0 0
        %2069 = vmatprep.subr.bf16.mxu0 0
        %2070 = vmatpush1.bf16.xpose.msra.mxu0 0
        %2071 = vmatprep.subr.bf16.mxu0 0
        %2072 = vmatpush1.bf16.xpose.msra.mxu0 0
        %2073 = vmatprep.subr.bf16.mxu0 0
        %2074 = vmatpush1.bf16.xpose.msra.mxu0 0
        %2075 = vmatprep.subr.bf16.mxu0 0
        %2076 = vmatpush1.bf16.xpose.msra.mxu0 0
        %2077 = vmatprep.subr.bf16.mxu0 0
        %2078 = vmatpush1.bf16.xpose.msra.mxu0 0
        %2079 = vmatprep.subr.bf16.mxu0 0
        %2080 = vmatpush1.bf16.xpose.msra.mxu0 0
        %2081 = vmatprep.subr.bf16.mxu0 0
        %2082 = vmatpush1.bf16.xpose.msra.mxu0 0
        %2083 = vmatprep.mubr.bf16.mxu0 0
        %2084 = vmatmul.mubr.bf16.gmra.mrb[0].mxu0 %v2046
        %v2085 = vpop.f32.mrb[0].mxu0
        %v2086 = vadd.f32 0.0, %v2085
        %v2087 = vpop.f32.mrb[0].mxu0
        %v2088 = vpop.f32.mrb[0].mxu0
        %v2089 = vpop.f32.mrb[0].mxu0
        %2090 = vdwg.mxu0
        %2092 = vrot.lane.b32.xlu0 %v1746, 112
        %v2093 = vpop.permute.xlu0 %2092
        %v2095 = vsel %vm1750, %v1746, 0
        %v2098 = vsel %vm1750, %v2093, 0
        %2100 = vmatprep.subr.bf16.mxu0 0
        %2101 = vmatpush1.bf16.xpose.msra.mxu0 %v2098
        %2102 = vmatprep.subr.bf16.mxu0 0
        %2103 = vmatpush1.bf16.xpose.msra.mxu0 0
        %2104 = vmatprep.subr.bf16.mxu0 0
        %2105 = vmatpush1.bf16.xpose.msra.mxu0 0
        %2106 = vmatprep.subr.bf16.mxu0 0
        %2107 = vmatpush1.bf16.xpose.msra.mxu0 0
        %2108 = vmatprep.subr.bf16.mxu0 0
        %2109 = vmatpush1.bf16.xpose.msra.mxu0 0
        %2110 = vmatprep.subr.bf16.mxu0 0
        %2111 = vmatpush1.bf16.xpose.msra.mxu0 0
        %2112 = vmatprep.subr.bf16.mxu0 0
        %2113 = vmatpush1.bf16.xpose.msra.mxu0 0
        %2114 = vmatprep.subr.bf16.mxu0 0
        %2115 = vmatpush1.bf16.xpose.msra.mxu0 0
        %2116 = vmatprep.subr.bf16.mxu0 0
        %2117 = vmatpush1.bf16.xpose.msra.mxu0 0
        %2118 = vmatprep.subr.bf16.mxu0 0
        %2119 = vmatpush1.bf16.xpose.msra.mxu0 0
        %2120 = vmatprep.subr.bf16.mxu0 0
        %2121 = vmatpush1.bf16.xpose.msra.mxu0 0
        %2122 = vmatprep.subr.bf16.mxu0 0
        %2123 = vmatpush1.bf16.xpose.msra.mxu0 0
        %2124 = vmatprep.subr.bf16.mxu0 0
        %2125 = vmatpush1.bf16.xpose.msra.mxu0 0
        %2126 = vmatprep.subr.bf16.mxu0 0
        %2127 = vmatpush1.bf16.xpose.msra.mxu0 0
        %2128 = vmatprep.subr.bf16.mxu0 0
        %2129 = vmatpush1.bf16.xpose.msra.mxu0 0
        %2130 = vmatprep.subr.bf16.mxu0 0
        %2131 = vmatpush1.bf16.xpose.msra.mxu0 0
        %2132 = vmatprep.mubr.bf16.mxu0 0
        %2133 = vmatmul.mubr.bf16.gmra.mrb[0].mxu0 %v2095
        %v2134 = vpop.f32.mrb[0].mxu0
        %v2135 = vadd.f32 0.0, %v2134
        %v2136 = vpop.f32.mrb[0].mxu0
        %v2137 = vpop.f32.mrb[0].mxu0
        %v2138 = vpop.f32.mrb[0].mxu0
        %2139 = vdwg.mxu0
        %v2140 = vmul.f32 %v1792, 0.35355338
        %v2141 = vmul.f32 %v1841, 0.35355338
        %v2142 = vmul.f32 %v1890, 0.35355338
        %v2143 = vmul.f32 %v1939, 0.35355338
        %v2144 = vmul.f32 %v1988, 0.35355338
        %v2145 = vmul.f32 %v2037, 0.35355338
        %v2146 = vmul.f32 %v2086, 0.35355338
        %v2147 = vmul.f32 %v2135, 0.35355338
        %v2148 = vadd.f32 %v2140, 20.0
        %v2149 = vadd.f32 %v2141, 20.0
        %v2150 = vadd.f32 %v2142, 20.0
        %v2151 = vadd.f32 %v2143, 20.0
        %v2152 = vadd.f32 %v2144, 20.0
        %v2153 = vadd.f32 %v2145, 20.0
        %v2154 = vadd.f32 %v2146, 20.0
        %v2155 = vadd.f32 %v2147, 20.0
        %v2156 = vmul.f32 %v2148, %v1554
        %v2157 = vmul.f32 %v2149, %v1555
        %v2158 = vmul.f32 %v2150, %v1556
        %v2159 = vmul.f32 %v2151, %v1557
        %v2160 = vmul.f32 %v2152, %v1558
        %v2161 = vmul.f32 %v2153, %v1559
        %v2162 = vmul.f32 %v2154, %v1560
        %v2163 = vmul.f32 %v2155, %v1561
        %v2164 = vsub.f32 %v2156, 20.0
        %v2165 = vsub.f32 %v2157, 20.0
        %v2166 = vsub.f32 %v2158, 20.0
        %v2167 = vsub.f32 %v2159, 20.0
        %v2168 = vsub.f32 %v2160, 20.0
        %v2169 = vsub.f32 %v2161, 20.0
        %v2170 = vsub.f32 %v2162, 20.0
        %v2171 = vsub.f32 %v2163, 20.0
        %v2172 = vsel %vm1750, %v2164, -inf
        %2173 = vmax.xlane.f32.xlu0 %v2172
        %v2174 = vpop.xlane.xlu0 %2173
        %v2175 = vsel %vm1750, %v2165, -inf
        %2176 = vmax.xlane.f32.xlu0 %v2175
        %v2177 = vpop.xlane.xlu0 %2176
        %v2178 = vsel %vm1750, %v2166, -inf
        %2179 = vmax.xlane.f32.xlu0 %v2178
        %v2180 = vpop.xlane.xlu0 %2179
        %v2181 = vsel %vm1750, %v2167, -inf
        %2182 = vmax.xlane.f32.xlu0 %v2181
        %v2183 = vpop.xlane.xlu0 %2182
        %v2184 = vsel %vm1750, %v2168, -inf
        %2185 = vmax.xlane.f32.xlu0 %v2184
        %v2186 = vpop.xlane.xlu0 %2185
        %v2187 = vsel %vm1750, %v2169, -inf
        %2188 = vmax.xlane.f32.xlu0 %v2187
        %v2189 = vpop.xlane.xlu0 %2188
        %v2190 = vsel %vm1750, %v2170, -inf
        %2191 = vmax.xlane.f32.xlu0 %v2190
        %v2192 = vpop.xlane.xlu0 %2191
        %v2193 = vsel %vm1750, %v2171, -inf
        %2194 = vmax.xlane.f32.xlu0 %v2193
        %v2195 = vpop.xlane.xlu0 %2194
        %v2196 = vsub.f32 %v2164, %v2174
        %v2197 = vsub.f32 %v2165, %v2177
        %v2198 = vsub.f32 %v2166, %v2180
        %v2199 = vsub.f32 %v2167, %v2183
        %v2200 = vsub.f32 %v2168, %v2186
        %v2201 = vsub.f32 %v2169, %v2189
        %v2202 = vsub.f32 %v2170, %v2192
        %v2203 = vsub.f32 %v2171, %v2195
        %v2204 = vmul.f32 %v2196, 1.442695
        %v2205 = vpow.pop %v2204
        %v2206 = vmul.f32 %v2197, 1.442695
        %v2207 = vpow.pop %v2206
        %v2208 = vmul.f32 %v2198, 1.442695
        %v2209 = vpow.pop %v2208
        %v2210 = vmul.f32 %v2199, 1.442695
        %v2211 = vpow.pop %v2210
        %v2212 = vmul.f32 %v2200, 1.442695
        %v2213 = vpow.pop %v2212
        %v2214 = vmul.f32 %v2201, 1.442695
        %v2215 = vpow.pop %v2214
        %v2216 = vmul.f32 %v2202, 1.442695
        %v2217 = vpow.pop %v2216
        %v2218 = vmul.f32 %v2203, 1.442695
        %v2219 = vpow.pop %v2218
        %v2220 = vsel %vm1750, %v2205, 0.0
        %2221 = vadd.xlane.f32.xlu0 %v2220
        %v2222 = vpop.xlane.xlu0 %2221
        %v2223 = vsel %vm1750, %v2207, 0.0
        %2224 = vadd.xlane.f32.xlu0 %v2223
        %v2225 = vpop.xlane.xlu0 %2224
        %v2226 = vsel %vm1750, %v2209, 0.0
        %2227 = vadd.xlane.f32.xlu0 %v2226
        %v2228 = vpop.xlane.xlu0 %2227
        %v2229 = vsel %vm1750, %v2211, 0.0
        %2230 = vadd.xlane.f32.xlu0 %v2229
        %v2231 = vpop.xlane.xlu0 %2230
        %v2232 = vsel %vm1750, %v2213, 0.0
        %2233 = vadd.xlane.f32.xlu0 %v2232
        %v2234 = vpop.xlane.xlu0 %2233
        %v2235 = vsel %vm1750, %v2215, 0.0
        %2236 = vadd.xlane.f32.xlu0 %v2235
        %v2237 = vpop.xlane.xlu0 %2236
        %v2238 = vsel %vm1750, %v2217, 0.0
        %2239 = vadd.xlane.f32.xlu0 %v2238
        %v2240 = vpop.xlane.xlu0 %2239
        %v2241 = vsel %vm1750, %v2219, 0.0
        %2242 = vadd.xlane.f32.xlu0 %v2241
        %v2243 = vpop.xlane.xlu0 %2242
        %v2244 = vrcp.pop %v2222
        %v2245 = vmul.f32 %v2205, %v2244
        %v2246 = vrcp.pop %v2225
        %v2247 = vmul.f32 %v2207, %v2246
        %v2248 = vrcp.pop %v2228
        %v2249 = vmul.f32 %v2209, %v2248
        %v2250 = vrcp.pop %v2231
        %v2251 = vmul.f32 %v2211, %v2250
        %v2252 = vrcp.pop %v2234
        %v2253 = vmul.f32 %v2213, %v2252
        %v2254 = vrcp.pop %v2237
        %v2255 = vmul.f32 %v2215, %v2254
        %v2256 = vrcp.pop %v2240
        %v2257 = vmul.f32 %v2217, %v2256
        %v2258 = vrcp.pop %v2243
        %v2259 = vmul.f32 %v2219, %v2258
        %v2260 = vmul.f32 %v2245, %v1660
        %v2261 = vmul.f32 %v2247, %v1661
        %v2262 = vmul.f32 %v2249, %v1662
        %v2263 = vmul.f32 %v2251, %v1663
        %v2264 = vmul.f32 %v2253, %v1664
        %v2265 = vmul.f32 %v2255, %v1665
        %v2266 = vmul.f32 %v2257, %v1666
        %v2267 = vmul.f32 %v2259, %v1667
        %v2268 = vpack.c.bf16 %v2260, %v2260
        %v2269 = vpack.c.bf16 %v2261, %v2261
        %v2270 = vpack.c.bf16 %v2262, %v2262
        %v2271 = vpack.c.bf16 %v2263, %v2263
        %v2272 = vpack.c.bf16 %v2264, %v2264
        %v2273 = vpack.c.bf16 %v2265, %v2265
        %v2274 = vpack.c.bf16 %v2266, %v2266
        %v2275 = vpack.c.bf16 %v2267, %v2267
        %2276 = vrot.lane.b32.xlu0 %v1739, 96
        %v2277 = vpop.permute.xlu0 %2276
        %v2279 = vsel %vm1750, %v2268, 0
        %vm2281 = vcmask 1043456
        %v2283 = vsel %vm2281, %v2277, 0
        %2285 = vmatprep.subr.bf16.mxu0 0
        %2286 = vmatpush1.bf16.msra.mxu0 %v2283
        %2287 = vmatprep.subr.bf16.mxu0 0
        %2288 = vmatpush1.bf16.msra.mxu0 0
        %2289 = vmatprep.subr.bf16.mxu0 0
        %2290 = vmatpush1.bf16.msra.mxu0 0
        %2291 = vmatprep.subr.bf16.mxu0 0
        %2292 = vmatpush1.bf16.msra.mxu0 0
        %2293 = vmatprep.subr.bf16.mxu0 0
        %2294 = vmatpush1.bf16.msra.mxu0 0
        %2295 = vmatprep.subr.bf16.mxu0 0
        %2296 = vmatpush1.bf16.msra.mxu0 0
        %2297 = vmatprep.subr.bf16.mxu0 0
        %2298 = vmatpush1.bf16.msra.mxu0 0
        %2299 = vmatprep.subr.bf16.mxu0 0
        %2300 = vmatpush1.bf16.msra.mxu0 0
        %2301 = vmatprep.subr.bf16.mxu0 0
        %2302 = vmatpush1.bf16.msra.mxu0 0
        %2303 = vmatprep.subr.bf16.mxu0 0
        %2304 = vmatpush1.bf16.msra.mxu0 0
        %2305 = vmatprep.subr.bf16.mxu0 0
        %2306 = vmatpush1.bf16.msra.mxu0 0
        %2307 = vmatprep.subr.bf16.mxu0 0
        %2308 = vmatpush1.bf16.msra.mxu0 0
        %2309 = vmatprep.subr.bf16.mxu0 0
        %2310 = vmatpush1.bf16.msra.mxu0 0
        %2311 = vmatprep.subr.bf16.mxu0 0
        %2312 = vmatpush1.bf16.msra.mxu0 0
        %2313 = vmatprep.subr.bf16.mxu0 0
        %2314 = vmatpush1.bf16.msra.mxu0 0
        %2315 = vmatprep.subr.bf16.mxu0 0
        %2316 = vmatpush1.bf16.msra.mxu0 0
        %2317 = vmatprep.mubr.bf16.mxu0 0
        %2318 = vmatmul.mubr.bf16.gmra.mrb[0].mxu0 %v2279
        %v2319 = vpop.f32.mrb[0].mxu0
        %v2320 = vadd.f32 0.0, %v2319
        %v2321 = vpop.f32.mrb[0].mxu0
        %v2322 = vpop.f32.mrb[0].mxu0
        %v2323 = vpop.f32.mrb[0].mxu0
        %2324 = vdwg.mxu0
        %2325 = vrot.lane.b32.xlu0 %v1740, 96
        %v2326 = vpop.permute.xlu0 %2325
        %v2328 = vsel %vm1750, %v2269, 0
        %v2331 = vsel %vm2281, %v2326, 0
        %2333 = vmatprep.subr.bf16.mxu0 0
        %2334 = vmatpush1.bf16.msra.mxu0 %v2331
        %2335 = vmatprep.subr.bf16.mxu0 0
        %2336 = vmatpush1.bf16.msra.mxu0 0
        %2337 = vmatprep.subr.bf16.mxu0 0
        %2338 = vmatpush1.bf16.msra.mxu0 0
        %2339 = vmatprep.subr.bf16.mxu0 0
        %2340 = vmatpush1.bf16.msra.mxu0 0
        %2341 = vmatprep.subr.bf16.mxu0 0
        %2342 = vmatpush1.bf16.msra.mxu0 0
        %2343 = vmatprep.subr.bf16.mxu0 0
        %2344 = vmatpush1.bf16.msra.mxu0 0
        %2345 = vmatprep.subr.bf16.mxu0 0
        %2346 = vmatpush1.bf16.msra.mxu0 0
        %2347 = vmatprep.subr.bf16.mxu0 0
        %2348 = vmatpush1.bf16.msra.mxu0 0
        %2349 = vmatprep.subr.bf16.mxu0 0
        %2350 = vmatpush1.bf16.msra.mxu0 0
        %2351 = vmatprep.subr.bf16.mxu0 0
        %2352 = vmatpush1.bf16.msra.mxu0 0
        %2353 = vmatprep.subr.bf16.mxu0 0
        %2354 = vmatpush1.bf16.msra.mxu0 0
        %2355 = vmatprep.subr.bf16.mxu0 0
        %2356 = vmatpush1.bf16.msra.mxu0 0
        %2357 = vmatprep.subr.bf16.mxu0 0
        %2358 = vmatpush1.bf16.msra.mxu0 0
        %2359 = vmatprep.subr.bf16.mxu0 0
        %2360 = vmatpush1.bf16.msra.mxu0 0
        %2361 = vmatprep.subr.bf16.mxu0 0
        %2362 = vmatpush1.bf16.msra.mxu0 0
        %2363 = vmatprep.subr.bf16.mxu0 0
        %2364 = vmatpush1.bf16.msra.mxu0 0
        %2365 = vmatprep.mubr.bf16.mxu0 0
        %2366 = vmatmul.mubr.bf16.gmra.mrb[0].mxu0 %v2328
        %v2367 = vpop.f32.mrb[0].mxu0
        %v2368 = vadd.f32 0.0, %v2367
        %v2369 = vpop.f32.mrb[0].mxu0
        %v2370 = vpop.f32.mrb[0].mxu0
        %v2371 = vpop.f32.mrb[0].mxu0
        %2372 = vdwg.mxu0
        %2373 = vrot.lane.b32.xlu0 %v1741, 96
        %v2374 = vpop.permute.xlu0 %2373
        %v2376 = vsel %vm1750, %v2270, 0
        %v2379 = vsel %vm2281, %v2374, 0
        %2381 = vmatprep.subr.bf16.mxu0 0
        %2382 = vmatpush1.bf16.msra.mxu0 %v2379
        %2383 = vmatprep.subr.bf16.mxu0 0
        %2384 = vmatpush1.bf16.msra.mxu0 0
        %2385 = vmatprep.subr.bf16.mxu0 0
        %2386 = vmatpush1.bf16.msra.mxu0 0
        %2387 = vmatprep.subr.bf16.mxu0 0
        %2388 = vmatpush1.bf16.msra.mxu0 0
        %2389 = vmatprep.subr.bf16.mxu0 0
        %2390 = vmatpush1.bf16.msra.mxu0 0
        %2391 = vmatprep.subr.bf16.mxu0 0
        %2392 = vmatpush1.bf16.msra.mxu0 0
        %2393 = vmatprep.subr.bf16.mxu0 0
        %2394 = vmatpush1.bf16.msra.mxu0 0
        %2395 = vmatprep.subr.bf16.mxu0 0
        %2396 = vmatpush1.bf16.msra.mxu0 0
        %2397 = vmatprep.subr.bf16.mxu0 0
        %2398 = vmatpush1.bf16.msra.mxu0 0
        %2399 = vmatprep.subr.bf16.mxu0 0
        %2400 = vmatpush1.bf16.msra.mxu0 0
        %2401 = vmatprep.subr.bf16.mxu0 0
        %2402 = vmatpush1.bf16.msra.mxu0 0
        %2403 = vmatprep.subr.bf16.mxu0 0
        %2404 = vmatpush1.bf16.msra.mxu0 0
        %2405 = vmatprep.subr.bf16.mxu0 0
        %2406 = vmatpush1.bf16.msra.mxu0 0
        %2407 = vmatprep.subr.bf16.mxu0 0
        %2408 = vmatpush1.bf16.msra.mxu0 0
        %2409 = vmatprep.subr.bf16.mxu0 0
        %2410 = vmatpush1.bf16.msra.mxu0 0
        %2411 = vmatprep.subr.bf16.mxu0 0
        %2412 = vmatpush1.bf16.msra.mxu0 0
        %2413 = vmatprep.mubr.bf16.mxu0 0
        %2414 = vmatmul.mubr.bf16.gmra.mrb[0].mxu0 %v2376
        %v2415 = vpop.f32.mrb[0].mxu0
        %v2416 = vadd.f32 0.0, %v2415
        %v2417 = vpop.f32.mrb[0].mxu0
        %v2418 = vpop.f32.mrb[0].mxu0
        %v2419 = vpop.f32.mrb[0].mxu0
        %2420 = vdwg.mxu0
        %2421 = vrot.lane.b32.xlu0 %v1742, 96
        %v2422 = vpop.permute.xlu0 %2421
        %v2424 = vsel %vm1750, %v2271, 0
        %v2427 = vsel %vm2281, %v2422, 0
        %2429 = vmatprep.subr.bf16.mxu0 0
        %2430 = vmatpush1.bf16.msra.mxu0 %v2427
        %2431 = vmatprep.subr.bf16.mxu0 0
        %2432 = vmatpush1.bf16.msra.mxu0 0
        %2433 = vmatprep.subr.bf16.mxu0 0
        %2434 = vmatpush1.bf16.msra.mxu0 0
        %2435 = vmatprep.subr.bf16.mxu0 0
        %2436 = vmatpush1.bf16.msra.mxu0 0
        %2437 = vmatprep.subr.bf16.mxu0 0
        %2438 = vmatpush1.bf16.msra.mxu0 0
        %2439 = vmatprep.subr.bf16.mxu0 0
        %2440 = vmatpush1.bf16.msra.mxu0 0
        %2441 = vmatprep.subr.bf16.mxu0 0
        %2442 = vmatpush1.bf16.msra.mxu0 0
        %2443 = vmatprep.subr.bf16.mxu0 0
        %2444 = vmatpush1.bf16.msra.mxu0 0
        %2445 = vmatprep.subr.bf16.mxu0 0
        %2446 = vmatpush1.bf16.msra.mxu0 0
        %2447 = vmatprep.subr.bf16.mxu0 0
        %2448 = vmatpush1.bf16.msra.mxu0 0
        %2449 = vmatprep.subr.bf16.mxu0 0
        %2450 = vmatpush1.bf16.msra.mxu0 0
        %2451 = vmatprep.subr.bf16.mxu0 0
        %2452 = vmatpush1.bf16.msra.mxu0 0
        %2453 = vmatprep.subr.bf16.mxu0 0
        %2454 = vmatpush1.bf16.msra.mxu0 0
        %2455 = vmatprep.subr.bf16.mxu0 0
        %2456 = vmatpush1.bf16.msra.mxu0 0
        %2457 = vmatprep.subr.bf16.mxu0 0
        %2458 = vmatpush1.bf16.msra.mxu0 0
        %2459 = vmatprep.subr.bf16.mxu0 0
        %2460 = vmatpush1.bf16.msra.mxu0 0
        %2461 = vmatprep.mubr.bf16.mxu0 0
        %2462 = vmatmul.mubr.bf16.gmra.mrb[0].mxu0 %v2424
        %v2463 = vpop.f32.mrb[0].mxu0
        %v2464 = vadd.f32 0.0, %v2463
        %v2465 = vpop.f32.mrb[0].mxu0
        %v2466 = vpop.f32.mrb[0].mxu0
        %v2467 = vpop.f32.mrb[0].mxu0
        %2468 = vdwg.mxu0
        %2469 = vrot.lane.b32.xlu0 %v1743, 96
        %v2470 = vpop.permute.xlu0 %2469
        %v2472 = vsel %vm1750, %v2272, 0
        %v2475 = vsel %vm2281, %v2470, 0
        %2477 = vmatprep.subr.bf16.mxu0 0
        %2478 = vmatpush1.bf16.msra.mxu0 %v2475
        %2479 = vmatprep.subr.bf16.mxu0 0
        %2480 = vmatpush1.bf16.msra.mxu0 0
        %2481 = vmatprep.subr.bf16.mxu0 0
        %2482 = vmatpush1.bf16.msra.mxu0 0
        %2483 = vmatprep.subr.bf16.mxu0 0
        %2484 = vmatpush1.bf16.msra.mxu0 0
        %2485 = vmatprep.subr.bf16.mxu0 0
        %2486 = vmatpush1.bf16.msra.mxu0 0
        %2487 = vmatprep.subr.bf16.mxu0 0
        %2488 = vmatpush1.bf16.msra.mxu0 0
        %2489 = vmatprep.subr.bf16.mxu0 0
        %2490 = vmatpush1.bf16.msra.mxu0 0
        %2491 = vmatprep.subr.bf16.mxu0 0
        %2492 = vmatpush1.bf16.msra.mxu0 0
        %2493 = vmatprep.subr.bf16.mxu0 0
        %2494 = vmatpush1.bf16.msra.mxu0 0
        %2495 = vmatprep.subr.bf16.mxu0 0
        %2496 = vmatpush1.bf16.msra.mxu0 0
        %2497 = vmatprep.subr.bf16.mxu0 0
        %2498 = vmatpush1.bf16.msra.mxu0 0
        %2499 = vmatprep.subr.bf16.mxu0 0
        %2500 = vmatpush1.bf16.msra.mxu0 0
        %2501 = vmatprep.subr.bf16.mxu0 0
        %2502 = vmatpush1.bf16.msra.mxu0 0
        %2503 = vmatprep.subr.bf16.mxu0 0
        %2504 = vmatpush1.bf16.msra.mxu0 0
        %2505 = vmatprep.subr.bf16.mxu0 0
        %2506 = vmatpush1.bf16.msra.mxu0 0
        %2507 = vmatprep.subr.bf16.mxu0 0
        %2508 = vmatpush1.bf16.msra.mxu0 0
        %2509 = vmatprep.mubr.bf16.mxu0 0
        %2510 = vmatmul.mubr.bf16.gmra.mrb[0].mxu0 %v2472
        %v2511 = vpop.f32.mrb[0].mxu0
        %v2512 = vadd.f32 0.0, %v2511
        %v2513 = vpop.f32.mrb[0].mxu0
        %v2514 = vpop.f32.mrb[0].mxu0
        %v2515 = vpop.f32.mrb[0].mxu0
        %2516 = vdwg.mxu0
        %2517 = vrot.lane.b32.xlu0 %v1744, 96
        %v2518 = vpop.permute.xlu0 %2517
        %v2520 = vsel %vm1750, %v2273, 0
        %v2523 = vsel %vm2281, %v2518, 0
        %2525 = vmatprep.subr.bf16.mxu0 0
        %2526 = vmatpush1.bf16.msra.mxu0 %v2523
        %2527 = vmatprep.subr.bf16.mxu0 0
        %2528 = vmatpush1.bf16.msra.mxu0 0
        %2529 = vmatprep.subr.bf16.mxu0 0
        %2530 = vmatpush1.bf16.msra.mxu0 0
        %2531 = vmatprep.subr.bf16.mxu0 0
        %2532 = vmatpush1.bf16.msra.mxu0 0
        %2533 = vmatprep.subr.bf16.mxu0 0
        %2534 = vmatpush1.bf16.msra.mxu0 0
        %2535 = vmatprep.subr.bf16.mxu0 0
        %2536 = vmatpush1.bf16.msra.mxu0 0
        %2537 = vmatprep.subr.bf16.mxu0 0
        %2538 = vmatpush1.bf16.msra.mxu0 0
        %2539 = vmatprep.subr.bf16.mxu0 0
        %2540 = vmatpush1.bf16.msra.mxu0 0
        %2541 = vmatprep.subr.bf16.mxu0 0
        %2542 = vmatpush1.bf16.msra.mxu0 0
        %2543 = vmatprep.subr.bf16.mxu0 0
        %2544 = vmatpush1.bf16.msra.mxu0 0
        %2545 = vmatprep.subr.bf16.mxu0 0
        %2546 = vmatpush1.bf16.msra.mxu0 0
        %2547 = vmatprep.subr.bf16.mxu0 0
        %2548 = vmatpush1.bf16.msra.mxu0 0
        %2549 = vmatprep.subr.bf16.mxu0 0
        %2550 = vmatpush1.bf16.msra.mxu0 0
        %2551 = vmatprep.subr.bf16.mxu0 0
        %2552 = vmatpush1.bf16.msra.mxu0 0
        %2553 = vmatprep.subr.bf16.mxu0 0
        %2554 = vmatpush1.bf16.msra.mxu0 0
        %2555 = vmatprep.subr.bf16.mxu0 0
        %2556 = vmatpush1.bf16.msra.mxu0 0
        %2557 = vmatprep.mubr.bf16.mxu0 0
        %2558 = vmatmul.mubr.bf16.gmra.mrb[0].mxu0 %v2520
        %v2559 = vpop.f32.mrb[0].mxu0
        %v2560 = vadd.f32 0.0, %v2559
        %v2561 = vpop.f32.mrb[0].mxu0
        %v2562 = vpop.f32.mrb[0].mxu0
        %v2563 = vpop.f32.mrb[0].mxu0
        %2564 = vdwg.mxu0
        %2565 = vrot.lane.b32.xlu0 %v1745, 96
        %v2566 = vpop.permute.xlu0 %2565
        %v2568 = vsel %vm1750, %v2274, 0
        %v2571 = vsel %vm2281, %v2566, 0
        %2573 = vmatprep.subr.bf16.mxu0 0
        %2574 = vmatpush1.bf16.msra.mxu0 %v2571
        %2575 = vmatprep.subr.bf16.mxu0 0
        %2576 = vmatpush1.bf16.msra.mxu0 0
        %2577 = vmatprep.subr.bf16.mxu0 0
        %2578 = vmatpush1.bf16.msra.mxu0 0
        %2579 = vmatprep.subr.bf16.mxu0 0
        %2580 = vmatpush1.bf16.msra.mxu0 0
        %2581 = vmatprep.subr.bf16.mxu0 0
        %2582 = vmatpush1.bf16.msra.mxu0 0
        %2583 = vmatprep.subr.bf16.mxu0 0
        %2584 = vmatpush1.bf16.msra.mxu0 0
        %2585 = vmatprep.subr.bf16.mxu0 0
        %2586 = vmatpush1.bf16.msra.mxu0 0
        %2587 = vmatprep.subr.bf16.mxu0 0
        %2588 = vmatpush1.bf16.msra.mxu0 0
        %2589 = vmatprep.subr.bf16.mxu0 0
        %2590 = vmatpush1.bf16.msra.mxu0 0
        %2591 = vmatprep.subr.bf16.mxu0 0
        %2592 = vmatpush1.bf16.msra.mxu0 0
        %2593 = vmatprep.subr.bf16.mxu0 0
        %2594 = vmatpush1.bf16.msra.mxu0 0
        %2595 = vmatprep.subr.bf16.mxu0 0
        %2596 = vmatpush1.bf16.msra.mxu0 0
        %2597 = vmatprep.subr.bf16.mxu0 0
        %2598 = vmatpush1.bf16.msra.mxu0 0
        %2599 = vmatprep.subr.bf16.mxu0 0
        %2600 = vmatpush1.bf16.msra.mxu0 0
        %2601 = vmatprep.subr.bf16.mxu0 0
        %2602 = vmatpush1.bf16.msra.mxu0 0
        %2603 = vmatprep.subr.bf16.mxu0 0
        %2604 = vmatpush1.bf16.msra.mxu0 0
        %2605 = vmatprep.mubr.bf16.mxu0 0
        %2606 = vmatmul.mubr.bf16.gmra.mrb[0].mxu0 %v2568
        %v2607 = vpop.f32.mrb[0].mxu0
        %v2608 = vadd.f32 0.0, %v2607
        %v2609 = vpop.f32.mrb[0].mxu0
        %v2610 = vpop.f32.mrb[0].mxu0
        %v2611 = vpop.f32.mrb[0].mxu0
        %2612 = vdwg.mxu0
        %2613 = vrot.lane.b32.xlu0 %v1746, 96
        %v2614 = vpop.permute.xlu0 %2613
        %v2616 = vsel %vm1750, %v2275, 0
        %v2619 = vsel %vm2281, %v2614, 0
        %2621 = vmatprep.subr.bf16.mxu0 0
        %2622 = vmatpush1.bf16.msra.mxu0 %v2619
        %2623 = vmatprep.subr.bf16.mxu0 0
        %2624 = vmatpush1.bf16.msra.mxu0 0
        %2625 = vmatprep.subr.bf16.mxu0 0
        %2626 = vmatpush1.bf16.msra.mxu0 0
        %2627 = vmatprep.subr.bf16.mxu0 0
        %2628 = vmatpush1.bf16.msra.mxu0 0
        %2629 = vmatprep.subr.bf16.mxu0 0
        %2630 = vmatpush1.bf16.msra.mxu0 0
        %2631 = vmatprep.subr.bf16.mxu0 0
        %2632 = vmatpush1.bf16.msra.mxu0 0
        %2633 = vmatprep.subr.bf16.mxu0 0
        %2634 = vmatpush1.bf16.msra.mxu0 0
        %2635 = vmatprep.subr.bf16.mxu0 0
        %2636 = vmatpush1.bf16.msra.mxu0 0
        %2637 = vmatprep.subr.bf16.mxu0 0
        %2638 = vmatpush1.bf16.msra.mxu0 0
        %2639 = vmatprep.subr.bf16.mxu0 0
        %2640 = vmatpush1.bf16.msra.mxu0 0
        %2641 = vmatprep.subr.bf16.mxu0 0
        %2642 = vmatpush1.bf16.msra.mxu0 0
        %2643 = vmatprep.subr.bf16.mxu0 0
        %2644 = vmatpush1.bf16.msra.mxu0 0
        %2645 = vmatprep.subr.bf16.mxu0 0
        %2646 = vmatpush1.bf16.msra.mxu0 0
        %2647 = vmatprep.subr.bf16.mxu0 0
        %2648 = vmatpush1.bf16.msra.mxu0 0
        %2649 = vmatprep.subr.bf16.mxu0 0
        %2650 = vmatpush1.bf16.msra.mxu0 0
        %2651 = vmatprep.subr.bf16.mxu0 0
        %2652 = vmatpush1.bf16.msra.mxu0 0
        %2653 = vmatprep.mubr.bf16.mxu0 0
        %2654 = vmatmul.mubr.bf16.gmra.mrb[0].mxu0 %v2616
        %v2655 = vpop.f32.mrb[0].mxu0
        %v2656 = vadd.f32 0.0, %v2655
        %v2657 = vpop.f32.mrb[0].mxu0
        %v2658 = vpop.f32.mrb[0].mxu0
        %v2659 = vpop.f32.mrb[0].mxu0
        %2660 = vdwg.mxu0
        %2661 = vrot.lane.b32.xlu0 %v1739, 120
        %v2662 = vpop.permute.xlu0 %2661
        %2663 = vrot.lane.b32.xlu0 %v1739, 104
        %v2664 = vpop.permute.xlu0 %2663
        %v2666 = vsel %vm1750, %v2662, 0
        %v2669 = vsel %vm1750, %v2664, 0
        %2671 = vmatprep.subr.bf16.mxu0 0
        %2672 = vmatpush1.bf16.xpose.msra.mxu0 %v2669
        %2673 = vmatprep.subr.bf16.mxu0 0
        %2674 = vmatpush1.bf16.xpose.msra.mxu0 0
        %2675 = vmatprep.subr.bf16.mxu0 0
        %2676 = vmatpush1.bf16.xpose.msra.mxu0 0
        %2677 = vmatprep.subr.bf16.mxu0 0
        %2678 = vmatpush1.bf16.xpose.msra.mxu0 0
        %2679 = vmatprep.subr.bf16.mxu0 0
        %2680 = vmatpush1.bf16.xpose.msra.mxu0 0
        %2681 = vmatprep.subr.bf16.mxu0 0
        %2682 = vmatpush1.bf16.xpose.msra.mxu0 0
        %2683 = vmatprep.subr.bf16.mxu0 0
        %2684 = vmatpush1.bf16.xpose.msra.mxu0 0
        %2685 = vmatprep.subr.bf16.mxu0 0
        %2686 = vmatpush1.bf16.xpose.msra.mxu0 0
        %2687 = vmatprep.subr.bf16.mxu0 0
        %2688 = vmatpush1.bf16.xpose.msra.mxu0 0
        %2689 = vmatprep.subr.bf16.mxu0 0
        %2690 = vmatpush1.bf16.xpose.msra.mxu0 0
        %2691 = vmatprep.subr.bf16.mxu0 0
        %2692 = vmatpush1.bf16.xpose.msra.mxu0 0
        %2693 = vmatprep.subr.bf16.mxu0 0
        %2694 = vmatpush1.bf16.xpose.msra.mxu0 0
        %2695 = vmatprep.subr.bf16.mxu0 0
        %2696 = vmatpush1.bf16.xpose.msra.mxu0 0
        %2697 = vmatprep.subr.bf16.mxu0 0
        %2698 = vmatpush1.bf16.xpose.msra.mxu0 0
        %2699 = vmatprep.subr.bf16.mxu0 0
        %2700 = vmatpush1.bf16.xpose.msra.mxu0 0
        %2701 = vmatprep.subr.bf16.mxu0 0
        %2702 = vmatpush1.bf16.xpose.msra.mxu0 0
        %2703 = vmatprep.mubr.bf16.mxu0 0
        %2704 = vmatmul.mubr.bf16.gmra.mrb[0].mxu0 %v2666
        %v2705 = vpop.f32.mrb[0].mxu0
        %v2706 = vadd.f32 0.0, %v2705
        %v2707 = vpop.f32.mrb[0].mxu0
        %v2708 = vpop.f32.mrb[0].mxu0
        %v2709 = vpop.f32.mrb[0].mxu0
        %2710 = vdwg.mxu0
        %2711 = vrot.lane.b32.xlu0 %v1740, 120
        %v2712 = vpop.permute.xlu0 %2711
        %2713 = vrot.lane.b32.xlu0 %v1740, 104
        %v2714 = vpop.permute.xlu0 %2713
        %v2716 = vsel %vm1750, %v2712, 0
        %v2719 = vsel %vm1750, %v2714, 0
        %2721 = vmatprep.subr.bf16.mxu0 0
        %2722 = vmatpush1.bf16.xpose.msra.mxu0 %v2719
        %2723 = vmatprep.subr.bf16.mxu0 0
        %2724 = vmatpush1.bf16.xpose.msra.mxu0 0
        %2725 = vmatprep.subr.bf16.mxu0 0
        %2726 = vmatpush1.bf16.xpose.msra.mxu0 0
        %2727 = vmatprep.subr.bf16.mxu0 0
        %2728 = vmatpush1.bf16.xpose.msra.mxu0 0
        %2729 = vmatprep.subr.bf16.mxu0 0
        %2730 = vmatpush1.bf16.xpose.msra.mxu0 0
        %2731 = vmatprep.subr.bf16.mxu0 0
        %2732 = vmatpush1.bf16.xpose.msra.mxu0 0
        %2733 = vmatprep.subr.bf16.mxu0 0
        %2734 = vmatpush1.bf16.xpose.msra.mxu0 0
        %2735 = vmatprep.subr.bf16.mxu0 0
        %2736 = vmatpush1.bf16.xpose.msra.mxu0 0
        %2737 = vmatprep.subr.bf16.mxu0 0
        %2738 = vmatpush1.bf16.xpose.msra.mxu0 0
        %2739 = vmatprep.subr.bf16.mxu0 0
        %2740 = vmatpush1.bf16.xpose.msra.mxu0 0
        %2741 = vmatprep.subr.bf16.mxu0 0
        %2742 = vmatpush1.bf16.xpose.msra.mxu0 0
        %2743 = vmatprep.subr.bf16.mxu0 0
        %2744 = vmatpush1.bf16.xpose.msra.mxu0 0
        %2745 = vmatprep.subr.bf16.mxu0 0
        %2746 = vmatpush1.bf16.xpose.msra.mxu0 0
        %2747 = vmatprep.subr.bf16.mxu0 0
        %2748 = vmatpush1.bf16.xpose.msra.mxu0 0
        %2749 = vmatprep.subr.bf16.mxu0 0
        %2750 = vmatpush1.bf16.xpose.msra.mxu0 0
        %2751 = vmatprep.subr.bf16.mxu0 0
        %2752 = vmatpush1.bf16.xpose.msra.mxu0 0
        %2753 = vmatprep.mubr.bf16.mxu0 0
        %2754 = vmatmul.mubr.bf16.gmra.mrb[0].mxu0 %v2716
        %v2755 = vpop.f32.mrb[0].mxu0
        %v2756 = vadd.f32 0.0, %v2755
        %v2757 = vpop.f32.mrb[0].mxu0
        %v2758 = vpop.f32.mrb[0].mxu0
        %v2759 = vpop.f32.mrb[0].mxu0
        %2760 = vdwg.mxu0
        %2761 = vrot.lane.b32.xlu0 %v1741, 120
        %v2762 = vpop.permute.xlu0 %2761
        %2763 = vrot.lane.b32.xlu0 %v1741, 104
        %v2764 = vpop.permute.xlu0 %2763
        %v2766 = vsel %vm1750, %v2762, 0
        %v2769 = vsel %vm1750, %v2764, 0
        %2771 = vmatprep.subr.bf16.mxu0 0
        %2772 = vmatpush1.bf16.xpose.msra.mxu0 %v2769
        %2773 = vmatprep.subr.bf16.mxu0 0
        %2774 = vmatpush1.bf16.xpose.msra.mxu0 0
        %2775 = vmatprep.subr.bf16.mxu0 0
        %2776 = vmatpush1.bf16.xpose.msra.mxu0 0
        %2777 = vmatprep.subr.bf16.mxu0 0
        %2778 = vmatpush1.bf16.xpose.msra.mxu0 0
        %2779 = vmatprep.subr.bf16.mxu0 0
        %2780 = vmatpush1.bf16.xpose.msra.mxu0 0
        %2781 = vmatprep.subr.bf16.mxu0 0
        %2782 = vmatpush1.bf16.xpose.msra.mxu0 0
        %2783 = vmatprep.subr.bf16.mxu0 0
        %2784 = vmatpush1.bf16.xpose.msra.mxu0 0
        %2785 = vmatprep.subr.bf16.mxu0 0
        %2786 = vmatpush1.bf16.xpose.msra.mxu0 0
        %2787 = vmatprep.subr.bf16.mxu0 0
        %2788 = vmatpush1.bf16.xpose.msra.mxu0 0
        %2789 = vmatprep.subr.bf16.mxu0 0
        %2790 = vmatpush1.bf16.xpose.msra.mxu0 0
        %2791 = vmatprep.subr.bf16.mxu0 0
        %2792 = vmatpush1.bf16.xpose.msra.mxu0 0
        %2793 = vmatprep.subr.bf16.mxu0 0
        %2794 = vmatpush1.bf16.xpose.msra.mxu0 0
        %2795 = vmatprep.subr.bf16.mxu0 0
        %2796 = vmatpush1.bf16.xpose.msra.mxu0 0
        %2797 = vmatprep.subr.bf16.mxu0 0
        %2798 = vmatpush1.bf16.xpose.msra.mxu0 0
        %2799 = vmatprep.subr.bf16.mxu0 0
        %2800 = vmatpush1.bf16.xpose.msra.mxu0 0
        %2801 = vmatprep.subr.bf16.mxu0 0
        %2802 = vmatpush1.bf16.xpose.msra.mxu0 0
        %2803 = vmatprep.mubr.bf16.mxu0 0
        %2804 = vmatmul.mubr.bf16.gmra.mrb[0].mxu0 %v2766
        %v2805 = vpop.f32.mrb[0].mxu0
        %v2806 = vadd.f32 0.0, %v2805
        %v2807 = vpop.f32.mrb[0].mxu0
        %v2808 = vpop.f32.mrb[0].mxu0
        %v2809 = vpop.f32.mrb[0].mxu0
        %2810 = vdwg.mxu0
        %2811 = vrot.lane.b32.xlu0 %v1742, 120
        %v2812 = vpop.permute.xlu0 %2811
        %2813 = vrot.lane.b32.xlu0 %v1742, 104
        %v2814 = vpop.permute.xlu0 %2813
        %v2816 = vsel %vm1750, %v2812, 0
        %v2819 = vsel %vm1750, %v2814, 0
        %2821 = vmatprep.subr.bf16.mxu0 0
        %2822 = vmatpush1.bf16.xpose.msra.mxu0 %v2819
        %2823 = vmatprep.subr.bf16.mxu0 0
        %2824 = vmatpush1.bf16.xpose.msra.mxu0 0
        %2825 = vmatprep.subr.bf16.mxu0 0
        %2826 = vmatpush1.bf16.xpose.msra.mxu0 0
        %2827 = vmatprep.subr.bf16.mxu0 0
        %2828 = vmatpush1.bf16.xpose.msra.mxu0 0
        %2829 = vmatprep.subr.bf16.mxu0 0
        %2830 = vmatpush1.bf16.xpose.msra.mxu0 0
        %2831 = vmatprep.subr.bf16.mxu0 0
        %2832 = vmatpush1.bf16.xpose.msra.mxu0 0
        %2833 = vmatprep.subr.bf16.mxu0 0
        %2834 = vmatpush1.bf16.xpose.msra.mxu0 0
        %2835 = vmatprep.subr.bf16.mxu0 0
        %2836 = vmatpush1.bf16.xpose.msra.mxu0 0
        %2837 = vmatprep.subr.bf16.mxu0 0
        %2838 = vmatpush1.bf16.xpose.msra.mxu0 0
        %2839 = vmatprep.subr.bf16.mxu0 0
        %2840 = vmatpush1.bf16.xpose.msra.mxu0 0
        %2841 = vmatprep.subr.bf16.mxu0 0
        %2842 = vmatpush1.bf16.xpose.msra.mxu0 0
        %2843 = vmatprep.subr.bf16.mxu0 0
        %2844 = vmatpush1.bf16.xpose.msra.mxu0 0
        %2845 = vmatprep.subr.bf16.mxu0 0
        %2846 = vmatpush1.bf16.xpose.msra.mxu0 0
        %2847 = vmatprep.subr.bf16.mxu0 0
        %2848 = vmatpush1.bf16.xpose.msra.mxu0 0
        %2849 = vmatprep.subr.bf16.mxu0 0
        %2850 = vmatpush1.bf16.xpose.msra.mxu0 0
        %2851 = vmatprep.subr.bf16.mxu0 0
        %2852 = vmatpush1.bf16.xpose.msra.mxu0 0
        %2853 = vmatprep.mubr.bf16.mxu0 0
        %2854 = vmatmul.mubr.bf16.gmra.mrb[0].mxu0 %v2816
        %v2855 = vpop.f32.mrb[0].mxu0
        %v2856 = vadd.f32 0.0, %v2855
        %v2857 = vpop.f32.mrb[0].mxu0
        %v2858 = vpop.f32.mrb[0].mxu0
        %v2859 = vpop.f32.mrb[0].mxu0
        %2860 = vdwg.mxu0
        %2861 = vrot.lane.b32.xlu0 %v1743, 120
        %v2862 = vpop.permute.xlu0 %2861
        %2863 = vrot.lane.b32.xlu0 %v1743, 104
        %v2864 = vpop.permute.xlu0 %2863
        %v2866 = vsel %vm1750, %v2862, 0
        %v2869 = vsel %vm1750, %v2864, 0
        %2871 = vmatprep.subr.bf16.mxu0 0
        %2872 = vmatpush1.bf16.xpose.msra.mxu0 %v2869
        %2873 = vmatprep.subr.bf16.mxu0 0
        %2874 = vmatpush1.bf16.xpose.msra.mxu0 0
        %2875 = vmatprep.subr.bf16.mxu0 0
        %2876 = vmatpush1.bf16.xpose.msra.mxu0 0
        %2877 = vmatprep.subr.bf16.mxu0 0
        %2878 = vmatpush1.bf16.xpose.msra.mxu0 0
        %2879 = vmatprep.subr.bf16.mxu0 0
        %2880 = vmatpush1.bf16.xpose.msra.mxu0 0
        %2881 = vmatprep.subr.bf16.mxu0 0
        %2882 = vmatpush1.bf16.xpose.msra.mxu0 0
        %2883 = vmatprep.subr.bf16.mxu0 0
        %2884 = vmatpush1.bf16.xpose.msra.mxu0 0
        %2885 = vmatprep.subr.bf16.mxu0 0
        %2886 = vmatpush1.bf16.xpose.msra.mxu0 0
        %2887 = vmatprep.subr.bf16.mxu0 0
        %2888 = vmatpush1.bf16.xpose.msra.mxu0 0
        %2889 = vmatprep.subr.bf16.mxu0 0
        %2890 = vmatpush1.bf16.xpose.msra.mxu0 0
        %2891 = vmatprep.subr.bf16.mxu0 0
        %2892 = vmatpush1.bf16.xpose.msra.mxu0 0
        %2893 = vmatprep.subr.bf16.mxu0 0
        %2894 = vmatpush1.bf16.xpose.msra.mxu0 0
        %2895 = vmatprep.subr.bf16.mxu0 0
        %2896 = vmatpush1.bf16.xpose.msra.mxu0 0
        %2897 = vmatprep.subr.bf16.mxu0 0
        %2898 = vmatpush1.bf16.xpose.msra.mxu0 0
        %2899 = vmatprep.subr.bf16.mxu0 0
        %2900 = vmatpush1.bf16.xpose.msra.mxu0 0
        %2901 = vmatprep.subr.bf16.mxu0 0
        %2902 = vmatpush1.bf16.xpose.msra.mxu0 0
        %2903 = vmatprep.mubr.bf16.mxu0 0
        %2904 = vmatmul.mubr.bf16.gmra.mrb[0].mxu0 %v2866
        %v2905 = vpop.f32.mrb[0].mxu0
        %v2906 = vadd.f32 0.0, %v2905
        %v2907 = vpop.f32.mrb[0].mxu0
        %v2908 = vpop.f32.mrb[0].mxu0
        %v2909 = vpop.f32.mrb[0].mxu0
        %2910 = vdwg.mxu0
        %2911 = vrot.lane.b32.xlu0 %v1744, 120
        %v2912 = vpop.permute.xlu0 %2911
        %2913 = vrot.lane.b32.xlu0 %v1744, 104
        %v2914 = vpop.permute.xlu0 %2913
        %v2916 = vsel %vm1750, %v2912, 0
        %v2919 = vsel %vm1750, %v2914, 0
        %2921 = vmatprep.subr.bf16.mxu0 0
        %2922 = vmatpush1.bf16.xpose.msra.mxu0 %v2919
        %2923 = vmatprep.subr.bf16.mxu0 0
        %2924 = vmatpush1.bf16.xpose.msra.mxu0 0
        %2925 = vmatprep.subr.bf16.mxu0 0
        %2926 = vmatpush1.bf16.xpose.msra.mxu0 0
        %2927 = vmatprep.subr.bf16.mxu0 0
        %2928 = vmatpush1.bf16.xpose.msra.mxu0 0
        %2929 = vmatprep.subr.bf16.mxu0 0
        %2930 = vmatpush1.bf16.xpose.msra.mxu0 0
        %2931 = vmatprep.subr.bf16.mxu0 0
        %2932 = vmatpush1.bf16.xpose.msra.mxu0 0
        %2933 = vmatprep.subr.bf16.mxu0 0
        %2934 = vmatpush1.bf16.xpose.msra.mxu0 0
        %2935 = vmatprep.subr.bf16.mxu0 0
        %2936 = vmatpush1.bf16.xpose.msra.mxu0 0
        %2937 = vmatprep.subr.bf16.mxu0 0
        %2938 = vmatpush1.bf16.xpose.msra.mxu0 0
        %2939 = vmatprep.subr.bf16.mxu0 0
        %2940 = vmatpush1.bf16.xpose.msra.mxu0 0
        %2941 = vmatprep.subr.bf16.mxu0 0
        %2942 = vmatpush1.bf16.xpose.msra.mxu0 0
        %2943 = vmatprep.subr.bf16.mxu0 0
        %2944 = vmatpush1.bf16.xpose.msra.mxu0 0
        %2945 = vmatprep.subr.bf16.mxu0 0
        %2946 = vmatpush1.bf16.xpose.msra.mxu0 0
        %2947 = vmatprep.subr.bf16.mxu0 0
        %2948 = vmatpush1.bf16.xpose.msra.mxu0 0
        %2949 = vmatprep.subr.bf16.mxu0 0
        %2950 = vmatpush1.bf16.xpose.msra.mxu0 0
        %2951 = vmatprep.subr.bf16.mxu0 0
        %2952 = vmatpush1.bf16.xpose.msra.mxu0 0
        %2953 = vmatprep.mubr.bf16.mxu0 0
        %2954 = vmatmul.mubr.bf16.gmra.mrb[0].mxu0 %v2916
        %v2955 = vpop.f32.mrb[0].mxu0
        %v2956 = vadd.f32 0.0, %v2955
        %v2957 = vpop.f32.mrb[0].mxu0
        %v2958 = vpop.f32.mrb[0].mxu0
        %v2959 = vpop.f32.mrb[0].mxu0
        %2960 = vdwg.mxu0
        %2961 = vrot.lane.b32.xlu0 %v1745, 120
        %v2962 = vpop.permute.xlu0 %2961
        %2963 = vrot.lane.b32.xlu0 %v1745, 104
        %v2964 = vpop.permute.xlu0 %2963
        %v2966 = vsel %vm1750, %v2962, 0
        %v2969 = vsel %vm1750, %v2964, 0
        %2971 = vmatprep.subr.bf16.mxu0 0
        %2972 = vmatpush1.bf16.xpose.msra.mxu0 %v2969
        %2973 = vmatprep.subr.bf16.mxu0 0
        %2974 = vmatpush1.bf16.xpose.msra.mxu0 0
        %2975 = vmatprep.subr.bf16.mxu0 0
        %2976 = vmatpush1.bf16.xpose.msra.mxu0 0
        %2977 = vmatprep.subr.bf16.mxu0 0
        %2978 = vmatpush1.bf16.xpose.msra.mxu0 0
        %2979 = vmatprep.subr.bf16.mxu0 0
        %2980 = vmatpush1.bf16.xpose.msra.mxu0 0
        %2981 = vmatprep.subr.bf16.mxu0 0
        %2982 = vmatpush1.bf16.xpose.msra.mxu0 0
        %2983 = vmatprep.subr.bf16.mxu0 0
        %2984 = vmatpush1.bf16.xpose.msra.mxu0 0
        %2985 = vmatprep.subr.bf16.mxu0 0
        %2986 = vmatpush1.bf16.xpose.msra.mxu0 0
        %2987 = vmatprep.subr.bf16.mxu0 0
        %2988 = vmatpush1.bf16.xpose.msra.mxu0 0
        %2989 = vmatprep.subr.bf16.mxu0 0
        %2990 = vmatpush1.bf16.xpose.msra.mxu0 0
        %2991 = vmatprep.subr.bf16.mxu0 0
        %2992 = vmatpush1.bf16.xpose.msra.mxu0 0
        %2993 = vmatprep.subr.bf16.mxu0 0
        %2994 = vmatpush1.bf16.xpose.msra.mxu0 0
        %2995 = vmatprep.subr.bf16.mxu0 0
        %2996 = vmatpush1.bf16.xpose.msra.mxu0 0
        %2997 = vmatprep.subr.bf16.mxu0 0
        %2998 = vmatpush1.bf16.xpose.msra.mxu0 0
        %2999 = vmatprep.subr.bf16.mxu0 0
        %3000 = vmatpush1.bf16.xpose.msra.mxu0 0
        %3001 = vmatprep.subr.bf16.mxu0 0
        %3002 = vmatpush1.bf16.xpose.msra.mxu0 0
        %3003 = vmatprep.mubr.bf16.mxu0 0
        %3004 = vmatmul.mubr.bf16.gmra.mrb[0].mxu0 %v2966
        %v3005 = vpop.f32.mrb[0].mxu0
        %v3006 = vadd.f32 0.0, %v3005
        %v3007 = vpop.f32.mrb[0].mxu0
        %v3008 = vpop.f32.mrb[0].mxu0
        %v3009 = vpop.f32.mrb[0].mxu0
        %3010 = vdwg.mxu0
        %3011 = vrot.lane.b32.xlu0 %v1746, 120
        %v3012 = vpop.permute.xlu0 %3011
        %3013 = vrot.lane.b32.xlu0 %v1746, 104
        %v3014 = vpop.permute.xlu0 %3013
        %v3016 = vsel %vm1750, %v3012, 0
        %v3019 = vsel %vm1750, %v3014, 0
        %3021 = vmatprep.subr.bf16.mxu0 0
        %3022 = vmatpush1.bf16.xpose.msra.mxu0 %v3019
        %3023 = vmatprep.subr.bf16.mxu0 0
        %3024 = vmatpush1.bf16.xpose.msra.mxu0 0
        %3025 = vmatprep.subr.bf16.mxu0 0
        %3026 = vmatpush1.bf16.xpose.msra.mxu0 0
        %3027 = vmatprep.subr.bf16.mxu0 0
        %3028 = vmatpush1.bf16.xpose.msra.mxu0 0
        %3029 = vmatprep.subr.bf16.mxu0 0
        %3030 = vmatpush1.bf16.xpose.msra.mxu0 0
        %3031 = vmatprep.subr.bf16.mxu0 0
        %3032 = vmatpush1.bf16.xpose.msra.mxu0 0
        %3033 = vmatprep.subr.bf16.mxu0 0
        %3034 = vmatpush1.bf16.xpose.msra.mxu0 0
        %3035 = vmatprep.subr.bf16.mxu0 0
        %3036 = vmatpush1.bf16.xpose.msra.mxu0 0
        %3037 = vmatprep.subr.bf16.mxu0 0
        %3038 = vmatpush1.bf16.xpose.msra.mxu0 0
        %3039 = vmatprep.subr.bf16.mxu0 0
        %3040 = vmatpush1.bf16.xpose.msra.mxu0 0
        %3041 = vmatprep.subr.bf16.mxu0 0
        %3042 = vmatpush1.bf16.xpose.msra.mxu0 0
        %3043 = vmatprep.subr.bf16.mxu0 0
        %3044 = vmatpush1.bf16.xpose.msra.mxu0 0
        %3045 = vmatprep.subr.bf16.mxu0 0
        %3046 = vmatpush1.bf16.xpose.msra.mxu0 0
        %3047 = vmatprep.subr.bf16.mxu0 0
        %3048 = vmatpush1.bf16.xpose.msra.mxu0 0
        %3049 = vmatprep.subr.bf16.mxu0 0
        %3050 = vmatpush1.bf16.xpose.msra.mxu0 0
        %3051 = vmatprep.subr.bf16.mxu0 0
        %3052 = vmatpush1.bf16.xpose.msra.mxu0 0
        %3053 = vmatprep.mubr.bf16.mxu0 0
        %3054 = vmatmul.mubr.bf16.gmra.mrb[0].mxu0 %v3016
        %v3055 = vpop.f32.mrb[0].mxu0
        %v3056 = vadd.f32 0.0, %v3055
        %v3057 = vpop.f32.mrb[0].mxu0
        %v3058 = vpop.f32.mrb[0].mxu0
        %v3059 = vpop.f32.mrb[0].mxu0
        %3060 = vdwg.mxu0
        %v3061 = vmul.f32 %v2706, 0.35355338
        %v3062 = vmul.f32 %v2756, 0.35355338
        %v3063 = vmul.f32 %v2806, 0.35355338
        %v3064 = vmul.f32 %v2856, 0.35355338
        %v3065 = vmul.f32 %v2906, 0.35355338
        %v3066 = vmul.f32 %v2956, 0.35355338
        %v3067 = vmul.f32 %v3006, 0.35355338
        %v3068 = vmul.f32 %v3056, 0.35355338
        %v3069 = vadd.f32 %v3061, 20.0
        %v3070 = vadd.f32 %v3062, 20.0
        %v3071 = vadd.f32 %v3063, 20.0
        %v3072 = vadd.f32 %v3064, 20.0
        %v3073 = vadd.f32 %v3065, 20.0
        %v3074 = vadd.f32 %v3066, 20.0
        %v3075 = vadd.f32 %v3067, 20.0
        %v3076 = vadd.f32 %v3068, 20.0
        %v3077 = vmul.f32 %v3069, %v1554
        %v3078 = vmul.f32 %v3070, %v1555
        %v3079 = vmul.f32 %v3071, %v1556
        %v3080 = vmul.f32 %v3072, %v1557
        %v3081 = vmul.f32 %v3073, %v1558
        %v3082 = vmul.f32 %v3074, %v1559
        %v3083 = vmul.f32 %v3075, %v1560
        %v3084 = vmul.f32 %v3076, %v1561
        %v3085 = vsub.f32 %v3077, 20.0
        %v3086 = vsub.f32 %v3078, 20.0
        %v3087 = vsub.f32 %v3079, 20.0
        %v3088 = vsub.f32 %v3080, 20.0
        %v3089 = vsub.f32 %v3081, 20.0
        %v3090 = vsub.f32 %v3082, 20.0
        %v3091 = vsub.f32 %v3083, 20.0
        %v3092 = vsub.f32 %v3084, 20.0
        %v3093 = vsel %vm1750, %v3085, -inf
        %3094 = vmax.xlane.f32.xlu0 %v3093
        %v3095 = vpop.xlane.xlu0 %3094
        %v3096 = vsel %vm1750, %v3086, -inf
        %3097 = vmax.xlane.f32.xlu0 %v3096
        %v3098 = vpop.xlane.xlu0 %3097
        %v3099 = vsel %vm1750, %v3087, -inf
        %3100 = vmax.xlane.f32.xlu0 %v3099
        %v3101 = vpop.xlane.xlu0 %3100
        %v3102 = vsel %vm1750, %v3088, -inf
        %3103 = vmax.xlane.f32.xlu0 %v3102
        %v3104 = vpop.xlane.xlu0 %3103
        %v3105 = vsel %vm1750, %v3089, -inf
        %3106 = vmax.xlane.f32.xlu0 %v3105
        %v3107 = vpop.xlane.xlu0 %3106
        %v3108 = vsel %vm1750, %v3090, -inf
        %3109 = vmax.xlane.f32.xlu0 %v3108
        %v3110 = vpop.xlane.xlu0 %3109
        %v3111 = vsel %vm1750, %v3091, -inf
        %3112 = vmax.xlane.f32.xlu0 %v3111
        %v3113 = vpop.xlane.xlu0 %3112
        %v3114 = vsel %vm1750, %v3092, -inf
        %3115 = vmax.xlane.f32.xlu0 %v3114
        %v3116 = vpop.xlane.xlu0 %3115
        %v3117 = vsub.f32 %v3085, %v3095
        %v3118 = vsub.f32 %v3086, %v3098
        %v3119 = vsub.f32 %v3087, %v3101
        %v3120 = vsub.f32 %v3088, %v3104
        %v3121 = vsub.f32 %v3089, %v3107
        %v3122 = vsub.f32 %v3090, %v3110
        %v3123 = vsub.f32 %v3091, %v3113
        %v3124 = vsub.f32 %v3092, %v3116
        %v3125 = vmul.f32 %v3117, 1.442695
        %v3126 = vpow.pop %v3125
        %v3127 = vmul.f32 %v3118, 1.442695
        %v3128 = vpow.pop %v3127
        %v3129 = vmul.f32 %v3119, 1.442695
        %v3130 = vpow.pop %v3129
        %v3131 = vmul.f32 %v3120, 1.442695
        %v3132 = vpow.pop %v3131
        %v3133 = vmul.f32 %v3121, 1.442695
        %v3134 = vpow.pop %v3133
        %v3135 = vmul.f32 %v3122, 1.442695
        %v3136 = vpow.pop %v3135
        %v3137 = vmul.f32 %v3123, 1.442695
        %v3138 = vpow.pop %v3137
        %v3139 = vmul.f32 %v3124, 1.442695
        %v3140 = vpow.pop %v3139
        %v3141 = vsel %vm1750, %v3126, 0.0
        %3142 = vadd.xlane.f32.xlu0 %v3141
        %v3143 = vpop.xlane.xlu0 %3142
        %v3144 = vsel %vm1750, %v3128, 0.0
        %3145 = vadd.xlane.f32.xlu0 %v3144
        %v3146 = vpop.xlane.xlu0 %3145
        %v3147 = vsel %vm1750, %v3130, 0.0
        %3148 = vadd.xlane.f32.xlu0 %v3147
        %v3149 = vpop.xlane.xlu0 %3148
        %v3150 = vsel %vm1750, %v3132, 0.0
        %3151 = vadd.xlane.f32.xlu0 %v3150
        %v3152 = vpop.xlane.xlu0 %3151
        %v3153 = vsel %vm1750, %v3134, 0.0
        %3154 = vadd.xlane.f32.xlu0 %v3153
        %v3155 = vpop.xlane.xlu0 %3154
        %v3156 = vsel %vm1750, %v3136, 0.0
        %3157 = vadd.xlane.f32.xlu0 %v3156
        %v3158 = vpop.xlane.xlu0 %3157
        %v3159 = vsel %vm1750, %v3138, 0.0
        %3160 = vadd.xlane.f32.xlu0 %v3159
        %v3161 = vpop.xlane.xlu0 %3160
        %v3162 = vsel %vm1750, %v3140, 0.0
        %3163 = vadd.xlane.f32.xlu0 %v3162
        %v3164 = vpop.xlane.xlu0 %3163
        %v3165 = vrcp.pop %v3143
        %v3166 = vmul.f32 %v3126, %v3165
        %v3167 = vrcp.pop %v3146
        %v3168 = vmul.f32 %v3128, %v3167
        %v3169 = vrcp.pop %v3149
        %v3170 = vmul.f32 %v3130, %v3169
        %v3171 = vrcp.pop %v3152
        %v3172 = vmul.f32 %v3132, %v3171
        %v3173 = vrcp.pop %v3155
        %v3174 = vmul.f32 %v3134, %v3173
        %v3175 = vrcp.pop %v3158
        %v3176 = vmul.f32 %v3136, %v3175
        %v3177 = vrcp.pop %v3161
        %v3178 = vmul.f32 %v3138, %v3177
        %v3179 = vrcp.pop %v3164
        %v3180 = vmul.f32 %v3140, %v3179
        %v3181 = vmul.f32 %v3166, %v1660
        %v3182 = vmul.f32 %v3168, %v1661
        %v3183 = vmul.f32 %v3170, %v1662
        %v3184 = vmul.f32 %v3172, %v1663
        %v3185 = vmul.f32 %v3174, %v1664
        %v3186 = vmul.f32 %v3176, %v1665
        %v3187 = vmul.f32 %v3178, %v1666
        %v3188 = vmul.f32 %v3180, %v1667
        %v3189 = vpack.c.bf16 %v3181, %v3181
        %v3190 = vpack.c.bf16 %v3182, %v3182
        %v3191 = vpack.c.bf16 %v3183, %v3183
        %v3192 = vpack.c.bf16 %v3184, %v3184
        %v3193 = vpack.c.bf16 %v3185, %v3185
        %v3194 = vpack.c.bf16 %v3186, %v3186
        %v3195 = vpack.c.bf16 %v3187, %v3187
        %v3196 = vpack.c.bf16 %v3188, %v3188
        %3197 = vrot.lane.b32.xlu0 %v1739, 80
        %v3198 = vpop.permute.xlu0 %3197
        %v3200 = vsel %vm1750, %v3189, 0
        %v3203 = vsel %vm2281, %v3198, 0
        %3205 = vmatprep.subr.bf16.mxu0 0
        %3206 = vmatpush1.bf16.msra.mxu0 %v3203
        %3207 = vmatprep.subr.bf16.mxu0 0
        %3208 = vmatpush1.bf16.msra.mxu0 0
        %3209 = vmatprep.subr.bf16.mxu0 0
        %3210 = vmatpush1.bf16.msra.mxu0 0
        %3211 = vmatprep.subr.bf16.mxu0 0
        %3212 = vmatpush1.bf16.msra.mxu0 0
        %3213 = vmatprep.subr.bf16.mxu0 0
        %3214 = vmatpush1.bf16.msra.mxu0 0
        %3215 = vmatprep.subr.bf16.mxu0 0
        %3216 = vmatpush1.bf16.msra.mxu0 0
        %3217 = vmatprep.subr.bf16.mxu0 0
        %3218 = vmatpush1.bf16.msra.mxu0 0
        %3219 = vmatprep.subr.bf16.mxu0 0
        %3220 = vmatpush1.bf16.msra.mxu0 0
        %3221 = vmatprep.subr.bf16.mxu0 0
        %3222 = vmatpush1.bf16.msra.mxu0 0
        %3223 = vmatprep.subr.bf16.mxu0 0
        %3224 = vmatpush1.bf16.msra.mxu0 0
        %3225 = vmatprep.subr.bf16.mxu0 0
        %3226 = vmatpush1.bf16.msra.mxu0 0
        %3227 = vmatprep.subr.bf16.mxu0 0
        %3228 = vmatpush1.bf16.msra.mxu0 0
        %3229 = vmatprep.subr.bf16.mxu0 0
        %3230 = vmatpush1.bf16.msra.mxu0 0
        %3231 = vmatprep.subr.bf16.mxu0 0
        %3232 = vmatpush1.bf16.msra.mxu0 0
        %3233 = vmatprep.subr.bf16.mxu0 0
        %3234 = vmatpush1.bf16.msra.mxu0 0
        %3235 = vmatprep.subr.bf16.mxu0 0
        %3236 = vmatpush1.bf16.msra.mxu0 0
        %3237 = vmatprep.mubr.bf16.mxu0 0
        %3238 = vmatmul.mubr.bf16.gmra.mrb[0].mxu0 %v3200
        %v3239 = vpop.f32.mrb[0].mxu0
        %v3240 = vadd.f32 0.0, %v3239
        %v3241 = vpop.f32.mrb[0].mxu0
        %v3242 = vpop.f32.mrb[0].mxu0
        %v3243 = vpop.f32.mrb[0].mxu0
        %3244 = vdwg.mxu0
        %3245 = vrot.lane.b32.xlu0 %v1740, 80
        %v3246 = vpop.permute.xlu0 %3245
        %v3248 = vsel %vm1750, %v3190, 0
        %v3251 = vsel %vm2281, %v3246, 0
        %3253 = vmatprep.subr.bf16.mxu0 0
        %3254 = vmatpush1.bf16.msra.mxu0 %v3251
        %3255 = vmatprep.subr.bf16.mxu0 0
        %3256 = vmatpush1.bf16.msra.mxu0 0
        %3257 = vmatprep.subr.bf16.mxu0 0
        %3258 = vmatpush1.bf16.msra.mxu0 0
        %3259 = vmatprep.subr.bf16.mxu0 0
        %3260 = vmatpush1.bf16.msra.mxu0 0
        %3261 = vmatprep.subr.bf16.mxu0 0
        %3262 = vmatpush1.bf16.msra.mxu0 0
        %3263 = vmatprep.subr.bf16.mxu0 0
        %3264 = vmatpush1.bf16.msra.mxu0 0
        %3265 = vmatprep.subr.bf16.mxu0 0
        %3266 = vmatpush1.bf16.msra.mxu0 0
        %3267 = vmatprep.subr.bf16.mxu0 0
        %3268 = vmatpush1.bf16.msra.mxu0 0
        %3269 = vmatprep.subr.bf16.mxu0 0
        %3270 = vmatpush1.bf16.msra.mxu0 0
        %3271 = vmatprep.subr.bf16.mxu0 0
        %3272 = vmatpush1.bf16.msra.mxu0 0
        %3273 = vmatprep.subr.bf16.mxu0 0
        %3274 = vmatpush1.bf16.msra.mxu0 0
        %3275 = vmatprep.subr.bf16.mxu0 0
        %3276 = vmatpush1.bf16.msra.mxu0 0
        %3277 = vmatprep.subr.bf16.mxu0 0
        %3278 = vmatpush1.bf16.msra.mxu0 0
        %3279 = vmatprep.subr.bf16.mxu0 0
        %3280 = vmatpush1.bf16.msra.mxu0 0
        %3281 = vmatprep.subr.bf16.mxu0 0
        %3282 = vmatpush1.bf16.msra.mxu0 0
        %3283 = vmatprep.subr.bf16.mxu0 0
        %3284 = vmatpush1.bf16.msra.mxu0 0
        %3285 = vmatprep.mubr.bf16.mxu0 0
        %3286 = vmatmul.mubr.bf16.gmra.mrb[0].mxu0 %v3248
        %v3287 = vpop.f32.mrb[0].mxu0
        %v3288 = vadd.f32 0.0, %v3287
        %v3289 = vpop.f32.mrb[0].mxu0
        %v3290 = vpop.f32.mrb[0].mxu0
        %v3291 = vpop.f32.mrb[0].mxu0
        %3292 = vdwg.mxu0
        %3293 = vrot.lane.b32.xlu0 %v1741, 80
        %v3294 = vpop.permute.xlu0 %3293
        %v3296 = vsel %vm1750, %v3191, 0
        %v3299 = vsel %vm2281, %v3294, 0
        %3301 = vmatprep.subr.bf16.mxu0 0
        %3302 = vmatpush1.bf16.msra.mxu0 %v3299
        %3303 = vmatprep.subr.bf16.mxu0 0
        %3304 = vmatpush1.bf16.msra.mxu0 0
        %3305 = vmatprep.subr.bf16.mxu0 0
        %3306 = vmatpush1.bf16.msra.mxu0 0
        %3307 = vmatprep.subr.bf16.mxu0 0
        %3308 = vmatpush1.bf16.msra.mxu0 0
        %3309 = vmatprep.subr.bf16.mxu0 0
        %3310 = vmatpush1.bf16.msra.mxu0 0
        %3311 = vmatprep.subr.bf16.mxu0 0
        %3312 = vmatpush1.bf16.msra.mxu0 0
        %3313 = vmatprep.subr.bf16.mxu0 0
        %3314 = vmatpush1.bf16.msra.mxu0 0
        %3315 = vmatprep.subr.bf16.mxu0 0
        %3316 = vmatpush1.bf16.msra.mxu0 0
        %3317 = vmatprep.subr.bf16.mxu0 0
        %3318 = vmatpush1.bf16.msra.mxu0 0
        %3319 = vmatprep.subr.bf16.mxu0 0
        %3320 = vmatpush1.bf16.msra.mxu0 0
        %3321 = vmatprep.subr.bf16.mxu0 0
        %3322 = vmatpush1.bf16.msra.mxu0 0
        %3323 = vmatprep.subr.bf16.mxu0 0
        %3324 = vmatpush1.bf16.msra.mxu0 0
        %3325 = vmatprep.subr.bf16.mxu0 0
        %3326 = vmatpush1.bf16.msra.mxu0 0
        %3327 = vmatprep.subr.bf16.mxu0 0
        %3328 = vmatpush1.bf16.msra.mxu0 0
        %3329 = vmatprep.subr.bf16.mxu0 0
        %3330 = vmatpush1.bf16.msra.mxu0 0
        %3331 = vmatprep.subr.bf16.mxu0 0
        %3332 = vmatpush1.bf16.msra.mxu0 0
        %3333 = vmatprep.mubr.bf16.mxu0 0
        %3334 = vmatmul.mubr.bf16.gmra.mrb[0].mxu0 %v3296
        %v3335 = vpop.f32.mrb[0].mxu0
        %v3336 = vadd.f32 0.0, %v3335
        %v3337 = vpop.f32.mrb[0].mxu0
        %v3338 = vpop.f32.mrb[0].mxu0
        %v3339 = vpop.f32.mrb[0].mxu0
        %3340 = vdwg.mxu0
        %3341 = vrot.lane.b32.xlu0 %v1742, 80
        %v3342 = vpop.permute.xlu0 %3341
        %v3344 = vsel %vm1750, %v3192, 0
        %v3347 = vsel %vm2281, %v3342, 0
        %3349 = vmatprep.subr.bf16.mxu0 0
        %3350 = vmatpush1.bf16.msra.mxu0 %v3347
        %3351 = vmatprep.subr.bf16.mxu0 0
        %3352 = vmatpush1.bf16.msra.mxu0 0
        %3353 = vmatprep.subr.bf16.mxu0 0
        %3354 = vmatpush1.bf16.msra.mxu0 0
        %3355 = vmatprep.subr.bf16.mxu0 0
        %3356 = vmatpush1.bf16.msra.mxu0 0
        %3357 = vmatprep.subr.bf16.mxu0 0
        %3358 = vmatpush1.bf16.msra.mxu0 0
        %3359 = vmatprep.subr.bf16.mxu0 0
        %3360 = vmatpush1.bf16.msra.mxu0 0
        %3361 = vmatprep.subr.bf16.mxu0 0
        %3362 = vmatpush1.bf16.msra.mxu0 0
        %3363 = vmatprep.subr.bf16.mxu0 0
        %3364 = vmatpush1.bf16.msra.mxu0 0
        %3365 = vmatprep.subr.bf16.mxu0 0
        %3366 = vmatpush1.bf16.msra.mxu0 0
        %3367 = vmatprep.subr.bf16.mxu0 0
        %3368 = vmatpush1.bf16.msra.mxu0 0
        %3369 = vmatprep.subr.bf16.mxu0 0
        %3370 = vmatpush1.bf16.msra.mxu0 0
        %3371 = vmatprep.subr.bf16.mxu0 0
        %3372 = vmatpush1.bf16.msra.mxu0 0
        %3373 = vmatprep.subr.bf16.mxu0 0
        %3374 = vmatpush1.bf16.msra.mxu0 0
        %3375 = vmatprep.subr.bf16.mxu0 0
        %3376 = vmatpush1.bf16.msra.mxu0 0
        %3377 = vmatprep.subr.bf16.mxu0 0
        %3378 = vmatpush1.bf16.msra.mxu0 0
        %3379 = vmatprep.subr.bf16.mxu0 0
        %3380 = vmatpush1.bf16.msra.mxu0 0
        %3381 = vmatprep.mubr.bf16.mxu0 0
        %3382 = vmatmul.mubr.bf16.gmra.mrb[0].mxu0 %v3344
        %v3383 = vpop.f32.mrb[0].mxu0
        %v3384 = vadd.f32 0.0, %v3383
        %v3385 = vpop.f32.mrb[0].mxu0
        %v3386 = vpop.f32.mrb[0].mxu0
        %v3387 = vpop.f32.mrb[0].mxu0
        %3388 = vdwg.mxu0
        %3389 = vrot.lane.b32.xlu0 %v1743, 80
        %v3390 = vpop.permute.xlu0 %3389
        %v3392 = vsel %vm1750, %v3193, 0
        %v3395 = vsel %vm2281, %v3390, 0
        %3397 = vmatprep.subr.bf16.mxu0 0
        %3398 = vmatpush1.bf16.msra.mxu0 %v3395
        %3399 = vmatprep.subr.bf16.mxu0 0
        %3400 = vmatpush1.bf16.msra.mxu0 0
        %3401 = vmatprep.subr.bf16.mxu0 0
        %3402 = vmatpush1.bf16.msra.mxu0 0
        %3403 = vmatprep.subr.bf16.mxu0 0
        %3404 = vmatpush1.bf16.msra.mxu0 0
        %3405 = vmatprep.subr.bf16.mxu0 0
        %3406 = vmatpush1.bf16.msra.mxu0 0
        %3407 = vmatprep.subr.bf16.mxu0 0
        %3408 = vmatpush1.bf16.msra.mxu0 0
        %3409 = vmatprep.subr.bf16.mxu0 0
        %3410 = vmatpush1.bf16.msra.mxu0 0
        %3411 = vmatprep.subr.bf16.mxu0 0
        %3412 = vmatpush1.bf16.msra.mxu0 0
        %3413 = vmatprep.subr.bf16.mxu0 0
        %3414 = vmatpush1.bf16.msra.mxu0 0
        %3415 = vmatprep.subr.bf16.mxu0 0
        %3416 = vmatpush1.bf16.msra.mxu0 0
        %3417 = vmatprep.subr.bf16.mxu0 0
        %3418 = vmatpush1.bf16.msra.mxu0 0
        %3419 = vmatprep.subr.bf16.mxu0 0
        %3420 = vmatpush1.bf16.msra.mxu0 0
        %3421 = vmatprep.subr.bf16.mxu0 0
        %3422 = vmatpush1.bf16.msra.mxu0 0
        %3423 = vmatprep.subr.bf16.mxu0 0
        %3424 = vmatpush1.bf16.msra.mxu0 0
        %3425 = vmatprep.subr.bf16.mxu0 0
        %3426 = vmatpush1.bf16.msra.mxu0 0
        %3427 = vmatprep.subr.bf16.mxu0 0
        %3428 = vmatpush1.bf16.msra.mxu0 0
        %3429 = vmatprep.mubr.bf16.mxu0 0
        %3430 = vmatmul.mubr.bf16.gmra.mrb[0].mxu0 %v3392
        %v3431 = vpop.f32.mrb[0].mxu0
        %v3432 = vadd.f32 0.0, %v3431
        %v3433 = vpop.f32.mrb[0].mxu0
        %v3434 = vpop.f32.mrb[0].mxu0
        %v3435 = vpop.f32.mrb[0].mxu0
        %3436 = vdwg.mxu0
        %3437 = vrot.lane.b32.xlu0 %v1744, 80
        %v3438 = vpop.permute.xlu0 %3437
        %v3440 = vsel %vm1750, %v3194, 0
        %v3443 = vsel %vm2281, %v3438, 0
        %3445 = vmatprep.subr.bf16.mxu0 0
        %3446 = vmatpush1.bf16.msra.mxu0 %v3443
        %3447 = vmatprep.subr.bf16.mxu0 0
        %3448 = vmatpush1.bf16.msra.mxu0 0
        %3449 = vmatprep.subr.bf16.mxu0 0
        %3450 = vmatpush1.bf16.msra.mxu0 0
        %3451 = vmatprep.subr.bf16.mxu0 0
        %3452 = vmatpush1.bf16.msra.mxu0 0
        %3453 = vmatprep.subr.bf16.mxu0 0
        %3454 = vmatpush1.bf16.msra.mxu0 0
        %3455 = vmatprep.subr.bf16.mxu0 0
        %3456 = vmatpush1.bf16.msra.mxu0 0
        %3457 = vmatprep.subr.bf16.mxu0 0
        %3458 = vmatpush1.bf16.msra.mxu0 0
        %3459 = vmatprep.subr.bf16.mxu0 0
        %3460 = vmatpush1.bf16.msra.mxu0 0
        %3461 = vmatprep.subr.bf16.mxu0 0
        %3462 = vmatpush1.bf16.msra.mxu0 0
        %3463 = vmatprep.subr.bf16.mxu0 0
        %3464 = vmatpush1.bf16.msra.mxu0 0
        %3465 = vmatprep.subr.bf16.mxu0 0
        %3466 = vmatpush1.bf16.msra.mxu0 0
        %3467 = vmatprep.subr.bf16.mxu0 0
        %3468 = vmatpush1.bf16.msra.mxu0 0
        %3469 = vmatprep.subr.bf16.mxu0 0
        %3470 = vmatpush1.bf16.msra.mxu0 0
        %3471 = vmatprep.subr.bf16.mxu0 0
        %3472 = vmatpush1.bf16.msra.mxu0 0
        %3473 = vmatprep.subr.bf16.mxu0 0
        %3474 = vmatpush1.bf16.msra.mxu0 0
        %3475 = vmatprep.subr.bf16.mxu0 0
        %3476 = vmatpush1.bf16.msra.mxu0 0
        %3477 = vmatprep.mubr.bf16.mxu0 0
        %3478 = vmatmul.mubr.bf16.gmra.mrb[0].mxu0 %v3440
        %v3479 = vpop.f32.mrb[0].mxu0
        %v3480 = vadd.f32 0.0, %v3479
        %v3481 = vpop.f32.mrb[0].mxu0
        %v3482 = vpop.f32.mrb[0].mxu0
        %v3483 = vpop.f32.mrb[0].mxu0
        %3484 = vdwg.mxu0
        %3485 = vrot.lane.b32.xlu0 %v1745, 80
        %v3486 = vpop.permute.xlu0 %3485
        %v3488 = vsel %vm1750, %v3195, 0
        %v3491 = vsel %vm2281, %v3486, 0
        %3493 = vmatprep.subr.bf16.mxu0 0
        %3494 = vmatpush1.bf16.msra.mxu0 %v3491
        %3495 = vmatprep.subr.bf16.mxu0 0
        %3496 = vmatpush1.bf16.msra.mxu0 0
        %3497 = vmatprep.subr.bf16.mxu0 0
        %3498 = vmatpush1.bf16.msra.mxu0 0
        %3499 = vmatprep.subr.bf16.mxu0 0
        %3500 = vmatpush1.bf16.msra.mxu0 0
        %3501 = vmatprep.subr.bf16.mxu0 0
        %3502 = vmatpush1.bf16.msra.mxu0 0
        %3503 = vmatprep.subr.bf16.mxu0 0
        %3504 = vmatpush1.bf16.msra.mxu0 0
        %3505 = vmatprep.subr.bf16.mxu0 0
        %3506 = vmatpush1.bf16.msra.mxu0 0
        %3507 = vmatprep.subr.bf16.mxu0 0
        %3508 = vmatpush1.bf16.msra.mxu0 0
        %3509 = vmatprep.subr.bf16.mxu0 0
        %3510 = vmatpush1.bf16.msra.mxu0 0
        %3511 = vmatprep.subr.bf16.mxu0 0
        %3512 = vmatpush1.bf16.msra.mxu0 0
        %3513 = vmatprep.subr.bf16.mxu0 0
        %3514 = vmatpush1.bf16.msra.mxu0 0
        %3515 = vmatprep.subr.bf16.mxu0 0
        %3516 = vmatpush1.bf16.msra.mxu0 0
        %3517 = vmatprep.subr.bf16.mxu0 0
        %3518 = vmatpush1.bf16.msra.mxu0 0
        %3519 = vmatprep.subr.bf16.mxu0 0
        %3520 = vmatpush1.bf16.msra.mxu0 0
        %3521 = vmatprep.subr.bf16.mxu0 0
        %3522 = vmatpush1.bf16.msra.mxu0 0
        %3523 = vmatprep.subr.bf16.mxu0 0
        %3524 = vmatpush1.bf16.msra.mxu0 0
        %3525 = vmatprep.mubr.bf16.mxu0 0
        %3526 = vmatmul.mubr.bf16.gmra.mrb[0].mxu0 %v3488
        %v3527 = vpop.f32.mrb[0].mxu0
        %v3528 = vadd.f32 0.0, %v3527
        %v3529 = vpop.f32.mrb[0].mxu0
        %v3530 = vpop.f32.mrb[0].mxu0
        %v3531 = vpop.f32.mrb[0].mxu0
        %3532 = vdwg.mxu0
        %3533 = vrot.lane.b32.xlu0 %v1746, 80
        %v3534 = vpop.permute.xlu0 %3533
        %v3536 = vsel %vm1750, %v3196, 0
        %v3539 = vsel %vm2281, %v3534, 0
        %3541 = vmatprep.subr.bf16.mxu0 0
        %3542 = vmatpush1.bf16.msra.mxu0 %v3539
        %3543 = vmatprep.subr.bf16.mxu0 0
        %3544 = vmatpush1.bf16.msra.mxu0 0
        %3545 = vmatprep.subr.bf16.mxu0 0
        %3546 = vmatpush1.bf16.msra.mxu0 0
        %3547 = vmatprep.subr.bf16.mxu0 0
        %3548 = vmatpush1.bf16.msra.mxu0 0
        %3549 = vmatprep.subr.bf16.mxu0 0
        %3550 = vmatpush1.bf16.msra.mxu0 0
        %3551 = vmatprep.subr.bf16.mxu0 0
        %3552 = vmatpush1.bf16.msra.mxu0 0
        %3553 = vmatprep.subr.bf16.mxu0 0
        %3554 = vmatpush1.bf16.msra.mxu0 0
        %3555 = vmatprep.subr.bf16.mxu0 0
        %3556 = vmatpush1.bf16.msra.mxu0 0
        %3557 = vmatprep.subr.bf16.mxu0 0
        %3558 = vmatpush1.bf16.msra.mxu0 0
        %3559 = vmatprep.subr.bf16.mxu0 0
        %3560 = vmatpush1.bf16.msra.mxu0 0
        %3561 = vmatprep.subr.bf16.mxu0 0
        %3562 = vmatpush1.bf16.msra.mxu0 0
        %3563 = vmatprep.subr.bf16.mxu0 0
        %3564 = vmatpush1.bf16.msra.mxu0 0
        %3565 = vmatprep.subr.bf16.mxu0 0
        %3566 = vmatpush1.bf16.msra.mxu0 0
        %3567 = vmatprep.subr.bf16.mxu0 0
        %3568 = vmatpush1.bf16.msra.mxu0 0
        %3569 = vmatprep.subr.bf16.mxu0 0
        %3570 = vmatpush1.bf16.msra.mxu0 0
        %3571 = vmatprep.subr.bf16.mxu0 0
        %3572 = vmatpush1.bf16.msra.mxu0 0
        %3573 = vmatprep.mubr.bf16.mxu0 0
        %3574 = vmatmul.mubr.bf16.gmra.mrb[0].mxu0 %v3536
        %v3575 = vpop.f32.mrb[0].mxu0
        %v3576 = vadd.f32 0.0, %v3575
        %v3577 = vpop.f32.mrb[0].mxu0
        %v3578 = vpop.f32.mrb[0].mxu0
        %v3579 = vpop.f32.mrb[0].mxu0
        %3580 = vdwg.mxu0
        %3589 = vrot.lane.b32.xlu0 %v3240, 16
        %v3590 = vpop.permute.xlu0 %3589
        %3591 = vrot.lane.b32.xlu0 %v3288, 16
        %v3592 = vpop.permute.xlu0 %3591
        %3593 = vrot.lane.b32.xlu0 %v3336, 16
        %v3594 = vpop.permute.xlu0 %3593
        %3595 = vrot.lane.b32.xlu0 %v3384, 16
        %v3596 = vpop.permute.xlu0 %3595
        %3597 = vrot.lane.b32.xlu0 %v3432, 16
        %v3598 = vpop.permute.xlu0 %3597
        %3599 = vrot.lane.b32.xlu0 %v3480, 16
        %v3600 = vpop.permute.xlu0 %3599
        %3601 = vrot.lane.b32.xlu0 %v3528, 16
        %v3602 = vpop.permute.xlu0 %3601
        %3603 = vrot.lane.b32.xlu0 %v3576, 16
        %v3604 = vpop.permute.xlu0 %3603
        %v3613 = vsel %vm914, %v2320, %v3590
        %v3614 = vsel %vm914, %v2368, %v3592
        %v3615 = vsel %vm914, %v2416, %v3594
        %v3616 = vsel %vm914, %v2464, %v3596
        %v3617 = vsel %vm914, %v2512, %v3598
        %v3618 = vsel %vm914, %v2560, %v3600
        %v3619 = vsel %vm914, %v2608, %v3602
        %v3620 = vsel %vm914, %v2656, %v3604
        %v3621 = vpack.c.bf16 %v3614, %v3613
        %v3622 = vpack.c.bf16 %v3616, %v3615
        %v3623 = vpack.c.bf16 %v3618, %v3617
        %v3624 = vpack.c.bf16 %v3620, %v3619
        %v3629 = vunpack.c.l.b16 %v756
        %v3630 = vunpack.c.l.b16 %v757
        %v3631 = vunpack.c.l.b16 %v758
        %v3632 = vunpack.c.l.b16 %v759
        %v3633 = vpack.c.b16 %v3630, %v3629
        %v3634 = vpack.c.b16 %v3632, %v3631
        %3637 = vrot.lane.b32.xlu0 %v886, 112
        %v3638 = vpop.permute.xlu0 %3637
        %v3641 = vsel %vm1114, %v3621, 0
        %v3644 = vsel %vm1114, %v3622, 0
        %v3647 = vsel %vm1114, %v3623, 0
        %v3650 = vsel %vm1114, %v3624, 0
        %3652 = vmatprep.subr.bf16.mxu0 0
        %3653 = vmatpush1.bf16.msra.mxu0 %v3633
        %3654 = vmatprep.subr.bf16.mxu0 0
        %3655 = vmatpush1.bf16.msra.mxu0 %v3634
        %3656 = vmatprep.subr.bf16.mxu0 0
        %3657 = vmatpush1.bf16.msra.mxu0 0
        %3658 = vmatprep.subr.bf16.mxu0 0
        %3659 = vmatpush1.bf16.msra.mxu0 0
        %3660 = vmatprep.subr.bf16.mxu0 0
        %3661 = vmatpush1.bf16.msra.mxu0 0
        %3662 = vmatprep.subr.bf16.mxu0 0
        %3663 = vmatpush1.bf16.msra.mxu0 0
        %3664 = vmatprep.subr.bf16.mxu0 0
        %3665 = vmatpush1.bf16.msra.mxu0 0
        %3666 = vmatprep.subr.bf16.mxu0 0
        %3667 = vmatpush1.bf16.msra.mxu0 0
        %3668 = vmatprep.subr.bf16.mxu0 0
        %3669 = vmatpush1.bf16.msra.mxu0 0
        %3670 = vmatprep.subr.bf16.mxu0 0
        %3671 = vmatpush1.bf16.msra.mxu0 0
        %3672 = vmatprep.subr.bf16.mxu0 0
        %3673 = vmatpush1.bf16.msra.mxu0 0
        %3674 = vmatprep.subr.bf16.mxu0 0
        %3675 = vmatpush1.bf16.msra.mxu0 0
        %3676 = vmatprep.subr.bf16.mxu0 0
        %3677 = vmatpush1.bf16.msra.mxu0 0
        %3678 = vmatprep.subr.bf16.mxu0 0
        %3679 = vmatpush1.bf16.msra.mxu0 0
        %3680 = vmatprep.subr.bf16.mxu0 0
        %3681 = vmatpush1.bf16.msra.mxu0 0
        %3682 = vmatprep.subr.bf16.mxu0 0
        %3683 = vmatpush1.bf16.msra.mxu0 0
        %3684 = vmatprep.mubr.bf16.mxu0 0
        %3685 = vmatmul.mubr.bf16.gmra.mrb[0].mxu0 %v3641
        %v3686 = vpop.f32.mrb[0].mxu0
        %v3687 = vadd.f32 %v3638, %v3686
        %v3688 = vpop.f32.mrb[0].mxu0
        %v3689 = vpop.f32.mrb[0].mxu0
        %v3690 = vadd.f32 %v3638, %v3689
        %v3691 = vpop.f32.mrb[0].mxu0
        %3692 = vmatprep.mubr.bf16.mxu0 0
        %3693 = vmatmul.mubr.bf16.gmra.mrb[0].mxu0 %v3644
        %v3694 = vpop.f32.mrb[0].mxu0
        %v3695 = vadd.f32 %v3638, %v3694
        %v3696 = vpop.f32.mrb[0].mxu0
        %v3697 = vpop.f32.mrb[0].mxu0
        %v3698 = vadd.f32 %v3638, %v3697
        %v3699 = vpop.f32.mrb[0].mxu0
        %3700 = vmatprep.mubr.bf16.mxu0 0
        %3701 = vmatmul.mubr.bf16.gmra.mrb[0].mxu0 %v3647
        %v3702 = vpop.f32.mrb[0].mxu0
        %v3703 = vadd.f32 %v3638, %v3702
        %v3704 = vpop.f32.mrb[0].mxu0
        %v3705 = vpop.f32.mrb[0].mxu0
        %v3706 = vadd.f32 %v3638, %v3705
        %v3707 = vpop.f32.mrb[0].mxu0
        %3708 = vmatprep.mubr.bf16.mxu0 0
        %3709 = vmatmul.mubr.bf16.gmra.mrb[0].mxu0 %v3650
        %v3710 = vpop.f32.mrb[0].mxu0
        %v3711 = vadd.f32 %v3638, %v3710
        %v3712 = vpop.f32.mrb[0].mxu0
        %v3713 = vpop.f32.mrb[0].mxu0
        %v3714 = vadd.f32 %v3638, %v3713
        %v3715 = vpop.f32.mrb[0].mxu0
        %3716 = vdwg.mxu0
        %v3717 = vsel %vm914, %v3687, 0.0
        %3718 = vadd.xlane.f32.xlu0 %v3717
        %v3719 = vpop.xlane.xlu0 %3718
        %v3720 = vsel %vm914, %v3690, 0.0
        %3721 = vadd.xlane.f32.xlu0 %v3720
        %v3722 = vpop.xlane.xlu0 %3721
        %v3723 = vsel %vm914, %v3695, 0.0
        %3724 = vadd.xlane.f32.xlu0 %v3723
        %v3725 = vpop.xlane.xlu0 %3724
        %v3726 = vsel %vm914, %v3698, 0.0
        %3727 = vadd.xlane.f32.xlu0 %v3726
        %v3728 = vpop.xlane.xlu0 %3727
        %v3729 = vsel %vm914, %v3703, 0.0
        %3730 = vadd.xlane.f32.xlu0 %v3729
        %v3731 = vpop.xlane.xlu0 %3730
        %v3732 = vsel %vm914, %v3706, 0.0
        %3733 = vadd.xlane.f32.xlu0 %v3732
        %v3734 = vpop.xlane.xlu0 %3733
        %v3735 = vsel %vm914, %v3711, 0.0
        %3736 = vadd.xlane.f32.xlu0 %v3735
        %v3737 = vpop.xlane.xlu0 %3736
        %v3738 = vsel %vm914, %v3714, 0.0
        %3739 = vadd.xlane.f32.xlu0 %v3738
        %v3740 = vpop.xlane.xlu0 %3739
        %v3741 = vrcp.pop 16.0
        %v3742 = vmul.f32 %v3719, %v3741
        %v3743 = vmul.f32 %v3722, %v3741
        %v3744 = vmul.f32 %v3725, %v3741
        %v3745 = vmul.f32 %v3728, %v3741
        %v3746 = vmul.f32 %v3731, %v3741
        %v3747 = vmul.f32 %v3734, %v3741
        %v3748 = vmul.f32 %v3737, %v3741
        %v3749 = vmul.f32 %v3740, %v3741
        %v3750 = vsub.f32 %v3687, %v3742
        %v3751 = vsub.f32 %v3690, %v3743
        %v3752 = vsub.f32 %v3695, %v3744
        %v3753 = vsub.f32 %v3698, %v3745
        %v3754 = vsub.f32 %v3703, %v3746
        %v3755 = vsub.f32 %v3706, %v3747
        %v3756 = vsub.f32 %v3711, %v3748
        %v3757 = vsub.f32 %v3714, %v3749
        %v3758 = vmul.f32 %v3750, %v3750
        %v3759 = vmul.f32 %v3751, %v3751
        %v3760 = vmul.f32 %v3752, %v3752
        %v3761 = vmul.f32 %v3753, %v3753
        %v3762 = vmul.f32 %v3754, %v3754
        %v3763 = vmul.f32 %v3755, %v3755
        %v3764 = vmul.f32 %v3756, %v3756
        %v3765 = vmul.f32 %v3757, %v3757
        %v3766 = vsel %vm914, %v3758, 0.0
        %3767 = vadd.xlane.f32.xlu0 %v3766
        %v3768 = vpop.xlane.xlu0 %3767
        %v3769 = vsel %vm914, %v3759, 0.0
        %3770 = vadd.xlane.f32.xlu0 %v3769
        %v3771 = vpop.xlane.xlu0 %3770
        %v3772 = vsel %vm914, %v3760, 0.0
        %3773 = vadd.xlane.f32.xlu0 %v3772
        %v3774 = vpop.xlane.xlu0 %3773
        %v3775 = vsel %vm914, %v3761, 0.0
        %3776 = vadd.xlane.f32.xlu0 %v3775
        %v3777 = vpop.xlane.xlu0 %3776
        %v3778 = vsel %vm914, %v3762, 0.0
        %3779 = vadd.xlane.f32.xlu0 %v3778
        %v3780 = vpop.xlane.xlu0 %3779
        %v3781 = vsel %vm914, %v3763, 0.0
        %3782 = vadd.xlane.f32.xlu0 %v3781
        %v3783 = vpop.xlane.xlu0 %3782
        %v3784 = vsel %vm914, %v3764, 0.0
        %3785 = vadd.xlane.f32.xlu0 %v3784
        %v3786 = vpop.xlane.xlu0 %3785
        %v3787 = vsel %vm914, %v3765, 0.0
        %3788 = vadd.xlane.f32.xlu0 %v3787
        %v3789 = vpop.xlane.xlu0 %3788
        %v3790 = vmul.f32 %v3768, %v3741
        %v3791 = vmul.f32 %v3771, %v3741
        %v3792 = vmul.f32 %v3774, %v3741
        %v3793 = vmul.f32 %v3777, %v3741
        %v3794 = vmul.f32 %v3780, %v3741
        %v3795 = vmul.f32 %v3783, %v3741
        %v3796 = vmul.f32 %v3786, %v3741
        %v3797 = vmul.f32 %v3789, %v3741
        %v3798 = vadd.f32 %v3790, 1e-05
        %v3799 = vadd.f32 %v3791, 1e-05
        %v3800 = vadd.f32 %v3792, 1e-05
        %v3801 = vadd.f32 %v3793, 1e-05
        %v3802 = vadd.f32 %v3794, 1e-05
        %v3803 = vadd.f32 %v3795, 1e-05
        %v3804 = vadd.f32 %v3796, 1e-05
        %v3805 = vadd.f32 %v3797, 1e-05
        %v3806 = vrsqrt.pop %v3798
        %v3807 = vrsqrt.pop %v3799
        %v3808 = vrsqrt.pop %v3800
        %v3809 = vrsqrt.pop %v3801
        %v3810 = vrsqrt.pop %v3802
        %v3811 = vrsqrt.pop %v3803
        %v3812 = vrsqrt.pop %v3804
        %v3813 = vrsqrt.pop %v3805
        %v3814 = vmul.f32 %v3750, %v3806
        %v3815 = vmul.f32 %v3751, %v3807
        %v3816 = vmul.f32 %v3752, %v3808
        %v3817 = vmul.f32 %v3753, %v3809
        %v3818 = vmul.f32 %v3754, %v3810
        %v3819 = vmul.f32 %v3755, %v3811
        %v3820 = vmul.f32 %v3756, %v3812
        %v3821 = vmul.f32 %v3757, %v3813
        %3822 = vrot.lane.b32.xlu0 %v886, 96
        %v3823 = vpop.permute.xlu0 %3822
        %v3825 = vmul.f32 %v3814, %v3823
        %v3826 = vmul.f32 %v3815, %v3823
        %v3827 = vmul.f32 %v3816, %v3823
        %v3828 = vmul.f32 %v3817, %v3823
        %v3829 = vmul.f32 %v3818, %v3823
        %v3830 = vmul.f32 %v3819, %v3823
        %v3831 = vmul.f32 %v3820, %v3823
        %v3832 = vmul.f32 %v3821, %v3823
        %3833 = vrot.lane.b32.xlu0 %v886, 80
        %v3834 = vpop.permute.xlu0 %3833
        %v3836 = vadd.f32 %v3825, %v3834
        %v3837 = vadd.f32 %v3826, %v3834
        %v3838 = vadd.f32 %v3827, %v3834
        %v3839 = vadd.f32 %v3828, %v3834
        %v3840 = vadd.f32 %v3829, %v3834
        %v3841 = vadd.f32 %v3830, %v3834
        %v3842 = vadd.f32 %v3831, %v3834
        %v3843 = vadd.f32 %v3832, %v3834
        %v3844 = vadd.f32 %v728, %v992
        %v3845 = vadd.f32 %v729, %v993
        %v3846 = vadd.f32 %v730, %v994
        %v3847 = vadd.f32 %v731, %v995
        %v3848 = vadd.f32 %v732, %v996
        %v3849 = vadd.f32 %v733, %v997
        %v3850 = vadd.f32 %v734, %v998
        %v3851 = vadd.f32 %v735, %v999
        %v3852 = vadd.f32 %v3844, %v1162
        %v3853 = vadd.f32 %v3845, %v1165
        %v3854 = vadd.f32 %v3846, %v1170
        %v3855 = vadd.f32 %v3847, %v1173
        %v3856 = vadd.f32 %v3848, %v1178
        %v3857 = vadd.f32 %v3849, %v1181
        %v3858 = vadd.f32 %v3850, %v1186
        %v3859 = vadd.f32 %v3851, %v1189
        %v3860 = vadd.f32 %v3852, %v3836
        %v3861 = vadd.f32 %v3853, %v3837
        %v3862 = vadd.f32 %v3854, %v3838
        %v3863 = vadd.f32 %v3855, %v3839
        %v3864 = vadd.f32 %v3856, %v3840
        %v3865 = vadd.f32 %v3857, %v3841
        %v3866 = vadd.f32 %v3858, %v3842
        %v3867 = vadd.f32 %v3859, %v3843
        %v3868 = vmul.f32 %v3860, 0.5
        %v3869 = vmul.f32 %v3861, 0.5
        %v3870 = vmul.f32 %v3862, 0.5
        %v3871 = vmul.f32 %v3863, 0.5
        %v3872 = vmul.f32 %v3864, 0.5
        %v3873 = vmul.f32 %v3865, 0.5
        %v3874 = vmul.f32 %v3866, 0.5
        %v3875 = vmul.f32 %v3867, 0.5
        %v3884 = vrot.slane %v3869, 7
        %vm3885 = vcmask 1041409
        %v3886 = vsel %vm3885, %v3884, %v3868
        %v3887 = vrot.slane %v3870, 6
        %vm3888 = vcmask 1042434
        %v3889 = vsel %vm3888, %v3887, %v3886
        %v3890 = vrot.slane %v3871, 5
        %vm3891 = vcmask 1043459
        %v3892 = vsel %vm3891, %v3890, %v3889
        %v3893 = vrot.slane %v3872, 4
        %vm3894 = vcmask 1044484
        %v3895 = vsel %vm3894, %v3893, %v3892
        %v3896 = vrot.slane %v3873, 3
        %vm3897 = vcmask 1045509
        %v3898 = vsel %vm3897, %v3896, %v3895
        %v3899 = vrot.slane %v3874, 2
        %vm3900 = vcmask 1046534
        %v3901 = vsel %vm3900, %v3899, %v3898
        %v3902 = vrot.slane %v3875, 1
        %vm3903 = vcmask 1047559
        %v3904 = vsel %vm3903, %v3902, %v3901
        %v3906 = vrot.slane %v3868, 1
        %v3907 = vsel %vm3885, %v3869, %v3906
        %v3908 = vrot.slane %v3870, 7
        %v3909 = vsel %vm3888, %v3908, %v3907
        %v3910 = vrot.slane %v3871, 6
        %v3911 = vsel %vm3891, %v3910, %v3909
        %v3912 = vrot.slane %v3872, 5
        %v3913 = vsel %vm3894, %v3912, %v3911
        %v3914 = vrot.slane %v3873, 4
        %v3915 = vsel %vm3897, %v3914, %v3913
        %v3916 = vrot.slane %v3874, 3
        %v3917 = vsel %vm3900, %v3916, %v3915
        %v3918 = vrot.slane %v3875, 2
        %v3919 = vsel %vm3903, %v3918, %v3917
        %3920 = vrot.lane.b32.xlu0 %v3919, 16
        %v3921 = vpop.permute.xlu0 %3920
        %v3923 = vrot.slane %v3868, 2
        %v3924 = vrot.slane %v3869, 1
        %v3925 = vsel %vm3885, %v3924, %v3923
        %v3926 = vsel %vm3888, %v3870, %v3925
        %v3927 = vrot.slane %v3871, 7
        %v3928 = vsel %vm3891, %v3927, %v3926
        %v3929 = vrot.slane %v3872, 6
        %v3930 = vsel %vm3894, %v3929, %v3928
        %v3931 = vrot.slane %v3873, 5
        %v3932 = vsel %vm3897, %v3931, %v3930
        %v3933 = vrot.slane %v3874, 4
        %v3934 = vsel %vm3900, %v3933, %v3932
        %v3935 = vrot.slane %v3875, 3
        %v3936 = vsel %vm3903, %v3935, %v3934
        %3937 = vrot.lane.b32.xlu0 %v3936, 32
        %v3938 = vpop.permute.xlu0 %3937
        %v3940 = vrot.slane %v3868, 3
        %v3941 = vrot.slane %v3869, 2
        %v3942 = vsel %vm3885, %v3941, %v3940
        %v3943 = vrot.slane %v3870, 1
        %v3944 = vsel %vm3888, %v3943, %v3942
        %v3945 = vsel %vm3891, %v3871, %v3944
        %v3946 = vrot.slane %v3872, 7
        %v3947 = vsel %vm3894, %v3946, %v3945
        %v3948 = vrot.slane %v3873, 6
        %v3949 = vsel %vm3897, %v3948, %v3947
        %v3950 = vrot.slane %v3874, 5
        %v3951 = vsel %vm3900, %v3950, %v3949
        %v3952 = vrot.slane %v3875, 4
        %v3953 = vsel %vm3903, %v3952, %v3951
        %3954 = vrot.lane.b32.xlu0 %v3953, 48
        %v3955 = vpop.permute.xlu0 %3954
        %v3957 = vrot.slane %v3868, 4
        %v3958 = vrot.slane %v3869, 3
        %v3959 = vsel %vm3885, %v3958, %v3957
        %v3960 = vrot.slane %v3870, 2
        %v3961 = vsel %vm3888, %v3960, %v3959
        %v3962 = vrot.slane %v3871, 1
        %v3963 = vsel %vm3891, %v3962, %v3961
        %v3964 = vsel %vm3894, %v3872, %v3963
        %v3965 = vrot.slane %v3873, 7
        %v3966 = vsel %vm3897, %v3965, %v3964
        %v3967 = vrot.slane %v3874, 6
        %v3968 = vsel %vm3900, %v3967, %v3966
        %v3969 = vrot.slane %v3875, 5
        %v3970 = vsel %vm3903, %v3969, %v3968
        %3971 = vrot.lane.b32.xlu0 %v3970, 64
        %v3972 = vpop.permute.xlu0 %3971
        %v3974 = vrot.slane %v3868, 5
        %v3975 = vrot.slane %v3869, 4
        %v3976 = vsel %vm3885, %v3975, %v3974
        %v3977 = vrot.slane %v3870, 3
        %v3978 = vsel %vm3888, %v3977, %v3976
        %v3979 = vrot.slane %v3871, 2
        %v3980 = vsel %vm3891, %v3979, %v3978
        %v3981 = vrot.slane %v3872, 1
        %v3982 = vsel %vm3894, %v3981, %v3980
        %v3983 = vsel %vm3897, %v3873, %v3982
        %v3984 = vrot.slane %v3874, 7
        %v3985 = vsel %vm3900, %v3984, %v3983
        %v3986 = vrot.slane %v3875, 6
        %v3987 = vsel %vm3903, %v3986, %v3985
        %3988 = vrot.lane.b32.xlu0 %v3987, 80
        %v3989 = vpop.permute.xlu0 %3988
        %v3991 = vrot.slane %v3868, 6
        %v3992 = vrot.slane %v3869, 5
        %v3993 = vsel %vm3885, %v3992, %v3991
        %v3994 = vrot.slane %v3870, 4
        %v3995 = vsel %vm3888, %v3994, %v3993
        %v3996 = vrot.slane %v3871, 3
        %v3997 = vsel %vm3891, %v3996, %v3995
        %v3998 = vrot.slane %v3872, 2
        %v3999 = vsel %vm3894, %v3998, %v3997
        %v4000 = vrot.slane %v3873, 1
        %v4001 = vsel %vm3897, %v4000, %v3999
        %v4002 = vsel %vm3900, %v3874, %v4001
        %v4003 = vrot.slane %v3875, 7
        %v4004 = vsel %vm3903, %v4003, %v4002
        %4005 = vrot.lane.b32.xlu0 %v4004, 96
        %v4006 = vpop.permute.xlu0 %4005
        %v4008 = vrot.slane %v3868, 7
        %v4009 = vrot.slane %v3869, 6
        %v4010 = vsel %vm3885, %v4009, %v4008
        %v4011 = vrot.slane %v3870, 5
        %v4012 = vsel %vm3888, %v4011, %v4010
        %v4013 = vrot.slane %v3871, 4
        %v4014 = vsel %vm3891, %v4013, %v4012
        %v4015 = vrot.slane %v3872, 3
        %v4016 = vsel %vm3894, %v4015, %v4014
        %v4017 = vrot.slane %v3873, 2
        %v4018 = vsel %vm3897, %v4017, %v4016
        %v4019 = vrot.slane %v3874, 1
        %v4020 = vsel %vm3900, %v4019, %v4018
        %v4021 = vsel %vm3903, %v3875, %v4020
        %4022 = vrot.lane.b32.xlu0 %v4021, 112
        %v4023 = vpop.permute.xlu0 %4022
        %v4025 = vsel %vm914, %v3904, %v3921
        %v4026 = vsel %vm1114, %v4025, %v3938
        %vm4027 = vcmask 392192
        %v4028 = vsel %vm4027, %v4026, %v3955
        %vm4029 = vcmask 523264
        %v4030 = vsel %vm4029, %v4028, %v3972
        %vm4031 = vcmask 654336
        %v4032 = vsel %vm4031, %v4030, %v3989
        %vm4033 = vcmask 785408
        %v4034 = vsel %vm4033, %v4032, %v4006
        %vm4035 = vcmask 916480
        %v4036 = vsel %vm4035, %v4034, %v4023
        %4037 = vst [vmem:[%s697] sm:$0xff] %v4036
        %v4046 = vunpack.c.l.b16 %v704
        %v4047 = vunpack.c.l.b16 %v705
        %v4048 = vunpack.c.l.b16 %v706
        %v4049 = vunpack.c.l.b16 %v707
        %v4050 = vunpack.c.l.b16 %v708
        %v4051 = vunpack.c.l.b16 %v709
        %v4052 = vunpack.c.l.b16 %v710
        %v4053 = vunpack.c.l.b16 %v711
        %v4054 = vpack.c.b16 %v4047, %v4046
        %v4055 = vpack.c.b16 %v4049, %v4048
        %v4056 = vpack.c.b16 %v4051, %v4050
        %v4057 = vpack.c.b16 %v4053, %v4052
        %v4062 = vunpack.c.l.b16 %v752
        %v4063 = vunpack.c.l.b16 %v753
        %v4064 = vunpack.c.l.b16 %v754
        %v4065 = vunpack.c.l.b16 %v755
        %v4066 = vpack.c.b16 %v4063, %v4062
        %v4067 = vpack.c.b16 %v4065, %v4064
        %v4071 = vsel %vm1114, %v4054, 0
        %v4074 = vsel %vm1114, %v4055, 0
        %v4077 = vsel %vm1114, %v4056, 0
        %v4080 = vsel %vm1114, %v4057, 0
        %4082 = vmatprep.subr.bf16.mxu0 0
        %4083 = vmatpush1.bf16.msra.mxu0 %v4066
        %4084 = vmatprep.subr.bf16.mxu0 0
        %4085 = vmatpush1.bf16.msra.mxu0 %v4067
        %4086 = vmatprep.subr.bf16.mxu0 0
        %4087 = vmatpush1.bf16.msra.mxu0 0
        %4088 = vmatprep.subr.bf16.mxu0 0
        %4089 = vmatpush1.bf16.msra.mxu0 0
        %4090 = vmatprep.subr.bf16.mxu0 0
        %4091 = vmatpush1.bf16.msra.mxu0 0
        %4092 = vmatprep.subr.bf16.mxu0 0
        %4093 = vmatpush1.bf16.msra.mxu0 0
        %4094 = vmatprep.subr.bf16.mxu0 0
        %4095 = vmatpush1.bf16.msra.mxu0 0
        %4096 = vmatprep.subr.bf16.mxu0 0
        %4097 = vmatpush1.bf16.msra.mxu0 0
        %4098 = vmatprep.subr.bf16.mxu0 0
        %4099 = vmatpush1.bf16.msra.mxu0 0
        %4100 = vmatprep.subr.bf16.mxu0 0
        %4101 = vmatpush1.bf16.msra.mxu0 0
        %4102 = vmatprep.subr.bf16.mxu0 0
        %4103 = vmatpush1.bf16.msra.mxu0 0
        %4104 = vmatprep.subr.bf16.mxu0 0
        %4105 = vmatpush1.bf16.msra.mxu0 0
        %4106 = vmatprep.subr.bf16.mxu0 0
        %4107 = vmatpush1.bf16.msra.mxu0 0
        %4108 = vmatprep.subr.bf16.mxu0 0
        %4109 = vmatpush1.bf16.msra.mxu0 0
        %4110 = vmatprep.subr.bf16.mxu0 0
        %4111 = vmatpush1.bf16.msra.mxu0 0
        %4112 = vmatprep.subr.bf16.mxu0 0
        %4113 = vmatpush1.bf16.msra.mxu0 0
        %4114 = vmatprep.mubr.bf16.mxu0 0
        %4115 = vmatmul.mubr.bf16.gmra.mrb[0].mxu0 %v4071
        %v4116 = vpop.f32.mrb[0].mxu0
        %v4117 = vadd.f32 0.0, %v4116
        %v4118 = vpop.f32.mrb[0].mxu0
        %v4119 = vpop.f32.mrb[0].mxu0
        %v4120 = vadd.f32 0.0, %v4119
        %v4121 = vpop.f32.mrb[0].mxu0
        %4122 = vmatprep.mubr.bf16.mxu0 0
        %4123 = vmatmul.mubr.bf16.gmra.mrb[0].mxu0 %v4074
        %v4124 = vpop.f32.mrb[0].mxu0
        %v4125 = vadd.f32 0.0, %v4124
        %v4126 = vpop.f32.mrb[0].mxu0
        %v4127 = vpop.f32.mrb[0].mxu0
        %v4128 = vadd.f32 0.0, %v4127
        %v4129 = vpop.f32.mrb[0].mxu0
        %4130 = vmatprep.mubr.bf16.mxu0 0
        %4131 = vmatmul.mubr.bf16.gmra.mrb[0].mxu0 %v4077
        %v4132 = vpop.f32.mrb[0].mxu0
        %v4133 = vadd.f32 0.0, %v4132
        %v4134 = vpop.f32.mrb[0].mxu0
        %v4135 = vpop.f32.mrb[0].mxu0
        %v4136 = vadd.f32 0.0, %v4135
        %v4137 = vpop.f32.mrb[0].mxu0
        %4138 = vmatprep.mubr.bf16.mxu0 0
        %4139 = vmatmul.mubr.bf16.gmra.mrb[0].mxu0 %v4080
        %v4140 = vpop.f32.mrb[0].mxu0
        %v4141 = vadd.f32 0.0, %v4140
        %v4142 = vpop.f32.mrb[0].mxu0
        %v4143 = vpop.f32.mrb[0].mxu0
        %v4144 = vadd.f32 0.0, %v4143
        %v4145 = vpop.f32.mrb[0].mxu0
        %4146 = vdwg.mxu0
        %v4147 = vmul.f32 %v4117, %v816
        %v4148 = vmul.f32 %v4120, %v823
        %v4149 = vmul.f32 %v4125, %v830
        %v4150 = vmul.f32 %v4128, %v837
        %v4151 = vmul.f32 %v4133, %v844
        %v4152 = vmul.f32 %v4136, %v851
        %v4153 = vmul.f32 %v4141, %v858
        %v4154 = vmul.f32 %v4144, %v865
        %v4155 = vmul.f32 %v728, %v4147
        %v4156 = vmul.f32 %v729, %v4148
        %v4157 = vmul.f32 %v730, %v4149
        %v4158 = vmul.f32 %v731, %v4150
        %v4159 = vmul.f32 %v732, %v4151
        %v4160 = vmul.f32 %v733, %v4152
        %v4161 = vmul.f32 %v734, %v4153
        %v4162 = vmul.f32 %v735, %v4154
        %v4163 = vsel %vm914, %v4155, 0.0
        %v4164 = vrot.slane %v4163, 4
        %v4165 = vadd.f32 %v4163, %v4164
        %v4166 = vrot.slane %v4165, 2
        %v4167 = vadd.f32 %v4165, %v4166
        %v4168 = vrot.slane %v4167, 1
        %v4169 = vadd.f32 %v4167, %v4168
        %v4170 = vsel %vm914, %v4156, 0.0
        %v4171 = vrot.slane %v4170, 4
        %v4172 = vadd.f32 %v4170, %v4171
        %v4173 = vrot.slane %v4172, 2
        %v4174 = vadd.f32 %v4172, %v4173
        %v4175 = vrot.slane %v4174, 1
        %v4176 = vadd.f32 %v4174, %v4175
        %v4177 = vsel %vm914, %v4157, 0.0
        %v4178 = vrot.slane %v4177, 4
        %v4179 = vadd.f32 %v4177, %v4178
        %v4180 = vrot.slane %v4179, 2
        %v4181 = vadd.f32 %v4179, %v4180
        %v4182 = vrot.slane %v4181, 1
        %v4183 = vadd.f32 %v4181, %v4182
        %v4184 = vsel %vm914, %v4158, 0.0
        %v4185 = vrot.slane %v4184, 4
        %v4186 = vadd.f32 %v4184, %v4185
        %v4187 = vrot.slane %v4186, 2
        %v4188 = vadd.f32 %v4186, %v4187
        %v4189 = vrot.slane %v4188, 1
        %v4190 = vadd.f32 %v4188, %v4189
        %v4191 = vsel %vm914, %v4159, 0.0
        %v4192 = vrot.slane %v4191, 4
        %v4193 = vadd.f32 %v4191, %v4192
        %v4194 = vrot.slane %v4193, 2
        %v4195 = vadd.f32 %v4193, %v4194
        %v4196 = vrot.slane %v4195, 1
        %v4197 = vadd.f32 %v4195, %v4196
        %v4198 = vsel %vm914, %v4160, 0.0
        %v4199 = vrot.slane %v4198, 4
        %v4200 = vadd.f32 %v4198, %v4199
        %v4201 = vrot.slane %v4200, 2
        %v4202 = vadd.f32 %v4200, %v4201
        %v4203 = vrot.slane %v4202, 1
        %v4204 = vadd.f32 %v4202, %v4203
        %v4205 = vsel %vm914, %v4161, 0.0
        %v4206 = vrot.slane %v4205, 4
        %v4207 = vadd.f32 %v4205, %v4206
        %v4208 = vrot.slane %v4207, 2
        %v4209 = vadd.f32 %v4207, %v4208
        %v4210 = vrot.slane %v4209, 1
        %v4211 = vadd.f32 %v4209, %v4210
        %v4212 = vsel %vm914, %v4162, 0.0
        %v4213 = vrot.slane %v4212, 4
        %v4214 = vadd.f32 %v4212, %v4213
        %v4215 = vrot.slane %v4214, 2
        %v4216 = vadd.f32 %v4214, %v4215
        %v4217 = vrot.slane %v4216, 1
        %v4218 = vadd.f32 %v4216, %v4217
        %v4219 = vmul.f32 %v4169, 0.125
        %v4220 = vmul.f32 %v4176, 0.125
        %v4221 = vmul.f32 %v4183, 0.125
        %v4222 = vmul.f32 %v4190, 0.125
        %v4223 = vmul.f32 %v4197, 0.125
        %v4224 = vmul.f32 %v4204, 0.125
        %v4225 = vmul.f32 %v4211, 0.125
        %v4226 = vmul.f32 %v4218, 0.125
        %v4227 = vpack.c.bf16 %v736, %v736
        %v4228 = vpack.c.bf16 %v737, %v737
        %v4229 = vpack.c.bf16 %v738, %v738
        %v4230 = vpack.c.bf16 %v739, %v739
        %v4231 = vpack.c.bf16 %v740, %v740
        %v4232 = vpack.c.bf16 %v741, %v741
        %v4233 = vpack.c.bf16 %v742, %v742
        %v4234 = vpack.c.bf16 %v743, %v743
        %v4235 = vpack.c.bf16 %v874, %v874
        %v4236 = vpack.c.bf16 %v875, %v875
        %v4237 = vpack.c.bf16 %v876, %v876
        %v4238 = vpack.c.bf16 %v877, %v877
        %v4239 = vpack.c.bf16 %v878, %v878
        %v4240 = vpack.c.bf16 %v879, %v879
        %v4241 = vpack.c.bf16 %v880, %v880
        %v4242 = vpack.c.bf16 %v881, %v881
        %v4244 = vsel %vm1750, %v4227, 0
        %v4247 = vsel %vm2281, %v4235, 0
        %4249 = vmatprep.subr.bf16.mxu0 0
        %4250 = vmatpush1.bf16.msra.mxu0 %v4247
        %4251 = vmatprep.subr.bf16.mxu0 0
        %4252 = vmatpush1.bf16.msra.mxu0 0
        %4253 = vmatprep.subr.bf16.mxu0 0
        %4254 = vmatpush1.bf16.msra.mxu0 0
        %4255 = vmatprep.subr.bf16.mxu0 0
        %4256 = vmatpush1.bf16.msra.mxu0 0
        %4257 = vmatprep.subr.bf16.mxu0 0
        %4258 = vmatpush1.bf16.msra.mxu0 0
        %4259 = vmatprep.subr.bf16.mxu0 0
        %4260 = vmatpush1.bf16.msra.mxu0 0
        %4261 = vmatprep.subr.bf16.mxu0 0
        %4262 = vmatpush1.bf16.msra.mxu0 0
        %4263 = vmatprep.subr.bf16.mxu0 0
        %4264 = vmatpush1.bf16.msra.mxu0 0
        %4265 = vmatprep.subr.bf16.mxu0 0
        %4266 = vmatpush1.bf16.msra.mxu0 0
        %4267 = vmatprep.subr.bf16.mxu0 0
        %4268 = vmatpush1.bf16.msra.mxu0 0
        %4269 = vmatprep.subr.bf16.mxu0 0
        %4270 = vmatpush1.bf16.msra.mxu0 0
        %4271 = vmatprep.subr.bf16.mxu0 0
        %4272 = vmatpush1.bf16.msra.mxu0 0
        %4273 = vmatprep.subr.bf16.mxu0 0
        %4274 = vmatpush1.bf16.msra.mxu0 0
        %4275 = vmatprep.subr.bf16.mxu0 0
        %4276 = vmatpush1.bf16.msra.mxu0 0
        %4277 = vmatprep.subr.bf16.mxu0 0
        %4278 = vmatpush1.bf16.msra.mxu0 0
        %4279 = vmatprep.subr.bf16.mxu0 0
        %4280 = vmatpush1.bf16.msra.mxu0 0
        %4281 = vmatprep.mubr.bf16.mxu0 0
        %4282 = vmatmul.mubr.bf16.gmra.mrb[0].mxu0 %v4244
        %v4283 = vpop.f32.mrb[0].mxu0
        %v4284 = vadd.f32 0.0, %v4283
        %v4285 = vpop.f32.mrb[0].mxu0
        %v4286 = vpop.f32.mrb[0].mxu0
        %v4287 = vpop.f32.mrb[0].mxu0
        %4288 = vdwg.mxu0
        %v4290 = vsel %vm1750, %v4228, 0
        %v4293 = vsel %vm2281, %v4236, 0
        %4295 = vmatprep.subr.bf16.mxu0 0
        %4296 = vmatpush1.bf16.msra.mxu0 %v4293
        %4297 = vmatprep.subr.bf16.mxu0 0
        %4298 = vmatpush1.bf16.msra.mxu0 0
        %4299 = vmatprep.subr.bf16.mxu0 0
        %4300 = vmatpush1.bf16.msra.mxu0 0
        %4301 = vmatprep.subr.bf16.mxu0 0
        %4302 = vmatpush1.bf16.msra.mxu0 0
        %4303 = vmatprep.subr.bf16.mxu0 0
        %4304 = vmatpush1.bf16.msra.mxu0 0
        %4305 = vmatprep.subr.bf16.mxu0 0
        %4306 = vmatpush1.bf16.msra.mxu0 0
        %4307 = vmatprep.subr.bf16.mxu0 0
        %4308 = vmatpush1.bf16.msra.mxu0 0
        %4309 = vmatprep.subr.bf16.mxu0 0
        %4310 = vmatpush1.bf16.msra.mxu0 0
        %4311 = vmatprep.subr.bf16.mxu0 0
        %4312 = vmatpush1.bf16.msra.mxu0 0
        %4313 = vmatprep.subr.bf16.mxu0 0
        %4314 = vmatpush1.bf16.msra.mxu0 0
        %4315 = vmatprep.subr.bf16.mxu0 0
        %4316 = vmatpush1.bf16.msra.mxu0 0
        %4317 = vmatprep.subr.bf16.mxu0 0
        %4318 = vmatpush1.bf16.msra.mxu0 0
        %4319 = vmatprep.subr.bf16.mxu0 0
        %4320 = vmatpush1.bf16.msra.mxu0 0
        %4321 = vmatprep.subr.bf16.mxu0 0
        %4322 = vmatpush1.bf16.msra.mxu0 0
        %4323 = vmatprep.subr.bf16.mxu0 0
        %4324 = vmatpush1.bf16.msra.mxu0 0
        %4325 = vmatprep.subr.bf16.mxu0 0
        %4326 = vmatpush1.bf16.msra.mxu0 0
        %4327 = vmatprep.mubr.bf16.mxu0 0
        %4328 = vmatmul.mubr.bf16.gmra.mrb[0].mxu0 %v4290
        %v4329 = vpop.f32.mrb[0].mxu0
        %v4330 = vadd.f32 0.0, %v4329
        %v4331 = vpop.f32.mrb[0].mxu0
        %v4332 = vpop.f32.mrb[0].mxu0
        %v4333 = vpop.f32.mrb[0].mxu0
        %4334 = vdwg.mxu0
        %v4336 = vsel %vm1750, %v4229, 0
        %v4339 = vsel %vm2281, %v4237, 0
        %4341 = vmatprep.subr.bf16.mxu0 0
        %4342 = vmatpush1.bf16.msra.mxu0 %v4339
        %4343 = vmatprep.subr.bf16.mxu0 0
        %4344 = vmatpush1.bf16.msra.mxu0 0
        %4345 = vmatprep.subr.bf16.mxu0 0
        %4346 = vmatpush1.bf16.msra.mxu0 0
        %4347 = vmatprep.subr.bf16.mxu0 0
        %4348 = vmatpush1.bf16.msra.mxu0 0
        %4349 = vmatprep.subr.bf16.mxu0 0
        %4350 = vmatpush1.bf16.msra.mxu0 0
        %4351 = vmatprep.subr.bf16.mxu0 0
        %4352 = vmatpush1.bf16.msra.mxu0 0
        %4353 = vmatprep.subr.bf16.mxu0 0
        %4354 = vmatpush1.bf16.msra.mxu0 0
        %4355 = vmatprep.subr.bf16.mxu0 0
        %4356 = vmatpush1.bf16.msra.mxu0 0
        %4357 = vmatprep.subr.bf16.mxu0 0
        %4358 = vmatpush1.bf16.msra.mxu0 0
        %4359 = vmatprep.subr.bf16.mxu0 0
        %4360 = vmatpush1.bf16.msra.mxu0 0
        %4361 = vmatprep.subr.bf16.mxu0 0
        %4362 = vmatpush1.bf16.msra.mxu0 0
        %4363 = vmatprep.subr.bf16.mxu0 0
        %4364 = vmatpush1.bf16.msra.mxu0 0
        %4365 = vmatprep.subr.bf16.mxu0 0
        %4366 = vmatpush1.bf16.msra.mxu0 0
        %4367 = vmatprep.subr.bf16.mxu0 0
        %4368 = vmatpush1.bf16.msra.mxu0 0
        %4369 = vmatprep.subr.bf16.mxu0 0
        %4370 = vmatpush1.bf16.msra.mxu0 0
        %4371 = vmatprep.subr.bf16.mxu0 0
        %4372 = vmatpush1.bf16.msra.mxu0 0
        %4373 = vmatprep.mubr.bf16.mxu0 0
        %4374 = vmatmul.mubr.bf16.gmra.mrb[0].mxu0 %v4336
        %v4375 = vpop.f32.mrb[0].mxu0
        %v4376 = vadd.f32 0.0, %v4375
        %v4377 = vpop.f32.mrb[0].mxu0
        %v4378 = vpop.f32.mrb[0].mxu0
        %v4379 = vpop.f32.mrb[0].mxu0
        %4380 = vdwg.mxu0
        %v4382 = vsel %vm1750, %v4230, 0
        %v4385 = vsel %vm2281, %v4238, 0
        %4387 = vmatprep.subr.bf16.mxu0 0
        %4388 = vmatpush1.bf16.msra.mxu0 %v4385
        %4389 = vmatprep.subr.bf16.mxu0 0
        %4390 = vmatpush1.bf16.msra.mxu0 0
        %4391 = vmatprep.subr.bf16.mxu0 0
        %4392 = vmatpush1.bf16.msra.mxu0 0
        %4393 = vmatprep.subr.bf16.mxu0 0
        %4394 = vmatpush1.bf16.msra.mxu0 0
        %4395 = vmatprep.subr.bf16.mxu0 0
        %4396 = vmatpush1.bf16.msra.mxu0 0
        %4397 = vmatprep.subr.bf16.mxu0 0
        %4398 = vmatpush1.bf16.msra.mxu0 0
        %4399 = vmatprep.subr.bf16.mxu0 0
        %4400 = vmatpush1.bf16.msra.mxu0 0
        %4401 = vmatprep.subr.bf16.mxu0 0
        %4402 = vmatpush1.bf16.msra.mxu0 0
        %4403 = vmatprep.subr.bf16.mxu0 0
        %4404 = vmatpush1.bf16.msra.mxu0 0
        %4405 = vmatprep.subr.bf16.mxu0 0
        %4406 = vmatpush1.bf16.msra.mxu0 0
        %4407 = vmatprep.subr.bf16.mxu0 0
        %4408 = vmatpush1.bf16.msra.mxu0 0
        %4409 = vmatprep.subr.bf16.mxu0 0
        %4410 = vmatpush1.bf16.msra.mxu0 0
        %4411 = vmatprep.subr.bf16.mxu0 0
        %4412 = vmatpush1.bf16.msra.mxu0 0
        %4413 = vmatprep.subr.bf16.mxu0 0
        %4414 = vmatpush1.bf16.msra.mxu0 0
        %4415 = vmatprep.subr.bf16.mxu0 0
        %4416 = vmatpush1.bf16.msra.mxu0 0
        %4417 = vmatprep.subr.bf16.mxu0 0
        %4418 = vmatpush1.bf16.msra.mxu0 0
        %4419 = vmatprep.mubr.bf16.mxu0 0
        %4420 = vmatmul.mubr.bf16.gmra.mrb[0].mxu0 %v4382
        %v4421 = vpop.f32.mrb[0].mxu0
        %v4422 = vadd.f32 0.0, %v4421
        %v4423 = vpop.f32.mrb[0].mxu0
        %v4424 = vpop.f32.mrb[0].mxu0
        %v4425 = vpop.f32.mrb[0].mxu0
        %4426 = vdwg.mxu0
        %v4428 = vsel %vm1750, %v4231, 0
        %v4431 = vsel %vm2281, %v4239, 0
        %4433 = vmatprep.subr.bf16.mxu0 0
        %4434 = vmatpush1.bf16.msra.mxu0 %v4431
        %4435 = vmatprep.subr.bf16.mxu0 0
        %4436 = vmatpush1.bf16.msra.mxu0 0
        %4437 = vmatprep.subr.bf16.mxu0 0
        %4438 = vmatpush1.bf16.msra.mxu0 0
        %4439 = vmatprep.subr.bf16.mxu0 0
        %4440 = vmatpush1.bf16.msra.mxu0 0
        %4441 = vmatprep.subr.bf16.mxu0 0
        %4442 = vmatpush1.bf16.msra.mxu0 0
        %4443 = vmatprep.subr.bf16.mxu0 0
        %4444 = vmatpush1.bf16.msra.mxu0 0
        %4445 = vmatprep.subr.bf16.mxu0 0
        %4446 = vmatpush1.bf16.msra.mxu0 0
        %4447 = vmatprep.subr.bf16.mxu0 0
        %4448 = vmatpush1.bf16.msra.mxu0 0
        %4449 = vmatprep.subr.bf16.mxu0 0
        %4450 = vmatpush1.bf16.msra.mxu0 0
        %4451 = vmatprep.subr.bf16.mxu0 0
        %4452 = vmatpush1.bf16.msra.mxu0 0
        %4453 = vmatprep.subr.bf16.mxu0 0
        %4454 = vmatpush1.bf16.msra.mxu0 0
        %4455 = vmatprep.subr.bf16.mxu0 0
        %4456 = vmatpush1.bf16.msra.mxu0 0
        %4457 = vmatprep.subr.bf16.mxu0 0
        %4458 = vmatpush1.bf16.msra.mxu0 0
        %4459 = vmatprep.subr.bf16.mxu0 0
        %4460 = vmatpush1.bf16.msra.mxu0 0
        %4461 = vmatprep.subr.bf16.mxu0 0
        %4462 = vmatpush1.bf16.msra.mxu0 0
        %4463 = vmatprep.subr.bf16.mxu0 0
        %4464 = vmatpush1.bf16.msra.mxu0 0
        %4465 = vmatprep.mubr.bf16.mxu0 0
        %4466 = vmatmul.mubr.bf16.gmra.mrb[0].mxu0 %v4428
        %v4467 = vpop.f32.mrb[0].mxu0
        %v4468 = vadd.f32 0.0, %v4467
        %v4469 = vpop.f32.mrb[0].mxu0
        %v4470 = vpop.f32.mrb[0].mxu0
        %v4471 = vpop.f32.mrb[0].mxu0
        %4472 = vdwg.mxu0
        %v4474 = vsel %vm1750, %v4232, 0
        %v4477 = vsel %vm2281, %v4240, 0
        %4479 = vmatprep.subr.bf16.mxu0 0
        %4480 = vmatpush1.bf16.msra.mxu0 %v4477
        %4481 = vmatprep.subr.bf16.mxu0 0
        %4482 = vmatpush1.bf16.msra.mxu0 0
        %4483 = vmatprep.subr.bf16.mxu0 0
        %4484 = vmatpush1.bf16.msra.mxu0 0
        %4485 = vmatprep.subr.bf16.mxu0 0
        %4486 = vmatpush1.bf16.msra.mxu0 0
        %4487 = vmatprep.subr.bf16.mxu0 0
        %4488 = vmatpush1.bf16.msra.mxu0 0
        %4489 = vmatprep.subr.bf16.mxu0 0
        %4490 = vmatpush1.bf16.msra.mxu0 0
        %4491 = vmatprep.subr.bf16.mxu0 0
        %4492 = vmatpush1.bf16.msra.mxu0 0
        %4493 = vmatprep.subr.bf16.mxu0 0
        %4494 = vmatpush1.bf16.msra.mxu0 0
        %4495 = vmatprep.subr.bf16.mxu0 0
        %4496 = vmatpush1.bf16.msra.mxu0 0
        %4497 = vmatprep.subr.bf16.mxu0 0
        %4498 = vmatpush1.bf16.msra.mxu0 0
        %4499 = vmatprep.subr.bf16.mxu0 0
        %4500 = vmatpush1.bf16.msra.mxu0 0
        %4501 = vmatprep.subr.bf16.mxu0 0
        %4502 = vmatpush1.bf16.msra.mxu0 0
        %4503 = vmatprep.subr.bf16.mxu0 0
        %4504 = vmatpush1.bf16.msra.mxu0 0
        %4505 = vmatprep.subr.bf16.mxu0 0
        %4506 = vmatpush1.bf16.msra.mxu0 0
        %4507 = vmatprep.subr.bf16.mxu0 0
        %4508 = vmatpush1.bf16.msra.mxu0 0
        %4509 = vmatprep.subr.bf16.mxu0 0
        %4510 = vmatpush1.bf16.msra.mxu0 0
        %4511 = vmatprep.mubr.bf16.mxu0 0
        %4512 = vmatmul.mubr.bf16.gmra.mrb[0].mxu0 %v4474
        %v4513 = vpop.f32.mrb[0].mxu0
        %v4514 = vadd.f32 0.0, %v4513
        %v4515 = vpop.f32.mrb[0].mxu0
        %v4516 = vpop.f32.mrb[0].mxu0
        %v4517 = vpop.f32.mrb[0].mxu0
        %4518 = vdwg.mxu0
        %v4520 = vsel %vm1750, %v4233, 0
        %v4523 = vsel %vm2281, %v4241, 0
        %4525 = vmatprep.subr.bf16.mxu0 0
        %4526 = vmatpush1.bf16.msra.mxu0 %v4523
        %4527 = vmatprep.subr.bf16.mxu0 0
        %4528 = vmatpush1.bf16.msra.mxu0 0
        %4529 = vmatprep.subr.bf16.mxu0 0
        %4530 = vmatpush1.bf16.msra.mxu0 0
        %4531 = vmatprep.subr.bf16.mxu0 0
        %4532 = vmatpush1.bf16.msra.mxu0 0
        %4533 = vmatprep.subr.bf16.mxu0 0
        %4534 = vmatpush1.bf16.msra.mxu0 0
        %4535 = vmatprep.subr.bf16.mxu0 0
        %4536 = vmatpush1.bf16.msra.mxu0 0
        %4537 = vmatprep.subr.bf16.mxu0 0
        %4538 = vmatpush1.bf16.msra.mxu0 0
        %4539 = vmatprep.subr.bf16.mxu0 0
        %4540 = vmatpush1.bf16.msra.mxu0 0
        %4541 = vmatprep.subr.bf16.mxu0 0
        %4542 = vmatpush1.bf16.msra.mxu0 0
        %4543 = vmatprep.subr.bf16.mxu0 0
        %4544 = vmatpush1.bf16.msra.mxu0 0
        %4545 = vmatprep.subr.bf16.mxu0 0
        %4546 = vmatpush1.bf16.msra.mxu0 0
        %4547 = vmatprep.subr.bf16.mxu0 0
        %4548 = vmatpush1.bf16.msra.mxu0 0
        %4549 = vmatprep.subr.bf16.mxu0 0
        %4550 = vmatpush1.bf16.msra.mxu0 0
        %4551 = vmatprep.subr.bf16.mxu0 0
        %4552 = vmatpush1.bf16.msra.mxu0 0
        %4553 = vmatprep.subr.bf16.mxu0 0
        %4554 = vmatpush1.bf16.msra.mxu0 0
        %4555 = vmatprep.subr.bf16.mxu0 0
        %4556 = vmatpush1.bf16.msra.mxu0 0
        %4557 = vmatprep.mubr.bf16.mxu0 0
        %4558 = vmatmul.mubr.bf16.gmra.mrb[0].mxu0 %v4520
        %v4559 = vpop.f32.mrb[0].mxu0
        %v4560 = vadd.f32 0.0, %v4559
        %v4561 = vpop.f32.mrb[0].mxu0
        %v4562 = vpop.f32.mrb[0].mxu0
        %v4563 = vpop.f32.mrb[0].mxu0
        %4564 = vdwg.mxu0
        %v4566 = vsel %vm1750, %v4234, 0
        %v4569 = vsel %vm2281, %v4242, 0
        %4571 = vmatprep.subr.bf16.mxu0 0
        %4572 = vmatpush1.bf16.msra.mxu0 %v4569
        %4573 = vmatprep.subr.bf16.mxu0 0
        %4574 = vmatpush1.bf16.msra.mxu0 0
        %4575 = vmatprep.subr.bf16.mxu0 0
        %4576 = vmatpush1.bf16.msra.mxu0 0
        %4577 = vmatprep.subr.bf16.mxu0 0
        %4578 = vmatpush1.bf16.msra.mxu0 0
        %4579 = vmatprep.subr.bf16.mxu0 0
        %4580 = vmatpush1.bf16.msra.mxu0 0
        %4581 = vmatprep.subr.bf16.mxu0 0
        %4582 = vmatpush1.bf16.msra.mxu0 0
        %4583 = vmatprep.subr.bf16.mxu0 0
        %4584 = vmatpush1.bf16.msra.mxu0 0
        %4585 = vmatprep.subr.bf16.mxu0 0
        %4586 = vmatpush1.bf16.msra.mxu0 0
        %4587 = vmatprep.subr.bf16.mxu0 0
        %4588 = vmatpush1.bf16.msra.mxu0 0
        %4589 = vmatprep.subr.bf16.mxu0 0
        %4590 = vmatpush1.bf16.msra.mxu0 0
        %4591 = vmatprep.subr.bf16.mxu0 0
        %4592 = vmatpush1.bf16.msra.mxu0 0
        %4593 = vmatprep.subr.bf16.mxu0 0
        %4594 = vmatpush1.bf16.msra.mxu0 0
        %4595 = vmatprep.subr.bf16.mxu0 0
        %4596 = vmatpush1.bf16.msra.mxu0 0
        %4597 = vmatprep.subr.bf16.mxu0 0
        %4598 = vmatpush1.bf16.msra.mxu0 0
        %4599 = vmatprep.subr.bf16.mxu0 0
        %4600 = vmatpush1.bf16.msra.mxu0 0
        %4601 = vmatprep.subr.bf16.mxu0 0
        %4602 = vmatpush1.bf16.msra.mxu0 0
        %4603 = vmatprep.mubr.bf16.mxu0 0
        %4604 = vmatmul.mubr.bf16.gmra.mrb[0].mxu0 %v4566
        %v4605 = vpop.f32.mrb[0].mxu0
        %v4606 = vadd.f32 0.0, %v4605
        %v4607 = vpop.f32.mrb[0].mxu0
        %v4608 = vpop.f32.mrb[0].mxu0
        %v4609 = vpop.f32.mrb[0].mxu0
        %4610 = vdwg.mxu0
        %v4611 = vmul.f32 %v4284, 0.125
        %v4612 = vmul.f32 %v4330, 0.125
        %v4613 = vmul.f32 %v4376, 0.125
        %v4614 = vmul.f32 %v4422, 0.125
        %v4615 = vmul.f32 %v4468, 0.125
        %v4616 = vmul.f32 %v4514, 0.125
        %v4617 = vmul.f32 %v4560, 0.125
        %v4618 = vmul.f32 %v4606, 0.125
        %v4619 = vpack.c.bf16 %v866, %v866
        %v4620 = vpack.c.bf16 %v867, %v867
        %v4621 = vpack.c.bf16 %v868, %v868
        %v4622 = vpack.c.bf16 %v869, %v869
        %v4623 = vpack.c.bf16 %v870, %v870
        %v4624 = vpack.c.bf16 %v871, %v871
        %v4625 = vpack.c.bf16 %v872, %v872
        %v4626 = vpack.c.bf16 %v873, %v873
        %v4628 = vsel %vm2281, %v4619, 0
        %4630 = vmatprep.subr.bf16.mxu0 0
        %4631 = vmatpush1.bf16.msra.mxu0 %v4628
        %4632 = vmatprep.subr.bf16.mxu0 0
        %4633 = vmatpush1.bf16.msra.mxu0 0
        %4634 = vmatprep.subr.bf16.mxu0 0
        %4635 = vmatpush1.bf16.msra.mxu0 0
        %4636 = vmatprep.subr.bf16.mxu0 0
        %4637 = vmatpush1.bf16.msra.mxu0 0
        %4638 = vmatprep.subr.bf16.mxu0 0
        %4639 = vmatpush1.bf16.msra.mxu0 0
        %4640 = vmatprep.subr.bf16.mxu0 0
        %4641 = vmatpush1.bf16.msra.mxu0 0
        %4642 = vmatprep.subr.bf16.mxu0 0
        %4643 = vmatpush1.bf16.msra.mxu0 0
        %4644 = vmatprep.subr.bf16.mxu0 0
        %4645 = vmatpush1.bf16.msra.mxu0 0
        %4646 = vmatprep.subr.bf16.mxu0 0
        %4647 = vmatpush1.bf16.msra.mxu0 0
        %4648 = vmatprep.subr.bf16.mxu0 0
        %4649 = vmatpush1.bf16.msra.mxu0 0
        %4650 = vmatprep.subr.bf16.mxu0 0
        %4651 = vmatpush1.bf16.msra.mxu0 0
        %4652 = vmatprep.subr.bf16.mxu0 0
        %4653 = vmatpush1.bf16.msra.mxu0 0
        %4654 = vmatprep.subr.bf16.mxu0 0
        %4655 = vmatpush1.bf16.msra.mxu0 0
        %4656 = vmatprep.subr.bf16.mxu0 0
        %4657 = vmatpush1.bf16.msra.mxu0 0
        %4658 = vmatprep.subr.bf16.mxu0 0
        %4659 = vmatpush1.bf16.msra.mxu0 0
        %4660 = vmatprep.subr.bf16.mxu0 0
        %4661 = vmatpush1.bf16.msra.mxu0 0
        %4662 = vmatprep.mubr.bf16.mxu0 0
        %4663 = vmatmul.mubr.bf16.gmra.mrb[0].mxu0 %v4244
        %v4664 = vpop.f32.mrb[0].mxu0
        %v4665 = vadd.f32 0.0, %v4664
        %v4666 = vpop.f32.mrb[0].mxu0
        %v4667 = vpop.f32.mrb[0].mxu0
        %v4668 = vpop.f32.mrb[0].mxu0
        %4669 = vdwg.mxu0
        %v4671 = vsel %vm2281, %v4620, 0
        %4673 = vmatprep.subr.bf16.mxu0 0
        %4674 = vmatpush1.bf16.msra.mxu0 %v4671
        %4675 = vmatprep.subr.bf16.mxu0 0
        %4676 = vmatpush1.bf16.msra.mxu0 0
        %4677 = vmatprep.subr.bf16.mxu0 0
        %4678 = vmatpush1.bf16.msra.mxu0 0
        %4679 = vmatprep.subr.bf16.mxu0 0
        %4680 = vmatpush1.bf16.msra.mxu0 0
        %4681 = vmatprep.subr.bf16.mxu0 0
        %4682 = vmatpush1.bf16.msra.mxu0 0
        %4683 = vmatprep.subr.bf16.mxu0 0
        %4684 = vmatpush1.bf16.msra.mxu0 0
        %4685 = vmatprep.subr.bf16.mxu0 0
        %4686 = vmatpush1.bf16.msra.mxu0 0
        %4687 = vmatprep.subr.bf16.mxu0 0
        %4688 = vmatpush1.bf16.msra.mxu0 0
        %4689 = vmatprep.subr.bf16.mxu0 0
        %4690 = vmatpush1.bf16.msra.mxu0 0
        %4691 = vmatprep.subr.bf16.mxu0 0
        %4692 = vmatpush1.bf16.msra.mxu0 0
        %4693 = vmatprep.subr.bf16.mxu0 0
        %4694 = vmatpush1.bf16.msra.mxu0 0
        %4695 = vmatprep.subr.bf16.mxu0 0
        %4696 = vmatpush1.bf16.msra.mxu0 0
        %4697 = vmatprep.subr.bf16.mxu0 0
        %4698 = vmatpush1.bf16.msra.mxu0 0
        %4699 = vmatprep.subr.bf16.mxu0 0
        %4700 = vmatpush1.bf16.msra.mxu0 0
        %4701 = vmatprep.subr.bf16.mxu0 0
        %4702 = vmatpush1.bf16.msra.mxu0 0
        %4703 = vmatprep.subr.bf16.mxu0 0
        %4704 = vmatpush1.bf16.msra.mxu0 0
        %4705 = vmatprep.mubr.bf16.mxu0 0
        %4706 = vmatmul.mubr.bf16.gmra.mrb[0].mxu0 %v4290
        %v4707 = vpop.f32.mrb[0].mxu0
        %v4708 = vadd.f32 0.0, %v4707
        %v4709 = vpop.f32.mrb[0].mxu0
        %v4710 = vpop.f32.mrb[0].mxu0
        %v4711 = vpop.f32.mrb[0].mxu0
        %4712 = vdwg.mxu0
        %v4714 = vsel %vm2281, %v4621, 0
        %4716 = vmatprep.subr.bf16.mxu0 0
        %4717 = vmatpush1.bf16.msra.mxu0 %v4714
        %4718 = vmatprep.subr.bf16.mxu0 0
        %4719 = vmatpush1.bf16.msra.mxu0 0
        %4720 = vmatprep.subr.bf16.mxu0 0
        %4721 = vmatpush1.bf16.msra.mxu0 0
        %4722 = vmatprep.subr.bf16.mxu0 0
        %4723 = vmatpush1.bf16.msra.mxu0 0
        %4724 = vmatprep.subr.bf16.mxu0 0
        %4725 = vmatpush1.bf16.msra.mxu0 0
        %4726 = vmatprep.subr.bf16.mxu0 0
        %4727 = vmatpush1.bf16.msra.mxu0 0
        %4728 = vmatprep.subr.bf16.mxu0 0
        %4729 = vmatpush1.bf16.msra.mxu0 0
        %4730 = vmatprep.subr.bf16.mxu0 0
        %4731 = vmatpush1.bf16.msra.mxu0 0
        %4732 = vmatprep.subr.bf16.mxu0 0
        %4733 = vmatpush1.bf16.msra.mxu0 0
        %4734 = vmatprep.subr.bf16.mxu0 0
        %4735 = vmatpush1.bf16.msra.mxu0 0
        %4736 = vmatprep.subr.bf16.mxu0 0
        %4737 = vmatpush1.bf16.msra.mxu0 0
        %4738 = vmatprep.subr.bf16.mxu0 0
        %4739 = vmatpush1.bf16.msra.mxu0 0
        %4740 = vmatprep.subr.bf16.mxu0 0
        %4741 = vmatpush1.bf16.msra.mxu0 0
        %4742 = vmatprep.subr.bf16.mxu0 0
        %4743 = vmatpush1.bf16.msra.mxu0 0
        %4744 = vmatprep.subr.bf16.mxu0 0
        %4745 = vmatpush1.bf16.msra.mxu0 0
        %4746 = vmatprep.subr.bf16.mxu0 0
        %4747 = vmatpush1.bf16.msra.mxu0 0
        %4748 = vmatprep.mubr.bf16.mxu0 0
        %4749 = vmatmul.mubr.bf16.gmra.mrb[0].mxu0 %v4336
        %v4750 = vpop.f32.mrb[0].mxu0
        %v4751 = vadd.f32 0.0, %v4750
        %v4752 = vpop.f32.mrb[0].mxu0
        %v4753 = vpop.f32.mrb[0].mxu0
        %v4754 = vpop.f32.mrb[0].mxu0
        %4755 = vdwg.mxu0
        %v4757 = vsel %vm2281, %v4622, 0
        %4759 = vmatprep.subr.bf16.mxu0 0
        %4760 = vmatpush1.bf16.msra.mxu0 %v4757
        %4761 = vmatprep.subr.bf16.mxu0 0
        %4762 = vmatpush1.bf16.msra.mxu0 0
        %4763 = vmatprep.subr.bf16.mxu0 0
        %4764 = vmatpush1.bf16.msra.mxu0 0
        %4765 = vmatprep.subr.bf16.mxu0 0
        %4766 = vmatpush1.bf16.msra.mxu0 0
        %4767 = vmatprep.subr.bf16.mxu0 0
        %4768 = vmatpush1.bf16.msra.mxu0 0
        %4769 = vmatprep.subr.bf16.mxu0 0
        %4770 = vmatpush1.bf16.msra.mxu0 0
        %4771 = vmatprep.subr.bf16.mxu0 0
        %4772 = vmatpush1.bf16.msra.mxu0 0
        %4773 = vmatprep.subr.bf16.mxu0 0
        %4774 = vmatpush1.bf16.msra.mxu0 0
        %4775 = vmatprep.subr.bf16.mxu0 0
        %4776 = vmatpush1.bf16.msra.mxu0 0
        %4777 = vmatprep.subr.bf16.mxu0 0
        %4778 = vmatpush1.bf16.msra.mxu0 0
        %4779 = vmatprep.subr.bf16.mxu0 0
        %4780 = vmatpush1.bf16.msra.mxu0 0
        %4781 = vmatprep.subr.bf16.mxu0 0
        %4782 = vmatpush1.bf16.msra.mxu0 0
        %4783 = vmatprep.subr.bf16.mxu0 0
        %4784 = vmatpush1.bf16.msra.mxu0 0
        %4785 = vmatprep.subr.bf16.mxu0 0
        %4786 = vmatpush1.bf16.msra.mxu0 0
        %4787 = vmatprep.subr.bf16.mxu0 0
        %4788 = vmatpush1.bf16.msra.mxu0 0
        %4789 = vmatprep.subr.bf16.mxu0 0
        %4790 = vmatpush1.bf16.msra.mxu0 0
        %4791 = vmatprep.mubr.bf16.mxu0 0
        %4792 = vmatmul.mubr.bf16.gmra.mrb[0].mxu0 %v4382
        %v4793 = vpop.f32.mrb[0].mxu0
        %v4794 = vadd.f32 0.0, %v4793
        %v4795 = vpop.f32.mrb[0].mxu0
        %v4796 = vpop.f32.mrb[0].mxu0
        %v4797 = vpop.f32.mrb[0].mxu0
        %4798 = vdwg.mxu0
        %v4800 = vsel %vm2281, %v4623, 0
        %4802 = vmatprep.subr.bf16.mxu0 0
        %4803 = vmatpush1.bf16.msra.mxu0 %v4800
        %4804 = vmatprep.subr.bf16.mxu0 0
        %4805 = vmatpush1.bf16.msra.mxu0 0
        %4806 = vmatprep.subr.bf16.mxu0 0
        %4807 = vmatpush1.bf16.msra.mxu0 0
        %4808 = vmatprep.subr.bf16.mxu0 0
        %4809 = vmatpush1.bf16.msra.mxu0 0
        %4810 = vmatprep.subr.bf16.mxu0 0
        %4811 = vmatpush1.bf16.msra.mxu0 0
        %4812 = vmatprep.subr.bf16.mxu0 0
        %4813 = vmatpush1.bf16.msra.mxu0 0
        %4814 = vmatprep.subr.bf16.mxu0 0
        %4815 = vmatpush1.bf16.msra.mxu0 0
        %4816 = vmatprep.subr.bf16.mxu0 0
        %4817 = vmatpush1.bf16.msra.mxu0 0
        %4818 = vmatprep.subr.bf16.mxu0 0
        %4819 = vmatpush1.bf16.msra.mxu0 0
        %4820 = vmatprep.subr.bf16.mxu0 0
        %4821 = vmatpush1.bf16.msra.mxu0 0
        %4822 = vmatprep.subr.bf16.mxu0 0
        %4823 = vmatpush1.bf16.msra.mxu0 0
        %4824 = vmatprep.subr.bf16.mxu0 0
        %4825 = vmatpush1.bf16.msra.mxu0 0
        %4826 = vmatprep.subr.bf16.mxu0 0
        %4827 = vmatpush1.bf16.msra.mxu0 0
        %4828 = vmatprep.subr.bf16.mxu0 0
        %4829 = vmatpush1.bf16.msra.mxu0 0
        %4830 = vmatprep.subr.bf16.mxu0 0
        %4831 = vmatpush1.bf16.msra.mxu0 0
        %4832 = vmatprep.subr.bf16.mxu0 0
        %4833 = vmatpush1.bf16.msra.mxu0 0
        %4834 = vmatprep.mubr.bf16.mxu0 0
        %4835 = vmatmul.mubr.bf16.gmra.mrb[0].mxu0 %v4428
        %v4836 = vpop.f32.mrb[0].mxu0
        %v4837 = vadd.f32 0.0, %v4836
        %v4838 = vpop.f32.mrb[0].mxu0
        %v4839 = vpop.f32.mrb[0].mxu0
        %v4840 = vpop.f32.mrb[0].mxu0
        %4841 = vdwg.mxu0
        %v4843 = vsel %vm2281, %v4624, 0
        %4845 = vmatprep.subr.bf16.mxu0 0
        %4846 = vmatpush1.bf16.msra.mxu0 %v4843
        %4847 = vmatprep.subr.bf16.mxu0 0
        %4848 = vmatpush1.bf16.msra.mxu0 0
        %4849 = vmatprep.subr.bf16.mxu0 0
        %4850 = vmatpush1.bf16.msra.mxu0 0
        %4851 = vmatprep.subr.bf16.mxu0 0
        %4852 = vmatpush1.bf16.msra.mxu0 0
        %4853 = vmatprep.subr.bf16.mxu0 0
        %4854 = vmatpush1.bf16.msra.mxu0 0
        %4855 = vmatprep.subr.bf16.mxu0 0
        %4856 = vmatpush1.bf16.msra.mxu0 0
        %4857 = vmatprep.subr.bf16.mxu0 0
        %4858 = vmatpush1.bf16.msra.mxu0 0
        %4859 = vmatprep.subr.bf16.mxu0 0
        %4860 = vmatpush1.bf16.msra.mxu0 0
        %4861 = vmatprep.subr.bf16.mxu0 0
        %4862 = vmatpush1.bf16.msra.mxu0 0
        %4863 = vmatprep.subr.bf16.mxu0 0
        %4864 = vmatpush1.bf16.msra.mxu0 0
        %4865 = vmatprep.subr.bf16.mxu0 0
        %4866 = vmatpush1.bf16.msra.mxu0 0
        %4867 = vmatprep.subr.bf16.mxu0 0
        %4868 = vmatpush1.bf16.msra.mxu0 0
        %4869 = vmatprep.subr.bf16.mxu0 0
        %4870 = vmatpush1.bf16.msra.mxu0 0
        %4871 = vmatprep.subr.bf16.mxu0 0
        %4872 = vmatpush1.bf16.msra.mxu0 0
        %4873 = vmatprep.subr.bf16.mxu0 0
        %4874 = vmatpush1.bf16.msra.mxu0 0
        %4875 = vmatprep.subr.bf16.mxu0 0
        %4876 = vmatpush1.bf16.msra.mxu0 0
        %4877 = vmatprep.mubr.bf16.mxu0 0
        %4878 = vmatmul.mubr.bf16.gmra.mrb[0].mxu0 %v4474
        %v4879 = vpop.f32.mrb[0].mxu0
        %v4880 = vadd.f32 0.0, %v4879
        %v4881 = vpop.f32.mrb[0].mxu0
        %v4882 = vpop.f32.mrb[0].mxu0
        %v4883 = vpop.f32.mrb[0].mxu0
        %4884 = vdwg.mxu0
        %v4886 = vsel %vm2281, %v4625, 0
        %4888 = vmatprep.subr.bf16.mxu0 0
        %4889 = vmatpush1.bf16.msra.mxu0 %v4886
        %4890 = vmatprep.subr.bf16.mxu0 0
        %4891 = vmatpush1.bf16.msra.mxu0 0
        %4892 = vmatprep.subr.bf16.mxu0 0
        %4893 = vmatpush1.bf16.msra.mxu0 0
        %4894 = vmatprep.subr.bf16.mxu0 0
        %4895 = vmatpush1.bf16.msra.mxu0 0
        %4896 = vmatprep.subr.bf16.mxu0 0
        %4897 = vmatpush1.bf16.msra.mxu0 0
        %4898 = vmatprep.subr.bf16.mxu0 0
        %4899 = vmatpush1.bf16.msra.mxu0 0
        %4900 = vmatprep.subr.bf16.mxu0 0
        %4901 = vmatpush1.bf16.msra.mxu0 0
        %4902 = vmatprep.subr.bf16.mxu0 0
        %4903 = vmatpush1.bf16.msra.mxu0 0
        %4904 = vmatprep.subr.bf16.mxu0 0
        %4905 = vmatpush1.bf16.msra.mxu0 0
        %4906 = vmatprep.subr.bf16.mxu0 0
        %4907 = vmatpush1.bf16.msra.mxu0 0
        %4908 = vmatprep.subr.bf16.mxu0 0
        %4909 = vmatpush1.bf16.msra.mxu0 0
        %4910 = vmatprep.subr.bf16.mxu0 0
        %4911 = vmatpush1.bf16.msra.mxu0 0
        %4912 = vmatprep.subr.bf16.mxu0 0
        %4913 = vmatpush1.bf16.msra.mxu0 0
        %4914 = vmatprep.subr.bf16.mxu0 0
        %4915 = vmatpush1.bf16.msra.mxu0 0
        %4916 = vmatprep.subr.bf16.mxu0 0
        %4917 = vmatpush1.bf16.msra.mxu0 0
        %4918 = vmatprep.subr.bf16.mxu0 0
        %4919 = vmatpush1.bf16.msra.mxu0 0
        %4920 = vmatprep.mubr.bf16.mxu0 0
        %4921 = vmatmul.mubr.bf16.gmra.mrb[0].mxu0 %v4520
        %v4922 = vpop.f32.mrb[0].mxu0
        %v4923 = vadd.f32 0.0, %v4922
        %v4924 = vpop.f32.mrb[0].mxu0
        %v4925 = vpop.f32.mrb[0].mxu0
        %v4926 = vpop.f32.mrb[0].mxu0
        %4927 = vdwg.mxu0
        %v4929 = vsel %vm2281, %v4626, 0
        %4931 = vmatprep.subr.bf16.mxu0 0
        %4932 = vmatpush1.bf16.msra.mxu0 %v4929
        %4933 = vmatprep.subr.bf16.mxu0 0
        %4934 = vmatpush1.bf16.msra.mxu0 0
        %4935 = vmatprep.subr.bf16.mxu0 0
        %4936 = vmatpush1.bf16.msra.mxu0 0
        %4937 = vmatprep.subr.bf16.mxu0 0
        %4938 = vmatpush1.bf16.msra.mxu0 0
        %4939 = vmatprep.subr.bf16.mxu0 0
        %4940 = vmatpush1.bf16.msra.mxu0 0
        %4941 = vmatprep.subr.bf16.mxu0 0
        %4942 = vmatpush1.bf16.msra.mxu0 0
        %4943 = vmatprep.subr.bf16.mxu0 0
        %4944 = vmatpush1.bf16.msra.mxu0 0
        %4945 = vmatprep.subr.bf16.mxu0 0
        %4946 = vmatpush1.bf16.msra.mxu0 0
        %4947 = vmatprep.subr.bf16.mxu0 0
        %4948 = vmatpush1.bf16.msra.mxu0 0
        %4949 = vmatprep.subr.bf16.mxu0 0
        %4950 = vmatpush1.bf16.msra.mxu0 0
        %4951 = vmatprep.subr.bf16.mxu0 0
        %4952 = vmatpush1.bf16.msra.mxu0 0
        %4953 = vmatprep.subr.bf16.mxu0 0
        %4954 = vmatpush1.bf16.msra.mxu0 0
        %4955 = vmatprep.subr.bf16.mxu0 0
        %4956 = vmatpush1.bf16.msra.mxu0 0
        %4957 = vmatprep.subr.bf16.mxu0 0
        %4958 = vmatpush1.bf16.msra.mxu0 0
        %4959 = vmatprep.subr.bf16.mxu0 0
        %4960 = vmatpush1.bf16.msra.mxu0 0
        %4961 = vmatprep.subr.bf16.mxu0 0
        %4962 = vmatpush1.bf16.msra.mxu0 0
        %4963 = vmatprep.mubr.bf16.mxu0 0
        %4964 = vmatmul.mubr.bf16.gmra.mrb[0].mxu0 %v4566
        %v4965 = vpop.f32.mrb[0].mxu0
        %v4966 = vadd.f32 0.0, %v4965
        %v4967 = vpop.f32.mrb[0].mxu0
        %v4968 = vpop.f32.mrb[0].mxu0
        %v4969 = vpop.f32.mrb[0].mxu0
        %4970 = vdwg.mxu0
        %v4971 = vmul.f32 %v4665, 0.125
        %v4972 = vmul.f32 %v4708, 0.125
        %v4973 = vmul.f32 %v4751, 0.125
        %v4974 = vmul.f32 %v4794, 0.125
        %v4975 = vmul.f32 %v4837, 0.125
        %v4976 = vmul.f32 %v4880, 0.125
        %v4977 = vmul.f32 %v4923, 0.125
        %v4978 = vmul.f32 %v4966, 0.125
        %4980 = vset.pattern.permute.xlu0 0
        %4981 = vperm.xlu0 %4980, %v4611
        %v4982 = vpop.permute.xlu0 %4981
        %4985 = vset.pattern.permute.xlu0 0
        %4986 = vperm.xlu0 %4985, %v4612
        %v4987 = vpop.permute.xlu0 %4986
        %4990 = vset.pattern.permute.xlu0 0
        %4991 = vperm.xlu0 %4990, %v4613
        %v4992 = vpop.permute.xlu0 %4991
        %4995 = vset.pattern.permute.xlu0 0
        %4996 = vperm.xlu0 %4995, %v4614
        %v4997 = vpop.permute.xlu0 %4996
        %5000 = vset.pattern.permute.xlu0 0
        %5001 = vperm.xlu0 %5000, %v4615
        %v5002 = vpop.permute.xlu0 %5001
        %5005 = vset.pattern.permute.xlu0 0
        %5006 = vperm.xlu0 %5005, %v4616
        %v5007 = vpop.permute.xlu0 %5006
        %5010 = vset.pattern.permute.xlu0 0
        %5011 = vperm.xlu0 %5010, %v4617
        %v5012 = vpop.permute.xlu0 %5011
        %5015 = vset.pattern.permute.xlu0 0
        %5016 = vperm.xlu0 %5015, %v4618
        %v5017 = vpop.permute.xlu0 %5016
        %v5019 = vmul.f32 %v4982, %v4611
        %v5020 = vmul.f32 %v4987, %v4612
        %v5021 = vmul.f32 %v4992, %v4613
        %v5022 = vmul.f32 %v4997, %v4614
        %v5023 = vmul.f32 %v5002, %v4615
        %v5024 = vmul.f32 %v5007, %v4616
        %v5025 = vmul.f32 %v5012, %v4617
        %v5026 = vmul.f32 %v5017, %v4618
        %v5035 = vrot.slane %v5019, 1
        %v5036 = vrot.slane %v5020, 1
        %v5037 = vrot.slane %v5021, 1
        %v5038 = vrot.slane %v5022, 1
        %v5039 = vrot.slane %v5023, 1
        %v5040 = vrot.slane %v5024, 1
        %v5041 = vrot.slane %v5025, 1
        %v5042 = vrot.slane %v5026, 1
        %v5051 = vadd.f32 %v5019, %v5035
        %v5052 = vadd.f32 %v5020, %v5036
        %v5053 = vadd.f32 %v5021, %v5037
        %v5054 = vadd.f32 %v5022, %v5038
        %v5055 = vadd.f32 %v5023, %v5039
        %v5056 = vadd.f32 %v5024, %v5040
        %v5057 = vadd.f32 %v5025, %v5041
        %v5058 = vadd.f32 %v5026, %v5042
        %v5059 = vrot.slane %v5019, 2
        %v5060 = vrot.slane %v5020, 2
        %v5061 = vrot.slane %v5021, 2
        %v5062 = vrot.slane %v5022, 2
        %v5063 = vrot.slane %v5023, 2
        %v5064 = vrot.slane %v5024, 2
        %v5065 = vrot.slane %v5025, 2
        %v5066 = vrot.slane %v5026, 2
        %v5075 = vadd.f32 %v5051, %v5059
        %v5076 = vadd.f32 %v5052, %v5060
        %v5077 = vadd.f32 %v5053, %v5061
        %v5078 = vadd.f32 %v5054, %v5062
        %v5079 = vadd.f32 %v5055, %v5063
        %v5080 = vadd.f32 %v5056, %v5064
        %v5081 = vadd.f32 %v5057, %v5065
        %v5082 = vadd.f32 %v5058, %v5066
        %v5083 = vmul.f32 %v5075, 0.33333334
        %v5084 = vmul.f32 %v5076, 0.33333334
        %v5085 = vmul.f32 %v5077, 0.33333334
        %v5086 = vmul.f32 %v5078, 0.33333334
        %v5087 = vmul.f32 %v5079, 0.33333334
        %v5088 = vmul.f32 %v5080, 0.33333334
        %v5089 = vmul.f32 %v5081, 0.33333334
        %v5090 = vmul.f32 %v5082, 0.33333334
        %5091 = vset.pattern.permute.xlu0 1
        %5092 = vperm.xlu0 %5091, %v4611
        %v5093 = vpop.permute.xlu0 %5092
        %5095 = vset.pattern.permute.xlu0 1
        %5096 = vperm.xlu0 %5095, %v4612
        %v5097 = vpop.permute.xlu0 %5096
        %5099 = vset.pattern.permute.xlu0 1
        %5100 = vperm.xlu0 %5099, %v4613
        %v5101 = vpop.permute.xlu0 %5100
        %5103 = vset.pattern.permute.xlu0 1
        %5104 = vperm.xlu0 %5103, %v4614
        %v5105 = vpop.permute.xlu0 %5104
        %5107 = vset.pattern.permute.xlu0 1
        %5108 = vperm.xlu0 %5107, %v4615
        %v5109 = vpop.permute.xlu0 %5108
        %5111 = vset.pattern.permute.xlu0 1
        %5112 = vperm.xlu0 %5111, %v4616
        %v5113 = vpop.permute.xlu0 %5112
        %5115 = vset.pattern.permute.xlu0 1
        %5116 = vperm.xlu0 %5115, %v4617
        %v5117 = vpop.permute.xlu0 %5116
        %5119 = vset.pattern.permute.xlu0 1
        %5120 = vperm.xlu0 %5119, %v4618
        %v5121 = vpop.permute.xlu0 %5120
        %v5123 = vmul.f32 %v5093, %v4611
        %v5124 = vmul.f32 %v5097, %v4612
        %v5125 = vmul.f32 %v5101, %v4613
        %v5126 = vmul.f32 %v5105, %v4614
        %v5127 = vmul.f32 %v5109, %v4615
        %v5128 = vmul.f32 %v5113, %v4616
        %v5129 = vmul.f32 %v5117, %v4617
        %v5130 = vmul.f32 %v5121, %v4618
        %v5139 = vrot.slane %v5123, 1
        %v5140 = vrot.slane %v5124, 1
        %v5141 = vrot.slane %v5125, 1
        %v5142 = vrot.slane %v5126, 1
        %v5143 = vrot.slane %v5127, 1
        %v5144 = vrot.slane %v5128, 1
        %v5145 = vrot.slane %v5129, 1
        %v5146 = vrot.slane %v5130, 1
        %v5155 = vadd.f32 %v5123, %v5139
        %v5156 = vadd.f32 %v5124, %v5140
        %v5157 = vadd.f32 %v5125, %v5141
        %v5158 = vadd.f32 %v5126, %v5142
        %v5159 = vadd.f32 %v5127, %v5143
        %v5160 = vadd.f32 %v5128, %v5144
        %v5161 = vadd.f32 %v5129, %v5145
        %v5162 = vadd.f32 %v5130, %v5146
        %v5163 = vrot.slane %v5123, 2
        %v5164 = vrot.slane %v5124, 2
        %v5165 = vrot.slane %v5125, 2
        %v5166 = vrot.slane %v5126, 2
        %v5167 = vrot.slane %v5127, 2
        %v5168 = vrot.slane %v5128, 2
        %v5169 = vrot.slane %v5129, 2
        %v5170 = vrot.slane %v5130, 2
        %v5179 = vadd.f32 %v5155, %v5163
        %v5180 = vadd.f32 %v5156, %v5164
        %v5181 = vadd.f32 %v5157, %v5165
        %v5182 = vadd.f32 %v5158, %v5166
        %v5183 = vadd.f32 %v5159, %v5167
        %v5184 = vadd.f32 %v5160, %v5168
        %v5185 = vadd.f32 %v5161, %v5169
        %v5186 = vadd.f32 %v5162, %v5170
        %v5187 = vmul.f32 %v5179, 0.33333334
        %v5188 = vmul.f32 %v5180, 0.33333334
        %v5189 = vmul.f32 %v5181, 0.33333334
        %v5190 = vmul.f32 %v5182, 0.33333334
        %v5191 = vmul.f32 %v5183, 0.33333334
        %v5192 = vmul.f32 %v5184, 0.33333334
        %v5193 = vmul.f32 %v5185, 0.33333334
        %v5194 = vmul.f32 %v5186, 0.33333334
        %5195 = vset.pattern.permute.xlu0 2
        %5196 = vperm.xlu0 %5195, %v4611
        %v5197 = vpop.permute.xlu0 %5196
        %5199 = vset.pattern.permute.xlu0 2
        %5200 = vperm.xlu0 %5199, %v4612
        %v5201 = vpop.permute.xlu0 %5200
        %5203 = vset.pattern.permute.xlu0 2
        %5204 = vperm.xlu0 %5203, %v4613
        %v5205 = vpop.permute.xlu0 %5204
        %5207 = vset.pattern.permute.xlu0 2
        %5208 = vperm.xlu0 %5207, %v4614
        %v5209 = vpop.permute.xlu0 %5208
        %5211 = vset.pattern.permute.xlu0 2
        %5212 = vperm.xlu0 %5211, %v4615
        %v5213 = vpop.permute.xlu0 %5212
        %5215 = vset.pattern.permute.xlu0 2
        %5216 = vperm.xlu0 %5215, %v4616
        %v5217 = vpop.permute.xlu0 %5216
        %5219 = vset.pattern.permute.xlu0 2
        %5220 = vperm.xlu0 %5219, %v4617
        %v5221 = vpop.permute.xlu0 %5220
        %5223 = vset.pattern.permute.xlu0 2
        %5224 = vperm.xlu0 %5223, %v4618
        %v5225 = vpop.permute.xlu0 %5224
        %v5227 = vmul.f32 %v5197, %v4611
        %v5228 = vmul.f32 %v5201, %v4612
        %v5229 = vmul.f32 %v5205, %v4613
        %v5230 = vmul.f32 %v5209, %v4614
        %v5231 = vmul.f32 %v5213, %v4615
        %v5232 = vmul.f32 %v5217, %v4616
        %v5233 = vmul.f32 %v5221, %v4617
        %v5234 = vmul.f32 %v5225, %v4618
        %v5243 = vrot.slane %v5227, 1
        %v5244 = vrot.slane %v5228, 1
        %v5245 = vrot.slane %v5229, 1
        %v5246 = vrot.slane %v5230, 1
        %v5247 = vrot.slane %v5231, 1
        %v5248 = vrot.slane %v5232, 1
        %v5249 = vrot.slane %v5233, 1
        %v5250 = vrot.slane %v5234, 1
        %v5259 = vadd.f32 %v5227, %v5243
        %v5260 = vadd.f32 %v5228, %v5244
        %v5261 = vadd.f32 %v5229, %v5245
        %v5262 = vadd.f32 %v5230, %v5246
        %v5263 = vadd.f32 %v5231, %v5247
        %v5264 = vadd.f32 %v5232, %v5248
        %v5265 = vadd.f32 %v5233, %v5249
        %v5266 = vadd.f32 %v5234, %v5250
        %v5267 = vrot.slane %v5227, 2
        %v5268 = vrot.slane %v5228, 2
        %v5269 = vrot.slane %v5229, 2
        %v5270 = vrot.slane %v5230, 2
        %v5271 = vrot.slane %v5231, 2
        %v5272 = vrot.slane %v5232, 2
        %v5273 = vrot.slane %v5233, 2
        %v5274 = vrot.slane %v5234, 2
        %v5283 = vadd.f32 %v5259, %v5267
        %v5284 = vadd.f32 %v5260, %v5268
        %v5285 = vadd.f32 %v5261, %v5269
        %v5286 = vadd.f32 %v5262, %v5270
        %v5287 = vadd.f32 %v5263, %v5271
        %v5288 = vadd.f32 %v5264, %v5272
        %v5289 = vadd.f32 %v5265, %v5273
        %v5290 = vadd.f32 %v5266, %v5274
        %v5291 = vmul.f32 %v5283, 0.33333334
        %v5292 = vmul.f32 %v5284, 0.33333334
        %v5293 = vmul.f32 %v5285, 0.33333334
        %v5294 = vmul.f32 %v5286, 0.33333334
        %v5295 = vmul.f32 %v5287, 0.33333334
        %v5296 = vmul.f32 %v5288, 0.33333334
        %v5297 = vmul.f32 %v5289, 0.33333334
        %v5298 = vmul.f32 %v5290, 0.33333334
        %5299 = vset.pattern.permute.xlu0 3
        %5300 = vperm.xlu0 %5299, %v4611
        %v5301 = vpop.permute.xlu0 %5300
        %5303 = vset.pattern.permute.xlu0 3
        %5304 = vperm.xlu0 %5303, %v4612
        %v5305 = vpop.permute.xlu0 %5304
        %5307 = vset.pattern.permute.xlu0 3
        %5308 = vperm.xlu0 %5307, %v4613
        %v5309 = vpop.permute.xlu0 %5308
        %5311 = vset.pattern.permute.xlu0 3
        %5312 = vperm.xlu0 %5311, %v4614
        %v5313 = vpop.permute.xlu0 %5312
        %5315 = vset.pattern.permute.xlu0 3
        %5316 = vperm.xlu0 %5315, %v4615
        %v5317 = vpop.permute.xlu0 %5316
        %5319 = vset.pattern.permute.xlu0 3
        %5320 = vperm.xlu0 %5319, %v4616
        %v5321 = vpop.permute.xlu0 %5320
        %5323 = vset.pattern.permute.xlu0 3
        %5324 = vperm.xlu0 %5323, %v4617
        %v5325 = vpop.permute.xlu0 %5324
        %5327 = vset.pattern.permute.xlu0 3
        %5328 = vperm.xlu0 %5327, %v4618
        %v5329 = vpop.permute.xlu0 %5328
        %v5331 = vmul.f32 %v5301, %v4611
        %v5332 = vmul.f32 %v5305, %v4612
        %v5333 = vmul.f32 %v5309, %v4613
        %v5334 = vmul.f32 %v5313, %v4614
        %v5335 = vmul.f32 %v5317, %v4615
        %v5336 = vmul.f32 %v5321, %v4616
        %v5337 = vmul.f32 %v5325, %v4617
        %v5338 = vmul.f32 %v5329, %v4618
        %v5347 = vrot.slane %v5331, 1
        %v5348 = vrot.slane %v5332, 1
        %v5349 = vrot.slane %v5333, 1
        %v5350 = vrot.slane %v5334, 1
        %v5351 = vrot.slane %v5335, 1
        %v5352 = vrot.slane %v5336, 1
        %v5353 = vrot.slane %v5337, 1
        %v5354 = vrot.slane %v5338, 1
        %v5363 = vadd.f32 %v5331, %v5347
        %v5364 = vadd.f32 %v5332, %v5348
        %v5365 = vadd.f32 %v5333, %v5349
        %v5366 = vadd.f32 %v5334, %v5350
        %v5367 = vadd.f32 %v5335, %v5351
        %v5368 = vadd.f32 %v5336, %v5352
        %v5369 = vadd.f32 %v5337, %v5353
        %v5370 = vadd.f32 %v5338, %v5354
        %v5371 = vrot.slane %v5331, 2
        %v5372 = vrot.slane %v5332, 2
        %v5373 = vrot.slane %v5333, 2
        %v5374 = vrot.slane %v5334, 2
        %v5375 = vrot.slane %v5335, 2
        %v5376 = vrot.slane %v5336, 2
        %v5377 = vrot.slane %v5337, 2
        %v5378 = vrot.slane %v5338, 2
        %v5387 = vadd.f32 %v5363, %v5371
        %v5388 = vadd.f32 %v5364, %v5372
        %v5389 = vadd.f32 %v5365, %v5373
        %v5390 = vadd.f32 %v5366, %v5374
        %v5391 = vadd.f32 %v5367, %v5375
        %v5392 = vadd.f32 %v5368, %v5376
        %v5393 = vadd.f32 %v5369, %v5377
        %v5394 = vadd.f32 %v5370, %v5378
        %v5395 = vmul.f32 %v5387, 0.33333334
        %v5396 = vmul.f32 %v5388, 0.33333334
        %v5397 = vmul.f32 %v5389, 0.33333334
        %v5398 = vmul.f32 %v5390, 0.33333334
        %v5399 = vmul.f32 %v5391, 0.33333334
        %v5400 = vmul.f32 %v5392, 0.33333334
        %v5401 = vmul.f32 %v5393, 0.33333334
        %v5402 = vmul.f32 %v5394, 0.33333334
        %5404 = vset.pattern.permute.xlu0 0
        %5405 = vperm.xlu0 %5404, %v4971
        %v5406 = vpop.permute.xlu0 %5405
        %5409 = vset.pattern.permute.xlu0 0
        %5410 = vperm.xlu0 %5409, %v4972
        %v5411 = vpop.permute.xlu0 %5410
        %5414 = vset.pattern.permute.xlu0 0
        %5415 = vperm.xlu0 %5414, %v4973
        %v5416 = vpop.permute.xlu0 %5415
        %5419 = vset.pattern.permute.xlu0 0
        %5420 = vperm.xlu0 %5419, %v4974
        %v5421 = vpop.permute.xlu0 %5420
        %5424 = vset.pattern.permute.xlu0 0
        %5425 = vperm.xlu0 %5424, %v4975
        %v5426 = vpop.permute.xlu0 %5425
        %5429 = vset.pattern.permute.xlu0 0
        %5430 = vperm.xlu0 %5429, %v4976
        %v5431 = vpop.permute.xlu0 %5430
        %5434 = vset.pattern.permute.xlu0 0
        %5435 = vperm.xlu0 %5434, %v4977
        %v5436 = vpop.permute.xlu0 %5435
        %5439 = vset.pattern.permute.xlu0 0
        %5440 = vperm.xlu0 %5439, %v4978
        %v5441 = vpop.permute.xlu0 %5440
        %v5443 = vmul.f32 %v5406, %v4971
        %v5444 = vmul.f32 %v5411, %v4972
        %v5445 = vmul.f32 %v5416, %v4973
        %v5446 = vmul.f32 %v5421, %v4974
        %v5447 = vmul.f32 %v5426, %v4975
        %v5448 = vmul.f32 %v5431, %v4976
        %v5449 = vmul.f32 %v5436, %v4977
        %v5450 = vmul.f32 %v5441, %v4978
        %v5459 = vrot.slane %v5443, 1
        %v5460 = vrot.slane %v5444, 1
        %v5461 = vrot.slane %v5445, 1
        %v5462 = vrot.slane %v5446, 1
        %v5463 = vrot.slane %v5447, 1
        %v5464 = vrot.slane %v5448, 1
        %v5465 = vrot.slane %v5449, 1
        %v5466 = vrot.slane %v5450, 1
        %v5475 = vadd.f32 %v5443, %v5459
        %v5476 = vadd.f32 %v5444, %v5460
        %v5477 = vadd.f32 %v5445, %v5461
        %v5478 = vadd.f32 %v5446, %v5462
        %v5479 = vadd.f32 %v5447, %v5463
        %v5480 = vadd.f32 %v5448, %v5464
        %v5481 = vadd.f32 %v5449, %v5465
        %v5482 = vadd.f32 %v5450, %v5466
        %v5483 = vrot.slane %v5443, 2
        %v5484 = vrot.slane %v5444, 2
        %v5485 = vrot.slane %v5445, 2
        %v5486 = vrot.slane %v5446, 2
        %v5487 = vrot.slane %v5447, 2
        %v5488 = vrot.slane %v5448, 2
        %v5489 = vrot.slane %v5449, 2
        %v5490 = vrot.slane %v5450, 2
        %v5499 = vadd.f32 %v5475, %v5483
        %v5500 = vadd.f32 %v5476, %v5484
        %v5501 = vadd.f32 %v5477, %v5485
        %v5502 = vadd.f32 %v5478, %v5486
        %v5503 = vadd.f32 %v5479, %v5487
        %v5504 = vadd.f32 %v5480, %v5488
        %v5505 = vadd.f32 %v5481, %v5489
        %v5506 = vadd.f32 %v5482, %v5490
        %v5507 = vmul.f32 %v5499, 0.33333334
        %v5508 = vmul.f32 %v5500, 0.33333334
        %v5509 = vmul.f32 %v5501, 0.33333334
        %v5510 = vmul.f32 %v5502, 0.33333334
        %v5511 = vmul.f32 %v5503, 0.33333334
        %v5512 = vmul.f32 %v5504, 0.33333334
        %v5513 = vmul.f32 %v5505, 0.33333334
        %v5514 = vmul.f32 %v5506, 0.33333334
        %5515 = vset.pattern.permute.xlu0 1
        %5516 = vperm.xlu0 %5515, %v4971
        %v5517 = vpop.permute.xlu0 %5516
        %5519 = vset.pattern.permute.xlu0 1
        %5520 = vperm.xlu0 %5519, %v4972
        %v5521 = vpop.permute.xlu0 %5520
        %5523 = vset.pattern.permute.xlu0 1
        %5524 = vperm.xlu0 %5523, %v4973
        %v5525 = vpop.permute.xlu0 %5524
        %5527 = vset.pattern.permute.xlu0 1
        %5528 = vperm.xlu0 %5527, %v4974
        %v5529 = vpop.permute.xlu0 %5528
        %5531 = vset.pattern.permute.xlu0 1
        %5532 = vperm.xlu0 %5531, %v4975
        %v5533 = vpop.permute.xlu0 %5532
        %5535 = vset.pattern.permute.xlu0 1
        %5536 = vperm.xlu0 %5535, %v4976
        %v5537 = vpop.permute.xlu0 %5536
        %5539 = vset.pattern.permute.xlu0 1
        %5540 = vperm.xlu0 %5539, %v4977
        %v5541 = vpop.permute.xlu0 %5540
        %5543 = vset.pattern.permute.xlu0 1
        %5544 = vperm.xlu0 %5543, %v4978
        %v5545 = vpop.permute.xlu0 %5544
        %v5547 = vmul.f32 %v5517, %v4971
        %v5548 = vmul.f32 %v5521, %v4972
        %v5549 = vmul.f32 %v5525, %v4973
        %v5550 = vmul.f32 %v5529, %v4974
        %v5551 = vmul.f32 %v5533, %v4975
        %v5552 = vmul.f32 %v5537, %v4976
        %v5553 = vmul.f32 %v5541, %v4977
        %v5554 = vmul.f32 %v5545, %v4978
        %v5563 = vrot.slane %v5547, 1
        %v5564 = vrot.slane %v5548, 1
        %v5565 = vrot.slane %v5549, 1
        %v5566 = vrot.slane %v5550, 1
        %v5567 = vrot.slane %v5551, 1
        %v5568 = vrot.slane %v5552, 1
        %v5569 = vrot.slane %v5553, 1
        %v5570 = vrot.slane %v5554, 1
        %v5579 = vadd.f32 %v5547, %v5563
        %v5580 = vadd.f32 %v5548, %v5564
        %v5581 = vadd.f32 %v5549, %v5565
        %v5582 = vadd.f32 %v5550, %v5566
        %v5583 = vadd.f32 %v5551, %v5567
        %v5584 = vadd.f32 %v5552, %v5568
        %v5585 = vadd.f32 %v5553, %v5569
        %v5586 = vadd.f32 %v5554, %v5570
        %v5587 = vrot.slane %v5547, 2
        %v5588 = vrot.slane %v5548, 2
        %v5589 = vrot.slane %v5549, 2
        %v5590 = vrot.slane %v5550, 2
        %v5591 = vrot.slane %v5551, 2
        %v5592 = vrot.slane %v5552, 2
        %v5593 = vrot.slane %v5553, 2
        %v5594 = vrot.slane %v5554, 2
        %v5603 = vadd.f32 %v5579, %v5587
        %v5604 = vadd.f32 %v5580, %v5588
        %v5605 = vadd.f32 %v5581, %v5589
        %v5606 = vadd.f32 %v5582, %v5590
        %v5607 = vadd.f32 %v5583, %v5591
        %v5608 = vadd.f32 %v5584, %v5592
        %v5609 = vadd.f32 %v5585, %v5593
        %v5610 = vadd.f32 %v5586, %v5594
        %v5611 = vmul.f32 %v5603, 0.33333334
        %v5612 = vmul.f32 %v5604, 0.33333334
        %v5613 = vmul.f32 %v5605, 0.33333334
        %v5614 = vmul.f32 %v5606, 0.33333334
        %v5615 = vmul.f32 %v5607, 0.33333334
        %v5616 = vmul.f32 %v5608, 0.33333334
        %v5617 = vmul.f32 %v5609, 0.33333334
        %v5618 = vmul.f32 %v5610, 0.33333334
        %5619 = vset.pattern.permute.xlu0 2
        %5620 = vperm.xlu0 %5619, %v4971
        %v5621 = vpop.permute.xlu0 %5620
        %5623 = vset.pattern.permute.xlu0 2
        %5624 = vperm.xlu0 %5623, %v4972
        %v5625 = vpop.permute.xlu0 %5624
        %5627 = vset.pattern.permute.xlu0 2
        %5628 = vperm.xlu0 %5627, %v4973
        %v5629 = vpop.permute.xlu0 %5628
        %5631 = vset.pattern.permute.xlu0 2
        %5632 = vperm.xlu0 %5631, %v4974
        %v5633 = vpop.permute.xlu0 %5632
        %5635 = vset.pattern.permute.xlu0 2
        %5636 = vperm.xlu0 %5635, %v4975
        %v5637 = vpop.permute.xlu0 %5636
        %5639 = vset.pattern.permute.xlu0 2
        %5640 = vperm.xlu0 %5639, %v4976
        %v5641 = vpop.permute.xlu0 %5640
        %5643 = vset.pattern.permute.xlu0 2
        %5644 = vperm.xlu0 %5643, %v4977
        %v5645 = vpop.permute.xlu0 %5644
        %5647 = vset.pattern.permute.xlu0 2
        %5648 = vperm.xlu0 %5647, %v4978
        %v5649 = vpop.permute.xlu0 %5648
        %v5651 = vmul.f32 %v5621, %v4971
        %v5652 = vmul.f32 %v5625, %v4972
        %v5653 = vmul.f32 %v5629, %v4973
        %v5654 = vmul.f32 %v5633, %v4974
        %v5655 = vmul.f32 %v5637, %v4975
        %v5656 = vmul.f32 %v5641, %v4976
        %v5657 = vmul.f32 %v5645, %v4977
        %v5658 = vmul.f32 %v5649, %v4978
        %v5667 = vrot.slane %v5651, 1
        %v5668 = vrot.slane %v5652, 1
        %v5669 = vrot.slane %v5653, 1
        %v5670 = vrot.slane %v5654, 1
        %v5671 = vrot.slane %v5655, 1
        %v5672 = vrot.slane %v5656, 1
        %v5673 = vrot.slane %v5657, 1
        %v5674 = vrot.slane %v5658, 1
        %v5683 = vadd.f32 %v5651, %v5667
        %v5684 = vadd.f32 %v5652, %v5668
        %v5685 = vadd.f32 %v5653, %v5669
        %v5686 = vadd.f32 %v5654, %v5670
        %v5687 = vadd.f32 %v5655, %v5671
        %v5688 = vadd.f32 %v5656, %v5672
        %v5689 = vadd.f32 %v5657, %v5673
        %v5690 = vadd.f32 %v5658, %v5674
        %v5691 = vrot.slane %v5651, 2
        %v5692 = vrot.slane %v5652, 2
        %v5693 = vrot.slane %v5653, 2
        %v5694 = vrot.slane %v5654, 2
        %v5695 = vrot.slane %v5655, 2
        %v5696 = vrot.slane %v5656, 2
        %v5697 = vrot.slane %v5657, 2
        %v5698 = vrot.slane %v5658, 2
        %v5707 = vadd.f32 %v5683, %v5691
        %v5708 = vadd.f32 %v5684, %v5692
        %v5709 = vadd.f32 %v5685, %v5693
        %v5710 = vadd.f32 %v5686, %v5694
        %v5711 = vadd.f32 %v5687, %v5695
        %v5712 = vadd.f32 %v5688, %v5696
        %v5713 = vadd.f32 %v5689, %v5697
        %v5714 = vadd.f32 %v5690, %v5698
        %v5715 = vmul.f32 %v5707, 0.33333334
        %v5716 = vmul.f32 %v5708, 0.33333334
        %v5717 = vmul.f32 %v5709, 0.33333334
        %v5718 = vmul.f32 %v5710, 0.33333334
        %v5719 = vmul.f32 %v5711, 0.33333334
        %v5720 = vmul.f32 %v5712, 0.33333334
        %v5721 = vmul.f32 %v5713, 0.33333334
        %v5722 = vmul.f32 %v5714, 0.33333334
        %5723 = vset.pattern.permute.xlu0 3
        %5724 = vperm.xlu0 %5723, %v4971
        %v5725 = vpop.permute.xlu0 %5724
        %5727 = vset.pattern.permute.xlu0 3
        %5728 = vperm.xlu0 %5727, %v4972
        %v5729 = vpop.permute.xlu0 %5728
        %5731 = vset.pattern.permute.xlu0 3
        %5732 = vperm.xlu0 %5731, %v4973
        %v5733 = vpop.permute.xlu0 %5732
        %5735 = vset.pattern.permute.xlu0 3
        %5736 = vperm.xlu0 %5735, %v4974
        %v5737 = vpop.permute.xlu0 %5736
        %5739 = vset.pattern.permute.xlu0 3
        %5740 = vperm.xlu0 %5739, %v4975
        %v5741 = vpop.permute.xlu0 %5740
        %5743 = vset.pattern.permute.xlu0 3
        %5744 = vperm.xlu0 %5743, %v4976
        %v5745 = vpop.permute.xlu0 %5744
        %5747 = vset.pattern.permute.xlu0 3
        %5748 = vperm.xlu0 %5747, %v4977
        %v5749 = vpop.permute.xlu0 %5748
        %5751 = vset.pattern.permute.xlu0 3
        %5752 = vperm.xlu0 %5751, %v4978
        %v5753 = vpop.permute.xlu0 %5752
        %v5755 = vmul.f32 %v5725, %v4971
        %v5756 = vmul.f32 %v5729, %v4972
        %v5757 = vmul.f32 %v5733, %v4973
        %v5758 = vmul.f32 %v5737, %v4974
        %v5759 = vmul.f32 %v5741, %v4975
        %v5760 = vmul.f32 %v5745, %v4976
        %v5761 = vmul.f32 %v5749, %v4977
        %v5762 = vmul.f32 %v5753, %v4978
        %v5771 = vrot.slane %v5755, 1
        %v5772 = vrot.slane %v5756, 1
        %v5773 = vrot.slane %v5757, 1
        %v5774 = vrot.slane %v5758, 1
        %v5775 = vrot.slane %v5759, 1
        %v5776 = vrot.slane %v5760, 1
        %v5777 = vrot.slane %v5761, 1
        %v5778 = vrot.slane %v5762, 1
        %v5787 = vadd.f32 %v5755, %v5771
        %v5788 = vadd.f32 %v5756, %v5772
        %v5789 = vadd.f32 %v5757, %v5773
        %v5790 = vadd.f32 %v5758, %v5774
        %v5791 = vadd.f32 %v5759, %v5775
        %v5792 = vadd.f32 %v5760, %v5776
        %v5793 = vadd.f32 %v5761, %v5777
        %v5794 = vadd.f32 %v5762, %v5778
        %v5795 = vrot.slane %v5755, 2
        %v5796 = vrot.slane %v5756, 2
        %v5797 = vrot.slane %v5757, 2
        %v5798 = vrot.slane %v5758, 2
        %v5799 = vrot.slane %v5759, 2
        %v5800 = vrot.slane %v5760, 2
        %v5801 = vrot.slane %v5761, 2
        %v5802 = vrot.slane %v5762, 2
        %v5811 = vadd.f32 %v5787, %v5795
        %v5812 = vadd.f32 %v5788, %v5796
        %v5813 = vadd.f32 %v5789, %v5797
        %v5814 = vadd.f32 %v5790, %v5798
        %v5815 = vadd.f32 %v5791, %v5799
        %v5816 = vadd.f32 %v5792, %v5800
        %v5817 = vadd.f32 %v5793, %v5801
        %v5818 = vadd.f32 %v5794, %v5802
        %v5819 = vmul.f32 %v5811, 0.33333334
        %v5820 = vmul.f32 %v5812, 0.33333334
        %v5821 = vmul.f32 %v5813, 0.33333334
        %v5822 = vmul.f32 %v5814, 0.33333334
        %v5823 = vmul.f32 %v5815, 0.33333334
        %v5824 = vmul.f32 %v5816, 0.33333334
        %v5825 = vmul.f32 %v5817, 0.33333334
        %v5826 = vmul.f32 %v5818, 0.33333334
        %v5835 = vsel %vm3885, %v4220, %v4219
        %v5836 = vsel %vm3888, %v4221, %v5835
        %v5837 = vsel %vm3891, %v4222, %v5836
        %v5838 = vsel %vm3894, %v4223, %v5837
        %v5839 = vsel %vm3897, %v4224, %v5838
        %v5840 = vsel %vm3900, %v4225, %v5839
        %v5841 = vsel %vm3903, %v4226, %v5840
        %5842 = vrot.lane.b32.xlu0 %v5841, 32
        %v5843 = vpop.permute.xlu0 %5842
        %v5853 = vrot.slane %v5084, 7
        %v5854 = vsel %vm3885, %v5853, %v5083
        %v5855 = vrot.slane %v5085, 6
        %v5856 = vsel %vm3888, %v5855, %v5854
        %v5857 = vrot.slane %v5086, 5
        %v5858 = vsel %vm3891, %v5857, %v5856
        %v5859 = vrot.slane %v5087, 4
        %v5860 = vsel %vm3894, %v5859, %v5858
        %v5861 = vrot.slane %v5088, 3
        %v5862 = vsel %vm3897, %v5861, %v5860
        %v5863 = vrot.slane %v5089, 2
        %v5864 = vsel %vm3900, %v5863, %v5862
        %v5865 = vrot.slane %v5090, 1
        %v5866 = vsel %vm3903, %v5865, %v5864
        %5867 = vrot.lane.b32.xlu0 %v5866, 48
        %v5868 = vpop.permute.xlu0 %5867
        %v5878 = vrot.slane %v5188, 7
        %v5879 = vsel %vm3885, %v5878, %v5187
        %v5880 = vrot.slane %v5189, 6
        %v5881 = vsel %vm3888, %v5880, %v5879
        %v5882 = vrot.slane %v5190, 5
        %v5883 = vsel %vm3891, %v5882, %v5881
        %v5884 = vrot.slane %v5191, 4
        %v5885 = vsel %vm3894, %v5884, %v5883
        %v5886 = vrot.slane %v5192, 3
        %v5887 = vsel %vm3897, %v5886, %v5885
        %v5888 = vrot.slane %v5193, 2
        %v5889 = vsel %vm3900, %v5888, %v5887
        %v5890 = vrot.slane %v5194, 1
        %v5891 = vsel %vm3903, %v5890, %v5889
        %5892 = vrot.lane.b32.xlu0 %v5891, 64
        %v5893 = vpop.permute.xlu0 %5892
        %v5903 = vrot.slane %v5292, 7
        %v5904 = vsel %vm3885, %v5903, %v5291
        %v5905 = vrot.slane %v5293, 6
        %v5906 = vsel %vm3888, %v5905, %v5904
        %v5907 = vrot.slane %v5294, 5
        %v5908 = vsel %vm3891, %v5907, %v5906
        %v5909 = vrot.slane %v5295, 4
        %v5910 = vsel %vm3894, %v5909, %v5908
        %v5911 = vrot.slane %v5296, 3
        %v5912 = vsel %vm3897, %v5911, %v5910
        %v5913 = vrot.slane %v5297, 2
        %v5914 = vsel %vm3900, %v5913, %v5912
        %v5915 = vrot.slane %v5298, 1
        %v5916 = vsel %vm3903, %v5915, %v5914
        %5917 = vrot.lane.b32.xlu0 %v5916, 80
        %v5918 = vpop.permute.xlu0 %5917
        %v5928 = vrot.slane %v5396, 7
        %v5929 = vsel %vm3885, %v5928, %v5395
        %v5930 = vrot.slane %v5397, 6
        %v5931 = vsel %vm3888, %v5930, %v5929
        %v5932 = vrot.slane %v5398, 5
        %v5933 = vsel %vm3891, %v5932, %v5931
        %v5934 = vrot.slane %v5399, 4
        %v5935 = vsel %vm3894, %v5934, %v5933
        %v5936 = vrot.slane %v5400, 3
        %v5937 = vsel %vm3897, %v5936, %v5935
        %v5938 = vrot.slane %v5401, 2
        %v5939 = vsel %vm3900, %v5938, %v5937
        %v5940 = vrot.slane %v5402, 1
        %v5941 = vsel %vm3903, %v5940, %v5939
        %5942 = vrot.lane.b32.xlu0 %v5941, 96
        %v5943 = vpop.permute.xlu0 %5942
        %v5953 = vrot.slane %v5508, 7
        %v5954 = vsel %vm3885, %v5953, %v5507
        %v5955 = vrot.slane %v5509, 6
        %v5956 = vsel %vm3888, %v5955, %v5954
        %v5957 = vrot.slane %v5510, 5
        %v5958 = vsel %vm3891, %v5957, %v5956
        %v5959 = vrot.slane %v5511, 4
        %v5960 = vsel %vm3894, %v5959, %v5958
        %v5961 = vrot.slane %v5512, 3
        %v5962 = vsel %vm3897, %v5961, %v5960
        %v5963 = vrot.slane %v5513, 2
        %v5964 = vsel %vm3900, %v5963, %v5962
        %v5965 = vrot.slane %v5514, 1
        %v5966 = vsel %vm3903, %v5965, %v5964
        %5967 = vrot.lane.b32.xlu0 %v5966, 112
        %v5968 = vpop.permute.xlu0 %5967
        %v5978 = vrot.slane %v5612, 7
        %v5979 = vsel %vm3885, %v5978, %v5611
        %v5980 = vrot.slane %v5613, 6
        %v5981 = vsel %vm3888, %v5980, %v5979
        %v5982 = vrot.slane %v5614, 5
        %v5983 = vsel %vm3891, %v5982, %v5981
        %v5984 = vrot.slane %v5615, 4
        %v5985 = vsel %vm3894, %v5984, %v5983
        %v5986 = vrot.slane %v5616, 3
        %v5987 = vsel %vm3897, %v5986, %v5985
        %v5988 = vrot.slane %v5617, 2
        %v5989 = vsel %vm3900, %v5988, %v5987
        %v5990 = vrot.slane %v5618, 1
        %v5991 = vsel %vm3903, %v5990, %v5989
        %5992 = vrot.lane.b32.xlu0 %v5991, 16
        %v5993 = vpop.permute.xlu0 %5992
        %v6003 = vrot.slane %v5716, 7
        %v6004 = vsel %vm3885, %v6003, %v5715
        %v6005 = vrot.slane %v5717, 6
        %v6006 = vsel %vm3888, %v6005, %v6004
        %v6007 = vrot.slane %v5718, 5
        %v6008 = vsel %vm3891, %v6007, %v6006
        %v6009 = vrot.slane %v5719, 4
        %v6010 = vsel %vm3894, %v6009, %v6008
        %v6011 = vrot.slane %v5720, 3
        %v6012 = vsel %vm3897, %v6011, %v6010
        %v6013 = vrot.slane %v5721, 2
        %v6014 = vsel %vm3900, %v6013, %v6012
        %v6015 = vrot.slane %v5722, 1
        %v6016 = vsel %vm3903, %v6015, %v6014
        %6017 = vrot.lane.b32.xlu0 %v6016, 48
        %v6018 = vpop.permute.xlu0 %6017
        %v6028 = vrot.slane %v5820, 7
        %v6029 = vsel %vm3885, %v6028, %v5819
        %v6030 = vrot.slane %v5821, 6
        %v6031 = vsel %vm3888, %v6030, %v6029
        %v6032 = vrot.slane %v5822, 5
        %v6033 = vsel %vm3891, %v6032, %v6031
        %v6034 = vrot.slane %v5823, 4
        %v6035 = vsel %vm3894, %v6034, %v6033
        %v6036 = vrot.slane %v5824, 3
        %v6037 = vsel %vm3897, %v6036, %v6035
        %v6038 = vrot.slane %v5825, 2
        %v6039 = vsel %vm3900, %v6038, %v6037
        %v6040 = vrot.slane %v5826, 1
        %v6041 = vsel %vm3903, %v6040, %v6039
        %6042 = vrot.lane.b32.xlu0 %v6041, 80
        %v6043 = vpop.permute.xlu0 %6042
        %v6045 = vsel %vm1114, %v702, %v5843
        %v6046 = vsel %vm4027, %v6045, %v5868
        %v6047 = vsel %vm4029, %v6046, %v5893
        %v6048 = vsel %vm4031, %v6047, %v5918
        %v6049 = vsel %vm4033, %v6048, %v5943
        %v6050 = vsel %vm4035, %v6049, %v5968
        %v6051 = vsel %vm914, %v5968, %v5993
        %v6052 = vsel %vm4027, %v6051, %v6018
        %v6053 = vsel %vm4031, %v6052, %v6043
        %v6054 = vpack.c.bf16 %v6050, %v6050
        %v6055 = vpack.c.bf16 %v6053, %v6053
        %v6086 = vunpack.c.l.b16 %v766
        %v6087 = vunpack.c.l.b16 %v767
        %v6088 = vunpack.c.l.b16 %v768
        %v6089 = vunpack.c.l.b16 %v769
        %v6090 = vunpack.c.l.b16 %v770
        %v6091 = vunpack.c.l.b16 %v771
        %v6092 = vunpack.c.l.b16 %v772
        %v6093 = vunpack.c.l.b16 %v773
        %v6094 = vunpack.c.l.b16 %v774
        %v6095 = vunpack.c.l.b16 %v775
        %v6096 = vunpack.c.l.b16 %v776
        %v6097 = vunpack.c.l.b16 %v777
        %v6098 = vunpack.c.l.b16 %v778
        %v6099 = vunpack.c.l.b16 %v779
        %v6100 = vunpack.c.l.b16 %v780
        %v6101 = vunpack.c.l.b16 %v781
        %v6102 = vunpack.c.l.b16 %v782
        %v6103 = vunpack.c.l.b16 %v783
        %v6104 = vunpack.c.l.b16 %v784
        %v6105 = vunpack.c.l.b16 %v785
        %v6106 = vunpack.c.l.b16 %v786
        %v6107 = vunpack.c.l.b16 %v787
        %v6108 = vunpack.c.l.b16 %v788
        %v6109 = vunpack.c.l.b16 %v789
        %v6110 = vunpack.c.l.b16 %v790
        %v6111 = vunpack.c.l.b16 %v791
        %v6112 = vunpack.c.l.b16 %v792
        %v6113 = vunpack.c.l.b16 %v793
        %v6114 = vunpack.c.l.b16 %v794
        %v6115 = vunpack.c.l.b16 %v795
        %v6116 = vpack.c.b16 %v6087, %v6086
        %v6117 = vpack.c.b16 %v6089, %v6088
        %v6118 = vpack.c.b16 %v6091, %v6090
        %v6119 = vpack.c.b16 %v6093, %v6092
        %v6120 = vpack.c.b16 %v6095, %v6094
        %v6121 = vpack.c.b16 %v6097, %v6096
        %v6122 = vpack.c.b16 %v6099, %v6098
        %v6123 = vpack.c.b16 %v6101, %v6100
        %v6124 = vpack.c.b16 %v6103, %v6102
        %v6125 = vpack.c.b16 %v6105, %v6104
        %v6126 = vpack.c.b16 %v6107, %v6106
        %v6127 = vpack.c.b16 %v6109, %v6108
        %v6128 = vpack.c.b16 %v6111, %v6110
        %v6129 = vpack.c.b16 %v6113, %v6112
        %v6130 = vpack.c.b16 %v6115, %v6114
        %6146 = vrot.lane.b32.xlu0 %v886, 64
        %v6147 = vpop.permute.xlu0 %6146
        %v6150 = vsel %vm4035, %v6055, 0
        %6152 = vmatprep.subr.bf16.mxu0 0
        %6153 = vmatpush1.bf16.msra.mxu0 %v6116
        %6154 = vmatprep.subr.bf16.mxu0 0
        %6155 = vmatpush1.bf16.msra.mxu0 %v6117
        %6156 = vmatprep.subr.bf16.mxu0 0
        %6157 = vmatpush1.bf16.msra.mxu0 %v6118
        %6158 = vmatprep.subr.bf16.mxu0 0
        %6159 = vmatpush1.bf16.msra.mxu0 %v6119
        %6160 = vmatprep.subr.bf16.mxu0 0
        %6161 = vmatpush1.bf16.msra.mxu0 %v6120
        %6162 = vmatprep.subr.bf16.mxu0 0
        %6163 = vmatpush1.bf16.msra.mxu0 %v6121
        %6164 = vmatprep.subr.bf16.mxu0 0
        %6165 = vmatpush1.bf16.msra.mxu0 %v6122
        %6166 = vmatprep.subr.bf16.mxu0 0
        %6167 = vmatpush1.bf16.msra.mxu0 %v6123
        %6168 = vmatprep.subr.bf16.mxu0 0
        %6169 = vmatpush1.bf16.msra.mxu0 %v6124
        %6170 = vmatprep.subr.bf16.mxu0 0
        %6171 = vmatpush1.bf16.msra.mxu0 %v6125
        %6172 = vmatprep.subr.bf16.mxu0 0
        %6173 = vmatpush1.bf16.msra.mxu0 %v6126
        %6174 = vmatprep.subr.bf16.mxu0 0
        %6175 = vmatpush1.bf16.msra.mxu0 %v6127
        %6176 = vmatprep.subr.bf16.mxu0 0
        %6177 = vmatpush1.bf16.msra.mxu0 %v6128
        %6178 = vmatprep.subr.bf16.mxu0 0
        %6179 = vmatpush1.bf16.msra.mxu0 %v6129
        %6180 = vmatprep.subr.bf16.mxu0 0
        %6181 = vmatpush1.bf16.msra.mxu0 %v6130
        %6182 = vmatprep.subr.bf16.mxu0 0
        %6183 = vmatpush1.bf16.msra.mxu0 0
        %6184 = vmatprep.mubr.bf16.mxu0 %v6150
        %6185 = vmatmul.mubr.bf16.gmra.mrb[0].mxu0 %v6054
        %v6186 = vpop.f32.mrb[0].mxu0
        %v6187 = vadd.f32 %v6147, %v6186
        %v6188 = vpop.f32.mrb[0].mxu0
        %v6189 = vpop.f32.mrb[0].mxu0
        %v6190 = vpop.f32.mrb[0].mxu0
        %6191 = vdwg.mxu0
        %v6192 = vtanh.pop %v6187
        %v6197 = vunpack.c.l.b16 %v796
        %v6198 = vunpack.c.l.b16 %v797
        %v6199 = vunpack.c.l.b16 %v798
        %v6200 = vunpack.c.l.b16 %v799
        %v6201 = vpack.c.b16 %v6198, %v6197
        %v6202 = vpack.c.b16 %v6200, %v6199
        %v6206 = vsel %vm1114, %v703, 0
        %6208 = vmatprep.subr.bf16.mxu0 0
        %6209 = vmatpush1.bf16.msra.mxu0 %v6201
        %6210 = vmatprep.subr.bf16.mxu0 0
        %6211 = vmatpush1.bf16.msra.mxu0 %v6202
        %6212 = vmatprep.subr.bf16.mxu0 0
        %6213 = vmatpush1.bf16.msra.mxu0 0
        %6214 = vmatprep.subr.bf16.mxu0 0
        %6215 = vmatpush1.bf16.msra.mxu0 0
        %6216 = vmatprep.subr.bf16.mxu0 0
        %6217 = vmatpush1.bf16.msra.mxu0 0
        %6218 = vmatprep.subr.bf16.mxu0 0
        %6219 = vmatpush1.bf16.msra.mxu0 0
        %6220 = vmatprep.subr.bf16.mxu0 0
        %6221 = vmatpush1.bf16.msra.mxu0 0
        %6222 = vmatprep.subr.bf16.mxu0 0
        %6223 = vmatpush1.bf16.msra.mxu0 0
        %6224 = vmatprep.subr.bf16.mxu0 0
        %6225 = vmatpush1.bf16.msra.mxu0 0
        %6226 = vmatprep.subr.bf16.mxu0 0
        %6227 = vmatpush1.bf16.msra.mxu0 0
        %6228 = vmatprep.subr.bf16.mxu0 0
        %6229 = vmatpush1.bf16.msra.mxu0 0
        %6230 = vmatprep.subr.bf16.mxu0 0
        %6231 = vmatpush1.bf16.msra.mxu0 0
        %6232 = vmatprep.subr.bf16.mxu0 0
        %6233 = vmatpush1.bf16.msra.mxu0 0
        %6234 = vmatprep.subr.bf16.mxu0 0
        %6235 = vmatpush1.bf16.msra.mxu0 0
        %6236 = vmatprep.subr.bf16.mxu0 0
        %6237 = vmatpush1.bf16.msra.mxu0 0
        %6238 = vmatprep.subr.bf16.mxu0 0
        %6239 = vmatpush1.bf16.msra.mxu0 0
        %6240 = vmatprep.mubr.bf16.mxu0 0
        %6241 = vmatmul.mubr.bf16.gmra.mrb[0].mxu0 %v6206
        %v6242 = vpop.f32.mrb[0].mxu0
        %v6243 = vadd.f32 0.0, %v6242
        %v6244 = vpop.f32.mrb[0].mxu0
        %v6245 = vpop.f32.mrb[0].mxu0
        %v6246 = vpop.f32.mrb[0].mxu0
        %6247 = vdwg.mxu0
        %v6252 = vunpack.c.l.b16 %v762
        %v6253 = vunpack.c.l.b16 %v763
        %v6254 = vunpack.c.l.b16 %v764
        %v6255 = vunpack.c.l.b16 %v765
        %v6256 = vpack.c.b16 %v6253, %v6252
        %v6257 = vpack.c.b16 %v6255, %v6254
        %6260 = vmatprep.subr.bf16.mxu0 0
        %6261 = vmatpush1.bf16.msra.mxu0 %v6256
        %6262 = vmatprep.subr.bf16.mxu0 0
        %6263 = vmatpush1.bf16.msra.mxu0 %v6257
        %6264 = vmatprep.subr.bf16.mxu0 0
        %6265 = vmatpush1.bf16.msra.mxu0 0
        %6266 = vmatprep.subr.bf16.mxu0 0
        %6267 = vmatpush1.bf16.msra.mxu0 0
        %6268 = vmatprep.subr.bf16.mxu0 0
        %6269 = vmatpush1.bf16.msra.mxu0 0
        %6270 = vmatprep.subr.bf16.mxu0 0
        %6271 = vmatpush1.bf16.msra.mxu0 0
        %6272 = vmatprep.subr.bf16.mxu0 0
        %6273 = vmatpush1.bf16.msra.mxu0 0
        %6274 = vmatprep.subr.bf16.mxu0 0
        %6275 = vmatpush1.bf16.msra.mxu0 0
        %6276 = vmatprep.subr.bf16.mxu0 0
        %6277 = vmatpush1.bf16.msra.mxu0 0
        %6278 = vmatprep.subr.bf16.mxu0 0
        %6279 = vmatpush1.bf16.msra.mxu0 0
        %6280 = vmatprep.subr.bf16.mxu0 0
        %6281 = vmatpush1.bf16.msra.mxu0 0
        %6282 = vmatprep.subr.bf16.mxu0 0
        %6283 = vmatpush1.bf16.msra.mxu0 0
        %6284 = vmatprep.subr.bf16.mxu0 0
        %6285 = vmatpush1.bf16.msra.mxu0 0
        %6286 = vmatprep.subr.bf16.mxu0 0
        %6287 = vmatpush1.bf16.msra.mxu0 0
        %6288 = vmatprep.subr.bf16.mxu0 0
        %6289 = vmatpush1.bf16.msra.mxu0 0
        %6290 = vmatprep.subr.bf16.mxu0 0
        %6291 = vmatpush1.bf16.msra.mxu0 0
        %6292 = vmatprep.mubr.bf16.mxu0 0
        %6293 = vmatmul.mubr.bf16.gmra.mrb[0].mxu0 %v4071
        %v6294 = vpop.f32.mrb[0].mxu0
        %v6295 = vadd.f32 0.0, %v6294
        %v6296 = vpop.f32.mrb[0].mxu0
        %v6297 = vpop.f32.mrb[0].mxu0
        %v6298 = vadd.f32 0.0, %v6297
        %v6299 = vpop.f32.mrb[0].mxu0
        %6300 = vmatprep.mubr.bf16.mxu0 0
        %6301 = vmatmul.mubr.bf16.gmra.mrb[0].mxu0 %v4074
        %v6302 = vpop.f32.mrb[0].mxu0
        %v6303 = vadd.f32 0.0, %v6302
        %v6304 = vpop.f32.mrb[0].mxu0
        %v6305 = vpop.f32.mrb[0].mxu0
        %v6306 = vadd.f32 0.0, %v6305
        %v6307 = vpop.f32.mrb[0].mxu0
        %6308 = vmatprep.mubr.bf16.mxu0 0
        %6309 = vmatmul.mubr.bf16.gmra.mrb[0].mxu0 %v4077
        %v6310 = vpop.f32.mrb[0].mxu0
        %v6311 = vadd.f32 0.0, %v6310
        %v6312 = vpop.f32.mrb[0].mxu0
        %v6313 = vpop.f32.mrb[0].mxu0
        %v6314 = vadd.f32 0.0, %v6313
        %v6315 = vpop.f32.mrb[0].mxu0
        %6316 = vmatprep.mubr.bf16.mxu0 0
        %6317 = vmatmul.mubr.bf16.gmra.mrb[0].mxu0 %v4080
        %v6318 = vpop.f32.mrb[0].mxu0
        %v6319 = vadd.f32 0.0, %v6318
        %v6320 = vpop.f32.mrb[0].mxu0
        %v6321 = vpop.f32.mrb[0].mxu0
        %v6322 = vadd.f32 0.0, %v6321
        %v6323 = vpop.f32.mrb[0].mxu0
        %6324 = vdwg.mxu0
        %v6326 = vcombine.high %v6243, %v6243
        %v6328 = vunpack.c.l.s4 1966171168
        %v6329 = vunpack.c.0.s8 %v6328
        %v6330 = vlaneseq
        %v6331 = vshrl.u32 %v6330, 7
        %v6332 = vsub.s32 %v6329, %v6331
        %v6333 = vrot.slane %v6243, %v6332
        %v6335 = vunpack.c.l.s4 1966171168
        %v6336 = vunpack.c.0.s8 %v6335
        %v6337 = vlaneseq
        %v6338 = vshrl.u32 %v6337, 7
        %v6339 = vsub.s32 %v6336, %v6338
        %v6340 = vrot.slane %v6326, %v6339
        %v6341 = vcombine.high %v6333, %v6333
        %v6342 = vcombine.high %v6340, %v6340
        %v6344 = vunpack.c.l.s4 1966171168
        %v6345 = vunpack.c.0.s8 %v6344
        %v6346 = vlaneseq
        %v6347 = vshrl.u32 %v6346, 7
        %v6348 = vsub.s32 %v6345, %v6347
        %v6349 = vrot.slane %v6333, %v6348
        %v6351 = vunpack.c.l.s4 1966171168
        %v6352 = vunpack.c.0.s8 %v6351
        %v6353 = vlaneseq
        %v6354 = vshrl.u32 %v6353, 7
        %v6355 = vsub.s32 %v6352, %v6354
        %v6356 = vrot.slane %v6340, %v6355
        %v6358 = vunpack.c.l.s4 1966171168
        %v6359 = vunpack.c.0.s8 %v6358
        %v6360 = vlaneseq
        %v6361 = vshrl.u32 %v6360, 7
        %v6362 = vsub.s32 %v6359, %v6361
        %v6363 = vrot.slane %v6341, %v6362
        %v6365 = vunpack.c.l.s4 1966171168
        %v6366 = vunpack.c.0.s8 %v6365
        %v6367 = vlaneseq
        %v6368 = vshrl.u32 %v6367, 7
        %v6369 = vsub.s32 %v6366, %v6368
        %v6370 = vrot.slane %v6342, %v6369
        %v6371 = vcombine.high %v6349, %v6349
        %v6372 = vcombine.high %v6356, %v6356
        %v6373 = vcombine.high %v6363, %v6363
        %v6374 = vcombine.high %v6370, %v6370
        %v6375 = vlaneseq
        %v6376 = vshrl.u32 %v6375, 7
        %v6377 = vsub.s32 0, %v6376
        %v6378 = vrot.slane %v6349, %v6377
        %v6379 = vlaneseq
        %v6380 = vshrl.u32 %v6379, 7
        %v6381 = vsub.s32 0, %v6380
        %v6382 = vrot.slane %v6363, %v6381
        %v6383 = vlaneseq
        %v6384 = vshrl.u32 %v6383, 7
        %v6385 = vsub.s32 0, %v6384
        %v6386 = vrot.slane %v6371, %v6385
        %v6387 = vlaneseq
        %v6388 = vshrl.u32 %v6387, 7
        %v6389 = vsub.s32 0, %v6388
        %v6390 = vrot.slane %v6373, %v6389
        %v6391 = vlaneseq
        %v6392 = vshrl.u32 %v6391, 7
        %v6393 = vsub.s32 0, %v6392
        %v6394 = vrot.slane %v6356, %v6393
        %v6395 = vlaneseq
        %v6396 = vshrl.u32 %v6395, 7
        %v6397 = vsub.s32 0, %v6396
        %v6398 = vrot.slane %v6370, %v6397
        %v6399 = vlaneseq
        %v6400 = vshrl.u32 %v6399, 7
        %v6401 = vsub.s32 0, %v6400
        %v6402 = vrot.slane %v6372, %v6401
        %v6403 = vlaneseq
        %v6404 = vshrl.u32 %v6403, 7
        %v6405 = vsub.s32 0, %v6404
        %v6406 = vrot.slane %v6374, %v6405
        %v6415 = vmul.f32 %v6378, %v6295
        %v6416 = vmul.f32 %v6382, %v6298
        %v6417 = vmul.f32 %v6386, %v6303
        %v6418 = vmul.f32 %v6390, %v6306
        %v6419 = vmul.f32 %v6394, %v6311
        %v6420 = vmul.f32 %v6398, %v6314
        %v6421 = vmul.f32 %v6402, %v6319
        %v6422 = vmul.f32 %v6406, %v6322
        %v6423 = vsel %vm914, %v6415, 0.0
        %6424 = vadd.xlane.f32.xlu0 %v6423
        %v6425 = vpop.xlane.xlu0 %6424
        %v6426 = vsel %vm914, %v6416, 0.0
        %6427 = vadd.xlane.f32.xlu0 %v6426
        %v6428 = vpop.xlane.xlu0 %6427
        %v6429 = vsel %vm914, %v6417, 0.0
        %6430 = vadd.xlane.f32.xlu0 %v6429
        %v6431 = vpop.xlane.xlu0 %6430
        %v6432 = vsel %vm914, %v6418, 0.0
        %6433 = vadd.xlane.f32.xlu0 %v6432
        %v6434 = vpop.xlane.xlu0 %6433
        %v6435 = vsel %vm914, %v6419, 0.0
        %6436 = vadd.xlane.f32.xlu0 %v6435
        %v6437 = vpop.xlane.xlu0 %6436
        %v6438 = vsel %vm914, %v6420, 0.0
        %6439 = vadd.xlane.f32.xlu0 %v6438
        %v6440 = vpop.xlane.xlu0 %6439
        %v6441 = vsel %vm914, %v6421, 0.0
        %6442 = vadd.xlane.f32.xlu0 %v6441
        %v6443 = vpop.xlane.xlu0 %6442
        %v6444 = vsel %vm914, %v6422, 0.0
        %6445 = vadd.xlane.f32.xlu0 %v6444
        %v6446 = vpop.xlane.xlu0 %6445
        %v6447 = vmul.f32 %v6425, 0.25
        %v6448 = vmul.f32 %v6428, 0.25
        %v6449 = vmul.f32 %v6431, 0.25
        %v6450 = vmul.f32 %v6434, 0.25
        %v6451 = vmul.f32 %v6437, 0.25
        %v6452 = vmul.f32 %v6440, 0.25
        %v6453 = vmul.f32 %v6443, 0.25
        %v6454 = vmul.f32 %v6446, 0.25
        %v6455 = vadd.f32 %v6447, 20.0
        %v6456 = vadd.f32 %v6448, 20.0
        %v6457 = vadd.f32 %v6449, 20.0
        %v6458 = vadd.f32 %v6450, 20.0
        %v6459 = vadd.f32 %v6451, 20.0
        %v6460 = vadd.f32 %v6452, 20.0
        %v6461 = vadd.f32 %v6453, 20.0
        %v6462 = vadd.f32 %v6454, 20.0
        %v6463 = vlaneseq
        %v6464 = vshrl.u32 %v6463, 7
        %v6465 = vsub.s32 0, %v6464
        %v6466 = vrot.slane %v745, %v6465
        %6468 = vbcast.lane.b32.xlu0 %v6466, 256
        %v6469 = vpop.permute.xlu0 %6468
        %v6470 = vlaneseq
        %v6471 = vshrl.u32 %v6470, 7
        %v6472 = vsub.s32 1, %v6471
        %v6473 = vrot.slane %v745, %v6472
        %6475 = vbcast.lane.b32.xlu0 %v6473, 256
        %v6476 = vpop.permute.xlu0 %6475
        %v6477 = vlaneseq
        %v6478 = vshrl.u32 %v6477, 7
        %v6479 = vsub.s32 2, %v6478
        %v6480 = vrot.slane %v745, %v6479
        %6482 = vbcast.lane.b32.xlu0 %v6480, 256
        %v6483 = vpop.permute.xlu0 %6482
        %v6484 = vlaneseq
        %v6485 = vshrl.u32 %v6484, 7
        %v6486 = vsub.s32 3, %v6485
        %v6487 = vrot.slane %v745, %v6486
        %6489 = vbcast.lane.b32.xlu0 %v6487, 256
        %v6490 = vpop.permute.xlu0 %6489
        %v6491 = vlaneseq
        %v6492 = vshrl.u32 %v6491, 7
        %v6493 = vsub.s32 4, %v6492
        %v6494 = vrot.slane %v745, %v6493
        %6496 = vbcast.lane.b32.xlu0 %v6494, 256
        %v6497 = vpop.permute.xlu0 %6496
        %v6498 = vlaneseq
        %v6499 = vshrl.u32 %v6498, 7
        %v6500 = vsub.s32 5, %v6499
        %v6501 = vrot.slane %v745, %v6500
        %6503 = vbcast.lane.b32.xlu0 %v6501, 256
        %v6504 = vpop.permute.xlu0 %6503
        %v6505 = vlaneseq
        %v6506 = vshrl.u32 %v6505, 7
        %v6507 = vsub.s32 6, %v6506
        %v6508 = vrot.slane %v745, %v6507
        %6510 = vbcast.lane.b32.xlu0 %v6508, 256
        %v6511 = vpop.permute.xlu0 %6510
        %v6512 = vlaneseq
        %v6513 = vshrl.u32 %v6512, 7
        %v6514 = vsub.s32 7, %v6513
        %v6515 = vrot.slane %v745, %v6514
        %6517 = vbcast.lane.b32.xlu0 %v6515, 256
        %v6518 = vpop.permute.xlu0 %6517
        %v6527 = vmul.f32 %v6455, %v6469
        %v6528 = vmul.f32 %v6456, %v6476
        %v6529 = vmul.f32 %v6457, %v6483
        %v6530 = vmul.f32 %v6458, %v6490
        %v6531 = vmul.f32 %v6459, %v6497
        %v6532 = vmul.f32 %v6460, %v6504
        %v6533 = vmul.f32 %v6461, %v6511
        %v6534 = vmul.f32 %v6462, %v6518
        %v6535 = vsub.f32 %v6527, 20.0
        %v6536 = vsub.f32 %v6528, 20.0
        %v6537 = vsub.f32 %v6529, 20.0
        %v6538 = vsub.f32 %v6530, 20.0
        %v6539 = vsub.f32 %v6531, 20.0
        %v6540 = vsub.f32 %v6532, 20.0
        %v6541 = vsub.f32 %v6533, 20.0
        %v6542 = vsub.f32 %v6534, 20.0
        %6551 = vset.pattern.permute.xlu0 0
        %6552 = vperm.xlu0 %6551, %v6535
        %v6553 = vpop.permute.xlu0 %6552
        %6554 = vset.pattern.permute.xlu0 0
        %6555 = vperm.xlu0 %6554, %v6536
        %v6556 = vpop.permute.xlu0 %6555
        %6557 = vset.pattern.permute.xlu0 0
        %6558 = vperm.xlu0 %6557, %v6537
        %v6559 = vpop.permute.xlu0 %6558
        %6560 = vset.pattern.permute.xlu0 0
        %6561 = vperm.xlu0 %6560, %v6538
        %v6562 = vpop.permute.xlu0 %6561
        %6563 = vset.pattern.permute.xlu0 0
        %6564 = vperm.xlu0 %6563, %v6539
        %v6565 = vpop.permute.xlu0 %6564
        %6566 = vset.pattern.permute.xlu0 0
        %6567 = vperm.xlu0 %6566, %v6540
        %v6568 = vpop.permute.xlu0 %6567
        %6569 = vset.pattern.permute.xlu0 0
        %6570 = vperm.xlu0 %6569, %v6541
        %v6571 = vpop.permute.xlu0 %6570
        %6572 = vset.pattern.permute.xlu0 0
        %6573 = vperm.xlu0 %6572, %v6542
        %v6574 = vpop.permute.xlu0 %6573
        %v6575 = vlaneseq
        %v6576 = vand.u32 %v6575, 127
        %v6577 = vlaneseq
        %v6578 = vshrl.u32 %v6577, 7
        %v6579 = vsub.s32 %v6576, %v6578
        %v6580 = vrot.slane %v6553, %v6579
        %v6581 = vlaneseq
        %v6582 = vshrl.u32 %v6581, 7
        %v6583 = vsub.s32 %v6576, %v6582
        %v6584 = vrot.slane %v6556, %v6583
        %v6585 = vlaneseq
        %v6586 = vshrl.u32 %v6585, 7
        %v6587 = vsub.s32 %v6576, %v6586
        %v6588 = vrot.slane %v6559, %v6587
        %v6589 = vlaneseq
        %v6590 = vshrl.u32 %v6589, 7
        %v6591 = vsub.s32 %v6576, %v6590
        %v6592 = vrot.slane %v6562, %v6591
        %v6593 = vlaneseq
        %v6594 = vshrl.u32 %v6593, 7
        %v6595 = vsub.s32 %v6576, %v6594
        %v6596 = vrot.slane %v6565, %v6595
        %v6597 = vlaneseq
        %v6598 = vshrl.u32 %v6597, 7
        %v6599 = vsub.s32 %v6576, %v6598
        %v6600 = vrot.slane %v6568, %v6599
        %v6601 = vlaneseq
        %v6602 = vshrl.u32 %v6601, 7
        %v6603 = vsub.s32 %v6576, %v6602
        %v6604 = vrot.slane %v6571, %v6603
        %v6605 = vlaneseq
        %v6606 = vshrl.u32 %v6605, 7
        %v6607 = vsub.s32 %v6576, %v6606
        %v6608 = vrot.slane %v6574, %v6607
        %v6609 = vsel %vm3885, %v6584, %v6580
        %v6610 = vsel %vm3888, %v6588, %v6609
        %v6611 = vsel %vm3891, %v6592, %v6610
        %v6612 = vsel %vm3894, %v6596, %v6611
        %v6613 = vsel %vm3897, %v6600, %v6612
        %v6614 = vsel %vm3900, %v6604, %v6613
        %v6615 = vsel %vm3903, %v6608, %v6614
        %v6617 = vsel %vm1750, %v6615, -inf
        %6618 = vmax.xlane.f32.xlu0 %v6617
        %v6619 = vpop.xlane.xlu0 %6618
        %v6621 = vlaneseq
        %v6622 = vshrl.u32 %v6621, 7
        %v6623 = vsub.s32 0, %v6622
        %v6624 = vrot.slane %v6619, %v6623
        %v6625 = vlaneseq
        %v6626 = vshrl.u32 %v6625, 7
        %v6627 = vsub.s32 1, %v6626
        %v6628 = vrot.slane %v6619, %v6627
        %v6629 = vlaneseq
        %v6630 = vshrl.u32 %v6629, 7
        %v6631 = vsub.s32 2, %v6630
        %v6632 = vrot.slane %v6619, %v6631
        %v6633 = vlaneseq
        %v6634 = vshrl.u32 %v6633, 7
        %v6635 = vsub.s32 3, %v6634
        %v6636 = vrot.slane %v6619, %v6635
        %v6637 = vlaneseq
        %v6638 = vshrl.u32 %v6637, 7
        %v6639 = vsub.s32 4, %v6638
        %v6640 = vrot.slane %v6619, %v6639
        %v6641 = vlaneseq
        %v6642 = vshrl.u32 %v6641, 7
        %v6643 = vsub.s32 5, %v6642
        %v6644 = vrot.slane %v6619, %v6643
        %v6645 = vlaneseq
        %v6646 = vshrl.u32 %v6645, 7
        %v6647 = vsub.s32 6, %v6646
        %v6648 = vrot.slane %v6619, %v6647
        %v6649 = vlaneseq
        %v6650 = vshrl.u32 %v6649, 7
        %v6651 = vsub.s32 7, %v6650
        %v6652 = vrot.slane %v6619, %v6651
        %v6661 = vsub.f32 %v6535, %v6624
        %v6662 = vsub.f32 %v6536, %v6628
        %v6663 = vsub.f32 %v6537, %v6632
        %v6664 = vsub.f32 %v6538, %v6636
        %v6665 = vsub.f32 %v6539, %v6640
        %v6666 = vsub.f32 %v6540, %v6644
        %v6667 = vsub.f32 %v6541, %v6648
        %v6668 = vsub.f32 %v6542, %v6652
        %v6669 = vmul.f32 %v6661, 1.442695
        %v6670 = vpow.pop %v6669
        %v6671 = vmul.f32 %v6662, 1.442695
        %v6672 = vpow.pop %v6671
        %v6673 = vmul.f32 %v6663, 1.442695
        %v6674 = vpow.pop %v6673
        %v6675 = vmul.f32 %v6664, 1.442695
        %v6676 = vpow.pop %v6675
        %v6677 = vmul.f32 %v6665, 1.442695
        %v6678 = vpow.pop %v6677
        %v6679 = vmul.f32 %v6666, 1.442695
        %v6680 = vpow.pop %v6679
        %v6681 = vmul.f32 %v6667, 1.442695
        %v6682 = vpow.pop %v6681
        %v6683 = vmul.f32 %v6668, 1.442695
        %v6684 = vpow.pop %v6683
        %6693 = vset.pattern.permute.xlu0 0
        %6694 = vperm.xlu0 %6693, %v6670
        %v6695 = vpop.permute.xlu0 %6694
        %6696 = vset.pattern.permute.xlu0 0
        %6697 = vperm.xlu0 %6696, %v6672
        %v6698 = vpop.permute.xlu0 %6697
        %6699 = vset.pattern.permute.xlu0 0
        %6700 = vperm.xlu0 %6699, %v6674
        %v6701 = vpop.permute.xlu0 %6700
        %6702 = vset.pattern.permute.xlu0 0
        %6703 = vperm.xlu0 %6702, %v6676
        %v6704 = vpop.permute.xlu0 %6703
        %6705 = vset.pattern.permute.xlu0 0
        %6706 = vperm.xlu0 %6705, %v6678
        %v6707 = vpop.permute.xlu0 %6706
        %6708 = vset.pattern.permute.xlu0 0
        %6709 = vperm.xlu0 %6708, %v6680
        %v6710 = vpop.permute.xlu0 %6709
        %6711 = vset.pattern.permute.xlu0 0
        %6712 = vperm.xlu0 %6711, %v6682
        %v6713 = vpop.permute.xlu0 %6712
        %6714 = vset.pattern.permute.xlu0 0
        %6715 = vperm.xlu0 %6714, %v6684
        %v6716 = vpop.permute.xlu0 %6715
        %v6717 = vlaneseq
        %v6718 = vshrl.u32 %v6717, 7
        %v6719 = vsub.s32 %v6576, %v6718
        %v6720 = vrot.slane %v6695, %v6719
        %v6721 = vlaneseq
        %v6722 = vshrl.u32 %v6721, 7
        %v6723 = vsub.s32 %v6576, %v6722
        %v6724 = vrot.slane %v6698, %v6723
        %v6725 = vlaneseq
        %v6726 = vshrl.u32 %v6725, 7
        %v6727 = vsub.s32 %v6576, %v6726
        %v6728 = vrot.slane %v6701, %v6727
        %v6729 = vlaneseq
        %v6730 = vshrl.u32 %v6729, 7
        %v6731 = vsub.s32 %v6576, %v6730
        %v6732 = vrot.slane %v6704, %v6731
        %v6733 = vlaneseq
        %v6734 = vshrl.u32 %v6733, 7
        %v6735 = vsub.s32 %v6576, %v6734
        %v6736 = vrot.slane %v6707, %v6735
        %v6737 = vlaneseq
        %v6738 = vshrl.u32 %v6737, 7
        %v6739 = vsub.s32 %v6576, %v6738
        %v6740 = vrot.slane %v6710, %v6739
        %v6741 = vlaneseq
        %v6742 = vshrl.u32 %v6741, 7
        %v6743 = vsub.s32 %v6576, %v6742
        %v6744 = vrot.slane %v6713, %v6743
        %v6745 = vlaneseq
        %v6746 = vshrl.u32 %v6745, 7
        %v6747 = vsub.s32 %v6576, %v6746
        %v6748 = vrot.slane %v6716, %v6747
        %v6749 = vsel %vm3885, %v6724, %v6720
        %v6750 = vsel %vm3888, %v6728, %v6749
        %v6751 = vsel %vm3891, %v6732, %v6750
        %v6752 = vsel %vm3894, %v6736, %v6751
        %v6753 = vsel %vm3897, %v6740, %v6752
        %v6754 = vsel %vm3900, %v6744, %v6753
        %v6755 = vsel %vm3903, %v6748, %v6754
        %v6757 = vsel %vm1750, %v6755, 0.0
        %6758 = vadd.xlane.f32.xlu0 %v6757
        %v6759 = vpop.xlane.xlu0 %6758
        %v6761 = vlaneseq
        %v6762 = vshrl.u32 %v6761, 7
        %v6763 = vsub.s32 0, %v6762
        %v6764 = vrot.slane %v6759, %v6763
        %v6765 = vlaneseq
        %v6766 = vshrl.u32 %v6765, 7
        %v6767 = vsub.s32 1, %v6766
        %v6768 = vrot.slane %v6759, %v6767
        %v6769 = vlaneseq
        %v6770 = vshrl.u32 %v6769, 7
        %v6771 = vsub.s32 2, %v6770
        %v6772 = vrot.slane %v6759, %v6771
        %v6773 = vlaneseq
        %v6774 = vshrl.u32 %v6773, 7
        %v6775 = vsub.s32 3, %v6774
        %v6776 = vrot.slane %v6759, %v6775
        %v6777 = vlaneseq
        %v6778 = vshrl.u32 %v6777, 7
        %v6779 = vsub.s32 4, %v6778
        %v6780 = vrot.slane %v6759, %v6779
        %v6781 = vlaneseq
        %v6782 = vshrl.u32 %v6781, 7
        %v6783 = vsub.s32 5, %v6782
        %v6784 = vrot.slane %v6759, %v6783
        %v6785 = vlaneseq
        %v6786 = vshrl.u32 %v6785, 7
        %v6787 = vsub.s32 6, %v6786
        %v6788 = vrot.slane %v6759, %v6787
        %v6789 = vlaneseq
        %v6790 = vshrl.u32 %v6789, 7
        %v6791 = vsub.s32 7, %v6790
        %v6792 = vrot.slane %v6759, %v6791
        %v6801 = vrcp.pop %v6764
        %v6802 = vmul.f32 %v6670, %v6801
        %v6803 = vrcp.pop %v6768
        %v6804 = vmul.f32 %v6672, %v6803
        %v6805 = vrcp.pop %v6772
        %v6806 = vmul.f32 %v6674, %v6805
        %v6807 = vrcp.pop %v6776
        %v6808 = vmul.f32 %v6676, %v6807
        %v6809 = vrcp.pop %v6780
        %v6810 = vmul.f32 %v6678, %v6809
        %v6811 = vrcp.pop %v6784
        %v6812 = vmul.f32 %v6680, %v6811
        %v6813 = vrcp.pop %v6788
        %v6814 = vmul.f32 %v6682, %v6813
        %v6815 = vrcp.pop %v6792
        %v6816 = vmul.f32 %v6684, %v6815
        %v6817 = vlaneseq
        %v6818 = vshrl.u32 %v6817, 7
        %v6819 = vsub.s32 0, %v6818
        %v6820 = vrot.slane %v809, %v6819
        %6822 = vbcast.lane.b32.xlu0 %v6820, 256
        %v6823 = vpop.permute.xlu0 %6822
        %v6824 = vlaneseq
        %v6825 = vshrl.u32 %v6824, 7
        %v6826 = vsub.s32 1, %v6825
        %v6827 = vrot.slane %v809, %v6826
        %6829 = vbcast.lane.b32.xlu0 %v6827, 256
        %v6830 = vpop.permute.xlu0 %6829
        %v6831 = vlaneseq
        %v6832 = vshrl.u32 %v6831, 7
        %v6833 = vsub.s32 2, %v6832
        %v6834 = vrot.slane %v809, %v6833
        %6836 = vbcast.lane.b32.xlu0 %v6834, 256
        %v6837 = vpop.permute.xlu0 %6836
        %v6838 = vlaneseq
        %v6839 = vshrl.u32 %v6838, 7
        %v6840 = vsub.s32 3, %v6839
        %v6841 = vrot.slane %v809, %v6840
        %6843 = vbcast.lane.b32.xlu0 %v6841, 256
        %v6844 = vpop.permute.xlu0 %6843
        %v6845 = vlaneseq
        %v6846 = vshrl.u32 %v6845, 7
        %v6847 = vsub.s32 4, %v6846
        %v6848 = vrot.slane %v809, %v6847
        %6850 = vbcast.lane.b32.xlu0 %v6848, 256
        %v6851 = vpop.permute.xlu0 %6850
        %v6852 = vlaneseq
        %v6853 = vshrl.u32 %v6852, 7
        %v6854 = vsub.s32 5, %v6853
        %v6855 = vrot.slane %v809, %v6854
        %6857 = vbcast.lane.b32.xlu0 %v6855, 256
        %v6858 = vpop.permute.xlu0 %6857
        %v6859 = vlaneseq
        %v6860 = vshrl.u32 %v6859, 7
        %v6861 = vsub.s32 6, %v6860
        %v6862 = vrot.slane %v809, %v6861
        %6864 = vbcast.lane.b32.xlu0 %v6862, 256
        %v6865 = vpop.permute.xlu0 %6864
        %v6866 = vlaneseq
        %v6867 = vshrl.u32 %v6866, 7
        %v6868 = vsub.s32 7, %v6867
        %v6869 = vrot.slane %v809, %v6868
        %6871 = vbcast.lane.b32.xlu0 %v6869, 256
        %v6872 = vpop.permute.xlu0 %6871
        %v6881 = vmul.f32 %v6802, %v6823
        %v6882 = vmul.f32 %v6804, %v6830
        %v6883 = vmul.f32 %v6806, %v6837
        %v6884 = vmul.f32 %v6808, %v6844
        %v6885 = vmul.f32 %v6810, %v6851
        %v6886 = vmul.f32 %v6812, %v6858
        %v6887 = vmul.f32 %v6814, %v6865
        %v6888 = vmul.f32 %v6816, %v6872
        %6890 = vset.pattern.permute.xlu0 0
        %6891 = vperm.xlu0 %6890, %v6881
        %v6892 = vpop.permute.xlu0 %6891
        %6895 = vset.pattern.permute.xlu0 0
        %6896 = vperm.xlu0 %6895, %v6882
        %v6897 = vpop.permute.xlu0 %6896
        %6900 = vset.pattern.permute.xlu0 0
        %6901 = vperm.xlu0 %6900, %v6883
        %v6902 = vpop.permute.xlu0 %6901
        %6905 = vset.pattern.permute.xlu0 0
        %6906 = vperm.xlu0 %6905, %v6884
        %v6907 = vpop.permute.xlu0 %6906
        %6910 = vset.pattern.permute.xlu0 0
        %6911 = vperm.xlu0 %6910, %v6885
        %v6912 = vpop.permute.xlu0 %6911
        %6915 = vset.pattern.permute.xlu0 0
        %6916 = vperm.xlu0 %6915, %v6886
        %v6917 = vpop.permute.xlu0 %6916
        %6920 = vset.pattern.permute.xlu0 0
        %6921 = vperm.xlu0 %6920, %v6887
        %v6922 = vpop.permute.xlu0 %6921
        %6925 = vset.pattern.permute.xlu0 0
        %6926 = vperm.xlu0 %6925, %v6888
        %v6927 = vpop.permute.xlu0 %6926
        %v6929 = vmul.f32 %v6892, %v6295
        %v6930 = vmul.f32 %v6897, %v6298
        %v6931 = vmul.f32 %v6902, %v6303
        %v6932 = vmul.f32 %v6907, %v6306
        %v6933 = vmul.f32 %v6912, %v6311
        %v6934 = vmul.f32 %v6917, %v6314
        %v6935 = vmul.f32 %v6922, %v6319
        %v6936 = vmul.f32 %v6927, %v6322
        %vm6937 = vcmask 523520
        %v6938 = vsel %vm6937, %v6929, 0.0
        %v6939 = vrot.slane %v6938, 4
        %v6940 = vadd.f32 %v6938, %v6939
        %v6941 = vrot.slane %v6940, 2
        %v6942 = vadd.f32 %v6940, %v6941
        %v6943 = vrot.slane %v6942, 1
        %v6944 = vadd.f32 %v6942, %v6943
        %v6945 = vsel %vm6937, %v6930, 0.0
        %v6946 = vrot.slane %v6945, 4
        %v6947 = vadd.f32 %v6945, %v6946
        %v6948 = vrot.slane %v6947, 2
        %v6949 = vadd.f32 %v6947, %v6948
        %v6950 = vrot.slane %v6949, 1
        %v6951 = vadd.f32 %v6949, %v6950
        %v6952 = vsel %vm6937, %v6931, 0.0
        %v6953 = vrot.slane %v6952, 4
        %v6954 = vadd.f32 %v6952, %v6953
        %v6955 = vrot.slane %v6954, 2
        %v6956 = vadd.f32 %v6954, %v6955
        %v6957 = vrot.slane %v6956, 1
        %v6958 = vadd.f32 %v6956, %v6957
        %v6959 = vsel %vm6937, %v6932, 0.0
        %v6960 = vrot.slane %v6959, 4
        %v6961 = vadd.f32 %v6959, %v6960
        %v6962 = vrot.slane %v6961, 2
        %v6963 = vadd.f32 %v6961, %v6962
        %v6964 = vrot.slane %v6963, 1
        %v6965 = vadd.f32 %v6963, %v6964
        %v6966 = vsel %vm6937, %v6933, 0.0
        %v6967 = vrot.slane %v6966, 4
        %v6968 = vadd.f32 %v6966, %v6967
        %v6969 = vrot.slane %v6968, 2
        %v6970 = vadd.f32 %v6968, %v6969
        %v6971 = vrot.slane %v6970, 1
        %v6972 = vadd.f32 %v6970, %v6971
        %v6973 = vsel %vm6937, %v6934, 0.0
        %v6974 = vrot.slane %v6973, 4
        %v6975 = vadd.f32 %v6973, %v6974
        %v6976 = vrot.slane %v6975, 2
        %v6977 = vadd.f32 %v6975, %v6976
        %v6978 = vrot.slane %v6977, 1
        %v6979 = vadd.f32 %v6977, %v6978
        %v6980 = vsel %vm6937, %v6935, 0.0
        %v6981 = vrot.slane %v6980, 4
        %v6982 = vadd.f32 %v6980, %v6981
        %v6983 = vrot.slane %v6982, 2
        %v6984 = vadd.f32 %v6982, %v6983
        %v6985 = vrot.slane %v6984, 1
        %v6986 = vadd.f32 %v6984, %v6985
        %v6987 = vsel %vm6937, %v6936, 0.0
        %v6988 = vrot.slane %v6987, 4
        %v6989 = vadd.f32 %v6987, %v6988
        %v6990 = vrot.slane %v6989, 2
        %v6991 = vadd.f32 %v6989, %v6990
        %v6992 = vrot.slane %v6991, 1
        %v6993 = vadd.f32 %v6991, %v6992
        %7002 = vrot.lane.b32.xlu0 %v6415, 112
        %v7003 = vpop.permute.xlu0 %7002
        %7004 = vrot.lane.b32.xlu0 %v6416, 112
        %v7005 = vpop.permute.xlu0 %7004
        %7006 = vrot.lane.b32.xlu0 %v6417, 112
        %v7007 = vpop.permute.xlu0 %7006
        %7008 = vrot.lane.b32.xlu0 %v6418, 112
        %v7009 = vpop.permute.xlu0 %7008
        %7010 = vrot.lane.b32.xlu0 %v6419, 112
        %v7011 = vpop.permute.xlu0 %7010
        %7012 = vrot.lane.b32.xlu0 %v6420, 112
        %v7013 = vpop.permute.xlu0 %7012
        %7014 = vrot.lane.b32.xlu0 %v6421, 112
        %v7015 = vpop.permute.xlu0 %7014
        %7016 = vrot.lane.b32.xlu0 %v6422, 112
        %v7017 = vpop.permute.xlu0 %7016
        %v7026 = vsel %vm914, %v7003, 0.0
        %7027 = vadd.xlane.f32.xlu0 %v7026
        %v7028 = vpop.xlane.xlu0 %7027
        %v7029 = vsel %vm914, %v7005, 0.0
        %7030 = vadd.xlane.f32.xlu0 %v7029
        %v7031 = vpop.xlane.xlu0 %7030
        %v7032 = vsel %vm914, %v7007, 0.0
        %7033 = vadd.xlane.f32.xlu0 %v7032
        %v7034 = vpop.xlane.xlu0 %7033
        %v7035 = vsel %vm914, %v7009, 0.0
        %7036 = vadd.xlane.f32.xlu0 %v7035
        %v7037 = vpop.xlane.xlu0 %7036
        %v7038 = vsel %vm914, %v7011, 0.0
        %7039 = vadd.xlane.f32.xlu0 %v7038
        %v7040 = vpop.xlane.xlu0 %7039
        %v7041 = vsel %vm914, %v7013, 0.0
        %7042 = vadd.xlane.f32.xlu0 %v7041
        %v7043 = vpop.xlane.xlu0 %7042
        %v7044 = vsel %vm914, %v7015, 0.0
        %7045 = vadd.xlane.f32.xlu0 %v7044
        %v7046 = vpop.xlane.xlu0 %7045
        %v7047 = vsel %vm914, %v7017, 0.0
        %7048 = vadd.xlane.f32.xlu0 %v7047
        %v7049 = vpop.xlane.xlu0 %7048
        %v7050 = vmul.f32 %v7028, 0.25
        %v7051 = vmul.f32 %v7031, 0.25
        %v7052 = vmul.f32 %v7034, 0.25
        %v7053 = vmul.f32 %v7037, 0.25
        %v7054 = vmul.f32 %v7040, 0.25
        %v7055 = vmul.f32 %v7043, 0.25
        %v7056 = vmul.f32 %v7046, 0.25
        %v7057 = vmul.f32 %v7049, 0.25
        %v7058 = vadd.f32 %v7050, 20.0
        %v7059 = vadd.f32 %v7051, 20.0
        %v7060 = vadd.f32 %v7052, 20.0
        %v7061 = vadd.f32 %v7053, 20.0
        %v7062 = vadd.f32 %v7054, 20.0
        %v7063 = vadd.f32 %v7055, 20.0
        %v7064 = vadd.f32 %v7056, 20.0
        %v7065 = vadd.f32 %v7057, 20.0
        %v7066 = vmul.f32 %v7058, %v6469
        %v7067 = vmul.f32 %v7059, %v6476
        %v7068 = vmul.f32 %v7060, %v6483
        %v7069 = vmul.f32 %v7061, %v6490
        %v7070 = vmul.f32 %v7062, %v6497
        %v7071 = vmul.f32 %v7063, %v6504
        %v7072 = vmul.f32 %v7064, %v6511
        %v7073 = vmul.f32 %v7065, %v6518
        %v7074 = vsub.f32 %v7066, 20.0
        %v7075 = vsub.f32 %v7067, 20.0
        %v7076 = vsub.f32 %v7068, 20.0
        %v7077 = vsub.f32 %v7069, 20.0
        %v7078 = vsub.f32 %v7070, 20.0
        %v7079 = vsub.f32 %v7071, 20.0
        %v7080 = vsub.f32 %v7072, 20.0
        %v7081 = vsub.f32 %v7073, 20.0
        %7090 = vset.pattern.permute.xlu0 0
        %7091 = vperm.xlu0 %7090, %v7074
        %v7092 = vpop.permute.xlu0 %7091
        %7093 = vset.pattern.permute.xlu0 0
        %7094 = vperm.xlu0 %7093, %v7075
        %v7095 = vpop.permute.xlu0 %7094
        %7096 = vset.pattern.permute.xlu0 0
        %7097 = vperm.xlu0 %7096, %v7076
        %v7098 = vpop.permute.xlu0 %7097
        %7099 = vset.pattern.permute.xlu0 0
        %7100 = vperm.xlu0 %7099, %v7077
        %v7101 = vpop.permute.xlu0 %7100
        %7102 = vset.pattern.permute.xlu0 0
        %7103 = vperm.xlu0 %7102, %v7078
        %v7104 = vpop.permute.xlu0 %7103
        %7105 = vset.pattern.permute.xlu0 0
        %7106 = vperm.xlu0 %7105, %v7079
        %v7107 = vpop.permute.xlu0 %7106
        %7108 = vset.pattern.permute.xlu0 0
        %7109 = vperm.xlu0 %7108, %v7080
        %v7110 = vpop.permute.xlu0 %7109
        %7111 = vset.pattern.permute.xlu0 0
        %7112 = vperm.xlu0 %7111, %v7081
        %v7113 = vpop.permute.xlu0 %7112
        %v7114 = vlaneseq
        %v7115 = vshrl.u32 %v7114, 7
        %v7116 = vsub.s32 %v6576, %v7115
        %v7117 = vrot.slane %v7092, %v7116
        %v7118 = vlaneseq
        %v7119 = vshrl.u32 %v7118, 7
        %v7120 = vsub.s32 %v6576, %v7119
        %v7121 = vrot.slane %v7095, %v7120
        %v7122 = vlaneseq
        %v7123 = vshrl.u32 %v7122, 7
        %v7124 = vsub.s32 %v6576, %v7123
        %v7125 = vrot.slane %v7098, %v7124
        %v7126 = vlaneseq
        %v7127 = vshrl.u32 %v7126, 7
        %v7128 = vsub.s32 %v6576, %v7127
        %v7129 = vrot.slane %v7101, %v7128
        %v7130 = vlaneseq
        %v7131 = vshrl.u32 %v7130, 7
        %v7132 = vsub.s32 %v6576, %v7131
        %v7133 = vrot.slane %v7104, %v7132
        %v7134 = vlaneseq
        %v7135 = vshrl.u32 %v7134, 7
        %v7136 = vsub.s32 %v6576, %v7135
        %v7137 = vrot.slane %v7107, %v7136
        %v7138 = vlaneseq
        %v7139 = vshrl.u32 %v7138, 7
        %v7140 = vsub.s32 %v6576, %v7139
        %v7141 = vrot.slane %v7110, %v7140
        %v7142 = vlaneseq
        %v7143 = vshrl.u32 %v7142, 7
        %v7144 = vsub.s32 %v6576, %v7143
        %v7145 = vrot.slane %v7113, %v7144
        %v7146 = vsel %vm3885, %v7121, %v7117
        %v7147 = vsel %vm3888, %v7125, %v7146
        %v7148 = vsel %vm3891, %v7129, %v7147
        %v7149 = vsel %vm3894, %v7133, %v7148
        %v7150 = vsel %vm3897, %v7137, %v7149
        %v7151 = vsel %vm3900, %v7141, %v7150
        %v7152 = vsel %vm3903, %v7145, %v7151
        %v7154 = vsel %vm1750, %v7152, -inf
        %7155 = vmax.xlane.f32.xlu0 %v7154
        %v7156 = vpop.xlane.xlu0 %7155
        %v7158 = vlaneseq
        %v7159 = vshrl.u32 %v7158, 7
        %v7160 = vsub.s32 0, %v7159
        %v7161 = vrot.slane %v7156, %v7160
        %v7162 = vlaneseq
        %v7163 = vshrl.u32 %v7162, 7
        %v7164 = vsub.s32 1, %v7163
        %v7165 = vrot.slane %v7156, %v7164
        %v7166 = vlaneseq
        %v7167 = vshrl.u32 %v7166, 7
        %v7168 = vsub.s32 2, %v7167
        %v7169 = vrot.slane %v7156, %v7168
        %v7170 = vlaneseq
        %v7171 = vshrl.u32 %v7170, 7
        %v7172 = vsub.s32 3, %v7171
        %v7173 = vrot.slane %v7156, %v7172
        %v7174 = vlaneseq
        %v7175 = vshrl.u32 %v7174, 7
        %v7176 = vsub.s32 4, %v7175
        %v7177 = vrot.slane %v7156, %v7176
        %v7178 = vlaneseq
        %v7179 = vshrl.u32 %v7178, 7
        %v7180 = vsub.s32 5, %v7179
        %v7181 = vrot.slane %v7156, %v7180
        %v7182 = vlaneseq
        %v7183 = vshrl.u32 %v7182, 7
        %v7184 = vsub.s32 6, %v7183
        %v7185 = vrot.slane %v7156, %v7184
        %v7186 = vlaneseq
        %v7187 = vshrl.u32 %v7186, 7
        %v7188 = vsub.s32 7, %v7187
        %v7189 = vrot.slane %v7156, %v7188
        %v7198 = vsub.f32 %v7074, %v7161
        %v7199 = vsub.f32 %v7075, %v7165
        %v7200 = vsub.f32 %v7076, %v7169
        %v7201 = vsub.f32 %v7077, %v7173
        %v7202 = vsub.f32 %v7078, %v7177
        %v7203 = vsub.f32 %v7079, %v7181
        %v7204 = vsub.f32 %v7080, %v7185
        %v7205 = vsub.f32 %v7081, %v7189
        %v7206 = vmul.f32 %v7198, 1.442695
        %v7207 = vpow.pop %v7206
        %v7208 = vmul.f32 %v7199, 1.442695
        %v7209 = vpow.pop %v7208
        %v7210 = vmul.f32 %v7200, 1.442695
        %v7211 = vpow.pop %v7210
        %v7212 = vmul.f32 %v7201, 1.442695
        %v7213 = vpow.pop %v7212
        %v7214 = vmul.f32 %v7202, 1.442695
        %v7215 = vpow.pop %v7214
        %v7216 = vmul.f32 %v7203, 1.442695
        %v7217 = vpow.pop %v7216
        %v7218 = vmul.f32 %v7204, 1.442695
        %v7219 = vpow.pop %v7218
        %v7220 = vmul.f32 %v7205, 1.442695
        %v7221 = vpow.pop %v7220
        %7230 = vset.pattern.permute.xlu0 0
        %7231 = vperm.xlu0 %7230, %v7207
        %v7232 = vpop.permute.xlu0 %7231
        %7233 = vset.pattern.permute.xlu0 0
        %7234 = vperm.xlu0 %7233, %v7209
        %v7235 = vpop.permute.xlu0 %7234
        %7236 = vset.pattern.permute.xlu0 0
        %7237 = vperm.xlu0 %7236, %v7211
        %v7238 = vpop.permute.xlu0 %7237
        %7239 = vset.pattern.permute.xlu0 0
        %7240 = vperm.xlu0 %7239, %v7213
        %v7241 = vpop.permute.xlu0 %7240
        %7242 = vset.pattern.permute.xlu0 0
        %7243 = vperm.xlu0 %7242, %v7215
        %v7244 = vpop.permute.xlu0 %7243
        %7245 = vset.pattern.permute.xlu0 0
        %7246 = vperm.xlu0 %7245, %v7217
        %v7247 = vpop.permute.xlu0 %7246
        %7248 = vset.pattern.permute.xlu0 0
        %7249 = vperm.xlu0 %7248, %v7219
        %v7250 = vpop.permute.xlu0 %7249
        %7251 = vset.pattern.permute.xlu0 0
        %7252 = vperm.xlu0 %7251, %v7221
        %v7253 = vpop.permute.xlu0 %7252
        %v7254 = vlaneseq
        %v7255 = vshrl.u32 %v7254, 7
        %v7256 = vsub.s32 %v6576, %v7255
        %v7257 = vrot.slane %v7232, %v7256
        %v7258 = vlaneseq
        %v7259 = vshrl.u32 %v7258, 7
        %v7260 = vsub.s32 %v6576, %v7259
        %v7261 = vrot.slane %v7235, %v7260
        %v7262 = vlaneseq
        %v7263 = vshrl.u32 %v7262, 7
        %v7264 = vsub.s32 %v6576, %v7263
        %v7265 = vrot.slane %v7238, %v7264
        %v7266 = vlaneseq
        %v7267 = vshrl.u32 %v7266, 7
        %v7268 = vsub.s32 %v6576, %v7267
        %v7269 = vrot.slane %v7241, %v7268
        %v7270 = vlaneseq
        %v7271 = vshrl.u32 %v7270, 7
        %v7272 = vsub.s32 %v6576, %v7271
        %v7273 = vrot.slane %v7244, %v7272
        %v7274 = vlaneseq
        %v7275 = vshrl.u32 %v7274, 7
        %v7276 = vsub.s32 %v6576, %v7275
        %v7277 = vrot.slane %v7247, %v7276
        %v7278 = vlaneseq
        %v7279 = vshrl.u32 %v7278, 7
        %v7280 = vsub.s32 %v6576, %v7279
        %v7281 = vrot.slane %v7250, %v7280
        %v7282 = vlaneseq
        %v7283 = vshrl.u32 %v7282, 7
        %v7284 = vsub.s32 %v6576, %v7283
        %v7285 = vrot.slane %v7253, %v7284
        %v7286 = vsel %vm3885, %v7261, %v7257
        %v7287 = vsel %vm3888, %v7265, %v7286
        %v7288 = vsel %vm3891, %v7269, %v7287
        %v7289 = vsel %vm3894, %v7273, %v7288
        %v7290 = vsel %vm3897, %v7277, %v7289
        %v7291 = vsel %vm3900, %v7281, %v7290
        %v7292 = vsel %vm3903, %v7285, %v7291
        %v7294 = vsel %vm1750, %v7292, 0.0
        %7295 = vadd.xlane.f32.xlu0 %v7294
        %v7296 = vpop.xlane.xlu0 %7295
        %v7298 = vlaneseq
        %v7299 = vshrl.u32 %v7298, 7
        %v7300 = vsub.s32 0, %v7299
        %v7301 = vrot.slane %v7296, %v7300
        %v7302 = vlaneseq
        %v7303 = vshrl.u32 %v7302, 7
        %v7304 = vsub.s32 1, %v7303
        %v7305 = vrot.slane %v7296, %v7304
        %v7306 = vlaneseq
        %v7307 = vshrl.u32 %v7306, 7
        %v7308 = vsub.s32 2, %v7307
        %v7309 = vrot.slane %v7296, %v7308
        %v7310 = vlaneseq
        %v7311 = vshrl.u32 %v7310, 7
        %v7312 = vsub.s32 3, %v7311
        %v7313 = vrot.slane %v7296, %v7312
        %v7314 = vlaneseq
        %v7315 = vshrl.u32 %v7314, 7
        %v7316 = vsub.s32 4, %v7315
        %v7317 = vrot.slane %v7296, %v7316
        %v7318 = vlaneseq
        %v7319 = vshrl.u32 %v7318, 7
        %v7320 = vsub.s32 5, %v7319
        %v7321 = vrot.slane %v7296, %v7320
        %v7322 = vlaneseq
        %v7323 = vshrl.u32 %v7322, 7
        %v7324 = vsub.s32 6, %v7323
        %v7325 = vrot.slane %v7296, %v7324
        %v7326 = vlaneseq
        %v7327 = vshrl.u32 %v7326, 7
        %v7328 = vsub.s32 7, %v7327
        %v7329 = vrot.slane %v7296, %v7328
        %v7338 = vrcp.pop %v7301
        %v7339 = vmul.f32 %v7207, %v7338
        %v7340 = vrcp.pop %v7305
        %v7341 = vmul.f32 %v7209, %v7340
        %v7342 = vrcp.pop %v7309
        %v7343 = vmul.f32 %v7211, %v7342
        %v7344 = vrcp.pop %v7313
        %v7345 = vmul.f32 %v7213, %v7344
        %v7346 = vrcp.pop %v7317
        %v7347 = vmul.f32 %v7215, %v7346
        %v7348 = vrcp.pop %v7321
        %v7349 = vmul.f32 %v7217, %v7348
        %v7350 = vrcp.pop %v7325
        %v7351 = vmul.f32 %v7219, %v7350
        %v7352 = vrcp.pop %v7329
        %v7353 = vmul.f32 %v7221, %v7352
        %v7354 = vmul.f32 %v7339, %v6823
        %v7355 = vmul.f32 %v7341, %v6830
        %v7356 = vmul.f32 %v7343, %v6837
        %v7357 = vmul.f32 %v7345, %v6844
        %v7358 = vmul.f32 %v7347, %v6851
        %v7359 = vmul.f32 %v7349, %v6858
        %v7360 = vmul.f32 %v7351, %v6865
        %v7361 = vmul.f32 %v7353, %v6872
        %7363 = vset.pattern.permute.xlu0 0
        %7364 = vperm.xlu0 %7363, %v7354
        %v7365 = vpop.permute.xlu0 %7364
        %7368 = vset.pattern.permute.xlu0 0
        %7369 = vperm.xlu0 %7368, %v7355
        %v7370 = vpop.permute.xlu0 %7369
        %7373 = vset.pattern.permute.xlu0 0
        %7374 = vperm.xlu0 %7373, %v7356
        %v7375 = vpop.permute.xlu0 %7374
        %7378 = vset.pattern.permute.xlu0 0
        %7379 = vperm.xlu0 %7378, %v7357
        %v7380 = vpop.permute.xlu0 %7379
        %7383 = vset.pattern.permute.xlu0 0
        %7384 = vperm.xlu0 %7383, %v7358
        %v7385 = vpop.permute.xlu0 %7384
        %7388 = vset.pattern.permute.xlu0 0
        %7389 = vperm.xlu0 %7388, %v7359
        %v7390 = vpop.permute.xlu0 %7389
        %7393 = vset.pattern.permute.xlu0 0
        %7394 = vperm.xlu0 %7393, %v7360
        %v7395 = vpop.permute.xlu0 %7394
        %7398 = vset.pattern.permute.xlu0 0
        %7399 = vperm.xlu0 %7398, %v7361
        %v7400 = vpop.permute.xlu0 %7399
        %v7402 = vmul.f32 %v7365, %v6295
        %v7403 = vmul.f32 %v7370, %v6298
        %v7404 = vmul.f32 %v7375, %v6303
        %v7405 = vmul.f32 %v7380, %v6306
        %v7406 = vmul.f32 %v7385, %v6311
        %v7407 = vmul.f32 %v7390, %v6314
        %v7408 = vmul.f32 %v7395, %v6319
        %v7409 = vmul.f32 %v7400, %v6322
        %vm7410 = vcmask 785920
        %v7411 = vsel %vm7410, %v7402, 0.0
        %v7412 = vrot.slane %v7411, 4
        %v7413 = vadd.f32 %v7411, %v7412
        %v7414 = vrot.slane %v7413, 2
        %v7415 = vadd.f32 %v7413, %v7414
        %v7416 = vrot.slane %v7415, 1
        %v7417 = vadd.f32 %v7415, %v7416
        %v7418 = vsel %vm7410, %v7403, 0.0
        %v7419 = vrot.slane %v7418, 4
        %v7420 = vadd.f32 %v7418, %v7419
        %v7421 = vrot.slane %v7420, 2
        %v7422 = vadd.f32 %v7420, %v7421
        %v7423 = vrot.slane %v7422, 1
        %v7424 = vadd.f32 %v7422, %v7423
        %v7425 = vsel %vm7410, %v7404, 0.0
        %v7426 = vrot.slane %v7425, 4
        %v7427 = vadd.f32 %v7425, %v7426
        %v7428 = vrot.slane %v7427, 2
        %v7429 = vadd.f32 %v7427, %v7428
        %v7430 = vrot.slane %v7429, 1
        %v7431 = vadd.f32 %v7429, %v7430
        %v7432 = vsel %vm7410, %v7405, 0.0
        %v7433 = vrot.slane %v7432, 4
        %v7434 = vadd.f32 %v7432, %v7433
        %v7435 = vrot.slane %v7434, 2
        %v7436 = vadd.f32 %v7434, %v7435
        %v7437 = vrot.slane %v7436, 1
        %v7438 = vadd.f32 %v7436, %v7437
        %v7439 = vsel %vm7410, %v7406, 0.0
        %v7440 = vrot.slane %v7439, 4
        %v7441 = vadd.f32 %v7439, %v7440
        %v7442 = vrot.slane %v7441, 2
        %v7443 = vadd.f32 %v7441, %v7442
        %v7444 = vrot.slane %v7443, 1
        %v7445 = vadd.f32 %v7443, %v7444
        %v7446 = vsel %vm7410, %v7407, 0.0
        %v7447 = vrot.slane %v7446, 4
        %v7448 = vadd.f32 %v7446, %v7447
        %v7449 = vrot.slane %v7448, 2
        %v7450 = vadd.f32 %v7448, %v7449
        %v7451 = vrot.slane %v7450, 1
        %v7452 = vadd.f32 %v7450, %v7451
        %v7453 = vsel %vm7410, %v7408, 0.0
        %v7454 = vrot.slane %v7453, 4
        %v7455 = vadd.f32 %v7453, %v7454
        %v7456 = vrot.slane %v7455, 2
        %v7457 = vadd.f32 %v7455, %v7456
        %v7458 = vrot.slane %v7457, 1
        %v7459 = vadd.f32 %v7457, %v7458
        %v7460 = vsel %vm7410, %v7409, 0.0
        %v7461 = vrot.slane %v7460, 4
        %v7462 = vadd.f32 %v7460, %v7461
        %v7463 = vrot.slane %v7462, 2
        %v7464 = vadd.f32 %v7462, %v7463
        %v7465 = vrot.slane %v7464, 1
        %v7466 = vadd.f32 %v7464, %v7465
        %v7475 = vsel %vm3885, %v6951, %v6944
        %v7476 = vsel %vm3888, %v6958, %v7475
        %v7477 = vsel %vm3891, %v6965, %v7476
        %v7478 = vsel %vm3894, %v6972, %v7477
        %v7479 = vsel %vm3897, %v6979, %v7478
        %v7480 = vsel %vm3900, %v6986, %v7479
        %v7481 = vsel %vm3903, %v6993, %v7480
        %7482 = vrot.lane.b32.xlu0 %v7481, 96
        %v7483 = vpop.permute.xlu0 %7482
        %v7493 = vsel %vm3885, %v7424, %v7417
        %v7494 = vsel %vm3888, %v7431, %v7493
        %v7495 = vsel %vm3891, %v7438, %v7494
        %v7496 = vsel %vm3894, %v7445, %v7495
        %v7497 = vsel %vm3897, %v7452, %v7496
        %v7498 = vsel %vm3900, %v7459, %v7497
        %v7499 = vsel %vm3903, %v7466, %v7498
        %7500 = vrot.lane.b32.xlu0 %v7499, 96
        %v7501 = vpop.permute.xlu0 %7500
        %v7503 = vsel %vm1114, %v7483, %v7501
        %v7504 = vpack.c.bf16 %v7503, %v7503
        %v7513 = vunpack.c.l.b16 %v800
        %v7514 = vunpack.c.l.b16 %v801
        %v7515 = vunpack.c.l.b16 %v802
        %v7516 = vunpack.c.l.b16 %v803
        %v7517 = vunpack.c.l.b16 %v804
        %v7518 = vunpack.c.l.b16 %v805
        %v7519 = vunpack.c.l.b16 %v806
        %v7520 = vunpack.c.l.b16 %v807
        %v7521 = vpack.c.b16 %v7514, %v7513
        %v7522 = vpack.c.b16 %v7516, %v7515
        %v7523 = vpack.c.b16 %v7518, %v7517
        %v7524 = vpack.c.b16 %v7520, %v7519
        %7529 = vrot.lane.b32.xlu0 %v886, 32
        %v7530 = vpop.permute.xlu0 %7529
        %v7533 = vsel %vm4029, %v7504, 0
        %7535 = vmatprep.subr.bf16.mxu0 0
        %7536 = vmatpush1.bf16.msra.mxu0 %v7521
        %7537 = vmatprep.subr.bf16.mxu0 0
        %7538 = vmatpush1.bf16.msra.mxu0 %v7522
        %7539 = vmatprep.subr.bf16.mxu0 0
        %7540 = vmatpush1.bf16.msra.mxu0 %v7523
        %7541 = vmatprep.subr.bf16.mxu0 0
        %7542 = vmatpush1.bf16.msra.mxu0 %v7524
        %7543 = vmatprep.subr.bf16.mxu0 0
        %7544 = vmatpush1.bf16.msra.mxu0 0
        %7545 = vmatprep.subr.bf16.mxu0 0
        %7546 = vmatpush1.bf16.msra.mxu0 0
        %7547 = vmatprep.subr.bf16.mxu0 0
        %7548 = vmatpush1.bf16.msra.mxu0 0
        %7549 = vmatprep.subr.bf16.mxu0 0
        %7550 = vmatpush1.bf16.msra.mxu0 0
        %7551 = vmatprep.subr.bf16.mxu0 0
        %7552 = vmatpush1.bf16.msra.mxu0 0
        %7553 = vmatprep.subr.bf16.mxu0 0
        %7554 = vmatpush1.bf16.msra.mxu0 0
        %7555 = vmatprep.subr.bf16.mxu0 0
        %7556 = vmatpush1.bf16.msra.mxu0 0
        %7557 = vmatprep.subr.bf16.mxu0 0
        %7558 = vmatpush1.bf16.msra.mxu0 0
        %7559 = vmatprep.subr.bf16.mxu0 0
        %7560 = vmatpush1.bf16.msra.mxu0 0
        %7561 = vmatprep.subr.bf16.mxu0 0
        %7562 = vmatpush1.bf16.msra.mxu0 0
        %7563 = vmatprep.subr.bf16.mxu0 0
        %7564 = vmatpush1.bf16.msra.mxu0 0
        %7565 = vmatprep.subr.bf16.mxu0 0
        %7566 = vmatpush1.bf16.msra.mxu0 0
        %7567 = vmatprep.mubr.bf16.mxu0 0
        %7568 = vmatmul.mubr.bf16.gmra.mrb[0].mxu0 %v7533
        %v7569 = vpop.f32.mrb[0].mxu0
        %v7570 = vadd.f32 %v7530, %v7569
        %v7571 = vpop.f32.mrb[0].mxu0
        %v7572 = vpop.f32.mrb[0].mxu0
        %v7573 = vpop.f32.mrb[0].mxu0
        %7574 = vdwg.mxu0
        %v7575 = vadd.f32 %v702, %v6192
        %v7576 = vadd.f32 %v7575, %v7570
        %v7577 = vmul.f32 %v7576, 0.57735026
        %7578 = vst.msk [vmem:[%s690] sm:$0xff] %vm1114, %v7577
        %s7579 = sand.u32 %s313, 1
        %s7580 = scalar_lea.sflag [#allocation4], %s7579
        %s7581 = sand.u32 %s313, 1
        %s7582 = smul.addr %s7581, 8
        %s7583 = scalar_lea.vmem [#allocation20], %s7582
        %s7584 = sand.u32 %s339, 1
        %s7585 = scalar_lea.sflag [#allocation22], %s7584
        %s7586 = sand.u32 %s339, 1
        %s7587 = smul.addr %s7586, 8
        %s7588 = scalar_lea.vmem [#allocation21], %s7587
        // Predicated region
        $region109: #{tpu_custom_call.1} parent=63 // pred_check
          %p7589 = pneg %p323
        $region110: #{tpu_custom_call.1} parent=63 // pred_check_branch
          %7591 = sbr.rel (%p7589) target = $region112
        $region111: #{tpu_custom_call.1} parent=63 // pred_region
          %s7593 = ssub.s32 128, 128
          %7594 = vsyncadd %s7580, %s7593
          %s7595 = smul.addr %s44, 128
          %s7596 = scalar_lea.hbm %s11, %s7595
          %s7598 = sshll.u32 %s7583, 4
          %s7599 = int_to_ptr.vmem [resolvable:$true] %s7598
          %7601 = dma.vmem_to_hbm [thread:$0]  %s7599, 128, %s7596, %s7580
        $region112: #{tpu_custom_call.1} parent=63 // pred_fallthru
          _
        // Predicated region
        $region113: #{tpu_custom_call.1} parent=63 // pred_check
          %p7602 = pneg %p349
        $region114: #{tpu_custom_call.1} parent=63 // pred_check_branch
          %7604 = sbr.rel (%p7602) target = $region116
        $region115: #{tpu_custom_call.1} parent=63 // pred_region
          %s7606 = ssub.s32 128, 128
          %7607 = vsyncadd %s7585, %s7606
          %s7608 = smul.addr %s44, 128
          %s7609 = scalar_lea.hbm %s12, %s7608
          %s7611 = sshll.u32 %s7588, 4
          %s7612 = int_to_ptr.vmem [resolvable:$true] %s7611
          %7614 = dma.vmem_to_hbm [thread:$0]  %s7612, 128, %s7609, %s7585
        $region116: #{tpu_custom_call.1} parent=63 // pred_fallthru
          _
      $region64: #{tpu_custom_call.1} parent=5 // pred_fallthru
        _
      %p7615 = scmp.le.s32.totalorder 2, %s39
      // Predicated region
      $region117: #{tpu_custom_call.1} parent=5 // pred_check
        %p7616 = pneg %p7615
      $region118: #{tpu_custom_call.1} parent=5 // pred_check_branch
        %7618 = sbr.rel (%p7616) target = $region120
      $region119: #{tpu_custom_call.1} parent=5 // pred_region
        %s7619 = ssub.s32 %s39, 2
        // Predicated region
        $region121: #{tpu_custom_call.1} parent=119 // pred_check
          %p7620 = pneg %p329
        $region122: #{tpu_custom_call.1} parent=119 // pred_check_branch
          %7622 = sbr.rel (%p7620) target = $region124
        $region123: #{tpu_custom_call.1} parent=119 // pred_region
          %s7623 = sand.u32 %s314, 1
          %s7624 = scalar_lea.sflag [#allocation4], %s7623
          %s7625 = sand.u32 %s314, 1
          %s7626 = smul.addr %s7625, 8
          %s7627 = scalar_lea.vmem [#allocation20], %s7626
          %7628 = dma.done %s7624, 128
        $region124: #{tpu_custom_call.1} parent=119 // pred_fallthru
          _
        // Predicated region
        $region125: #{tpu_custom_call.1} parent=119 // pred_check
          %p7629 = pneg %p355
        $region126: #{tpu_custom_call.1} parent=119 // pred_check_branch
          %7631 = sbr.rel (%p7629) target = $region128
        $region127: #{tpu_custom_call.1} parent=119 // pred_region
          %s7632 = sand.u32 %s340, 1
          %s7633 = scalar_lea.sflag [#allocation22], %s7632
          %s7634 = sand.u32 %s340, 1
          %s7635 = smul.addr %s7634, 8
          %s7636 = scalar_lea.vmem [#allocation21], %s7635
          %7637 = dma.done %s7633, 128
        $region128: #{tpu_custom_call.1} parent=119 // pred_fallthru
          _
      $region120: #{tpu_custom_call.1} parent=5 // pred_fallthru
        _
    $region6: #{tpu_custom_call.1} parent=1 // loop_footer
      %s43 = sadd.s32 1, %s39
    $region7: #{tpu_custom_call.1} parent=1 // loop_footer_branch
      %38 = sbr.rel target = $region3
    $region8: #{tpu_custom_call.1} parent=1 // loop_exit
      _
    %7638 = vsyncpa [#allocation3], 1
    %s7639 = scalar_lea.sflag [#allocation3], 1
    %7640 = vsyncpa %s7639, 1
    %7641 = vsyncpa [#allocation6], 1
    %s7642 = scalar_lea.sflag [#allocation6], 1
    %7643 = vsyncpa %s7642, 1
    %7644 = vsyncpa [#allocation9], 1
    %s7645 = scalar_lea.sflag [#allocation9], 1
    %7646 = vsyncpa %s7645, 1
    %7647 = vsyncpa [#allocation12], 1
    %s7648 = scalar_lea.sflag [#allocation12], 1
    %7649 = vsyncpa %s7648, 1
    %7650 = vsyncpa [#allocation15], 1
    %7651 = vsyncpa [#allocation18], 1
    %7652 = vsyncpa [#allocation4], 1
    %s7653 = scalar_lea.sflag [#allocation4], 1
    %7654 = vsyncpa %s7653, 1
    %7655 = vsyncpa [#allocation22], 1
    %s7656 = scalar_lea.sflag [#allocation22], 1
    %7657 = vsyncpa %s7656, 1

</llo_original>
